<compile_context>
chip_gen: v5e
topology: v5e:2x2
jax: 0.10.0
libtpu: 0.0.40
codegen_flags: <defaults>
</compile_context>

<pallas_src>
import functools

import jax
import jax.numpy as jnp
from jax.experimental import pallas as pl
from jax.experimental.pallas import tpu as pltpu

VMEM_LIMIT = 32 * 1024 * 1024  # safe scoped-VMEM cap on v5e / v6e / v7x
ROW_TILE = 256                 # row tile for the large matmul-style calls


# ----------------------------------------------------------------------------
# Small helpers for single-block (tiny) calls
# ----------------------------------------------------------------------------
def _full_spec(shape):
    n = len(shape)
    return pl.BlockSpec(shape, lambda i: (0,) * n)


def _scalar_loss_call(kernel, *args):
    out = pl.pallas_call(
        kernel,
        grid=(1,),
        in_specs=[_full_spec(a.shape) for a in args],
        out_specs=_full_spec((1, 1)),
        out_shape=jax.ShapeDtypeStruct((1, 1), jnp.float32),
        compiler_params=pltpu.CompilerParams(
            dimension_semantics=("arbitrary",), vmem_limit_bytes=VMEM_LIMIT),
    )(*args)
    return out[0, 0]


# ----------------------------------------------------------------------------
# Kernels
# ----------------------------------------------------------------------------
def _linear_kernel(x_ref, w_ref, b_ref, o_ref, *, relu):
    # bf16 MXU matmul, f32 accumulate, f32 bias / activation.
    y = jnp.dot(x_ref[...].astype(jnp.bfloat16), w_ref[...],
                preferred_element_type=jnp.float32)
    y = y + b_ref[...]
    if relu:
        y = jnp.maximum(y, 0.0)
    o_ref[...] = y.astype(o_ref.dtype)


def _proj_head_norm_kernel(x_ref, w1_ref, b1_ref, w2_ref, b2_ref, o_ref):
    # Fused ProjectionHead + F.normalize:
    #   Linear -> (BN identity at init) -> ReLU -> Linear -> L2 normalize.
    # TODO(synk): BatchNorm treated as identity (fresh init stats / eval mode).
    h = jnp.dot(x_ref[...].astype(jnp.bfloat16), w1_ref[...],
                preferred_element_type=jnp.float32) + b1_ref[...]
    h = jnp.maximum(h, 0.0)
    y = jnp.dot(h.astype(jnp.bfloat16), w2_ref[...],
                preferred_element_type=jnp.float32) + b2_ref[...]
    # x / max(||x||, 1e-12)  ==  x * rsqrt(max(sumsq, 1e-24))
    ss = jnp.sum(y * y, axis=-1, keepdims=True)
    o_ref[...] = y * jax.lax.rsqrt(jnp.maximum(ss, 1e-24))


def _matmul_nt_kernel(a_ref, b_ref, o_ref, *, scale):
    # A @ B.T * scale  (kept in f32: tiny similarity matrices feed exp())
    o_ref[...] = jax.lax.dot_general(
        a_ref[...], b_ref[...],
        dimension_numbers=(((1,), (1,)), ((), ())),
        preferred_element_type=jnp.float32) * scale


def _self_distill_kernel(q_ref, k_ref, o_ref, *, inv_t, rows):
    q = q_ref[...] * inv_t
    k = k_ref[...] * inv_t
    q_max = jnp.max(q, axis=-1, keepdims=True)
    q_shift = q - q_max
    log_q = q_shift - jnp.log(jnp.sum(jnp.exp(q_shift), axis=-1, keepdims=True))
    k_max = jnp.max(k, axis=-1, keepdims=True)
    k_exp = jnp.exp(k - k_max)
    k_den = jnp.sum(k_exp, axis=-1, keepdims=True)
    soft_k = k_exp * pl.reciprocal(k_den, approx=True)
    per_row = jnp.sum(-soft_k * log_q, axis=-1, keepdims=True)       # (R, 1)
    o_ref[...] = jnp.sum(per_row, keepdims=True) * (1.0 / rows)      # scalar mean


def _sup_contra_kernel(g_ref, mask_ref, o_ref, *, scale, rows):
    # Fused: logits = g @ g.T * scale ; SupCon loss with diagonal masked out.
    g = g_ref[...]
    logits = jax.lax.dot_general(
        g, g, dimension_numbers=(((1,), (1,)), ((), ())),
        preferred_element_type=jnp.float32) * scale
    R = logits.shape[0]
    rid = jax.lax.broadcasted_iota(jnp.int32, (R, R), 0)
    cid = jax.lax.broadcasted_iota(jnp.int32, (R, R), 1)
    inv_diag = (rid != cid).astype(jnp.float32)
    m = mask_ref[...] * inv_diag
    # Row-max shift: mathematically identical (shift-invariant), numerically safe.
    lmax = jnp.max(logits, axis=1, keepdims=True)
    shifted = logits - lmax
    exp_logits = jnp.exp(shifted) * inv_diag
    log_prob = shifted - jnp.log(jnp.sum(exp_logits, axis=1, keepdims=True))
    # Guard against singleton components (mask row all zero) producing NaN.
    denom = jnp.maximum(jnp.sum(m, axis=1, keepdims=True), 1e-12)
    mean_log_prob_pos = (jnp.sum(m * log_prob, axis=1, keepdims=True)
                         * pl.reciprocal(denom, approx=True))
    o_ref[...] = -jnp.sum(mean_log_prob_pos, keepdims=True) * (1.0 / rows)


# ----------------------------------------------------------------------------
# Kernel wrappers
# ----------------------------------------------------------------------------
def linear(x, w, b, relu=False, tile=ROW_TILE):
    M, K = x.shape
    N = w.shape[1]
    tm = M if M <= tile else tile
    grid = (pl.cdiv(M, tm),)
    return pl.pallas_call(
        functools.partial(_linear_kernel, relu=relu),
        grid=grid,
        in_specs=[pl.BlockSpec((tm, K), lambda i: (i, 0)),
                  pl.BlockSpec((K, N), lambda i: (0, 0)),
                  pl.BlockSpec((1, N), lambda i: (0, 0))],
        out_specs=pl.BlockSpec((tm, N), lambda i: (i, 0)),
        out_shape=jax.ShapeDtypeStruct((M, N), jnp.float32),
        compiler_params=pltpu.CompilerParams(
            dimension_semantics=("parallel",), vmem_limit_bytes=VMEM_LIMIT),
    )(x, w, b)


def projection_head_norm(x, p, tile=ROW_TILE):
    """Fused projection head + L2 normalize, row-tiled over a parallel grid."""
    M, K = x.shape
    Dh = p['w1'].shape[1]
    Do = p['w2'].shape[1]
    tm = M if M <= tile else tile
    grid = (pl.cdiv(M, tm),)
    return pl.pallas_call(
        _proj_head_norm_kernel,
        grid=grid,
        in_specs=[pl.BlockSpec((tm, K), lambda i: (i, 0)),
                  pl.BlockSpec((K, Dh), lambda i: (0, 0)),
                  pl.BlockSpec((1, Dh), lambda i: (0, 0)),
                  pl.BlockSpec((Dh, Do), lambda i: (0, 0)),
                  pl.BlockSpec((1, Do), lambda i: (0, 0))],
        out_specs=pl.BlockSpec((tm, Do), lambda i: (i, 0)),
        out_shape=jax.ShapeDtypeStruct((M, Do), jnp.float32),
        compiler_params=pltpu.CompilerParams(
            dimension_semantics=("parallel",), vmem_limit_bytes=VMEM_LIMIT),
    )(x, p['w1'], p['b1'], p['w2'], p['b2'])


def matmul_nt(a, b, scale=1.0):
    out_shape = jax.ShapeDtypeStruct((a.shape[0], b.shape[0]), jnp.float32)
    return pl.pallas_call(
        functools.partial(_matmul_nt_kernel, scale=scale),
        grid=(1,),
        in_specs=[_full_spec(a.shape), _full_spec(b.shape)],
        out_specs=_full_spec(out_shape.shape),
        out_shape=out_shape,
        compiler_params=pltpu.CompilerParams(
            dimension_semantics=("arbitrary",), vmem_limit_bytes=VMEM_LIMIT),
    )(a, b)


def self_distill(q, k, t=0.2):
    kern = functools.partial(_self_distill_kernel, inv_t=1.0 / t, rows=q.shape[0])
    return _scalar_loss_call(kern, q, k)


def sup_contra_fused(g, mask, *, scale):
    kern = functools.partial(_sup_contra_kernel, scale=scale, rows=g.shape[0])
    return _scalar_loss_call(kern, g, mask)


# ----------------------------------------------------------------------------
# Glue in plain JAX (no clean Pallas equivalent)
# ----------------------------------------------------------------------------
def _remove_diag(prob):
    # torch.masked_select(prob, ~eye).reshape(R, C-1): row i drops column i.
    R, C = prob.shape
    cols = jnp.arange(C - 1)
    rows = jnp.arange(R)[:, None]
    idx = cols[None, :] + (cols[None, :] >= rows).astype(jnp.int32)
    return jnp.take_along_axis(prob, idx, axis=1)


def build_connected_component(sim):
    # TODO(synk): scipy connected_components replaced by log-depth transitive
    # closure (repeated boolean squaring) in plain JAX.
    b = sim.shape[0]
    dist = sim - 2.0 * jnp.eye(b, dtype=sim.dtype)
    nn = jnp.argmax(dist, axis=1)                      # topk(k=1) neighbor
    rows = jnp.arange(b)
    adj = jnp.zeros((b, b), dtype=bool)
    adj = adj.at[rows, nn].set(True).at[nn, rows].set(True)
    adj = adj | jnp.eye(b, dtype=bool)
    reach = adj.astype(jnp.float32)
    n_iter = max(1, (b - 1).bit_length())              # path length doubles per squaring

    def body(_, r):
        return jnp.minimum(r + jnp.dot(r, r), 1.0)

    reach = jax.lax.fori_loop(0, n_iter, body, reach)
    return (reach > 0.5).astype(jnp.float32)


def _roi_align_simple(x, coords):
    # x: (N, C, H, W) NCHW, coords: (N, 4) normalized (x1, y1, x2, y2).
    # TODO(synk): simplified roi_align — one bilinear sample per bin center
    # (sampling_ratio=1) with clamped borders; batch index assumed == row index
    # (which is exactly how the original forward builds coords_with_idxs).
    N, C, H, W = x.shape

    def one(feat, box):
        x1, y1, x2, y2 = box[0] * W, box[1] * H, box[2] * W, box[3] * H
        bin_w = (x2 - x1) / W
        bin_h = (y2 - y1) / H
        ys = jnp.clip(y1 + (jnp.arange(H) + 0.5) * bin_h - 0.5, 0.0, H - 1.0)
        xs = jnp.clip(x1 + (jnp.arange(W) + 0.5) * bin_w - 0.5, 0.0, W - 1.0)
        y0 = jnp.floor(ys)
        x0 = jnp.floor(xs)
        y0i = y0.astype(jnp.int32)
        x0i = x0.astype(jnp.int32)
        y1i = jnp.clip(y0i + 1, 0, H - 1)
        x1i = jnp.clip(x0i + 1, 0, W - 1)
        wy1 = (ys - y0)[:, None]
        wy0 = 1.0 - wy1
        wx1 = (xs - x0)[None, :]
        wx0 = 1.0 - wx1
        f00 = feat[:, y0i][:, :, x0i]
        f01 = feat[:, y0i][:, :, x1i]
        f10 = feat[:, y1i][:, :, x0i]
        f11 = feat[:, y1i][:, :, x1i]
        return f00 * (wy0 * wx0) + f01 * (wy0 * wx1) + f10 * (wy1 * wx0) + f11 * (wy1 * wx1)

    return jax.vmap(one)(x, coords)


def invaug(x, coords, flags):
    aligned = _roi_align_simple(x, coords)
    flipped = aligned[..., ::-1]
    return jnp.where(flags[:, None, None, None], flipped, aligned)


# ----------------------------------------------------------------------------
# Synthetic backbone (stands in for the pretrained ViT)
# ----------------------------------------------------------------------------
def backbone_forward(x, net, cfg):
    b, C, H, W = x.shape
    ps = cfg['patch_size']
    ph, pw = H // ps, W // ps
    D = cfg['dim_input']

    # NHWC patchify so the channel/patch axis is lane-contiguous before the matmul.
    # TODO(synk): patch gather kept in XLA (one transpose copy); a BlockSpec
    # index_map gather would need (ps, ps) blocks that violate the (8,128) tiling.
    xh = jnp.transpose(x, (0, 2, 3, 1))                               # (b, H, W, C)
    patches = xh.reshape(b, ph, ps, pw, ps, C)
    patches = jnp.transpose(patches, (0, 1, 3, 2, 4, 5)).reshape(b * ph * pw, ps * ps * C)
    tok = linear(patches, net['w_patch'], net['b_patch']).reshape(b, ph * pw, D)

    cls = jnp.broadcast_to(net['cls_token'], (b, 1, D))
    tokens = jnp.concatenate([cls, tok], axis=1)
    T = tokens.shape[1]

    # Only the K projection of the qkv linear is consumed downstream (Q/V are
    # never used), so slice the K columns and skip 2/3 of the matmul + writes.
    w_k = net['w_qkv'][:, D:2 * D]
    b_k = net['b_qkv'][:, D:2 * D]
    k = linear(tokens.reshape(b * T, D), w_k, b_k).reshape(b, T, D)

    feat = linear(jnp.mean(tokens, axis=1), net['w_out'], net['b_out'])
    return feat, k, T


# ----------------------------------------------------------------------------
# WCL forward
# ----------------------------------------------------------------------------
def wcl_forward(params, x1, x2, coords, flags, *, cfg, t=0.1):
    patch_size = cfg['patch_size']
    D = cfg['dim_input']
    b = x1.shape[0]
    nb_im = b

    # TODO(synk): get_last_selfattention is only used for shape metadata in the
    # original forward; the attention map itself is never consumed, so skipped.
    feat_bb1, k1, nb_tokens = backbone_forward(x1, params['net'], cfg)
    feat_bb2, k2, _ = backbone_forward(x2, params['net'], cfg)

    patch_nb = 14 if patch_size == 16 else 28
    npix = patch_nb * patch_nb

    # 2D (dense) path: the original qkv reshape/permute chain on the K slice is
    # an exact identity, so k[:, 1:, :] is already in (pixel-row, channel) order.
    # Both views batched into one fused head2d + L2-normalize call.
    kk = jnp.concatenate([k1[:, 1:, :], k2[:, 1:, :]], axis=0)        # (2b, 196, D)
    kk = kk.reshape(2 * nb_im * npix, D)
    p2d = projection_head_norm(kk, params['head2d'])                  # (2b*196, dim)
    dim_out = p2d.shape[1]
    p2d = p2d.reshape(2 * nb_im, patch_nb, patch_nb, dim_out)
    feat1_2d = jnp.transpose(p2d[:nb_im], (0, 3, 1, 2))               # NCHW
    feat2_2d = jnp.transpose(p2d[nb_im:], (0, 3, 1, 2))

    f1_aligned = invaug(feat1_2d, coords[0], flags[0])
    f2_aligned = invaug(feat2_2d, coords[1], flags[1])
    loss_ovlp = self_distill(
        jnp.transpose(f1_aligned, (0, 2, 3, 1)).reshape(-1, dim_out),
        jnp.transpose(f2_aligned, (0, 2, 3, 1)).reshape(-1, dim_out))

    # Instance-level contrastive logits: head1 on both views in one fused call.
    feat_bb = jnp.concatenate([feat_bb1, feat_bb2], axis=0)           # (2b, D)
    lhs = projection_head_norm(feat_bb, params['head1'])              # = [feat1; feat2]
    # rhs = [feat1, feat2, other1, other2] == lhs tiled twice -> compute S once.
    S = matmul_nt(lhs, lhs, scale=1.0 / t)                            # (2b, 2b)
    prob = jnp.concatenate([S, S], axis=1)                            # (2b, 4b)
    logits = _remove_diag(prob)
    labels = jnp.concatenate([jnp.arange(b - 1, 2 * b - 1),
                              jnp.arange(0, b)]).astype(jnp.int32)

    # Graph (weakly-supervised) contrastive loss: head2 on both views in one call.
    g = projection_head_norm(feat_bb, params['head2'])
    g1, g2 = g[:b], g[b:]
    mask1 = build_connected_component(matmul_nt(g1, g1))
    mask2 = build_connected_component(matmul_nt(g2, g2))
    graph_loss = 5.0 * sup_contra_fused(g1, mask2, scale=1.0 / t)
    graph_loss = graph_loss + 5.0 * sup_contra_fused(g2, mask1, scale=1.0 / t)

    return logits, labels, graph_loss, loss_ovlp


# ----------------------------------------------------------------------------
# Deterministic parameter init (matmul weights stored in bf16, biases in f32)
# ----------------------------------------------------------------------------
def init_params(key, cfg):
    D, Dh, Do = cfg['dim_input'], cfg['dim_hidden'], cfg['dim']
    ps, C = cfg['patch_size'], 3
    keys = jax.random.split(key, 12)

    def w(k, shape):
        return (jax.random.normal(k, shape, jnp.float32) * 0.02).astype(jnp.bfloat16)

    net = dict(
        w_patch=w(keys[0], (ps * ps * C, D)),
        b_patch=jnp.zeros((1, D), jnp.float32),
        cls_token=jax.random.normal(keys[1], (1, D), jnp.float32) * 0.02,
        w_qkv=w(keys[2], (D, 3 * D)),
        b_qkv=jnp.zeros((1, 3 * D), jnp.float32),
        w_out=w(keys[3], (D, D)),
        b_out=jnp.zeros((1, D), jnp.float32),
    )

    def head(k1, k2):
        return dict(
            w1=w(k1, (D, Dh)), b1=jnp.zeros((1, Dh), jnp.float32),
            w2=w(k2, (Dh, Do)), b2=jnp.zeros((1, Do), jnp.float32))

    return dict(net=net,
                head1=head(keys[4], keys[5]),
                head2=head(keys[6], keys[7]),
                head2d=head(keys[8], keys[9]))


if __name__ == "__main__":
    cfg = dict(patch_size=16, dim_input=64, num_heads=4, dim_hidden=32, dim=32)
    b = 4
    img = cfg['patch_size'] * 14   # forward hard-codes a 14x14 patch grid for patch_size=16

    root = jax.random.PRNGKey(0)
    kp, k1, k2 = jax.random.split(root, 3)
    params = init_params(kp, cfg)
    x1 = jax.random.normal(k1, (b, 3, img, img), jnp.float32)
    x2 = jax.random.normal(k2, (b, 3, img, img), jnp.float32)
    base_box = jnp.array([0.1, 0.1, 0.9, 0.9], jnp.float32)
    coords = jnp.stack([jnp.tile(base_box, (b, 1)), jnp.tile(base_box, (b, 1))])  # (2, b, 4)
    flags = jnp.array([[True, False, True, False],
                       [False, True, False, True]])

    fwd = jax.jit(functools.partial(wcl_forward, cfg=cfg, t=0.1))
    logits, labels, graph_loss, loss_ovlp = fwd(params, x1, x2, coords, flags)
    jax.block_until_ready((logits, labels, graph_loss, loss_ovlp))
    assert logits.shape == (2 * b, 4 * b - 1)
    assert labels.shape == (2 * b,)
    print("KERNEL_OK")
</pallas_src>

<mosaic_0001>
module attributes {stable_mosaic.version = 11 : i64} {
  func.func @_linear_kernel(%arg0: i32, %arg1: memref<256x768xf32, #tpu.memory_space<vmem>>, %arg2: memref<768x64xbf16, #tpu.memory_space<vmem>>, %arg3: memref<1x64xf32, #tpu.memory_space<vmem>>, %arg4: memref<256x64xf32, #tpu.memory_space<vmem>>) attributes {dimension_semantics = [#tpu.dimension_semantics<parallel>], iteration_bounds = array<i64: 4>, scalar_prefetch = 0 : i64, scratch_operands = 0 : i64, tpu.core_type = #tpu.core_type<tc>, window_params = [{transform_indices = @transform_0, window_bounds = array<i64: 256, 768>}, {pipeline_mode = #tpu.pipeline_mode<synchronous>, transform_indices = @transform_1, window_bounds = array<i64: 768, 64>}, {pipeline_mode = #tpu.pipeline_mode<synchronous>, transform_indices = @transform_2, window_bounds = array<i64: 1, 64>}, {transform_indices = @transform_3, window_bounds = array<i64: 256, 64>}]} {
    %c0 = arith.constant 0 : index
    %c0_0 = arith.constant 0 : index
    %0 = vector.load %arg1[%c0, %c0_0] : memref<256x768xf32, #tpu.memory_space<vmem>>, vector<256x768xf32>
    %1 = arith.truncf %0 : vector<256x768xf32> to vector<256x768xbf16>
    %c0_1 = arith.constant 0 : index
    %c0_2 = arith.constant 0 : index
    %2 = vector.load %arg2[%c0_1, %c0_2] : memref<768x64xbf16, #tpu.memory_space<vmem>>, vector<768x64xbf16>
    %cst = arith.constant dense<0.000000e+00> : vector<256x64xf32>
    %3 = tpu.matmul %1, %2, %cst {dimension_numbers = #tpu.dot_dimension_numbers<[1], [0], [0], [1], [0, 0, 1, 1], [], []>} : vector<256x768xbf16>, vector<768x64xbf16>, vector<256x64xf32> -> vector<256x64xf32>
    %c0_3 = arith.constant 0 : index
    %c0_4 = arith.constant 0 : index
    %4 = vector.load %arg3[%c0_3, %c0_4] : memref<1x64xf32, #tpu.memory_space<vmem>>, vector<1x64xf32>
    %5 = vector.broadcast %4 : vector<1x64xf32> to vector<256x64xf32>
    %6 = arith.addf %3, %5 : vector<256x64xf32>
    %c0_5 = arith.constant 0 : index
    %c0_6 = arith.constant 0 : index
    %7 = vector.load %arg4[%c0_5, %c0_6] : memref<256x64xf32, #tpu.memory_space<vmem>>, vector<256x64xf32>
    tpu.vector_store %arg4[%c0_5, %c0_6], %6 {strides = array<i32>} : memref<256x64xf32, #tpu.memory_space<vmem>>, vector<256x64xf32>,
    return
  }
  func.func @transform_0(%arg0: i32) -> (i32, i32) {
    %c0_i32 = arith.constant 0 : i32
    %c0_i32_0 = arith.constant 0 : i32
    return %arg0, %c0_i32 : i32, i32
  }
  func.func @transform_1(%arg0: i32) -> (i32, i32) {
    %c0_i32 = arith.constant 0 : i32
    %c0_i32_0 = arith.constant 0 : i32
    %c0_i32_1 = arith.constant 0 : i32
    return %c0_i32, %c0_i32_0 : i32, i32
  }
  func.func @transform_2(%arg0: i32) -> (i32, i32) {
    %c0_i32 = arith.constant 0 : i32
    %c0_i32_0 = arith.constant 0 : i32
    %c0_i32_1 = arith.constant 0 : i32
    return %c0_i32, %c0_i32_0 : i32, i32
  }
  func.func @transform_3(%arg0: i32) -> (i32, i32) {
    %c0_i32 = arith.constant 0 : i32
    %c0_i32_0 = arith.constant 0 : i32
    return %arg0, %c0_i32 : i32, i32
  }
}

module attributes {stable_mosaic.version = 11 : i64} {
  func.func @_linear_kernel(%arg0: i32, %arg1: memref<4x64xf32, #tpu.memory_space<vmem>>, %arg2: memref<64x64xbf16, #tpu.memory_space<vmem>>, %arg3: memref<1x64xf32, #tpu.memory_space<vmem>>, %arg4: memref<4x64xf32, #tpu.memory_space<vmem>>) attributes {dimension_semantics = [#tpu.dimension_semantics<parallel>], iteration_bounds = array<i64: 1>, scalar_prefetch = 0 : i64, scratch_operands = 0 : i64, tpu.core_type = #tpu.core_type<tc>, window_params = [{transform_indices = @transform_0, window_bounds = array<i64: 4, 64>}, {pipeline_mode = #tpu.pipeline_mode<synchronous>, transform_indices = @transform_1, window_bounds = array<i64: 64, 64>}, {pipeline_mode = #tpu.pipeline_mode<synchronous>, transform_indices = @transform_2, window_bounds = array<i64: 1, 64>}, {transform_indices = @transform_3, window_bounds = array<i64: 4, 64>}]} {
    %c0 = arith.constant 0 : index
    %c0_0 = arith.constant 0 : index
    %0 = vector.load %arg1[%c0, %c0_0] : memref<4x64xf32, #tpu.memory_space<vmem>>, vector<4x64xf32>
    %1 = arith.truncf %0 : vector<4x64xf32> to vector<4x64xbf16>
    %c0_1 = arith.constant 0 : index
    %c0_2 = arith.constant 0 : index
    %2 = vector.load %arg2[%c0_1, %c0_2] : memref<64x64xbf16, #tpu.memory_space<vmem>>, vector<64x64xbf16>
    %cst = arith.constant dense<0.000000e+00> : vector<4x64xf32>
    %3 = tpu.matmul %1, %2, %cst {dimension_numbers = #tpu.dot_dimension_numbers<[1], [0], [0], [1], [0, 0, 1, 1], [], []>} : vector<4x64xbf16>, vector<64x64xbf16>, vector<4x64xf32> -> vector<4x64xf32>
    %c0_3 = arith.constant 0 : index
    %c0_4 = arith.constant 0 : index
    %4 = vector.load %arg3[%c0_3, %c0_4] : memref<1x64xf32, #tpu.memory_space<vmem>>, vector<1x64xf32>
    %5 = vector.broadcast %4 : vector<1x64xf32> to vector<4x64xf32>
    %6 = arith.addf %3, %5 : vector<4x64xf32>
    %c0_5 = arith.constant 0 : index
    %c0_6 = arith.constant 0 : index
    %7 = vector.load %arg4[%c0_5, %c0_6] : memref<4x64xf32, #tpu.memory_space<vmem>>, vector<4x64xf32>
    tpu.vector_store %arg4[%c0_5, %c0_6], %6 {strides = array<i32>} : memref<4x64xf32, #tpu.memory_space<vmem>>, vector<4x64xf32>,
    return
  }
  func.func @transform_0(%arg0: i32) -> (i32, i32) {
    %c0_i32 = arith.constant 0 : i32
    %c0_i32_0 = arith.constant 0 : i32
    return %arg0, %c0_i32 : i32, i32
  }
  func.func @transform_1(%arg0: i32) -> (i32, i32) {
    %c0_i32 = arith.constant 0 : i32
    %c0_i32_0 = arith.constant 0 : i32
    %c0_i32_1 = arith.constant 0 : i32
    return %c0_i32, %c0_i32_0 : i32, i32
  }
  func.func @transform_2(%arg0: i32) -> (i32, i32) {
    %c0_i32 = arith.constant 0 : i32
    %c0_i32_0 = arith.constant 0 : i32
    %c0_i32_1 = arith.constant 0 : i32
    return %c0_i32, %c0_i32_0 : i32, i32
  }
  func.func @transform_3(%arg0: i32) -> (i32, i32) {
    %c0_i32 = arith.constant 0 : i32
    %c0_i32_0 = arith.constant 0 : i32
    return %arg0, %c0_i32 : i32, i32
  }
}

module attributes {stable_mosaic.version = 11 : i64} {
  func.func @_proj_head_norm_kernel(%arg0: i32, %arg1: memref<8x64xf32, #tpu.memory_space<vmem>>, %arg2: memref<64x32xbf16, #tpu.memory_space<vmem>>, %arg3: memref<1x32xf32, #tpu.memory_space<vmem>>, %arg4: memref<32x32xbf16, #tpu.memory_space<vmem>>, %arg5: memref<1x32xf32, #tpu.memory_space<vmem>>, %arg6: memref<8x32xf32, #tpu.memory_space<vmem>>) attributes {dimension_semantics = [#tpu.dimension_semantics<parallel>], iteration_bounds = array<i64: 1>, scalar_prefetch = 0 : i64, scratch_operands = 0 : i64, tpu.core_type = #tpu.core_type<tc>, window_params = [{transform_indices = @transform_0, window_bounds = array<i64: 8, 64>}, {pipeline_mode = #tpu.pipeline_mode<synchronous>, transform_indices = @transform_1, window_bounds = array<i64: 64, 32>}, {pipeline_mode = #tpu.pipeline_mode<synchronous>, transform_indices = @transform_2, window_bounds = array<i64: 1, 32>}, {pipeline_mode = #tpu.pipeline_mode<synchronous>, transform_indices = @transform_3, window_bounds = array<i64: 32, 32>}, {pipeline_mode = #tpu.pipeline_mode<synchronous>, transform_indices = @transform_4, window_bounds = array<i64: 1, 32>}, {transform_indices = @transform_5, window_bounds = array<i64: 8, 32>}]} {
    %c0 = arith.constant 0 : index
    %c0_0 = arith.constant 0 : index
    %0 = vector.load %arg1[%c0, %c0_0] : memref<8x64xf32, #tpu.memory_space<vmem>>, vector<8x64xf32>
    %1 = arith.truncf %0 : vector<8x64xf32> to vector<8x64xbf16>
    %c0_1 = arith.constant 0 : index
    %c0_2 = arith.constant 0 : index
    %2 = vector.load %arg2[%c0_1, %c0_2] : memref<64x32xbf16, #tpu.memory_space<vmem>>, vector<64x32xbf16>
    %cst = arith.constant dense<0.000000e+00> : vector<8x32xf32>
    %3 = tpu.matmul %1, %2, %cst {dimension_numbers = #tpu.dot_dimension_numbers<[1], [0], [0], [1], [0, 0, 1, 1], [], []>} : vector<8x64xbf16>, vector<64x32xbf16>, vector<8x32xf32> -> vector<8x32xf32>
    %c0_3 = arith.constant 0 : index
    %c0_4 = arith.constant 0 : index
    %4 = vector.load %arg3[%c0_3, %c0_4] : memref<1x32xf32, #tpu.memory_space<vmem>>, vector<1x32xf32>
    %5 = vector.broadcast %4 : vector<1x32xf32> to vector<8x32xf32>
    %6 = arith.addf %3, %5 : vector<8x32xf32>
    %cst_5 = arith.constant 0.000000e+00 : f32
    %7 = vector.broadcast %cst_5 : f32 to vector<8x32xf32>
    %8 = arith.maximumf %6, %7 : vector<8x32xf32>
    %9 = arith.truncf %8 : vector<8x32xf32> to vector<8x32xbf16>
    %c0_6 = arith.constant 0 : index
    %c0_7 = arith.constant 0 : index
    %10 = vector.load %arg4[%c0_6, %c0_7] : memref<32x32xbf16, #tpu.memory_space<vmem>>, vector<32x32xbf16>
    %cst_8 = arith.constant dense<0.000000e+00> : vector<8x32xf32>
    %11 = tpu.matmul %9, %10, %cst_8 {dimension_numbers = #tpu.dot_dimension_numbers<[1], [0], [0], [1], [0, 0, 1, 1], [], []>} : vector<8x32xbf16>, vector<32x32xbf16>, vector<8x32xf32> -> vector<8x32xf32>
    %c0_9 = arith.constant 0 : index
    %c0_10 = arith.constant 0 : index
    %12 = vector.load %arg5[%c0_9, %c0_10] : memref<1x32xf32, #tpu.memory_space<vmem>>, vector<1x32xf32>
    %13 = vector.broadcast %12 : vector<1x32xf32> to vector<8x32xf32>
    %14 = arith.addf %11, %13 : vector<8x32xf32>
    %15 = arith.mulf %14, %14 : vector<8x32xf32>
    %cst_11 = arith.constant dense<0.000000e+00> : vector<8xf32>
    %16 = vector.multi_reduction <add>, %15, %cst_11 [1] : vector<8x32xf32> to vector<8xf32>
    %17 = vector.shape_cast %16 : vector<8xf32> to vector<8x1xf32>
    %cst_12 = arith.constant 1.000000e-24 : f32
    %18 = vector.broadcast %cst_12 : f32 to vector<8x1xf32>
    %19 = arith.maximumf %17, %18 : vector<8x1xf32>
    %20 = math.rsqrt %19 : vector<8x1xf32>
    %21 = vector.broadcast %20 : vector<8x1xf32> to vector<8x32xf32>
    %22 = arith.mulf %14, %21 : vector<8x32xf32>
    %c0_13 = arith.constant 0 : index
    %c0_14 = arith.constant 0 : index
    %23 = vector.load %arg6[%c0_13, %c0_14] : memref<8x32xf32, #tpu.memory_space<vmem>>, vector<8x32xf32>
    tpu.vector_store %arg6[%c0_13, %c0_14], %22 {strides = array<i32>} : memref<8x32xf32, #tpu.memory_space<vmem>>, vector<8x32xf32>,
    return
  }
  func.func @transform_0(%arg0: i32) -> (i32, i32) {
    %c0_i32 = arith.constant 0 : i32
    %c0_i32_0 = arith.constant 0 : i32
    return %arg0, %c0_i32 : i32, i32
  }
  func.func @transform_1(%arg0: i32) -> (i32, i32) {
    %c0_i32 = arith.constant 0 : i32
    %c0_i32_0 = arith.constant 0 : i32
    %c0_i32_1 = arith.constant 0 : i32
    return %c0_i32, %c0_i32_0 : i32, i32
  }
  func.func @transform_2(%arg0: i32) -> (i32, i32) {
    %c0_i32 = arith.constant 0 : i32
    %c0_i32_0 = arith.constant 0 : i32
    %c0_i32_1 = arith.constant 0 : i32
    return %c0_i32, %c0_i32_0 : i32, i32
  }
  func.func @transform_3(%arg0: i32) -> (i32, i32) {
    %c0_i32 = arith.constant 0 : i32
    %c0_i32_0 = arith.constant 0 : i32
    %c0_i32_1 = arith.constant 0 : i32
    return %c0_i32, %c0_i32_0 : i32, i32
  }
  func.func @transform_4(%arg0: i32) -> (i32, i32) {
    %c0_i32 = arith.constant 0 : i32
    %c0_i32_0 = arith.constant 0 : i32
    %c0_i32_1 = arith.constant 0 : i32
    return %c0_i32, %c0_i32_0 : i32, i32
  }
  func.func @transform_5(%arg0: i32) -> (i32, i32) {
    %c0_i32 = arith.constant 0 : i32
    %c0_i32_0 = arith.constant 0 : i32
    return %arg0, %c0_i32 : i32, i32
  }
}

module attributes {stable_mosaic.version = 11 : i64} {
  func.func @_matmul_nt_kernel(%arg0: i32, %arg1: memref<8x32xf32, #tpu.memory_space<vmem>>, %arg2: memref<8x32xf32, #tpu.memory_space<vmem>>, %arg3: memref<8x8xf32, #tpu.memory_space<vmem>>) attributes {dimension_semantics = [#tpu.dimension_semantics<arbitrary>], iteration_bounds = array<i64: 1>, scalar_prefetch = 0 : i64, scratch_operands = 0 : i64, tpu.core_type = #tpu.core_type<tc>, window_params = [{pipeline_mode = #tpu.pipeline_mode<synchronous>, transform_indices = @transform_0, window_bounds = array<i64: 8, 32>}, {pipeline_mode = #tpu.pipeline_mode<synchronous>, transform_indices = @transform_1, window_bounds = array<i64: 8, 32>}, {pipeline_mode = #tpu.pipeline_mode<synchronous>, transform_indices = @transform_2, window_bounds = array<i64: 8, 8>}]} {
    %c0 = arith.constant 0 : index
    %c0_0 = arith.constant 0 : index
    %0 = vector.load %arg1[%c0, %c0_0] : memref<8x32xf32, #tpu.memory_space<vmem>>, vector<8x32xf32>
    %c0_1 = arith.constant 0 : index
    %c0_2 = arith.constant 0 : index
    %1 = vector.load %arg2[%c0_1, %c0_2] : memref<8x32xf32, #tpu.memory_space<vmem>>, vector<8x32xf32>
    %cst = arith.constant dense<0.000000e+00> : vector<8x8xf32>
    %2 = tpu.matmul %0, %1, %cst {dimension_numbers = #tpu.dot_dimension_numbers<[1], [1], [0], [0], [0, 0, 1, 0], [], []>} : vector<8x32xf32>, vector<8x32xf32>, vector<8x8xf32> -> vector<8x8xf32>
    %cst_3 = arith.constant 1.000000e+01 : f32
    %3 = vector.broadcast %cst_3 : f32 to vector<8x8xf32>
    %4 = arith.mulf %2, %3 : vector<8x8xf32>
    %c0_4 = arith.constant 0 : index
    %c0_5 = arith.constant 0 : index
    %5 = vector.load %arg3[%c0_4, %c0_5] : memref<8x8xf32, #tpu.memory_space<vmem>>, vector<8x8xf32>
    tpu.vector_store %arg3[%c0_4, %c0_5], %4 {strides = array<i32>} : memref<8x8xf32, #tpu.memory_space<vmem>>, vector<8x8xf32>,
    return
  }
  func.func @transform_0(%arg0: i32) -> (i32, i32) {
    %c0_i32 = arith.constant 0 : i32
    %c0_i32_0 = arith.constant 0 : i32
    %c0_i32_1 = arith.constant 0 : i32
    return %c0_i32, %c0_i32_0 : i32, i32
  }
  func.func @transform_1(%arg0: i32) -> (i32, i32) {
    %c0_i32 = arith.constant 0 : i32
    %c0_i32_0 = arith.constant 0 : i32
    %c0_i32_1 = arith.constant 0 : i32
    return %c0_i32, %c0_i32_0 : i32, i32
  }
  func.func @transform_2(%arg0: i32) -> (i32, i32) {
    %c0_i32 = arith.constant 0 : i32
    %c0_i32_0 = arith.constant 0 : i32
    %c0_i32_1 = arith.constant 0 : i32
    return %c0_i32, %c0_i32_0 : i32, i32
  }
}

module attributes {stable_mosaic.version = 11 : i64} {
  func.func @_matmul_nt_kernel(%arg0: i32, %arg1: memref<4x32xf32, #tpu.memory_space<vmem>>, %arg2: memref<4x32xf32, #tpu.memory_space<vmem>>, %arg3: memref<4x4xf32, #tpu.memory_space<vmem>>) attributes {dimension_semantics = [#tpu.dimension_semantics<arbitrary>], iteration_bounds = array<i64: 1>, scalar_prefetch = 0 : i64, scratch_operands = 0 : i64, tpu.core_type = #tpu.core_type<tc>, window_params = [{pipeline_mode = #tpu.pipeline_mode<synchronous>, transform_indices = @transform_0, window_bounds = array<i64: 4, 32>}, {pipeline_mode = #tpu.pipeline_mode<synchronous>, transform_indices = @transform_1, window_bounds = array<i64: 4, 32>}, {pipeline_mode = #tpu.pipeline_mode<synchronous>, transform_indices = @transform_2, window_bounds = array<i64: 4, 4>}]} {
    %c0 = arith.constant 0 : index
    %c0_0 = arith.constant 0 : index
    %0 = vector.load %arg1[%c0, %c0_0] : memref<4x32xf32, #tpu.memory_space<vmem>>, vector<4x32xf32>
    %c0_1 = arith.constant 0 : index
    %c0_2 = arith.constant 0 : index
    %1 = vector.load %arg2[%c0_1, %c0_2] : memref<4x32xf32, #tpu.memory_space<vmem>>, vector<4x32xf32>
    %cst = arith.constant dense<0.000000e+00> : vector<4x4xf32>
    %2 = tpu.matmul %0, %1, %cst {dimension_numbers = #tpu.dot_dimension_numbers<[1], [1], [0], [0], [0, 0, 1, 0], [], []>} : vector<4x32xf32>, vector<4x32xf32>, vector<4x4xf32> -> vector<4x4xf32>
    %cst_3 = arith.constant 1.000000e+00 : f32
    %3 = vector.broadcast %cst_3 : f32 to vector<4x4xf32>
    %4 = arith.mulf %2, %3 : vector<4x4xf32>
    %c0_4 = arith.constant 0 : index
    %c0_5 = arith.constant 0 : index
    %5 = vector.load %arg3[%c0_4, %c0_5] : memref<4x4xf32, #tpu.memory_space<vmem>>, vector<4x4xf32>
    tpu.vector_store %arg3[%c0_4, %c0_5], %4 {strides = array<i32>} : memref<4x4xf32, #tpu.memory_space<vmem>>, vector<4x4xf32>,
    return
  }
  func.func @transform_0(%arg0: i32) -> (i32, i32) {
    %c0_i32 = arith.constant 0 : i32
    %c0_i32_0 = arith.constant 0 : i32
    %c0_i32_1 = arith.constant 0 : i32
    return %c0_i32, %c0_i32_0 : i32, i32
  }
  func.func @transform_1(%arg0: i32) -> (i32, i32) {
    %c0_i32 = arith.constant 0 : i32
    %c0_i32_0 = arith.constant 0 : i32
    %c0_i32_1 = arith.constant 0 : i32
    return %c0_i32, %c0_i32_0 : i32, i32
  }
  func.func @transform_2(%arg0: i32) -> (i32, i32) {
    %c0_i32 = arith.constant 0 : i32
    %c0_i32_0 = arith.constant 0 : i32
    %c0_i32_1 = arith.constant 0 : i32
    return %c0_i32, %c0_i32_0 : i32, i32
  }
}

module attributes {stable_mosaic.version = 11 : i64} {
  func.func @_sup_contra_kernel(%arg0: i32, %arg1: memref<4x32xf32, #tpu.memory_space<vmem>>, %arg2: memref<4x4xf32, #tpu.memory_space<vmem>>, %arg3: memref<1x1xf32, #tpu.memory_space<vmem>>) attributes {dimension_semantics = [#tpu.dimension_semantics<arbitrary>], iteration_bounds = array<i64: 1>, scalar_prefetch = 0 : i64, scratch_operands = 0 : i64, tpu.core_type = #tpu.core_type<tc>, window_params = [{pipeline_mode = #tpu.pipeline_mode<synchronous>, transform_indices = @transform_0, window_bounds = array<i64: 4, 32>}, {pipeline_mode = #tpu.pipeline_mode<synchronous>, transform_indices = @transform_1, window_bounds = array<i64: 4, 4>}, {pipeline_mode = #tpu.pipeline_mode<synchronous>, transform_indices = @transform_2, window_bounds = array<i64: 1, 1>}]} {
    %c0 = arith.constant 0 : index
    %c0_0 = arith.constant 0 : index
    %0 = vector.load %arg1[%c0, %c0_0] : memref<4x32xf32, #tpu.memory_space<vmem>>, vector<4x32xf32>
    %cst = arith.constant dense<0.000000e+00> : vector<4x4xf32>
    %1 = tpu.matmul %0, %0, %cst {dimension_numbers = #tpu.dot_dimension_numbers<[1], [1], [0], [0], [0, 0, 1, 0], [], []>} : vector<4x32xf32>, vector<4x32xf32>, vector<4x4xf32> -> vector<4x4xf32>
    %cst_1 = arith.constant 1.000000e+01 : f32
    %2 = vector.broadcast %cst_1 : f32 to vector<4x4xf32>
    %3 = arith.mulf %1, %2 : vector<4x4xf32>
    %4 = tpu.iota {dimensions = array<i32: 0>} : vector<4x4xi32>
    %5 = tpu.iota {dimensions = array<i32: 1>} : vector<4x4xi32>
    %6 = arith.cmpi ne, %4, %5 : vector<4x4xi32>
    %7 = arith.extui %6 : vector<4x4xi1> to vector<4x4xi32>
    %8 = arith.sitofp %7 : vector<4x4xi32> to vector<4x4xf32>
    %c0_2 = arith.constant 0 : index
    %c0_3 = arith.constant 0 : index
    %9 = vector.load %arg2[%c0_2, %c0_3] : memref<4x4xf32, #tpu.memory_space<vmem>>, vector<4x4xf32>
    %10 = arith.mulf %9, %8 : vector<4x4xf32>
    %cst_4 = arith.constant dense<0xFF800000> : vector<4xf32>
    %11 = vector.multi_reduction <maximumf>, %3, %cst_4 [1] : vector<4x4xf32> to vector<4xf32>
    %12 = vector.shape_cast %11 : vector<4xf32> to vector<4x1xf32>
    %13 = vector.broadcast %12 : vector<4x1xf32> to vector<4x4xf32>
    %14 = arith.subf %3, %13 : vector<4x4xf32>
    %15 = math.exp %14 : vector<4x4xf32>
    %16 = arith.mulf %15, %8 : vector<4x4xf32>
    %cst_5 = arith.constant dense<0.000000e+00> : vector<4xf32>
    %17 = vector.multi_reduction <add>, %16, %cst_5 [1] : vector<4x4xf32> to vector<4xf32>
    %18 = vector.shape_cast %17 : vector<4xf32> to vector<4x1xf32>
    %19 = math.log %18 : vector<4x1xf32>
    %20 = vector.broadcast %19 : vector<4x1xf32> to vector<4x4xf32>
    %21 = arith.subf %14, %20 : vector<4x4xf32>
    %cst_6 = arith.constant dense<0.000000e+00> : vector<4xf32>
    %22 = vector.multi_reduction <add>, %10, %cst_6 [1] : vector<4x4xf32> to vector<4xf32>
    %23 = vector.shape_cast %22 : vector<4xf32> to vector<4x1xf32>
    %cst_7 = arith.constant 9.99999996E-13 : f32
    %24 = vector.broadcast %cst_7 : f32 to vector<4x1xf32>
    %25 = arith.maximumf %23, %24 : vector<4x1xf32>
    %26 = arith.mulf %10, %21 : vector<4x4xf32>
    %cst_8 = arith.constant dense<0.000000e+00> : vector<4xf32>
    %27 = vector.multi_reduction <add>, %26, %cst_8 [1] : vector<4x4xf32> to vector<4xf32>
    %28 = vector.shape_cast %27 : vector<4xf32> to vector<4x1xf32>
    %29 = tpu.reciprocal %25 {approx = true} : vector<4x1xf32> -> vector<4x1xf32>
    %30 = arith.mulf %28, %29 : vector<4x1xf32>
    %31 = vector.shape_cast %30 : vector<4x1xf32> to vector<1x4x1xf32>
    %cst_9 = arith.constant dense<0.000000e+00> : vector<1xf32>
    %32 = vector.multi_reduction <add>, %31, %cst_9 [1, 2] : vector<1x4x1xf32> to vector<1xf32>
    %33 = vector.shape_cast %32 : vector<1xf32> to vector<1x1x1xf32>
    %34 = vector.extract %33[0, 0, 0] : f32 from vector<1x1x1xf32>
    %35 = vector.broadcast %34 : f32 to vector<1x1xf32>
    %cst_10 = arith.constant 0.000000e+00 : f32
    %36 = vector.broadcast %cst_10 : f32 to vector<1x1xf32>
    %37 = arith.subf %36, %35 : vector<1x1xf32>
    %cst_11 = arith.constant 2.500000e-01 : f32
    %38 = vector.broadcast %cst_11 : f32 to vector<1x1xf32>
    %39 = arith.mulf %37, %38 : vector<1x1xf32>
    %c0_12 = arith.constant 0 : index
    %c0_13 = arith.constant 0 : index
    %40 = vector.load %arg3[%c0_12, %c0_13] : memref<1x1xf32, #tpu.memory_space<vmem>>, vector<1x1xf32>
    tpu.vector_store %arg3[%c0_12, %c0_13], %39 {strides = array<i32>} : memref<1x1xf32, #tpu.memory_space<vmem>>, vector<1x1xf32>,
    return
  }
  func.func @transform_0(%arg0: i32) -> (i32, i32) {
    %c0_i32 = arith.constant 0 : i32
    %c0_i32_0 = arith.constant 0 : i32
    %c0_i32_1 = arith.constant 0 : i32
    return %c0_i32, %c0_i32_0 : i32, i32
  }
  func.func @transform_1(%arg0: i32) -> (i32, i32) {
    %c0_i32 = arith.constant 0 : i32
    %c0_i32_0 = arith.constant 0 : i32
    %c0_i32_1 = arith.constant 0 : i32
    return %c0_i32, %c0_i32_0 : i32, i32
  }
  func.func @transform_2(%arg0: i32) -> (i32, i32) {
    %c0_i32 = arith.constant 0 : i32
    %c0_i32_0 = arith.constant 0 : i32
    %c0_i32_1 = arith.constant 0 : i32
    return %c0_i32, %c0_i32_0 : i32, i32
  }
}

module attributes {stable_mosaic.version = 11 : i64} {
  func.func @_linear_kernel(%arg0: i32, %arg1: memref<256x64xf32, #tpu.memory_space<vmem>>, %arg2: memref<64x64xbf16, #tpu.memory_space<vmem>>, %arg3: memref<1x64xf32, #tpu.memory_space<vmem>>, %arg4: memref<256x64xf32, #tpu.memory_space<vmem>>) attributes {dimension_semantics = [#tpu.dimension_semantics<parallel>], iteration_bounds = array<i64: 4>, scalar_prefetch = 0 : i64, scratch_operands = 0 : i64, tpu.core_type = #tpu.core_type<tc>, window_params = [{transform_indices = @transform_0, window_bounds = array<i64: 256, 64>}, {pipeline_mode = #tpu.pipeline_mode<synchronous>, transform_indices = @transform_1, window_bounds = array<i64: 64, 64>}, {pipeline_mode = #tpu.pipeline_mode<synchronous>, transform_indices = @transform_2, window_bounds = array<i64: 1, 64>}, {transform_indices = @transform_3, window_bounds = array<i64: 256, 64>}]} {
    %c0 = arith.constant 0 : index
    %c0_0 = arith.constant 0 : index
    %0 = vector.load %arg1[%c0, %c0_0] : memref<256x64xf32, #tpu.memory_space<vmem>>, vector<256x64xf32>
    %1 = arith.truncf %0 : vector<256x64xf32> to vector<256x64xbf16>
    %c0_1 = arith.constant 0 : index
    %c0_2 = arith.constant 0 : index
    %2 = vector.load %arg2[%c0_1, %c0_2] : memref<64x64xbf16, #tpu.memory_space<vmem>>, vector<64x64xbf16>
    %cst = arith.constant dense<0.000000e+00> : vector<256x64xf32>
    %3 = tpu.matmul %1, %2, %cst {dimension_numbers = #tpu.dot_dimension_numbers<[1], [0], [0], [1], [0, 0, 1, 1], [], []>} : vector<256x64xbf16>, vector<64x64xbf16>, vector<256x64xf32> -> vector<256x64xf32>
    %c0_3 = arith.constant 0 : index
    %c0_4 = arith.constant 0 : index
    %4 = vector.load %arg3[%c0_3, %c0_4] : memref<1x64xf32, #tpu.memory_space<vmem>>, vector<1x64xf32>
    %5 = vector.broadcast %4 : vector<1x64xf32> to vector<256x64xf32>
    %6 = arith.addf %3, %5 : vector<256x64xf32>
    %c0_5 = arith.constant 0 : index
    %c0_6 = arith.constant 0 : index
    %7 = vector.load %arg4[%c0_5, %c0_6] : memref<256x64xf32, #tpu.memory_space<vmem>>, vector<256x64xf32>
    tpu.vector_store %arg4[%c0_5, %c0_6], %6 {strides = array<i32>} : memref<256x64xf32, #tpu.memory_space<vmem>>, vector<256x64xf32>,
    return
  }
  func.func @transform_0(%arg0: i32) -> (i32, i32) {
    %c0_i32 = arith.constant 0 : i32
    %c0_i32_0 = arith.constant 0 : i32
    return %arg0, %c0_i32 : i32, i32
  }
  func.func @transform_1(%arg0: i32) -> (i32, i32) {
    %c0_i32 = arith.constant 0 : i32
    %c0_i32_0 = arith.constant 0 : i32
    %c0_i32_1 = arith.constant 0 : i32
    return %c0_i32, %c0_i32_0 : i32, i32
  }
  func.func @transform_2(%arg0: i32) -> (i32, i32) {
    %c0_i32 = arith.constant 0 : i32
    %c0_i32_0 = arith.constant 0 : i32
    %c0_i32_1 = arith.constant 0 : i32
    return %c0_i32, %c0_i32_0 : i32, i32
  }
  func.func @transform_3(%arg0: i32) -> (i32, i32) {
    %c0_i32 = arith.constant 0 : i32
    %c0_i32_0 = arith.constant 0 : i32
    return %arg0, %c0_i32 : i32, i32
  }
}

module attributes {stable_mosaic.version = 11 : i64} {
  func.func @_proj_head_norm_kernel(%arg0: i32, %arg1: memref<256x64xf32, #tpu.memory_space<vmem>>, %arg2: memref<64x32xbf16, #tpu.memory_space<vmem>>, %arg3: memref<1x32xf32, #tpu.memory_space<vmem>>, %arg4: memref<32x32xbf16, #tpu.memory_space<vmem>>, %arg5: memref<1x32xf32, #tpu.memory_space<vmem>>, %arg6: memref<256x32xf32, #tpu.memory_space<vmem>>) attributes {dimension_semantics = [#tpu.dimension_semantics<parallel>], iteration_bounds = array<i64: 7>, scalar_prefetch = 0 : i64, scratch_operands = 0 : i64, tpu.core_type = #tpu.core_type<tc>, window_params = [{transform_indices = @transform_0, window_bounds = array<i64: 256, 64>}, {pipeline_mode = #tpu.pipeline_mode<synchronous>, transform_indices = @transform_1, window_bounds = array<i64: 64, 32>}, {pipeline_mode = #tpu.pipeline_mode<synchronous>, transform_indices = @transform_2, window_bounds = array<i64: 1, 32>}, {pipeline_mode = #tpu.pipeline_mode<synchronous>, transform_indices = @transform_3, window_bounds = array<i64: 32, 32>}, {pipeline_mode = #tpu.pipeline_mode<synchronous>, transform_indices = @transform_4, window_bounds = array<i64: 1, 32>}, {transform_indices = @transform_5, window_bounds = array<i64: 256, 32>}]} {
    %c0 = arith.constant 0 : index
    %c0_0 = arith.constant 0 : index
    %0 = vector.load %arg1[%c0, %c0_0] : memref<256x64xf32, #tpu.memory_space<vmem>>, vector<256x64xf32>
    %1 = arith.truncf %0 : vector<256x64xf32> to vector<256x64xbf16>
    %c0_1 = arith.constant 0 : index
    %c0_2 = arith.constant 0 : index
    %2 = vector.load %arg2[%c0_1, %c0_2] : memref<64x32xbf16, #tpu.memory_space<vmem>>, vector<64x32xbf16>
    %cst = arith.constant dense<0.000000e+00> : vector<256x32xf32>
    %3 = tpu.matmul %1, %2, %cst {dimension_numbers = #tpu.dot_dimension_numbers<[1], [0], [0], [1], [0, 0, 1, 1], [], []>} : vector<256x64xbf16>, vector<64x32xbf16>, vector<256x32xf32> -> vector<256x32xf32>
    %c0_3 = arith.constant 0 : index
    %c0_4 = arith.constant 0 : index
    %4 = vector.load %arg3[%c0_3, %c0_4] : memref<1x32xf32, #tpu.memory_space<vmem>>, vector<1x32xf32>
    %5 = vector.broadcast %4 : vector<1x32xf32> to vector<256x32xf32>
    %6 = arith.addf %3, %5 : vector<256x32xf32>
    %cst_5 = arith.constant 0.000000e+00 : f32
    %7 = vector.broadcast %cst_5 : f32 to vector<256x32xf32>
    %8 = arith.maximumf %6, %7 : vector<256x32xf32>
    %9 = arith.truncf %8 : vector<256x32xf32> to vector<256x32xbf16>
    %c0_6 = arith.constant 0 : index
    %c0_7 = arith.constant 0 : index
    %10 = vector.load %arg4[%c0_6, %c0_7] : memref<32x32xbf16, #tpu.memory_space<vmem>>, vector<32x32xbf16>
    %cst_8 = arith.constant dense<0.000000e+00> : vector<256x32xf32>
    %11 = tpu.matmul %9, %10, %cst_8 {dimension_numbers = #tpu.dot_dimension_numbers<[1], [0], [0], [1], [0, 0, 1, 1], [], []>} : vector<256x32xbf16>, vector<32x32xbf16>, vector<256x32xf32> -> vector<256x32xf32>
    %c0_9 = arith.constant 0 : index
    %c0_10 = arith.constant 0 : index
    %12 = vector.load %arg5[%c0_9, %c0_10] : memref<1x32xf32, #tpu.memory_space<vmem>>, vector<1x32xf32>
    %13 = vector.broadcast %12 : vector<1x32xf32> to vector<256x32xf32>
    %14 = arith.addf %11, %13 : vector<256x32xf32>
    %15 = arith.mulf %14, %14 : vector<256x32xf32>
    %cst_11 = arith.constant dense<0.000000e+00> : vector<256xf32>
    %16 = vector.multi_reduction <add>, %15, %cst_11 [1] : vector<256x32xf32> to vector<256xf32>
    %17 = vector.shape_cast %16 : vector<256xf32> to vector<256x1xf32>
    %cst_12 = arith.constant 1.000000e-24 : f32
    %18 = vector.broadcast %cst_12 : f32 to vector<256x1xf32>
    %19 = arith.maximumf %17, %18 : vector<256x1xf32>
    %20 = math.rsqrt %19 : vector<256x1xf32>
    %21 = vector.broadcast %20 : vector<256x1xf32> to vector<256x32xf32>
    %22 = arith.mulf %14, %21 : vector<256x32xf32>
    %c0_13 = arith.constant 0 : index
    %c0_14 = arith.constant 0 : index
    %23 = vector.load %arg6[%c0_13, %c0_14] : memref<256x32xf32, #tpu.memory_space<vmem>>, vector<256x32xf32>
    tpu.vector_store %arg6[%c0_13, %c0_14], %22 {strides = array<i32>} : memref<256x32xf32, #tpu.memory_space<vmem>>, vector<256x32xf32>,
    return
  }
  func.func @transform_0(%arg0: i32) -> (i32, i32) {
    %c0_i32 = arith.constant 0 : i32
    %c0_i32_0 = arith.constant 0 : i32
    return %arg0, %c0_i32 : i32, i32
  }
  func.func @transform_1(%arg0: i32) -> (i32, i32) {
    %c0_i32 = arith.constant 0 : i32
    %c0_i32_0 = arith.constant 0 : i32
    %c0_i32_1 = arith.constant 0 : i32
    return %c0_i32, %c0_i32_0 : i32, i32
  }
  func.func @transform_2(%arg0: i32) -> (i32, i32) {
    %c0_i32 = arith.constant 0 : i32
    %c0_i32_0 = arith.constant 0 : i32
    %c0_i32_1 = arith.constant 0 : i32
    return %c0_i32, %c0_i32_0 : i32, i32
  }
  func.func @transform_3(%arg0: i32) -> (i32, i32) {
    %c0_i32 = arith.constant 0 : i32
    %c0_i32_0 = arith.constant 0 : i32
    %c0_i32_1 = arith.constant 0 : i32
    return %c0_i32, %c0_i32_0 : i32, i32
  }
  func.func @transform_4(%arg0: i32) -> (i32, i32) {
    %c0_i32 = arith.constant 0 : i32
    %c0_i32_0 = arith.constant 0 : i32
    %c0_i32_1 = arith.constant 0 : i32
    return %c0_i32, %c0_i32_0 : i32, i32
  }
  func.func @transform_5(%arg0: i32) -> (i32, i32) {
    %c0_i32 = arith.constant 0 : i32
    %c0_i32_0 = arith.constant 0 : i32
    return %arg0, %c0_i32 : i32, i32
  }
}

module attributes {stable_mosaic.version = 11 : i64} {
  func.func @_self_distill_kernel(%arg0: i32, %arg1: memref<784x32xf32, #tpu.memory_space<vmem>>, %arg2: memref<784x32xf32, #tpu.memory_space<vmem>>, %arg3: memref<1x1xf32, #tpu.memory_space<vmem>>) attributes {dimension_semantics = [#tpu.dimension_semantics<arbitrary>], iteration_bounds = array<i64: 1>, scalar_prefetch = 0 : i64, scratch_operands = 0 : i64, tpu.core_type = #tpu.core_type<tc>, window_params = [{pipeline_mode = #tpu.pipeline_mode<synchronous>, transform_indices = @transform_0, window_bounds = array<i64: 784, 32>}, {pipeline_mode = #tpu.pipeline_mode<synchronous>, transform_indices = @transform_1, window_bounds = array<i64: 784, 32>}, {pipeline_mode = #tpu.pipeline_mode<synchronous>, transform_indices = @transform_2, window_bounds = array<i64: 1, 1>}]} {
    %c0 = arith.constant 0 : index
    %c0_0 = arith.constant 0 : index
    %0 = vector.load %arg1[%c0, %c0_0] : memref<784x32xf32, #tpu.memory_space<vmem>>, vector<784x32xf32>
    %cst = arith.constant 5.000000e+00 : f32
    %1 = vector.broadcast %cst : f32 to vector<784x32xf32>
    %2 = arith.mulf %0, %1 : vector<784x32xf32>
    %c0_1 = arith.constant 0 : index
    %c0_2 = arith.constant 0 : index
    %3 = vector.load %arg2[%c0_1, %c0_2] : memref<784x32xf32, #tpu.memory_space<vmem>>, vector<784x32xf32>
    %cst_3 = arith.constant 5.000000e+00 : f32
    %4 = vector.broadcast %cst_3 : f32 to vector<784x32xf32>
    %5 = arith.mulf %3, %4 : vector<784x32xf32>
    %cst_4 = arith.constant dense<0xFF800000> : vector<784xf32>
    %6 = vector.multi_reduction <maximumf>, %2, %cst_4 [1] : vector<784x32xf32> to vector<784xf32>
    %7 = vector.shape_cast %6 : vector<784xf32> to vector<784x1xf32>
    %8 = vector.broadcast %7 : vector<784x1xf32> to vector<784x32xf32>
    %9 = arith.subf %2, %8 : vector<784x32xf32>
    %10 = math.exp %9 : vector<784x32xf32>
    %cst_5 = arith.constant dense<0.000000e+00> : vector<784xf32>
    %11 = vector.multi_reduction <add>, %10, %cst_5 [1] : vector<784x32xf32> to vector<784xf32>
    %12 = vector.shape_cast %11 : vector<784xf32> to vector<784x1xf32>
    %13 = math.log %12 : vector<784x1xf32>
    %14 = vector.broadcast %13 : vector<784x1xf32> to vector<784x32xf32>
    %15 = arith.subf %9, %14 : vector<784x32xf32>
    %cst_6 = arith.constant dense<0xFF800000> : vector<784xf32>
    %16 = vector.multi_reduction <maximumf>, %5, %cst_6 [1] : vector<784x32xf32> to vector<784xf32>
    %17 = vector.shape_cast %16 : vector<784xf32> to vector<784x1xf32>
    %18 = vector.broadcast %17 : vector<784x1xf32> to vector<784x32xf32>
    %19 = arith.subf %5, %18 : vector<784x32xf32>
    %20 = math.exp %19 : vector<784x32xf32>
    %cst_7 = arith.constant dense<0.000000e+00> : vector<784xf32>
    %21 = vector.multi_reduction <add>, %20, %cst_7 [1] : vector<784x32xf32> to vector<784xf32>
    %22 = vector.shape_cast %21 : vector<784xf32> to vector<784x1xf32>
    %23 = tpu.reciprocal %22 {approx = true} : vector<784x1xf32> -> vector<784x1xf32>
    %24 = vector.broadcast %23 : vector<784x1xf32> to vector<784x32xf32>
    %25 = arith.mulf %20, %24 : vector<784x32xf32>
    %cst_8 = arith.constant 0.000000e+00 : f32
    %26 = vector.broadcast %cst_8 : f32 to vector<784x32xf32>
    %27 = arith.subf %26, %25 : vector<784x32xf32>
    %28 = arith.mulf %27, %15 : vector<784x32xf32>
    %cst_9 = arith.constant dense<0.000000e+00> : vector<784xf32>
    %29 = vector.multi_reduction <add>, %28, %cst_9 [1] : vector<784x32xf32> to vector<784xf32>
    %30 = vector.shape_cast %29 : vector<784xf32> to vector<784x1xf32>
    %31 = vector.shape_cast %30 : vector<784x1xf32> to vector<1x784x1xf32>
    %cst_10 = arith.constant dense<0.000000e+00> : vector<1xf32>
    %32 = vector.multi_reduction <add>, %31, %cst_10 [1, 2] : vector<1x784x1xf32> to vector<1xf32>
    %33 = vector.shape_cast %32 : vector<1xf32> to vector<1x1x1xf32>
    %34 = vector.extract %33[0, 0, 0] : f32 from vector<1x1x1xf32>
    %35 = vector.broadcast %34 : f32 to vector<1x1xf32>
    %cst_11 = arith.constant 0.00127551018 : f32
    %36 = vector.broadcast %cst_11 : f32 to vector<1x1xf32>
    %37 = arith.mulf %35, %36 : vector<1x1xf32>
    %c0_12 = arith.constant 0 : index
    %c0_13 = arith.constant 0 : index
    %38 = vector.load %arg3[%c0_12, %c0_13] : memref<1x1xf32, #tpu.memory_space<vmem>>, vector<1x1xf32>
    tpu.vector_store %arg3[%c0_12, %c0_13], %37 {strides = array<i32>} : memref<1x1xf32, #tpu.memory_space<vmem>>, vector<1x1xf32>,
    return
  }
  func.func @transform_0(%arg0: i32) -> (i32, i32) {
    %c0_i32 = arith.constant 0 : i32
    %c0_i32_0 = arith.constant 0 : i32
    %c0_i32_1 = arith.constant 0 : i32
    return %c0_i32, %c0_i32_0 : i32, i32
  }
  func.func @transform_1(%arg0: i32) -> (i32, i32) {
    %c0_i32 = arith.constant 0 : i32
    %c0_i32_0 = arith.constant 0 : i32
    %c0_i32_1 = arith.constant 0 : i32
    return %c0_i32, %c0_i32_0 : i32, i32
  }
  func.func @transform_2(%arg0: i32) -> (i32, i32) {
    %c0_i32 = arith.constant 0 : i32
    %c0_i32_0 = arith.constant 0 : i32
    %c0_i32_1 = arith.constant 0 : i32
    return %c0_i32, %c0_i32_0 : i32, i32
  }
}

</mosaic_0001>

<llo_original>
// kernel: wcl_forward.15
$region0: #{wcl_forward.15}
  #allocation0 [shape = 'u32[]', space=smem, size = 0x4, offset = 0x4, fixed_abs, tag = 'smem constant byte address 0x4 - core index']
  #allocation1 [shape = 'u32[72,128]{1,0:T(1,128)}', space=vmem, size = 0x9000, scoped, tag = 'internal scratch']
  %s0 = inlined_call_operand.vmem [shape: f32[784,768], index: 0, kind: input, shape index: {}]
  %s1 = inlined_call_operand.vmem [shape: bf16[768,64], index: 1, kind: input, shape index: {}]
  %s2 = inlined_call_operand.vmem [shape: f32[1,64], index: 2, kind: input, shape index: {}]
  %s3 = inlined_call_operand.vmem [shape: f32[784,64], index: 3, kind: output, shape index: {}]
  %s4 = sld [smem:[#allocation0]]
  $region93: #{wcl_forward.15} parent=0
    _
  %s6 = ssub.s32 1, %s4
  %s7 = scalar_select 0, %s6, %s4
  $region1: #{wcl_forward.15} parent=0
    #allocation2 [shape = 'u8[262144]{0}', space=vmem, size = 0x40000, scoped, tag = 'output window, operand 0']
    loop: start=0, step=1, limit=6
    $region2: #{wcl_forward.15} parent=1 // loop_pre_header
      _
    $region3: #{wcl_forward.15} parent=1 // loop_header
      %s9 = sphi 0, %s13
      %p10 = scmp.ge.s32.totalorder %s9, 6
      %s19 = sphi 0, %s21
      %s22 = sphi 0, %s19
      %s23 = sphi 0, %s22
      %s39 = sphi 0, %s23
      %s43 = sphi 0, %s43
      %s45 = sphi 0, %s43
      %s46 = sphi 0, %s45
      %s60 = sphi 0, %s46
      %s64 = sphi 0, %s64
      %s66 = sphi 0, %s64
      %s67 = sphi 0, %s66
      %s81 = sphi 0, %s67
      %s87 = sphi 0, %s89
      %s90 = sphi 0, %s87
      %s91 = sphi 0, %s90
      %s107 = sphi 0, %s91
    $region4: #{wcl_forward.15} parent=1 // loop_header_branch
      %12 = sbr.rel (%p10) target = $region8
    $region5: #{wcl_forward.15} parent=1 // loop_body
      %s14 = ssub.s32 %s9, 1
      %s15 = ssub.s32 %s9, 2
      %s16 = sadd.s32 %s9, 1
      %s17 = ssub.s32 %s9, %s16
      %p18 = scmp.eq.s32.totalorder %s17, 0
      %s20 = sadd.s32 %s19, 1
      %s21 = scalar_select %p18, %s19, %s20
      %p24 = pneg %p18
      %p25 = scmp.eq.s32.totalorder %s9, 3
      %p26 = por %p24, %p25
      %p27 = scmp.ne.s32.totalorder %s19, %s22
      %p28 = scmp.eq.s32.totalorder %s9, 0
      %p29 = por %p27, %p28
      %p30 = scmp.ne.s32.totalorder %s19, %s22
      %p31 = scmp.eq.s32.totalorder %s14, 3
      %p32 = por %p30, %p31
      %p33 = scmp.ne.s32.totalorder %s22, %s23
      %p34 = scmp.eq.s32.totalorder %s14, 0
      %p35 = por %p33, %p34
      %p36 = scmp.ne.s32.totalorder %s22, %s23
      %p37 = scmp.eq.s32.totalorder %s15, 3
      %p38 = por %p36, %p37
      %p40 = scmp.ne.s32.totalorder %s23, %s39
      %p41 = scmp.eq.s32.totalorder %s15, 0
      %p42 = por %p40, %p41
      %s44 = sadd.s32 %s43, 1
      %p47 = scmp.eq.s32.totalorder %s9, 3
      %p48 = scmp.ne.s32.totalorder %s43, %s45
      %p49 = scmp.eq.s32.totalorder %s9, 0
      %p50 = por %p48, %p49
      %p51 = scmp.ne.s32.totalorder %s43, %s45
      %p52 = scmp.eq.s32.totalorder %s14, 3
      %p53 = por %p51, %p52
      %p54 = scmp.ne.s32.totalorder %s45, %s46
      %p55 = scmp.eq.s32.totalorder %s14, 0
      %p56 = por %p54, %p55
      %p57 = scmp.ne.s32.totalorder %s45, %s46
      %p58 = scmp.eq.s32.totalorder %s15, 3
      %p59 = por %p57, %p58
      %p61 = scmp.ne.s32.totalorder %s46, %s60
      %p62 = scmp.eq.s32.totalorder %s15, 0
      %p63 = por %p61, %p62
      %s65 = sadd.s32 %s64, 1
      %p68 = scmp.eq.s32.totalorder %s9, 3
      %p69 = scmp.ne.s32.totalorder %s64, %s66
      %p70 = scmp.eq.s32.totalorder %s9, 0
      %p71 = por %p69, %p70
      %p72 = scmp.ne.s32.totalorder %s64, %s66
      %p73 = scmp.eq.s32.totalorder %s14, 3
      %p74 = por %p72, %p73
      %p75 = scmp.ne.s32.totalorder %s66, %s67
      %p76 = scmp.eq.s32.totalorder %s14, 0
      %p77 = por %p75, %p76
      %p78 = scmp.ne.s32.totalorder %s66, %s67
      %p79 = scmp.eq.s32.totalorder %s15, 3
      %p80 = por %p78, %p79
      %p82 = scmp.ne.s32.totalorder %s67, %s81
      %p83 = scmp.eq.s32.totalorder %s15, 0
      %p84 = por %p82, %p83
      %s85 = ssub.s32 %s9, %s16
      %p86 = scmp.eq.s32.totalorder %s85, 0
      %s88 = sadd.s32 %s87, 1
      %s89 = scalar_select %p86, %s87, %s88
      %p92 = pneg %p86
      %p93 = scmp.eq.s32.totalorder %s9, 3
      %p94 = por %p92, %p93
      %p95 = scmp.ne.s32.totalorder %s87, %s90
      %p96 = scmp.eq.s32.totalorder %s9, 0
      %p97 = por %p95, %p96
      %p98 = scmp.ne.s32.totalorder %s87, %s90
      %p99 = scmp.eq.s32.totalorder %s14, 3
      %p100 = por %p98, %p99
      %p101 = scmp.ne.s32.totalorder %s90, %s91
      %p102 = scmp.eq.s32.totalorder %s14, 0
      %p103 = por %p101, %p102
      %p104 = scmp.ne.s32.totalorder %s90, %s91
      %p105 = scmp.eq.s32.totalorder %s15, 3
      %p106 = por %p104, %p105
      %p108 = scmp.ne.s32.totalorder %s91, %s107
      %p109 = scmp.eq.s32.totalorder %s15, 0
      %p110 = por %p108, %p109
      %p111 = scmp.le.s32.totalorder 1, %s9
      %p112 = scmp.lt.s32.totalorder %s9, 5
      %p113 = pnand %p111, %p112
      %p114 = pneg %p113
      // Predicated region
      $region9: #{wcl_forward.15} parent=5 // pred_check
        _
      $region10: #{wcl_forward.15} parent=5 // pred_check_branch
        %116 = sbr.rel (%p113) target = $region12
      $region11: #{wcl_forward.15} parent=5 // pred_region
        %s117 = ssub.s32 %s9, 1
        // Predicated region
        $region13: #{wcl_forward.15} parent=11 // pred_check
          %p118 = pneg %p56
        $region14: #{wcl_forward.15} parent=11 // pred_check_branch
          %120 = sbr.rel (%p118) target = $region16
        $region15: #{wcl_forward.15} parent=11 // pred_region
          _
        $region16: #{wcl_forward.15} parent=11 // pred_fallthru
          _
        // Predicated region
        $region17: #{wcl_forward.15} parent=11 // pred_check
          %p121 = pneg %p77
        $region18: #{wcl_forward.15} parent=11 // pred_check_branch
          %123 = sbr.rel (%p121) target = $region20
        $region19: #{wcl_forward.15} parent=11 // pred_region
          _
        $region20: #{wcl_forward.15} parent=11 // pred_fallthru
          _
      $region12: #{wcl_forward.15} parent=5 // pred_fallthru
        _
      %p124 = scmp.lt.s32.totalorder %s9, 4
      // Predicated region
      $region21: #{wcl_forward.15} parent=5 // pred_check
        %p125 = pneg %p124
      $region22: #{wcl_forward.15} parent=5 // pred_check_branch
        %127 = sbr.rel (%p125) target = $region24
      $region23: #{wcl_forward.15} parent=5 // pred_region
        // Predicated region
        $region25: #{wcl_forward.15} parent=23 // pred_check
          %p128 = pneg %p29
        $region26: #{wcl_forward.15} parent=23 // pred_check_branch
          %130 = sbr.rel (%p128) target = $region28
        $region27: #{wcl_forward.15} parent=23 // pred_region
          %s131 = smul.u32 32, %s9
          %s132 = ssub.s32 98, %s131
          %p133 = scmp.lt.s32.totalorder %s132, 32
          %s134 = scalar_select %p133, %s132, 32
          %s135 = smul.u32 8, %s134
          %s136 = smul.u32 %s135, 6
          %p137 = scmp.lt.s32.totalorder %s131, 97
          %s138 = scalar_select %p137, %s131, 97
          %s139 = smul.addr %s138, 6
          %s140 = smul.addr %s139, 8
          %s141 = scalar_lea.vmem %s0, %s140
          %s142 = smul.u32 32, %s9
          %s143 = ssub.s32 98, %s142
          %p144 = scmp.lt.s32.totalorder %s143, 32
          %s145 = scalar_select %p144, %s143, 32
          %s146 = smul.u32 8, %s145
          %s147 = smul.u32 %s146, 6
        $region28: #{wcl_forward.15} parent=23 // pred_fallthru
          _
      $region24: #{wcl_forward.15} parent=5 // pred_fallthru
        _
      %p148 = scmp.le.s32.totalorder 1, %s9
      %p149 = scmp.lt.s32.totalorder %s9, 5
      %p150 = pnand %p148, %p149
      %p151 = pneg %p150
      // Predicated region
      $region29: #{wcl_forward.15} parent=5 // pred_check
        _
      $region30: #{wcl_forward.15} parent=5 // pred_check_branch
        %153 = sbr.rel (%p150) target = $region32
      $region31: #{wcl_forward.15} parent=5 // pred_region
        %s154 = ssub.s32 %s9, 1
        %s155 = smul.u32 32, %s14
        %s156 = ssub.s32 98, %s155
        %p157 = scmp.lt.s32.totalorder %s156, 32
        %s158 = scalar_select %p157, %s156, 32
        %s159 = smul.u32 8, %s158
        %s160 = smul.u32 %s159, 6
        %p161 = scmp.lt.s32.totalorder %s155, 97
        %s162 = scalar_select %p161, %s155, 97
        %s163 = smul.addr %s162, 6
        %s164 = smul.addr %s163, 8
        %s165 = scalar_lea.vmem %s0, %s164
        %p166 = pneg %p35
        %p167 = pneg %p32
        %p168 = pneg %p56
        %p169 = pneg %p53
        %p170 = pneg %p77
        %p171 = pneg %p74
        %p172 = pneg %p103
        %p173 = pneg %p100
        %s174 = sand.u32 %s90, 1
        %s175 = sand.u32 %s90, 1
        %s176 = smul.addr %s175, 256
        %s177 = scalar_lea.vmem [#allocation2], %s176
        %s178 = smul.u32 32, %s14
        %s179 = ssub.s32 98, %s178
        %p180 = scmp.lt.s32.totalorder %s179, 32
        %s181 = scalar_select %p180, %s179, 32
        %s182 = smul.u32 8, %s181
        %s183 = smul.u32 %s182, 6
        %p184 = scmp.lt.s32.totalorder %s178, 97
        %s185 = scalar_select %p184, %s178, 97
        %s186 = smul.addr %s185, 6
        %s187 = smul.addr %s186, 8
        %s188 = scalar_lea.vmem %s0, %s187
        %s189 = smul.u32 32, %s14
        %s190 = ssub.s32 98, %s189
        %p191 = scmp.lt.s32.totalorder %s190, 32
        %s192 = scalar_select %p191, %s190, 32
        %s193 = smul.u32 8, %s192
        %s194 = smul.u32 %s193, 6
        %s195 = smul.u32 32, %s14
        %s196 = ssub.s32 98, %s195
        %p197 = scmp.lt.s32.totalorder %s196, 32
        %s198 = scalar_select %p197, %s196, 32
        %s199 = smul.u32 8, %s198
        %v200 = vld [vmem:[%s188] sm:$0xff]
        %v201 = vld [vmem:[%s188 + $0x8] sm:$0xff]
        %v202 = vld [vmem:[%s188 + $0x10] sm:$0xff]
        %v203 = vld [vmem:[%s188 + $0x18] sm:$0xff]
        %v204 = vld [vmem:[%s188 + $0x20] sm:$0xff]
        %v205 = vld [vmem:[%s188 + $0x28] sm:$0xff]
        %v206 = vld [vmem:[%s188 + $0x30] sm:$0xff]
        %v207 = vld [vmem:[%s188 + $0x38] sm:$0xff]
        %v208 = vld [vmem:[%s188 + $0x40] sm:$0xff]
        %v209 = vld [vmem:[%s188 + $0x48] sm:$0xff]
        %v210 = vld [vmem:[%s188 + $0x50] sm:$0xff]
        %v211 = vld [vmem:[%s188 + $0x58] sm:$0xff]
        %v212 = vld [vmem:[%s188 + $0x60] sm:$0xff]
        %v213 = vld [vmem:[%s188 + $0x68] sm:$0xff]
        %v214 = vld [vmem:[%s188 + $0x70] sm:$0xff]
        %v215 = vld [vmem:[%s188 + $0x78] sm:$0xff]
        %v216 = vld [vmem:[%s188 + $0x80] sm:$0xff]
        %v217 = vld [vmem:[%s188 + $0x88] sm:$0xff]
        %v218 = vld [vmem:[%s188 + $0x90] sm:$0xff]
        %v219 = vld [vmem:[%s188 + $0x98] sm:$0xff]
        %v220 = vld [vmem:[%s188 + $0xa0] sm:$0xff]
        %v221 = vld [vmem:[%s188 + $0xa8] sm:$0xff]
        %v222 = vld [vmem:[%s188 + $0xb0] sm:$0xff]
        %v223 = vld [vmem:[%s188 + $0xb8] sm:$0xff]
        %v224 = vld [vmem:[%s188 + $0xc0] sm:$0xff]
        %v225 = vld [vmem:[%s188 + $0xc8] sm:$0xff]
        %v226 = vld [vmem:[%s188 + $0xd0] sm:$0xff]
        %v227 = vld [vmem:[%s188 + $0xd8] sm:$0xff]
        %v228 = vld [vmem:[%s188 + $0xe0] sm:$0xff]
        %v229 = vld [vmem:[%s188 + $0xe8] sm:$0xff]
        %v230 = vld [vmem:[%s188 + $0xf0] sm:$0xff]
        %v231 = vld [vmem:[%s188 + $0xf8] sm:$0xff]
        %v232 = vld [vmem:[%s188 + $0x100] sm:$0xff]
        %v233 = vld [vmem:[%s188 + $0x108] sm:$0xff]
        %v234 = vld [vmem:[%s188 + $0x110] sm:$0xff]
        %v235 = vld [vmem:[%s188 + $0x118] sm:$0xff]
        %v236 = vld [vmem:[%s188 + $0x120] sm:$0xff]
        %v237 = vld [vmem:[%s188 + $0x128] sm:$0xff]
        %v238 = vld [vmem:[%s188 + $0x130] sm:$0xff]
        %v239 = vld [vmem:[%s188 + $0x138] sm:$0xff]
        %v240 = vld [vmem:[%s188 + $0x140] sm:$0xff]
        %v241 = vld [vmem:[%s188 + $0x148] sm:$0xff]
        %v242 = vld [vmem:[%s188 + $0x150] sm:$0xff]
        %v243 = vld [vmem:[%s188 + $0x158] sm:$0xff]
        %v244 = vld [vmem:[%s188 + $0x160] sm:$0xff]
        %v245 = vld [vmem:[%s188 + $0x168] sm:$0xff]
        %v246 = vld [vmem:[%s188 + $0x170] sm:$0xff]
        %v247 = vld [vmem:[%s188 + $0x178] sm:$0xff]
        %v248 = vld [vmem:[%s188 + $0x180] sm:$0xff]
        %v249 = vld [vmem:[%s188 + $0x188] sm:$0xff]
        %v250 = vld [vmem:[%s188 + $0x190] sm:$0xff]
        %v251 = vld [vmem:[%s188 + $0x198] sm:$0xff]
        %v252 = vld [vmem:[%s188 + $0x1a0] sm:$0xff]
        %v253 = vld [vmem:[%s188 + $0x1a8] sm:$0xff]
        %v254 = vld [vmem:[%s188 + $0x1b0] sm:$0xff]
        %v255 = vld [vmem:[%s188 + $0x1b8] sm:$0xff]
        %v256 = vld [vmem:[%s188 + $0x1c0] sm:$0xff]
        %v257 = vld [vmem:[%s188 + $0x1c8] sm:$0xff]
        %v258 = vld [vmem:[%s188 + $0x1d0] sm:$0xff]
        %v259 = vld [vmem:[%s188 + $0x1d8] sm:$0xff]
        %v260 = vld [vmem:[%s188 + $0x1e0] sm:$0xff]
        %v261 = vld [vmem:[%s188 + $0x1e8] sm:$0xff]
        %v262 = vld [vmem:[%s188 + $0x1f0] sm:$0xff]
        %v263 = vld [vmem:[%s188 + $0x1f8] sm:$0xff]
        %v264 = vld [vmem:[%s188 + $0x200] sm:$0xff]
        %v265 = vld [vmem:[%s188 + $0x208] sm:$0xff]
        %v266 = vld [vmem:[%s188 + $0x210] sm:$0xff]
        %v267 = vld [vmem:[%s188 + $0x218] sm:$0xff]
        %v268 = vld [vmem:[%s188 + $0x220] sm:$0xff]
        %v269 = vld [vmem:[%s188 + $0x228] sm:$0xff]
        %v270 = vld [vmem:[%s188 + $0x230] sm:$0xff]
        %v271 = vld [vmem:[%s188 + $0x238] sm:$0xff]
        %v272 = vld [vmem:[%s188 + $0x240] sm:$0xff]
        %v273 = vld [vmem:[%s188 + $0x248] sm:$0xff]
        %v274 = vld [vmem:[%s188 + $0x250] sm:$0xff]
        %v275 = vld [vmem:[%s188 + $0x258] sm:$0xff]
        %v276 = vld [vmem:[%s188 + $0x260] sm:$0xff]
        %v277 = vld [vmem:[%s188 + $0x268] sm:$0xff]
        %v278 = vld [vmem:[%s188 + $0x270] sm:$0xff]
        %v279 = vld [vmem:[%s188 + $0x278] sm:$0xff]
        %v280 = vld [vmem:[%s188 + $0x280] sm:$0xff]
        %v281 = vld [vmem:[%s188 + $0x288] sm:$0xff]
        %v282 = vld [vmem:[%s188 + $0x290] sm:$0xff]
        %v283 = vld [vmem:[%s188 + $0x298] sm:$0xff]
        %v284 = vld [vmem:[%s188 + $0x2a0] sm:$0xff]
        %v285 = vld [vmem:[%s188 + $0x2a8] sm:$0xff]
        %v286 = vld [vmem:[%s188 + $0x2b0] sm:$0xff]
        %v287 = vld [vmem:[%s188 + $0x2b8] sm:$0xff]
        %v288 = vld [vmem:[%s188 + $0x2c0] sm:$0xff]
        %v289 = vld [vmem:[%s188 + $0x2c8] sm:$0xff]
        %v290 = vld [vmem:[%s188 + $0x2d0] sm:$0xff]
        %v291 = vld [vmem:[%s188 + $0x2d8] sm:$0xff]
        %v292 = vld [vmem:[%s188 + $0x2e0] sm:$0xff]
        %v293 = vld [vmem:[%s188 + $0x2e8] sm:$0xff]
        %v294 = vld [vmem:[%s188 + $0x2f0] sm:$0xff]
        %v295 = vld [vmem:[%s188 + $0x2f8] sm:$0xff]
        %v296 = vld [vmem:[%s188 + $0x300] sm:$0xff]
        %v297 = vld [vmem:[%s188 + $0x308] sm:$0xff]
        %v298 = vld [vmem:[%s188 + $0x310] sm:$0xff]
        %v299 = vld [vmem:[%s188 + $0x318] sm:$0xff]
        %v300 = vld [vmem:[%s188 + $0x320] sm:$0xff]
        %v301 = vld [vmem:[%s188 + $0x328] sm:$0xff]
        %v302 = vld [vmem:[%s188 + $0x330] sm:$0xff]
        %v303 = vld [vmem:[%s188 + $0x338] sm:$0xff]
        %v304 = vld [vmem:[%s188 + $0x340] sm:$0xff]
        %v305 = vld [vmem:[%s188 + $0x348] sm:$0xff]
        %v306 = vld [vmem:[%s188 + $0x350] sm:$0xff]
        %v307 = vld [vmem:[%s188 + $0x358] sm:$0xff]
        %v308 = vld [vmem:[%s188 + $0x360] sm:$0xff]
        %v309 = vld [vmem:[%s188 + $0x368] sm:$0xff]
        %v310 = vld [vmem:[%s188 + $0x370] sm:$0xff]
        %v311 = vld [vmem:[%s188 + $0x378] sm:$0xff]
        %v312 = vld [vmem:[%s188 + $0x380] sm:$0xff]
        %v313 = vld [vmem:[%s188 + $0x388] sm:$0xff]
        %v314 = vld [vmem:[%s188 + $0x390] sm:$0xff]
        %v315 = vld [vmem:[%s188 + $0x398] sm:$0xff]
        %v316 = vld [vmem:[%s188 + $0x3a0] sm:$0xff]
        %v317 = vld [vmem:[%s188 + $0x3a8] sm:$0xff]
        %v318 = vld [vmem:[%s188 + $0x3b0] sm:$0xff]
        %v319 = vld [vmem:[%s188 + $0x3b8] sm:$0xff]
        %v320 = vld [vmem:[%s188 + $0x3c0] sm:$0xff]
        %v321 = vld [vmem:[%s188 + $0x3c8] sm:$0xff]
        %v322 = vld [vmem:[%s188 + $0x3d0] sm:$0xff]
        %v323 = vld [vmem:[%s188 + $0x3d8] sm:$0xff]
        %v324 = vld [vmem:[%s188 + $0x3e0] sm:$0xff]
        %v325 = vld [vmem:[%s188 + $0x3e8] sm:$0xff]
        %v326 = vld [vmem:[%s188 + $0x3f0] sm:$0xff]
        %v327 = vld [vmem:[%s188 + $0x3f8] sm:$0xff]
        %v328 = vld [vmem:[%s188 + $0x400] sm:$0xff]
        %v329 = vld [vmem:[%s188 + $0x408] sm:$0xff]
        %v330 = vld [vmem:[%s188 + $0x410] sm:$0xff]
        %v331 = vld [vmem:[%s188 + $0x418] sm:$0xff]
        %v332 = vld [vmem:[%s188 + $0x420] sm:$0xff]
        %v333 = vld [vmem:[%s188 + $0x428] sm:$0xff]
        %v334 = vld [vmem:[%s188 + $0x430] sm:$0xff]
        %v335 = vld [vmem:[%s188 + $0x438] sm:$0xff]
        %v336 = vld [vmem:[%s188 + $0x440] sm:$0xff]
        %v337 = vld [vmem:[%s188 + $0x448] sm:$0xff]
        %v338 = vld [vmem:[%s188 + $0x450] sm:$0xff]
        %v339 = vld [vmem:[%s188 + $0x458] sm:$0xff]
        %v340 = vld [vmem:[%s188 + $0x460] sm:$0xff]
        %v341 = vld [vmem:[%s188 + $0x468] sm:$0xff]
        %v342 = vld [vmem:[%s188 + $0x470] sm:$0xff]
        %v343 = vld [vmem:[%s188 + $0x478] sm:$0xff]
        %v344 = vld [vmem:[%s188 + $0x480] sm:$0xff]
        %v345 = vld [vmem:[%s188 + $0x488] sm:$0xff]
        %v346 = vld [vmem:[%s188 + $0x490] sm:$0xff]
        %v347 = vld [vmem:[%s188 + $0x498] sm:$0xff]
        %v348 = vld [vmem:[%s188 + $0x4a0] sm:$0xff]
        %v349 = vld [vmem:[%s188 + $0x4a8] sm:$0xff]
        %v350 = vld [vmem:[%s188 + $0x4b0] sm:$0xff]
        %v351 = vld [vmem:[%s188 + $0x4b8] sm:$0xff]
        %v352 = vld [vmem:[%s188 + $0x4c0] sm:$0xff]
        %v353 = vld [vmem:[%s188 + $0x4c8] sm:$0xff]
        %v354 = vld [vmem:[%s188 + $0x4d0] sm:$0xff]
        %v355 = vld [vmem:[%s188 + $0x4d8] sm:$0xff]
        %v356 = vld [vmem:[%s188 + $0x4e0] sm:$0xff]
        %v357 = vld [vmem:[%s188 + $0x4e8] sm:$0xff]
        %v358 = vld [vmem:[%s188 + $0x4f0] sm:$0xff]
        %v359 = vld [vmem:[%s188 + $0x4f8] sm:$0xff]
        %v360 = vld [vmem:[%s188 + $0x500] sm:$0xff]
        %v361 = vld [vmem:[%s188 + $0x508] sm:$0xff]
        %v362 = vld [vmem:[%s188 + $0x510] sm:$0xff]
        %v363 = vld [vmem:[%s188 + $0x518] sm:$0xff]
        %v364 = vld [vmem:[%s188 + $0x520] sm:$0xff]
        %v365 = vld [vmem:[%s188 + $0x528] sm:$0xff]
        %v366 = vld [vmem:[%s188 + $0x530] sm:$0xff]
        %v367 = vld [vmem:[%s188 + $0x538] sm:$0xff]
        %v368 = vld [vmem:[%s188 + $0x540] sm:$0xff]
        %v369 = vld [vmem:[%s188 + $0x548] sm:$0xff]
        %v370 = vld [vmem:[%s188 + $0x550] sm:$0xff]
        %v371 = vld [vmem:[%s188 + $0x558] sm:$0xff]
        %v372 = vld [vmem:[%s188 + $0x560] sm:$0xff]
        %v373 = vld [vmem:[%s188 + $0x568] sm:$0xff]
        %v374 = vld [vmem:[%s188 + $0x570] sm:$0xff]
        %v375 = vld [vmem:[%s188 + $0x578] sm:$0xff]
        %v376 = vld [vmem:[%s188 + $0x580] sm:$0xff]
        %v377 = vld [vmem:[%s188 + $0x588] sm:$0xff]
        %v378 = vld [vmem:[%s188 + $0x590] sm:$0xff]
        %v379 = vld [vmem:[%s188 + $0x598] sm:$0xff]
        %v380 = vld [vmem:[%s188 + $0x5a0] sm:$0xff]
        %v381 = vld [vmem:[%s188 + $0x5a8] sm:$0xff]
        %v382 = vld [vmem:[%s188 + $0x5b0] sm:$0xff]
        %v383 = vld [vmem:[%s188 + $0x5b8] sm:$0xff]
        %v384 = vld [vmem:[%s188 + $0x5c0] sm:$0xff]
        %v385 = vld [vmem:[%s188 + $0x5c8] sm:$0xff]
        %v386 = vld [vmem:[%s188 + $0x5d0] sm:$0xff]
        %v387 = vld [vmem:[%s188 + $0x5d8] sm:$0xff]
        %v388 = vld [vmem:[%s188 + $0x5e0] sm:$0xff]
        %v389 = vld [vmem:[%s188 + $0x5e8] sm:$0xff]
        %v390 = vld [vmem:[%s188 + $0x5f0] sm:$0xff]
        %v391 = vld [vmem:[%s188 + $0x5f8] sm:$0xff]
        %v392 = vpack.c.bf16 %v206, %v200
        %v393 = vpack.c.bf16 %v207, %v201
        %v394 = vpack.c.bf16 %v208, %v202
        %v395 = vpack.c.bf16 %v209, %v203
        %v396 = vpack.c.bf16 %v210, %v204
        %v397 = vpack.c.bf16 %v211, %v205
        %v398 = vpack.c.bf16 %v218, %v212
        %v399 = vpack.c.bf16 %v219, %v213
        %v400 = vpack.c.bf16 %v220, %v214
        %v401 = vpack.c.bf16 %v221, %v215
        %v402 = vpack.c.bf16 %v222, %v216
        %v403 = vpack.c.bf16 %v223, %v217
        %v404 = vpack.c.bf16 %v230, %v224
        %v405 = vpack.c.bf16 %v231, %v225
        %v406 = vpack.c.bf16 %v232, %v226
        %v407 = vpack.c.bf16 %v233, %v227
        %v408 = vpack.c.bf16 %v234, %v228
        %v409 = vpack.c.bf16 %v235, %v229
        %v410 = vpack.c.bf16 %v242, %v236
        %v411 = vpack.c.bf16 %v243, %v237
        %v412 = vpack.c.bf16 %v244, %v238
        %v413 = vpack.c.bf16 %v245, %v239
        %v414 = vpack.c.bf16 %v246, %v240
        %v415 = vpack.c.bf16 %v247, %v241
        %v416 = vpack.c.bf16 %v254, %v248
        %v417 = vpack.c.bf16 %v255, %v249
        %v418 = vpack.c.bf16 %v256, %v250
        %v419 = vpack.c.bf16 %v257, %v251
        %v420 = vpack.c.bf16 %v258, %v252
        %v421 = vpack.c.bf16 %v259, %v253
        %v422 = vpack.c.bf16 %v266, %v260
        %v423 = vpack.c.bf16 %v267, %v261
        %v424 = vpack.c.bf16 %v268, %v262
        %v425 = vpack.c.bf16 %v269, %v263
        %v426 = vpack.c.bf16 %v270, %v264
        %v427 = vpack.c.bf16 %v271, %v265
        %v428 = vpack.c.bf16 %v278, %v272
        %v429 = vpack.c.bf16 %v279, %v273
        %v430 = vpack.c.bf16 %v280, %v274
        %v431 = vpack.c.bf16 %v281, %v275
        %v432 = vpack.c.bf16 %v282, %v276
        %v433 = vpack.c.bf16 %v283, %v277
        %v434 = vpack.c.bf16 %v290, %v284
        %v435 = vpack.c.bf16 %v291, %v285
        %v436 = vpack.c.bf16 %v292, %v286
        %v437 = vpack.c.bf16 %v293, %v287
        %v438 = vpack.c.bf16 %v294, %v288
        %v439 = vpack.c.bf16 %v295, %v289
        %v440 = vpack.c.bf16 %v302, %v296
        %v441 = vpack.c.bf16 %v303, %v297
        %v442 = vpack.c.bf16 %v304, %v298
        %v443 = vpack.c.bf16 %v305, %v299
        %v444 = vpack.c.bf16 %v306, %v300
        %v445 = vpack.c.bf16 %v307, %v301
        %v446 = vpack.c.bf16 %v314, %v308
        %v447 = vpack.c.bf16 %v315, %v309
        %v448 = vpack.c.bf16 %v316, %v310
        %v449 = vpack.c.bf16 %v317, %v311
        %v450 = vpack.c.bf16 %v318, %v312
        %v451 = vpack.c.bf16 %v319, %v313
        %v452 = vpack.c.bf16 %v326, %v320
        %v453 = vpack.c.bf16 %v327, %v321
        %v454 = vpack.c.bf16 %v328, %v322
        %v455 = vpack.c.bf16 %v329, %v323
        %v456 = vpack.c.bf16 %v330, %v324
        %v457 = vpack.c.bf16 %v331, %v325
        %v458 = vpack.c.bf16 %v338, %v332
        %v459 = vpack.c.bf16 %v339, %v333
        %v460 = vpack.c.bf16 %v340, %v334
        %v461 = vpack.c.bf16 %v341, %v335
        %v462 = vpack.c.bf16 %v342, %v336
        %v463 = vpack.c.bf16 %v343, %v337
        %v464 = vpack.c.bf16 %v350, %v344
        %v465 = vpack.c.bf16 %v351, %v345
        %v466 = vpack.c.bf16 %v352, %v346
        %v467 = vpack.c.bf16 %v353, %v347
        %v468 = vpack.c.bf16 %v354, %v348
        %v469 = vpack.c.bf16 %v355, %v349
        %v470 = vpack.c.bf16 %v362, %v356
        %v471 = vpack.c.bf16 %v363, %v357
        %v472 = vpack.c.bf16 %v364, %v358
        %v473 = vpack.c.bf16 %v365, %v359
        %v474 = vpack.c.bf16 %v366, %v360
        %v475 = vpack.c.bf16 %v367, %v361
        %v476 = vpack.c.bf16 %v374, %v368
        %v477 = vpack.c.bf16 %v375, %v369
        %v478 = vpack.c.bf16 %v376, %v370
        %v479 = vpack.c.bf16 %v377, %v371
        %v480 = vpack.c.bf16 %v378, %v372
        %v481 = vpack.c.bf16 %v379, %v373
        %v482 = vpack.c.bf16 %v386, %v380
        %v483 = vpack.c.bf16 %v387, %v381
        %v484 = vpack.c.bf16 %v388, %v382
        %v485 = vpack.c.bf16 %v389, %v383
        %v486 = vpack.c.bf16 %v390, %v384
        %v487 = vpack.c.bf16 %v391, %v385
        %v488 = vld [vmem:[%s1] sm:$0xf]
        %v489 = vld [vmem:[%s1 + $0x4] sm:$0xf]
        %v490 = vld [vmem:[%s1 + $0x8] sm:$0xf]
        %v491 = vld [vmem:[%s1 + $0xc] sm:$0xf]
        %v492 = vld [vmem:[%s1 + $0x10] sm:$0xf]
        %v493 = vld [vmem:[%s1 + $0x14] sm:$0xf]
        %v494 = vld [vmem:[%s1 + $0x18] sm:$0xf]
        %v495 = vld [vmem:[%s1 + $0x1c] sm:$0xf]
        %v496 = vld [vmem:[%s1 + $0x20] sm:$0xf]
        %v497 = vld [vmem:[%s1 + $0x24] sm:$0xf]
        %v498 = vld [vmem:[%s1 + $0x28] sm:$0xf]
        %v499 = vld [vmem:[%s1 + $0x2c] sm:$0xf]
        %v500 = vld [vmem:[%s1 + $0x30] sm:$0xf]
        %v501 = vld [vmem:[%s1 + $0x34] sm:$0xf]
        %v502 = vld [vmem:[%s1 + $0x38] sm:$0xf]
        %v503 = vld [vmem:[%s1 + $0x3c] sm:$0xf]
        %v504 = vld [vmem:[%s1 + $0x40] sm:$0xf]
        %v505 = vld [vmem:[%s1 + $0x44] sm:$0xf]
        %v506 = vld [vmem:[%s1 + $0x48] sm:$0xf]
        %v507 = vld [vmem:[%s1 + $0x4c] sm:$0xf]
        %v508 = vld [vmem:[%s1 + $0x50] sm:$0xf]
        %v509 = vld [vmem:[%s1 + $0x54] sm:$0xf]
        %v510 = vld [vmem:[%s1 + $0x58] sm:$0xf]
        %v511 = vld [vmem:[%s1 + $0x5c] sm:$0xf]
        %v512 = vld [vmem:[%s1 + $0x60] sm:$0xf]
        %v513 = vld [vmem:[%s1 + $0x64] sm:$0xf]
        %v514 = vld [vmem:[%s1 + $0x68] sm:$0xf]
        %v515 = vld [vmem:[%s1 + $0x6c] sm:$0xf]
        %v516 = vld [vmem:[%s1 + $0x70] sm:$0xf]
        %v517 = vld [vmem:[%s1 + $0x74] sm:$0xf]
        %v518 = vld [vmem:[%s1 + $0x78] sm:$0xf]
        %v519 = vld [vmem:[%s1 + $0x7c] sm:$0xf]
        %v520 = vld [vmem:[%s1 + $0x80] sm:$0xf]
        %v521 = vld [vmem:[%s1 + $0x84] sm:$0xf]
        %v522 = vld [vmem:[%s1 + $0x88] sm:$0xf]
        %v523 = vld [vmem:[%s1 + $0x8c] sm:$0xf]
        %v524 = vld [vmem:[%s1 + $0x90] sm:$0xf]
        %v525 = vld [vmem:[%s1 + $0x94] sm:$0xf]
        %v526 = vld [vmem:[%s1 + $0x98] sm:$0xf]
        %v527 = vld [vmem:[%s1 + $0x9c] sm:$0xf]
        %v528 = vld [vmem:[%s1 + $0xa0] sm:$0xf]
        %v529 = vld [vmem:[%s1 + $0xa4] sm:$0xf]
        %v530 = vld [vmem:[%s1 + $0xa8] sm:$0xf]
        %v531 = vld [vmem:[%s1 + $0xac] sm:$0xf]
        %v532 = vld [vmem:[%s1 + $0xb0] sm:$0xf]
        %v533 = vld [vmem:[%s1 + $0xb4] sm:$0xf]
        %v534 = vld [vmem:[%s1 + $0xb8] sm:$0xf]
        %v535 = vld [vmem:[%s1 + $0xbc] sm:$0xf]
        %v536 = vld [vmem:[%s1 + $0xc0] sm:$0xf]
        %v537 = vld [vmem:[%s1 + $0xc4] sm:$0xf]
        %v538 = vld [vmem:[%s1 + $0xc8] sm:$0xf]
        %v539 = vld [vmem:[%s1 + $0xcc] sm:$0xf]
        %v540 = vld [vmem:[%s1 + $0xd0] sm:$0xf]
        %v541 = vld [vmem:[%s1 + $0xd4] sm:$0xf]
        %v542 = vld [vmem:[%s1 + $0xd8] sm:$0xf]
        %v543 = vld [vmem:[%s1 + $0xdc] sm:$0xf]
        %v544 = vld [vmem:[%s1 + $0xe0] sm:$0xf]
        %v545 = vld [vmem:[%s1 + $0xe4] sm:$0xf]
        %v546 = vld [vmem:[%s1 + $0xe8] sm:$0xf]
        %v547 = vld [vmem:[%s1 + $0xec] sm:$0xf]
        %v548 = vld [vmem:[%s1 + $0xf0] sm:$0xf]
        %v549 = vld [vmem:[%s1 + $0xf4] sm:$0xf]
        %v550 = vld [vmem:[%s1 + $0xf8] sm:$0xf]
        %v551 = vld [vmem:[%s1 + $0xfc] sm:$0xf]
        %v552 = vld [vmem:[%s1 + $0x100] sm:$0xf]
        %v553 = vld [vmem:[%s1 + $0x104] sm:$0xf]
        %v554 = vld [vmem:[%s1 + $0x108] sm:$0xf]
        %v555 = vld [vmem:[%s1 + $0x10c] sm:$0xf]
        %v556 = vld [vmem:[%s1 + $0x110] sm:$0xf]
        %v557 = vld [vmem:[%s1 + $0x114] sm:$0xf]
        %v558 = vld [vmem:[%s1 + $0x118] sm:$0xf]
        %v559 = vld [vmem:[%s1 + $0x11c] sm:$0xf]
        %v560 = vld [vmem:[%s1 + $0x120] sm:$0xf]
        %v561 = vld [vmem:[%s1 + $0x124] sm:$0xf]
        %v562 = vld [vmem:[%s1 + $0x128] sm:$0xf]
        %v563 = vld [vmem:[%s1 + $0x12c] sm:$0xf]
        %v564 = vld [vmem:[%s1 + $0x130] sm:$0xf]
        %v565 = vld [vmem:[%s1 + $0x134] sm:$0xf]
        %v566 = vld [vmem:[%s1 + $0x138] sm:$0xf]
        %v567 = vld [vmem:[%s1 + $0x13c] sm:$0xf]
        %v568 = vld [vmem:[%s1 + $0x140] sm:$0xf]
        %v569 = vld [vmem:[%s1 + $0x144] sm:$0xf]
        %v570 = vld [vmem:[%s1 + $0x148] sm:$0xf]
        %v571 = vld [vmem:[%s1 + $0x14c] sm:$0xf]
        %v572 = vld [vmem:[%s1 + $0x150] sm:$0xf]
        %v573 = vld [vmem:[%s1 + $0x154] sm:$0xf]
        %v574 = vld [vmem:[%s1 + $0x158] sm:$0xf]
        %v575 = vld [vmem:[%s1 + $0x15c] sm:$0xf]
        %v576 = vld [vmem:[%s1 + $0x160] sm:$0xf]
        %v577 = vld [vmem:[%s1 + $0x164] sm:$0xf]
        %v578 = vld [vmem:[%s1 + $0x168] sm:$0xf]
        %v579 = vld [vmem:[%s1 + $0x16c] sm:$0xf]
        %v580 = vld [vmem:[%s1 + $0x170] sm:$0xf]
        %v581 = vld [vmem:[%s1 + $0x174] sm:$0xf]
        %v582 = vld [vmem:[%s1 + $0x178] sm:$0xf]
        %v583 = vld [vmem:[%s1 + $0x17c] sm:$0xf]
        %v584 = vld [vmem:[%s2] sm:$0x1]
        %v586 = vperm.slane %v584, 0
        %v684 = vunpack.c.l.b16 %v488
        %v685 = vunpack.c.l.b16 %v489
        %v686 = vunpack.c.l.b16 %v490
        %v687 = vunpack.c.l.b16 %v491
        %v688 = vunpack.c.l.b16 %v492
        %v689 = vunpack.c.l.b16 %v493
        %v690 = vunpack.c.l.b16 %v494
        %v691 = vunpack.c.l.b16 %v495
        %v692 = vunpack.c.l.b16 %v496
        %v693 = vunpack.c.l.b16 %v497
        %v694 = vunpack.c.l.b16 %v498
        %v695 = vunpack.c.l.b16 %v499
        %v696 = vunpack.c.l.b16 %v500
        %v697 = vunpack.c.l.b16 %v501
        %v698 = vunpack.c.l.b16 %v502
        %v699 = vunpack.c.l.b16 %v503
        %v700 = vunpack.c.l.b16 %v504
        %v701 = vunpack.c.l.b16 %v505
        %v702 = vunpack.c.l.b16 %v506
        %v703 = vunpack.c.l.b16 %v507
        %v704 = vunpack.c.l.b16 %v508
        %v705 = vunpack.c.l.b16 %v509
        %v706 = vunpack.c.l.b16 %v510
        %v707 = vunpack.c.l.b16 %v511
        %v708 = vunpack.c.l.b16 %v512
        %v709 = vunpack.c.l.b16 %v513
        %v710 = vunpack.c.l.b16 %v514
        %v711 = vunpack.c.l.b16 %v515
        %v712 = vunpack.c.l.b16 %v516
        %v713 = vunpack.c.l.b16 %v517
        %v714 = vunpack.c.l.b16 %v518
        %v715 = vunpack.c.l.b16 %v519
        %v716 = vunpack.c.l.b16 %v520
        %v717 = vunpack.c.l.b16 %v521
        %v718 = vunpack.c.l.b16 %v522
        %v719 = vunpack.c.l.b16 %v523
        %v720 = vunpack.c.l.b16 %v524
        %v721 = vunpack.c.l.b16 %v525
        %v722 = vunpack.c.l.b16 %v526
        %v723 = vunpack.c.l.b16 %v527
        %v724 = vunpack.c.l.b16 %v528
        %v725 = vunpack.c.l.b16 %v529
        %v726 = vunpack.c.l.b16 %v530
        %v727 = vunpack.c.l.b16 %v531
        %v728 = vunpack.c.l.b16 %v532
        %v729 = vunpack.c.l.b16 %v533
        %v730 = vunpack.c.l.b16 %v534
        %v731 = vunpack.c.l.b16 %v535
        %v732 = vunpack.c.l.b16 %v536
        %v733 = vunpack.c.l.b16 %v537
        %v734 = vunpack.c.l.b16 %v538
        %v735 = vunpack.c.l.b16 %v539
        %v736 = vunpack.c.l.b16 %v540
        %v737 = vunpack.c.l.b16 %v541
        %v738 = vunpack.c.l.b16 %v542
        %v739 = vunpack.c.l.b16 %v543
        %v740 = vunpack.c.l.b16 %v544
        %v741 = vunpack.c.l.b16 %v545
        %v742 = vunpack.c.l.b16 %v546
        %v743 = vunpack.c.l.b16 %v547
        %v744 = vunpack.c.l.b16 %v548
        %v745 = vunpack.c.l.b16 %v549
        %v746 = vunpack.c.l.b16 %v550
        %v747 = vunpack.c.l.b16 %v551
        %v748 = vunpack.c.l.b16 %v552
        %v749 = vunpack.c.l.b16 %v553
        %v750 = vunpack.c.l.b16 %v554
        %v751 = vunpack.c.l.b16 %v555
        %v752 = vunpack.c.l.b16 %v556
        %v753 = vunpack.c.l.b16 %v557
        %v754 = vunpack.c.l.b16 %v558
        %v755 = vunpack.c.l.b16 %v559
        %v756 = vunpack.c.l.b16 %v560
        %v757 = vunpack.c.l.b16 %v561
        %v758 = vunpack.c.l.b16 %v562
        %v759 = vunpack.c.l.b16 %v563
        %v760 = vunpack.c.l.b16 %v564
        %v761 = vunpack.c.l.b16 %v565
        %v762 = vunpack.c.l.b16 %v566
        %v763 = vunpack.c.l.b16 %v567
        %v764 = vunpack.c.l.b16 %v568
        %v765 = vunpack.c.l.b16 %v569
        %v766 = vunpack.c.l.b16 %v570
        %v767 = vunpack.c.l.b16 %v571
        %v768 = vunpack.c.l.b16 %v572
        %v769 = vunpack.c.l.b16 %v573
        %v770 = vunpack.c.l.b16 %v574
        %v771 = vunpack.c.l.b16 %v575
        %v772 = vunpack.c.l.b16 %v576
        %v773 = vunpack.c.l.b16 %v577
        %v774 = vunpack.c.l.b16 %v578
        %v775 = vunpack.c.l.b16 %v579
        %v776 = vunpack.c.l.b16 %v580
        %v777 = vunpack.c.l.b16 %v581
        %v778 = vunpack.c.l.b16 %v582
        %v779 = vunpack.c.l.b16 %v583
        %v780 = vpack.c.b16 %v685, %v684
        %v781 = vpack.c.b16 %v687, %v686
        %v782 = vpack.c.b16 %v689, %v688
        %v783 = vpack.c.b16 %v691, %v690
        %v784 = vpack.c.b16 %v693, %v692
        %v785 = vpack.c.b16 %v695, %v694
        %v786 = vpack.c.b16 %v697, %v696
        %v787 = vpack.c.b16 %v699, %v698
        %v788 = vpack.c.b16 %v701, %v700
        %v789 = vpack.c.b16 %v703, %v702
        %v790 = vpack.c.b16 %v705, %v704
        %v791 = vpack.c.b16 %v707, %v706
        %v792 = vpack.c.b16 %v709, %v708
        %v793 = vpack.c.b16 %v711, %v710
        %v794 = vpack.c.b16 %v713, %v712
        %v795 = vpack.c.b16 %v715, %v714
        %v796 = vpack.c.b16 %v717, %v716
        %v797 = vpack.c.b16 %v719, %v718
        %v798 = vpack.c.b16 %v721, %v720
        %v799 = vpack.c.b16 %v723, %v722
        %v800 = vpack.c.b16 %v725, %v724
        %v801 = vpack.c.b16 %v727, %v726
        %v802 = vpack.c.b16 %v729, %v728
        %v803 = vpack.c.b16 %v731, %v730
        %v804 = vpack.c.b16 %v733, %v732
        %v805 = vpack.c.b16 %v735, %v734
        %v806 = vpack.c.b16 %v737, %v736
        %v807 = vpack.c.b16 %v739, %v738
        %v808 = vpack.c.b16 %v741, %v740
        %v809 = vpack.c.b16 %v743, %v742
        %v810 = vpack.c.b16 %v745, %v744
        %v811 = vpack.c.b16 %v747, %v746
        %v812 = vpack.c.b16 %v749, %v748
        %v813 = vpack.c.b16 %v751, %v750
        %v814 = vpack.c.b16 %v753, %v752
        %v815 = vpack.c.b16 %v755, %v754
        %v816 = vpack.c.b16 %v757, %v756
        %v817 = vpack.c.b16 %v759, %v758
        %v818 = vpack.c.b16 %v761, %v760
        %v819 = vpack.c.b16 %v763, %v762
        %v820 = vpack.c.b16 %v765, %v764
        %v821 = vpack.c.b16 %v767, %v766
        %v822 = vpack.c.b16 %v769, %v768
        %v823 = vpack.c.b16 %v771, %v770
        %v824 = vpack.c.b16 %v773, %v772
        %v825 = vpack.c.b16 %v775, %v774
        %v826 = vpack.c.b16 %v777, %v776
        %v827 = vpack.c.b16 %v779, %v778
        %876 = vmatpush.bf16.msra.mxu0 %v787
        %877 = vmatpush.bf16.msra.mxu0 %v786
        %878 = vmatpush.bf16.msra.mxu0 %v785
        %879 = vmatpush.bf16.msra.mxu0 %v784
        %880 = vmatpush.bf16.msra.mxu0 %v783
        %881 = vmatpush.bf16.msra.mxu0 %v782
        %882 = vmatpush.bf16.msra.mxu0 %v781
        %883 = vmatpush.bf16.msra.mxu0 %v780
        %884 = vmatmul.bf16.gmra.mxu0 %v392
        %v885 = vpop.f32.mrf.mxu0
        %v886 = vadd.f32 %v586, %v885
        %v887 = vpop.f32.mrf.mxu0
        %v888 = vadd.f32 %v586, %v887
        %889 = vmatmul.bf16.gmra.mxu0 %v398
        %v890 = vpop.f32.mrf.mxu0
        %v891 = vadd.f32 %v586, %v890
        %v892 = vpop.f32.mrf.mxu0
        %v893 = vadd.f32 %v586, %v892
        %894 = vmatmul.bf16.gmra.mxu0 %v404
        %v895 = vpop.f32.mrf.mxu0
        %v896 = vadd.f32 %v586, %v895
        %v897 = vpop.f32.mrf.mxu0
        %v898 = vadd.f32 %v586, %v897
        %899 = vmatmul.bf16.gmra.mxu0 %v410
        %v900 = vpop.f32.mrf.mxu0
        %v901 = vadd.f32 %v586, %v900
        %v902 = vpop.f32.mrf.mxu0
        %v903 = vadd.f32 %v586, %v902
        %904 = vmatmul.bf16.gmra.mxu0 %v416
        %v905 = vpop.f32.mrf.mxu0
        %v906 = vadd.f32 %v586, %v905
        %v907 = vpop.f32.mrf.mxu0
        %v908 = vadd.f32 %v586, %v907
        %909 = vmatmul.bf16.gmra.mxu0 %v422
        %v910 = vpop.f32.mrf.mxu0
        %v911 = vadd.f32 %v586, %v910
        %v912 = vpop.f32.mrf.mxu0
        %v913 = vadd.f32 %v586, %v912
        %914 = vmatmul.bf16.gmra.mxu0 %v428
        %v915 = vpop.f32.mrf.mxu0
        %v916 = vadd.f32 %v586, %v915
        %v917 = vpop.f32.mrf.mxu0
        %v918 = vadd.f32 %v586, %v917
        %919 = vmatmul.bf16.gmra.mxu0 %v434
        %v920 = vpop.f32.mrf.mxu0
        %v921 = vadd.f32 %v586, %v920
        %v922 = vpop.f32.mrf.mxu0
        %v923 = vadd.f32 %v586, %v922
        %924 = vmatmul.bf16.gmra.mxu0 %v440
        %v925 = vpop.f32.mrf.mxu0
        %v926 = vadd.f32 %v586, %v925
        %v927 = vpop.f32.mrf.mxu0
        %v928 = vadd.f32 %v586, %v927
        %929 = vmatmul.bf16.gmra.mxu0 %v446
        %v930 = vpop.f32.mrf.mxu0
        %v931 = vadd.f32 %v586, %v930
        %v932 = vpop.f32.mrf.mxu0
        %v933 = vadd.f32 %v586, %v932
        %934 = vmatmul.bf16.gmra.mxu0 %v452
        %v935 = vpop.f32.mrf.mxu0
        %v936 = vadd.f32 %v586, %v935
        %v937 = vpop.f32.mrf.mxu0
        %v938 = vadd.f32 %v586, %v937
        %939 = vmatmul.bf16.gmra.mxu0 %v458
        %v940 = vpop.f32.mrf.mxu0
        %v941 = vadd.f32 %v586, %v940
        %v942 = vpop.f32.mrf.mxu0
        %v943 = vadd.f32 %v586, %v942
        %944 = vmatmul.bf16.gmra.mxu0 %v464
        %v945 = vpop.f32.mrf.mxu0
        %v946 = vadd.f32 %v586, %v945
        %v947 = vpop.f32.mrf.mxu0
        %v948 = vadd.f32 %v586, %v947
        %949 = vmatmul.bf16.gmra.mxu0 %v470
        %v950 = vpop.f32.mrf.mxu0
        %v951 = vadd.f32 %v586, %v950
        %v952 = vpop.f32.mrf.mxu0
        %v953 = vadd.f32 %v586, %v952
        %954 = vmatmul.bf16.gmra.mxu0 %v476
        %v955 = vpop.f32.mrf.mxu0
        %v956 = vadd.f32 %v586, %v955
        %v957 = vpop.f32.mrf.mxu0
        %v958 = vadd.f32 %v586, %v957
        %959 = vmatmul.bf16.gmra.mxu0 %v482
        %v960 = vpop.f32.mrf.mxu0
        %v961 = vadd.f32 %v586, %v960
        %v962 = vpop.f32.mrf.mxu0
        %v963 = vadd.f32 %v586, %v962
        %964 = vdwg.mxu0
        %965 = vmatpush.bf16.msra.mxu0 %v795
        %966 = vmatpush.bf16.msra.mxu0 %v794
        %967 = vmatpush.bf16.msra.mxu0 %v793
        %968 = vmatpush.bf16.msra.mxu0 %v792
        %969 = vmatpush.bf16.msra.mxu0 %v791
        %970 = vmatpush.bf16.msra.mxu0 %v790
        %971 = vmatpush.bf16.msra.mxu0 %v789
        %972 = vmatpush.bf16.msra.mxu0 %v788
        %973 = vmatmul.bf16.gmra.mxu0 %v393
        %v974 = vpop.f32.mrf.mxu0
        %v975 = vadd.f32 %v886, %v974
        %v976 = vpop.f32.mrf.mxu0
        %v977 = vadd.f32 %v888, %v976
        %978 = vmatmul.bf16.gmra.mxu0 %v399
        %v979 = vpop.f32.mrf.mxu0
        %v980 = vadd.f32 %v891, %v979
        %v981 = vpop.f32.mrf.mxu0
        %v982 = vadd.f32 %v893, %v981
        %983 = vmatmul.bf16.gmra.mxu0 %v405
        %v984 = vpop.f32.mrf.mxu0
        %v985 = vadd.f32 %v896, %v984
        %v986 = vpop.f32.mrf.mxu0
        %v987 = vadd.f32 %v898, %v986
        %988 = vmatmul.bf16.gmra.mxu0 %v411
        %v989 = vpop.f32.mrf.mxu0
        %v990 = vadd.f32 %v901, %v989
        %v991 = vpop.f32.mrf.mxu0
        %v992 = vadd.f32 %v903, %v991
        %993 = vmatmul.bf16.gmra.mxu0 %v417
        %v994 = vpop.f32.mrf.mxu0
        %v995 = vadd.f32 %v906, %v994
        %v996 = vpop.f32.mrf.mxu0
        %v997 = vadd.f32 %v908, %v996
        %998 = vmatmul.bf16.gmra.mxu0 %v423
        %v999 = vpop.f32.mrf.mxu0
        %v1000 = vadd.f32 %v911, %v999
        %v1001 = vpop.f32.mrf.mxu0
        %v1002 = vadd.f32 %v913, %v1001
        %1003 = vmatmul.bf16.gmra.mxu0 %v429
        %v1004 = vpop.f32.mrf.mxu0
        %v1005 = vadd.f32 %v916, %v1004
        %v1006 = vpop.f32.mrf.mxu0
        %v1007 = vadd.f32 %v918, %v1006
        %1008 = vmatmul.bf16.gmra.mxu0 %v435
        %v1009 = vpop.f32.mrf.mxu0
        %v1010 = vadd.f32 %v921, %v1009
        %v1011 = vpop.f32.mrf.mxu0
        %v1012 = vadd.f32 %v923, %v1011
        %1013 = vmatmul.bf16.gmra.mxu0 %v441
        %v1014 = vpop.f32.mrf.mxu0
        %v1015 = vadd.f32 %v926, %v1014
        %v1016 = vpop.f32.mrf.mxu0
        %v1017 = vadd.f32 %v928, %v1016
        %1018 = vmatmul.bf16.gmra.mxu0 %v447
        %v1019 = vpop.f32.mrf.mxu0
        %v1020 = vadd.f32 %v931, %v1019
        %v1021 = vpop.f32.mrf.mxu0
        %v1022 = vadd.f32 %v933, %v1021
        %1023 = vmatmul.bf16.gmra.mxu0 %v453
        %v1024 = vpop.f32.mrf.mxu0
        %v1025 = vadd.f32 %v936, %v1024
        %v1026 = vpop.f32.mrf.mxu0
        %v1027 = vadd.f32 %v938, %v1026
        %1028 = vmatmul.bf16.gmra.mxu0 %v459
        %v1029 = vpop.f32.mrf.mxu0
        %v1030 = vadd.f32 %v941, %v1029
        %v1031 = vpop.f32.mrf.mxu0
        %v1032 = vadd.f32 %v943, %v1031
        %1033 = vmatmul.bf16.gmra.mxu0 %v465
        %v1034 = vpop.f32.mrf.mxu0
        %v1035 = vadd.f32 %v946, %v1034
        %v1036 = vpop.f32.mrf.mxu0
        %v1037 = vadd.f32 %v948, %v1036
        %1038 = vmatmul.bf16.gmra.mxu0 %v471
        %v1039 = vpop.f32.mrf.mxu0
        %v1040 = vadd.f32 %v951, %v1039
        %v1041 = vpop.f32.mrf.mxu0
        %v1042 = vadd.f32 %v953, %v1041
        %1043 = vmatmul.bf16.gmra.mxu0 %v477
        %v1044 = vpop.f32.mrf.mxu0
        %v1045 = vadd.f32 %v956, %v1044
        %v1046 = vpop.f32.mrf.mxu0
        %v1047 = vadd.f32 %v958, %v1046
        %1048 = vmatmul.bf16.gmra.mxu0 %v483
        %v1049 = vpop.f32.mrf.mxu0
        %v1050 = vadd.f32 %v961, %v1049
        %v1051 = vpop.f32.mrf.mxu0
        %v1052 = vadd.f32 %v963, %v1051
        %1053 = vdwg.mxu0
        %1054 = vmatpush.bf16.msra.mxu0 %v803
        %1055 = vmatpush.bf16.msra.mxu0 %v802
        %1056 = vmatpush.bf16.msra.mxu0 %v801
        %1057 = vmatpush.bf16.msra.mxu0 %v800
        %1058 = vmatpush.bf16.msra.mxu0 %v799
        %1059 = vmatpush.bf16.msra.mxu0 %v798
        %1060 = vmatpush.bf16.msra.mxu0 %v797
        %1061 = vmatpush.bf16.msra.mxu0 %v796
        %1062 = vmatmul.bf16.gmra.mxu0 %v394
        %v1063 = vpop.f32.mrf.mxu0
        %v1064 = vadd.f32 %v975, %v1063
        %v1065 = vpop.f32.mrf.mxu0
        %v1066 = vadd.f32 %v977, %v1065
        %1067 = vmatmul.bf16.gmra.mxu0 %v400
        %v1068 = vpop.f32.mrf.mxu0
        %v1069 = vadd.f32 %v980, %v1068
        %v1070 = vpop.f32.mrf.mxu0
        %v1071 = vadd.f32 %v982, %v1070
        %1072 = vmatmul.bf16.gmra.mxu0 %v406
        %v1073 = vpop.f32.mrf.mxu0
        %v1074 = vadd.f32 %v985, %v1073
        %v1075 = vpop.f32.mrf.mxu0
        %v1076 = vadd.f32 %v987, %v1075
        %1077 = vmatmul.bf16.gmra.mxu0 %v412
        %v1078 = vpop.f32.mrf.mxu0
        %v1079 = vadd.f32 %v990, %v1078
        %v1080 = vpop.f32.mrf.mxu0
        %v1081 = vadd.f32 %v992, %v1080
        %1082 = vmatmul.bf16.gmra.mxu0 %v418
        %v1083 = vpop.f32.mrf.mxu0
        %v1084 = vadd.f32 %v995, %v1083
        %v1085 = vpop.f32.mrf.mxu0
        %v1086 = vadd.f32 %v997, %v1085
        %1087 = vmatmul.bf16.gmra.mxu0 %v424
        %v1088 = vpop.f32.mrf.mxu0
        %v1089 = vadd.f32 %v1000, %v1088
        %v1090 = vpop.f32.mrf.mxu0
        %v1091 = vadd.f32 %v1002, %v1090
        %1092 = vmatmul.bf16.gmra.mxu0 %v430
        %v1093 = vpop.f32.mrf.mxu0
        %v1094 = vadd.f32 %v1005, %v1093
        %v1095 = vpop.f32.mrf.mxu0
        %v1096 = vadd.f32 %v1007, %v1095
        %1097 = vmatmul.bf16.gmra.mxu0 %v436
        %v1098 = vpop.f32.mrf.mxu0
        %v1099 = vadd.f32 %v1010, %v1098
        %v1100 = vpop.f32.mrf.mxu0
        %v1101 = vadd.f32 %v1012, %v1100
        %1102 = vmatmul.bf16.gmra.mxu0 %v442
        %v1103 = vpop.f32.mrf.mxu0
        %v1104 = vadd.f32 %v1015, %v1103
        %v1105 = vpop.f32.mrf.mxu0
        %v1106 = vadd.f32 %v1017, %v1105
        %1107 = vmatmul.bf16.gmra.mxu0 %v448
        %v1108 = vpop.f32.mrf.mxu0
        %v1109 = vadd.f32 %v1020, %v1108
        %v1110 = vpop.f32.mrf.mxu0
        %v1111 = vadd.f32 %v1022, %v1110
        %1112 = vmatmul.bf16.gmra.mxu0 %v454
        %v1113 = vpop.f32.mrf.mxu0
        %v1114 = vadd.f32 %v1025, %v1113
        %v1115 = vpop.f32.mrf.mxu0
        %v1116 = vadd.f32 %v1027, %v1115
        %1117 = vmatmul.bf16.gmra.mxu0 %v460
        %v1118 = vpop.f32.mrf.mxu0
        %v1119 = vadd.f32 %v1030, %v1118
        %v1120 = vpop.f32.mrf.mxu0
        %v1121 = vadd.f32 %v1032, %v1120
        %1122 = vmatmul.bf16.gmra.mxu0 %v466
        %v1123 = vpop.f32.mrf.mxu0
        %v1124 = vadd.f32 %v1035, %v1123
        %v1125 = vpop.f32.mrf.mxu0
        %v1126 = vadd.f32 %v1037, %v1125
        %1127 = vmatmul.bf16.gmra.mxu0 %v472
        %v1128 = vpop.f32.mrf.mxu0
        %v1129 = vadd.f32 %v1040, %v1128
        %v1130 = vpop.f32.mrf.mxu0
        %v1131 = vadd.f32 %v1042, %v1130
        %1132 = vmatmul.bf16.gmra.mxu0 %v478
        %v1133 = vpop.f32.mrf.mxu0
        %v1134 = vadd.f32 %v1045, %v1133
        %v1135 = vpop.f32.mrf.mxu0
        %v1136 = vadd.f32 %v1047, %v1135
        %1137 = vmatmul.bf16.gmra.mxu0 %v484
        %v1138 = vpop.f32.mrf.mxu0
        %v1139 = vadd.f32 %v1050, %v1138
        %v1140 = vpop.f32.mrf.mxu0
        %v1141 = vadd.f32 %v1052, %v1140
        %1142 = vdwg.mxu0
        %1143 = vmatpush.bf16.msra.mxu0 %v811
        %1144 = vmatpush.bf16.msra.mxu0 %v810
        %1145 = vmatpush.bf16.msra.mxu0 %v809
        %1146 = vmatpush.bf16.msra.mxu0 %v808
        %1147 = vmatpush.bf16.msra.mxu0 %v807
        %1148 = vmatpush.bf16.msra.mxu0 %v806
        %1149 = vmatpush.bf16.msra.mxu0 %v805
        %1150 = vmatpush.bf16.msra.mxu0 %v804
        %1151 = vmatmul.bf16.gmra.mxu0 %v395
        %v1152 = vpop.f32.mrf.mxu0
        %v1153 = vadd.f32 %v1064, %v1152
        %v1154 = vpop.f32.mrf.mxu0
        %v1155 = vadd.f32 %v1066, %v1154
        %1156 = vmatmul.bf16.gmra.mxu0 %v401
        %v1157 = vpop.f32.mrf.mxu0
        %v1158 = vadd.f32 %v1069, %v1157
        %v1159 = vpop.f32.mrf.mxu0
        %v1160 = vadd.f32 %v1071, %v1159
        %1161 = vmatmul.bf16.gmra.mxu0 %v407
        %v1162 = vpop.f32.mrf.mxu0
        %v1163 = vadd.f32 %v1074, %v1162
        %v1164 = vpop.f32.mrf.mxu0
        %v1165 = vadd.f32 %v1076, %v1164
        %1166 = vmatmul.bf16.gmra.mxu0 %v413
        %v1167 = vpop.f32.mrf.mxu0
        %v1168 = vadd.f32 %v1079, %v1167
        %v1169 = vpop.f32.mrf.mxu0
        %v1170 = vadd.f32 %v1081, %v1169
        %1171 = vmatmul.bf16.gmra.mxu0 %v419
        %v1172 = vpop.f32.mrf.mxu0
        %v1173 = vadd.f32 %v1084, %v1172
        %v1174 = vpop.f32.mrf.mxu0
        %v1175 = vadd.f32 %v1086, %v1174
        %1176 = vmatmul.bf16.gmra.mxu0 %v425
        %v1177 = vpop.f32.mrf.mxu0
        %v1178 = vadd.f32 %v1089, %v1177
        %v1179 = vpop.f32.mrf.mxu0
        %v1180 = vadd.f32 %v1091, %v1179
        %1181 = vmatmul.bf16.gmra.mxu0 %v431
        %v1182 = vpop.f32.mrf.mxu0
        %v1183 = vadd.f32 %v1094, %v1182
        %v1184 = vpop.f32.mrf.mxu0
        %v1185 = vadd.f32 %v1096, %v1184
        %1186 = vmatmul.bf16.gmra.mxu0 %v437
        %v1187 = vpop.f32.mrf.mxu0
        %v1188 = vadd.f32 %v1099, %v1187
        %v1189 = vpop.f32.mrf.mxu0
        %v1190 = vadd.f32 %v1101, %v1189
        %1191 = vmatmul.bf16.gmra.mxu0 %v443
        %v1192 = vpop.f32.mrf.mxu0
        %v1193 = vadd.f32 %v1104, %v1192
        %v1194 = vpop.f32.mrf.mxu0
        %v1195 = vadd.f32 %v1106, %v1194
        %1196 = vmatmul.bf16.gmra.mxu0 %v449
        %v1197 = vpop.f32.mrf.mxu0
        %v1198 = vadd.f32 %v1109, %v1197
        %v1199 = vpop.f32.mrf.mxu0
        %v1200 = vadd.f32 %v1111, %v1199
        %1201 = vmatmul.bf16.gmra.mxu0 %v455
        %v1202 = vpop.f32.mrf.mxu0
        %v1203 = vadd.f32 %v1114, %v1202
        %v1204 = vpop.f32.mrf.mxu0
        %v1205 = vadd.f32 %v1116, %v1204
        %1206 = vmatmul.bf16.gmra.mxu0 %v461
        %v1207 = vpop.f32.mrf.mxu0
        %v1208 = vadd.f32 %v1119, %v1207
        %v1209 = vpop.f32.mrf.mxu0
        %v1210 = vadd.f32 %v1121, %v1209
        %1211 = vmatmul.bf16.gmra.mxu0 %v467
        %v1212 = vpop.f32.mrf.mxu0
        %v1213 = vadd.f32 %v1124, %v1212
        %v1214 = vpop.f32.mrf.mxu0
        %v1215 = vadd.f32 %v1126, %v1214
        %1216 = vmatmul.bf16.gmra.mxu0 %v473
        %v1217 = vpop.f32.mrf.mxu0
        %v1218 = vadd.f32 %v1129, %v1217
        %v1219 = vpop.f32.mrf.mxu0
        %v1220 = vadd.f32 %v1131, %v1219
        %1221 = vmatmul.bf16.gmra.mxu0 %v479
        %v1222 = vpop.f32.mrf.mxu0
        %v1223 = vadd.f32 %v1134, %v1222
        %v1224 = vpop.f32.mrf.mxu0
        %v1225 = vadd.f32 %v1136, %v1224
        %1226 = vmatmul.bf16.gmra.mxu0 %v485
        %v1227 = vpop.f32.mrf.mxu0
        %v1228 = vadd.f32 %v1139, %v1227
        %v1229 = vpop.f32.mrf.mxu0
        %v1230 = vadd.f32 %v1141, %v1229
        %1231 = vdwg.mxu0
        %1232 = vmatpush.bf16.msra.mxu0 %v819
        %1233 = vmatpush.bf16.msra.mxu0 %v818
        %1234 = vmatpush.bf16.msra.mxu0 %v817
        %1235 = vmatpush.bf16.msra.mxu0 %v816
        %1236 = vmatpush.bf16.msra.mxu0 %v815
        %1237 = vmatpush.bf16.msra.mxu0 %v814
        %1238 = vmatpush.bf16.msra.mxu0 %v813
        %1239 = vmatpush.bf16.msra.mxu0 %v812
        %1240 = vmatmul.bf16.gmra.mxu0 %v396
        %v1241 = vpop.f32.mrf.mxu0
        %v1242 = vadd.f32 %v1153, %v1241
        %v1243 = vpop.f32.mrf.mxu0
        %v1244 = vadd.f32 %v1155, %v1243
        %1245 = vmatmul.bf16.gmra.mxu0 %v402
        %v1246 = vpop.f32.mrf.mxu0
        %v1247 = vadd.f32 %v1158, %v1246
        %v1248 = vpop.f32.mrf.mxu0
        %v1249 = vadd.f32 %v1160, %v1248
        %1250 = vmatmul.bf16.gmra.mxu0 %v408
        %v1251 = vpop.f32.mrf.mxu0
        %v1252 = vadd.f32 %v1163, %v1251
        %v1253 = vpop.f32.mrf.mxu0
        %v1254 = vadd.f32 %v1165, %v1253
        %1255 = vmatmul.bf16.gmra.mxu0 %v414
        %v1256 = vpop.f32.mrf.mxu0
        %v1257 = vadd.f32 %v1168, %v1256
        %v1258 = vpop.f32.mrf.mxu0
        %v1259 = vadd.f32 %v1170, %v1258
        %1260 = vmatmul.bf16.gmra.mxu0 %v420
        %v1261 = vpop.f32.mrf.mxu0
        %v1262 = vadd.f32 %v1173, %v1261
        %v1263 = vpop.f32.mrf.mxu0
        %v1264 = vadd.f32 %v1175, %v1263
        %1265 = vmatmul.bf16.gmra.mxu0 %v426
        %v1266 = vpop.f32.mrf.mxu0
        %v1267 = vadd.f32 %v1178, %v1266
        %v1268 = vpop.f32.mrf.mxu0
        %v1269 = vadd.f32 %v1180, %v1268
        %1270 = vmatmul.bf16.gmra.mxu0 %v432
        %v1271 = vpop.f32.mrf.mxu0
        %v1272 = vadd.f32 %v1183, %v1271
        %v1273 = vpop.f32.mrf.mxu0
        %v1274 = vadd.f32 %v1185, %v1273
        %1275 = vmatmul.bf16.gmra.mxu0 %v438
        %v1276 = vpop.f32.mrf.mxu0
        %v1277 = vadd.f32 %v1188, %v1276
        %v1278 = vpop.f32.mrf.mxu0
        %v1279 = vadd.f32 %v1190, %v1278
        %1280 = vmatmul.bf16.gmra.mxu0 %v444
        %v1281 = vpop.f32.mrf.mxu0
        %v1282 = vadd.f32 %v1193, %v1281
        %v1283 = vpop.f32.mrf.mxu0
        %v1284 = vadd.f32 %v1195, %v1283
        %1285 = vmatmul.bf16.gmra.mxu0 %v450
        %v1286 = vpop.f32.mrf.mxu0
        %v1287 = vadd.f32 %v1198, %v1286
        %v1288 = vpop.f32.mrf.mxu0
        %v1289 = vadd.f32 %v1200, %v1288
        %1290 = vmatmul.bf16.gmra.mxu0 %v456
        %v1291 = vpop.f32.mrf.mxu0
        %v1292 = vadd.f32 %v1203, %v1291
        %v1293 = vpop.f32.mrf.mxu0
        %v1294 = vadd.f32 %v1205, %v1293
        %1295 = vmatmul.bf16.gmra.mxu0 %v462
        %v1296 = vpop.f32.mrf.mxu0
        %v1297 = vadd.f32 %v1208, %v1296
        %v1298 = vpop.f32.mrf.mxu0
        %v1299 = vadd.f32 %v1210, %v1298
        %1300 = vmatmul.bf16.gmra.mxu0 %v468
        %v1301 = vpop.f32.mrf.mxu0
        %v1302 = vadd.f32 %v1213, %v1301
        %v1303 = vpop.f32.mrf.mxu0
        %v1304 = vadd.f32 %v1215, %v1303
        %1305 = vmatmul.bf16.gmra.mxu0 %v474
        %v1306 = vpop.f32.mrf.mxu0
        %v1307 = vadd.f32 %v1218, %v1306
        %v1308 = vpop.f32.mrf.mxu0
        %v1309 = vadd.f32 %v1220, %v1308
        %1310 = vmatmul.bf16.gmra.mxu0 %v480
        %v1311 = vpop.f32.mrf.mxu0
        %v1312 = vadd.f32 %v1223, %v1311
        %v1313 = vpop.f32.mrf.mxu0
        %v1314 = vadd.f32 %v1225, %v1313
        %1315 = vmatmul.bf16.gmra.mxu0 %v486
        %v1316 = vpop.f32.mrf.mxu0
        %v1317 = vadd.f32 %v1228, %v1316
        %v1318 = vpop.f32.mrf.mxu0
        %v1319 = vadd.f32 %v1230, %v1318
        %1320 = vdwg.mxu0
        %1321 = vmatpush.bf16.msra.mxu0 %v827
        %1322 = vmatpush.bf16.msra.mxu0 %v826
        %1323 = vmatpush.bf16.msra.mxu0 %v825
        %1324 = vmatpush.bf16.msra.mxu0 %v824
        %1325 = vmatpush.bf16.msra.mxu0 %v823
        %1326 = vmatpush.bf16.msra.mxu0 %v822
        %1327 = vmatpush.bf16.msra.mxu0 %v821
        %1328 = vmatpush.bf16.msra.mxu0 %v820
        %1329 = vmatmul.bf16.gmra.mxu0 %v397
        %v1330 = vpop.f32.mrf.mxu0
        %v1331 = vadd.f32 %v1242, %v1330
        %v1332 = vpop.f32.mrf.mxu0
        %v1333 = vadd.f32 %v1244, %v1332
        %1334 = vmatmul.bf16.gmra.mxu0 %v403
        %v1335 = vpop.f32.mrf.mxu0
        %v1336 = vadd.f32 %v1247, %v1335
        %v1337 = vpop.f32.mrf.mxu0
        %v1338 = vadd.f32 %v1249, %v1337
        %1339 = vmatmul.bf16.gmra.mxu0 %v409
        %v1340 = vpop.f32.mrf.mxu0
        %v1341 = vadd.f32 %v1252, %v1340
        %v1342 = vpop.f32.mrf.mxu0
        %v1343 = vadd.f32 %v1254, %v1342
        %1344 = vmatmul.bf16.gmra.mxu0 %v415
        %v1345 = vpop.f32.mrf.mxu0
        %v1346 = vadd.f32 %v1257, %v1345
        %v1347 = vpop.f32.mrf.mxu0
        %v1348 = vadd.f32 %v1259, %v1347
        %1349 = vmatmul.bf16.gmra.mxu0 %v421
        %v1350 = vpop.f32.mrf.mxu0
        %v1351 = vadd.f32 %v1262, %v1350
        %v1352 = vpop.f32.mrf.mxu0
        %v1353 = vadd.f32 %v1264, %v1352
        %1354 = vmatmul.bf16.gmra.mxu0 %v427
        %v1355 = vpop.f32.mrf.mxu0
        %v1356 = vadd.f32 %v1267, %v1355
        %v1357 = vpop.f32.mrf.mxu0
        %v1358 = vadd.f32 %v1269, %v1357
        %1359 = vmatmul.bf16.gmra.mxu0 %v433
        %v1360 = vpop.f32.mrf.mxu0
        %v1361 = vadd.f32 %v1272, %v1360
        %v1362 = vpop.f32.mrf.mxu0
        %v1363 = vadd.f32 %v1274, %v1362
        %1364 = vmatmul.bf16.gmra.mxu0 %v439
        %v1365 = vpop.f32.mrf.mxu0
        %v1366 = vadd.f32 %v1277, %v1365
        %v1367 = vpop.f32.mrf.mxu0
        %v1368 = vadd.f32 %v1279, %v1367
        %1369 = vmatmul.bf16.gmra.mxu0 %v445
        %v1370 = vpop.f32.mrf.mxu0
        %v1371 = vadd.f32 %v1282, %v1370
        %v1372 = vpop.f32.mrf.mxu0
        %v1373 = vadd.f32 %v1284, %v1372
        %1374 = vmatmul.bf16.gmra.mxu0 %v451
        %v1375 = vpop.f32.mrf.mxu0
        %v1376 = vadd.f32 %v1287, %v1375
        %v1377 = vpop.f32.mrf.mxu0
        %v1378 = vadd.f32 %v1289, %v1377
        %1379 = vmatmul.bf16.gmra.mxu0 %v457
        %v1380 = vpop.f32.mrf.mxu0
        %v1381 = vadd.f32 %v1292, %v1380
        %v1382 = vpop.f32.mrf.mxu0
        %v1383 = vadd.f32 %v1294, %v1382
        %1384 = vmatmul.bf16.gmra.mxu0 %v463
        %v1385 = vpop.f32.mrf.mxu0
        %v1386 = vadd.f32 %v1297, %v1385
        %v1387 = vpop.f32.mrf.mxu0
        %v1388 = vadd.f32 %v1299, %v1387
        %1389 = vmatmul.bf16.gmra.mxu0 %v469
        %v1390 = vpop.f32.mrf.mxu0
        %v1391 = vadd.f32 %v1302, %v1390
        %v1392 = vpop.f32.mrf.mxu0
        %v1393 = vadd.f32 %v1304, %v1392
        %1394 = vmatmul.bf16.gmra.mxu0 %v475
        %v1395 = vpop.f32.mrf.mxu0
        %v1396 = vadd.f32 %v1307, %v1395
        %v1397 = vpop.f32.mrf.mxu0
        %v1398 = vadd.f32 %v1309, %v1397
        %1399 = vmatmul.bf16.gmra.mxu0 %v481
        %v1400 = vpop.f32.mrf.mxu0
        %v1401 = vadd.f32 %v1312, %v1400
        %v1402 = vpop.f32.mrf.mxu0
        %v1403 = vadd.f32 %v1314, %v1402
        %1404 = vmatmul.bf16.gmra.mxu0 %v487
        %v1405 = vpop.f32.mrf.mxu0
        %v1406 = vadd.f32 %v1317, %v1405
        %v1407 = vpop.f32.mrf.mxu0
        %v1408 = vadd.f32 %v1319, %v1407
        %1409 = vdwg.mxu0
        %vm1410 = vcmask 523264
        %1411 = vst.msk [vmem:[%s177] sm:$0xff] %vm1410, %v1331
        %1412 = vst.msk [vmem:[%s177 + $0x8] sm:$0xff] %vm1410, %v1333
        %1413 = vst.msk [vmem:[%s177 + $0x10] sm:$0xff] %vm1410, %v1336
        %1414 = vst.msk [vmem:[%s177 + $0x18] sm:$0xff] %vm1410, %v1338
        %1415 = vst.msk [vmem:[%s177 + $0x20] sm:$0xff] %vm1410, %v1341
        %1416 = vst.msk [vmem:[%s177 + $0x28] sm:$0xff] %vm1410, %v1343
        %1417 = vst.msk [vmem:[%s177 + $0x30] sm:$0xff] %vm1410, %v1346
        %1418 = vst.msk [vmem:[%s177 + $0x38] sm:$0xff] %vm1410, %v1348
        %1419 = vst.msk [vmem:[%s177 + $0x40] sm:$0xff] %vm1410, %v1351
        %1420 = vst.msk [vmem:[%s177 + $0x48] sm:$0xff] %vm1410, %v1353
        %1421 = vst.msk [vmem:[%s177 + $0x50] sm:$0xff] %vm1410, %v1356
        %1422 = vst.msk [vmem:[%s177 + $0x58] sm:$0xff] %vm1410, %v1358
        %1423 = vst.msk [vmem:[%s177 + $0x60] sm:$0xff] %vm1410, %v1361
        %1424 = vst.msk [vmem:[%s177 + $0x68] sm:$0xff] %vm1410, %v1363
        %1425 = vst.msk [vmem:[%s177 + $0x70] sm:$0xff] %vm1410, %v1366
        %1426 = vst.msk [vmem:[%s177 + $0x78] sm:$0xff] %vm1410, %v1368
        %1427 = vst.msk [vmem:[%s177 + $0x80] sm:$0xff] %vm1410, %v1371
        %1428 = vst.msk [vmem:[%s177 + $0x88] sm:$0xff] %vm1410, %v1373
        %1429 = vst.msk [vmem:[%s177 + $0x90] sm:$0xff] %vm1410, %v1376
        %1430 = vst.msk [vmem:[%s177 + $0x98] sm:$0xff] %vm1410, %v1378
        %1431 = vst.msk [vmem:[%s177 + $0xa0] sm:$0xff] %vm1410, %v1381
        %1432 = vst.msk [vmem:[%s177 + $0xa8] sm:$0xff] %vm1410, %v1383
        %1433 = vst.msk [vmem:[%s177 + $0xb0] sm:$0xff] %vm1410, %v1386
        %1434 = vst.msk [vmem:[%s177 + $0xb8] sm:$0xff] %vm1410, %v1388
        %1435 = vst.msk [vmem:[%s177 + $0xc0] sm:$0xff] %vm1410, %v1391
        %1436 = vst.msk [vmem:[%s177 + $0xc8] sm:$0xff] %vm1410, %v1393
        %1437 = vst.msk [vmem:[%s177 + $0xd0] sm:$0xff] %vm1410, %v1396
        %1438 = vst.msk [vmem:[%s177 + $0xd8] sm:$0xff] %vm1410, %v1398
        %1439 = vst.msk [vmem:[%s177 + $0xe0] sm:$0xff] %vm1410, %v1401
        %1440 = vst.msk [vmem:[%s177 + $0xe8] sm:$0xff] %vm1410, %v1403
        %1441 = vst.msk [vmem:[%s177 + $0xf0] sm:$0xff] %vm1410, %v1406
        %1442 = vst.msk [vmem:[%s177 + $0xf8] sm:$0xff] %vm1410, %v1408
        %s1443 = sand.u32 %s90, 1
        %s1444 = sand.u32 %s90, 1
        %s1445 = smul.addr %s1444, 256
        %s1446 = scalar_lea.vmem [#allocation2], %s1445
        // Predicated region
        $region33: #{wcl_forward.15} parent=31 // pred_check
          %p1447 = pneg %p100
        $region34: #{wcl_forward.15} parent=31 // pred_check_branch
          %1449 = sbr.rel (%p1447) target = $region36
        $region35: #{wcl_forward.15} parent=31 // pred_region
          %s1450 = smul.u32 32, %s14
          %s1451 = ssub.s32 98, %s1450
          %p1452 = scmp.lt.s32.totalorder %s1451, 32
          %s1453 = scalar_select %p1452, %s1451, 32
          %s1454 = smul.u32 8, %s1453
          %p1455 = scmp.ne.s32.totalorder 0, %s1454
          %s1456 = smul.addr %s1450, 8
          %s1457 = scalar_lea.vmem %s3, %s1456
          // Predicated region
          $region37: #{wcl_forward.15} parent=35 // pred_check
            %p1458 = pneg %p1455
          $region38: #{wcl_forward.15} parent=35 // pred_check_branch
            %1460 = sbr.rel (%p1458) target = $region40
          $region39: #{wcl_forward.15} parent=35 // pred_region
            // Predicated region
            $region41: #{wcl_forward.15} parent=39 // pred_check
              _
            $region42: #{wcl_forward.15} parent=39 // pred_check_branch
              %1462 = sbr.rel (0) target = $region44
            $region43: #{wcl_forward.15} parent=39 // pred_region
              // Predicated region
              $region63: #{wcl_forward.15} parent=43 // pred_check
                _
              $region64: #{wcl_forward.15} parent=43 // pred_check_branch
                %1574 = sbr.rel (0) target = $region66
              $region65: #{wcl_forward.15} parent=43 // pred_region
                %s1575 = sshrl.u32 %s1453, 5
                // While loop
                $region67: #{wcl_forward.15} parent=65 // loop_pre_header
                  _
                $region68: #{wcl_forward.15} parent=65 // loop_header
                  %s1577 = sphi 0, %s1579
                  %p1578 = scmp.ge.s32.totalorder %s1577, %s1575
                  %s1582 = sphi 0, %s1651
                  %s1583 = sphi %s1446, %s1654
                  %s1584 = sphi %s1457, %s1655
                $region69: #{wcl_forward.15} parent=65 // loop_header_branch
                  %1581 = sbr.rel (%p1578) target = $region73
                $region70: #{wcl_forward.15} parent=65 // loop_body
                  %v1585 = vld [vmem:[%s1583] sm:$0xff]
                  %1586 = vst [vmem:[%s1584] sm:$0xff] %v1585
                  %v1587 = vld [vmem:[%s1583 + $0x8] sm:$0xff]
                  %1588 = vst [vmem:[%s1584 + $0x8] sm:$0xff] %v1587
                  %v1589 = vld [vmem:[%s1583 + $0x10] sm:$0xff]
                  %1590 = vst [vmem:[%s1584 + $0x10] sm:$0xff] %v1589
                  %v1591 = vld [vmem:[%s1583 + $0x18] sm:$0xff]
                  %1592 = vst [vmem:[%s1584 + $0x18] sm:$0xff] %v1591
                  %v1593 = vld [vmem:[%s1583 + $0x20] sm:$0xff]
                  %1594 = vst [vmem:[%s1584 + $0x20] sm:$0xff] %v1593
                  %v1595 = vld [vmem:[%s1583 + $0x28] sm:$0xff]
                  %1596 = vst [vmem:[%s1584 + $0x28] sm:$0xff] %v1595
                  %v1597 = vld [vmem:[%s1583 + $0x30] sm:$0xff]
                  %1598 = vst [vmem:[%s1584 + $0x30] sm:$0xff] %v1597
                  %v1599 = vld [vmem:[%s1583 + $0x38] sm:$0xff]
                  %1600 = vst [vmem:[%s1584 + $0x38] sm:$0xff] %v1599
                  %v1601 = vld [vmem:[%s1583 + $0x40] sm:$0xff]
                  %1602 = vst [vmem:[%s1584 + $0x40] sm:$0xff] %v1601
                  %v1603 = vld [vmem:[%s1583 + $0x48] sm:$0xff]
                  %1604 = vst [vmem:[%s1584 + $0x48] sm:$0xff] %v1603
                  %v1605 = vld [vmem:[%s1583 + $0x50] sm:$0xff]
                  %1606 = vst [vmem:[%s1584 + $0x50] sm:$0xff] %v1605
                  %v1607 = vld [vmem:[%s1583 + $0x58] sm:$0xff]
                  %1608 = vst [vmem:[%s1584 + $0x58] sm:$0xff] %v1607
                  %v1609 = vld [vmem:[%s1583 + $0x60] sm:$0xff]
                  %1610 = vst [vmem:[%s1584 + $0x60] sm:$0xff] %v1609
                  %v1611 = vld [vmem:[%s1583 + $0x68] sm:$0xff]
                  %1612 = vst [vmem:[%s1584 + $0x68] sm:$0xff] %v1611
                  %v1613 = vld [vmem:[%s1583 + $0x70] sm:$0xff]
                  %1614 = vst [vmem:[%s1584 + $0x70] sm:$0xff] %v1613
                  %v1615 = vld [vmem:[%s1583 + $0x78] sm:$0xff]
                  %1616 = vst [vmem:[%s1584 + $0x78] sm:$0xff] %v1615
                  %v1617 = vld [vmem:[%s1583 + $0x80] sm:$0xff]
                  %1618 = vst [vmem:[%s1584 + $0x80] sm:$0xff] %v1617
                  %v1619 = vld [vmem:[%s1583 + $0x88] sm:$0xff]
                  %1620 = vst [vmem:[%s1584 + $0x88] sm:$0xff] %v1619
                  %v1621 = vld [vmem:[%s1583 + $0x90] sm:$0xff]
                  %1622 = vst [vmem:[%s1584 + $0x90] sm:$0xff] %v1621
                  %v1623 = vld [vmem:[%s1583 + $0x98] sm:$0xff]
                  %1624 = vst [vmem:[%s1584 + $0x98] sm:$0xff] %v1623
                  %v1625 = vld [vmem:[%s1583 + $0xa0] sm:$0xff]
                  %1626 = vst [vmem:[%s1584 + $0xa0] sm:$0xff] %v1625
                  %v1627 = vld [vmem:[%s1583 + $0xa8] sm:$0xff]
                  %1628 = vst [vmem:[%s1584 + $0xa8] sm:$0xff] %v1627
                  %v1629 = vld [vmem:[%s1583 + $0xb0] sm:$0xff]
                  %1630 = vst [vmem:[%s1584 + $0xb0] sm:$0xff] %v1629
                  %v1631 = vld [vmem:[%s1583 + $0xb8] sm:$0xff]
                  %1632 = vst [vmem:[%s1584 + $0xb8] sm:$0xff] %v1631
                  %v1633 = vld [vmem:[%s1583 + $0xc0] sm:$0xff]
                  %1634 = vst [vmem:[%s1584 + $0xc0] sm:$0xff] %v1633
                  %v1635 = vld [vmem:[%s1583 + $0xc8] sm:$0xff]
                  %1636 = vst [vmem:[%s1584 + $0xc8] sm:$0xff] %v1635
                  %v1637 = vld [vmem:[%s1583 + $0xd0] sm:$0xff]
                  %1638 = vst [vmem:[%s1584 + $0xd0] sm:$0xff] %v1637
                  %v1639 = vld [vmem:[%s1583 + $0xd8] sm:$0xff]
                  %1640 = vst [vmem:[%s1584 + $0xd8] sm:$0xff] %v1639
                  %v1641 = vld [vmem:[%s1583 + $0xe0] sm:$0xff]
                  %1642 = vst [vmem:[%s1584 + $0xe0] sm:$0xff] %v1641
                  %v1643 = vld [vmem:[%s1583 + $0xe8] sm:$0xff]
                  %1644 = vst [vmem:[%s1584 + $0xe8] sm:$0xff] %v1643
                  %v1645 = vld [vmem:[%s1583 + $0xf0] sm:$0xff]
                  %1646 = vst [vmem:[%s1584 + $0xf0] sm:$0xff] %v1645
                  %v1647 = vld [vmem:[%s1583 + $0xf8] sm:$0xff]
                  %1648 = vst [vmem:[%s1584 + $0xf8] sm:$0xff] %v1647
                  %s1649 = sadd.s32 1, %s1582
                  %p1650 = scmp.ge.s32.totalorder %s1649, %s1575
                  %s1651 = scalar_select %p1650, 0, %s1649
                  %s1652 = smul.u32 %s1651, 256
                  %s1653 = smul.u32 %s1651, 256
                  %s1654 = scalar_lea.vmem %s1446, %s1652 [#allocation2]
                  %s1655 = scalar_lea.vmem %s1457, %s1653
                $region71: #{wcl_forward.15} parent=65 // loop_footer
                  %s1579 = sadd.s32 %s1577, 1
                $region72: #{wcl_forward.15} parent=65 // loop_footer_branch
                  %1576 = sbr.rel target = $region68
                $region73: #{wcl_forward.15} parent=65 // loop_exit
                  _
                %s1656 = sshrl.u32 %s1453, 5
                %s1657 = sand.u32 %s1453, 31
                %s1658 = smul.u32 %s1656, 32
                %s1659 = smul.u32 8, %s1658
                %s1660 = scalar_lea.vmem %s1446, %s1659 [#allocation2]
                %s1661 = smul.u32 8, %s1658
                %s1662 = scalar_lea.vmem %s1457, %s1661
                // While loop
                $region74: #{wcl_forward.15} parent=65 // loop_pre_header
                  _
                $region75: #{wcl_forward.15} parent=65 // loop_header
                  %s1664 = sphi 0, %s1666
                  %p1665 = scmp.ge.s32.totalorder %s1664, %s1657
                  %s1669 = sphi 0, %s1676
                  %s1670 = sphi %s1660, %s1679
                  %s1671 = sphi %s1662, %s1680
                $region76: #{wcl_forward.15} parent=65 // loop_header_branch
                  %1668 = sbr.rel (%p1665) target = $region80
                $region77: #{wcl_forward.15} parent=65 // loop_body
                  %v1672 = vld [vmem:[%s1670] sm:$0xff]
                  %1673 = vst [vmem:[%s1671] sm:$0xff] %v1672
                  %s1674 = sadd.s32 1, %s1669
                  %p1675 = scmp.ge.s32.totalorder %s1674, %s1657
                  %s1676 = scalar_select %p1675, 0, %s1674
                  %s1677 = smul.u32 %s1676, 8
                  %s1678 = smul.u32 %s1676, 8
                  %s1679 = scalar_lea.vmem %s1660, %s1677 [#allocation2]
                  %s1680 = scalar_lea.vmem %s1662, %s1678
                $region78: #{wcl_forward.15} parent=65 // loop_footer
                  %s1666 = sadd.s32 %s1664, 1
                $region79: #{wcl_forward.15} parent=65 // loop_footer_branch
                  %1663 = sbr.rel target = $region75
                $region80: #{wcl_forward.15} parent=65 // loop_exit
                  _
              $region66: #{wcl_forward.15} parent=43 // pred_fallthru
                _
              // Predicated region
              $region81: #{wcl_forward.15} parent=43 // pred_check
                _
              $region82: #{wcl_forward.15} parent=43 // pred_check_branch
                %1682 = sbr.rel target = $region84
              $region83: #{wcl_forward.15} parent=43 // pred_region
                _
              $region84: #{wcl_forward.15} parent=43 // pred_fallthru
                _
            $region44: #{wcl_forward.15} parent=39 // pred_fallthru
              _
            // Predicated region
            $region45: #{wcl_forward.15} parent=39 // pred_check
              _
            $region46: #{wcl_forward.15} parent=39 // pred_check_branch
              %1464 = sbr.rel target = $region48
            $region47: #{wcl_forward.15} parent=39 // pred_region
              %s1466 = ssub.s32 256, 1
              %s1467 = sshrl.u32 %s1453, 5
              // While loop
              $region49: #{wcl_forward.15} parent=47 // loop_pre_header
                _
              $region50: #{wcl_forward.15} parent=47 // loop_header
                %s1469 = sphi 0, %s1471
                %p1470 = scmp.ge.s32.totalorder %s1469, %s1467
                %s1474 = sphi 0, %s1543
                %s1475 = sphi %s1446, %s1546
                %s1476 = sphi %s1457, %s1547
              $region51: #{wcl_forward.15} parent=47 // loop_header_branch
                %1473 = sbr.rel (%p1470) target = $region55
              $region52: #{wcl_forward.15} parent=47 // loop_body
                %v1477 = vld [vmem:[%s1475] sm:%s1466]
                %1478 = vst [vmem:[%s1476] sm:%s1466] %v1477
                %v1479 = vld [vmem:[%s1475 + $0x8] sm:%s1466]
                %1480 = vst [vmem:[%s1476 + $0x8] sm:%s1466] %v1479
                %v1481 = vld [vmem:[%s1475 + $0x10] sm:%s1466]
                %1482 = vst [vmem:[%s1476 + $0x10] sm:%s1466] %v1481
                %v1483 = vld [vmem:[%s1475 + $0x18] sm:%s1466]
                %1484 = vst [vmem:[%s1476 + $0x18] sm:%s1466] %v1483
                %v1485 = vld [vmem:[%s1475 + $0x20] sm:%s1466]
                %1486 = vst [vmem:[%s1476 + $0x20] sm:%s1466] %v1485
                %v1487 = vld [vmem:[%s1475 + $0x28] sm:%s1466]
                %1488 = vst [vmem:[%s1476 + $0x28] sm:%s1466] %v1487
                %v1489 = vld [vmem:[%s1475 + $0x30] sm:%s1466]
                %1490 = vst [vmem:[%s1476 + $0x30] sm:%s1466] %v1489
                %v1491 = vld [vmem:[%s1475 + $0x38] sm:%s1466]
                %1492 = vst [vmem:[%s1476 + $0x38] sm:%s1466] %v1491
                %v1493 = vld [vmem:[%s1475 + $0x40] sm:%s1466]
                %1494 = vst [vmem:[%s1476 + $0x40] sm:%s1466] %v1493
                %v1495 = vld [vmem:[%s1475 + $0x48] sm:%s1466]
                %1496 = vst [vmem:[%s1476 + $0x48] sm:%s1466] %v1495
                %v1497 = vld [vmem:[%s1475 + $0x50] sm:%s1466]
                %1498 = vst [vmem:[%s1476 + $0x50] sm:%s1466] %v1497
                %v1499 = vld [vmem:[%s1475 + $0x58] sm:%s1466]
                %1500 = vst [vmem:[%s1476 + $0x58] sm:%s1466] %v1499
                %v1501 = vld [vmem:[%s1475 + $0x60] sm:%s1466]
                %1502 = vst [vmem:[%s1476 + $0x60] sm:%s1466] %v1501
                %v1503 = vld [vmem:[%s1475 + $0x68] sm:%s1466]
                %1504 = vst [vmem:[%s1476 + $0x68] sm:%s1466] %v1503
                %v1505 = vld [vmem:[%s1475 + $0x70] sm:%s1466]
                %1506 = vst [vmem:[%s1476 + $0x70] sm:%s1466] %v1505
                %v1507 = vld [vmem:[%s1475 + $0x78] sm:%s1466]
                %1508 = vst [vmem:[%s1476 + $0x78] sm:%s1466] %v1507
                %v1509 = vld [vmem:[%s1475 + $0x80] sm:%s1466]
                %1510 = vst [vmem:[%s1476 + $0x80] sm:%s1466] %v1509
                %v1511 = vld [vmem:[%s1475 + $0x88] sm:%s1466]
                %1512 = vst [vmem:[%s1476 + $0x88] sm:%s1466] %v1511
                %v1513 = vld [vmem:[%s1475 + $0x90] sm:%s1466]
                %1514 = vst [vmem:[%s1476 + $0x90] sm:%s1466] %v1513
                %v1515 = vld [vmem:[%s1475 + $0x98] sm:%s1466]
                %1516 = vst [vmem:[%s1476 + $0x98] sm:%s1466] %v1515
                %v1517 = vld [vmem:[%s1475 + $0xa0] sm:%s1466]
                %1518 = vst [vmem:[%s1476 + $0xa0] sm:%s1466] %v1517
                %v1519 = vld [vmem:[%s1475 + $0xa8] sm:%s1466]
                %1520 = vst [vmem:[%s1476 + $0xa8] sm:%s1466] %v1519
                %v1521 = vld [vmem:[%s1475 + $0xb0] sm:%s1466]
                %1522 = vst [vmem:[%s1476 + $0xb0] sm:%s1466] %v1521
                %v1523 = vld [vmem:[%s1475 + $0xb8] sm:%s1466]
                %1524 = vst [vmem:[%s1476 + $0xb8] sm:%s1466] %v1523
                %v1525 = vld [vmem:[%s1475 + $0xc0] sm:%s1466]
                %1526 = vst [vmem:[%s1476 + $0xc0] sm:%s1466] %v1525
                %v1527 = vld [vmem:[%s1475 + $0xc8] sm:%s1466]
                %1528 = vst [vmem:[%s1476 + $0xc8] sm:%s1466] %v1527
                %v1529 = vld [vmem:[%s1475 + $0xd0] sm:%s1466]
                %1530 = vst [vmem:[%s1476 + $0xd0] sm:%s1466] %v1529
                %v1531 = vld [vmem:[%s1475 + $0xd8] sm:%s1466]
                %1532 = vst [vmem:[%s1476 + $0xd8] sm:%s1466] %v1531
                %v1533 = vld [vmem:[%s1475 + $0xe0] sm:%s1466]
                %1534 = vst [vmem:[%s1476 + $0xe0] sm:%s1466] %v1533
                %v1535 = vld [vmem:[%s1475 + $0xe8] sm:%s1466]
                %1536 = vst [vmem:[%s1476 + $0xe8] sm:%s1466] %v1535
                %v1537 = vld [vmem:[%s1475 + $0xf0] sm:%s1466]
                %1538 = vst [vmem:[%s1476 + $0xf0] sm:%s1466] %v1537
                %v1539 = vld [vmem:[%s1475 + $0xf8] sm:%s1466]
                %1540 = vst [vmem:[%s1476 + $0xf8] sm:%s1466] %v1539
                %s1541 = sadd.s32 1, %s1474
                %p1542 = scmp.ge.s32.totalorder %s1541, %s1467
                %s1543 = scalar_select %p1542, 0, %s1541
                %s1544 = smul.u32 %s1543, 256
                %s1545 = smul.u32 %s1543, 256
                %s1546 = scalar_lea.vmem %s1446, %s1544 [#allocation2]
                %s1547 = scalar_lea.vmem %s1457, %s1545
              $region53: #{wcl_forward.15} parent=47 // loop_footer
                %s1471 = sadd.s32 %s1469, 1
              $region54: #{wcl_forward.15} parent=47 // loop_footer_branch
                %1468 = sbr.rel target = $region50
              $region55: #{wcl_forward.15} parent=47 // loop_exit
                _
              %s1548 = sshrl.u32 %s1453, 5
              %s1549 = sand.u32 %s1453, 31
              %s1550 = smul.u32 %s1548, 32
              %s1551 = smul.u32 8, %s1550
              %s1552 = scalar_lea.vmem %s1446, %s1551 [#allocation2]
              %s1553 = smul.u32 8, %s1550
              %s1554 = scalar_lea.vmem %s1457, %s1553
              // While loop
              $region56: #{wcl_forward.15} parent=47 // loop_pre_header
                _
              $region57: #{wcl_forward.15} parent=47 // loop_header
                %s1556 = sphi 0, %s1558
                %p1557 = scmp.ge.s32.totalorder %s1556, %s1549
                %s1561 = sphi 0, %s1568
                %s1562 = sphi %s1552, %s1571
                %s1563 = sphi %s1554, %s1572
              $region58: #{wcl_forward.15} parent=47 // loop_header_branch
                %1560 = sbr.rel (%p1557) target = $region62
              $region59: #{wcl_forward.15} parent=47 // loop_body
                %v1564 = vld [vmem:[%s1562] sm:%s1466]
                %1565 = vst [vmem:[%s1563] sm:%s1466] %v1564
                %s1566 = sadd.s32 1, %s1561
                %p1567 = scmp.ge.s32.totalorder %s1566, %s1549
                %s1568 = scalar_select %p1567, 0, %s1566
                %s1569 = smul.u32 %s1568, 8
                %s1570 = smul.u32 %s1568, 8
                %s1571 = scalar_lea.vmem %s1552, %s1569 [#allocation2]
                %s1572 = scalar_lea.vmem %s1554, %s1570
              $region60: #{wcl_forward.15} parent=47 // loop_footer
                %s1558 = sadd.s32 %s1556, 1
              $region61: #{wcl_forward.15} parent=47 // loop_footer_branch
                %1555 = sbr.rel target = $region57
              $region62: #{wcl_forward.15} parent=47 // loop_exit
                _
            $region48: #{wcl_forward.15} parent=39 // pred_fallthru
              _
          $region40: #{wcl_forward.15} parent=35 // pred_fallthru
            _
          %1683 = vnop
        $region36: #{wcl_forward.15} parent=31 // pred_fallthru
          _
      $region32: #{wcl_forward.15} parent=5 // pred_fallthru
        _
      %p1684 = scmp.le.s32.totalorder 2, %s9
      // Predicated region
      $region85: #{wcl_forward.15} parent=5 // pred_check
        %p1685 = pneg %p1684
      $region86: #{wcl_forward.15} parent=5 // pred_check_branch
        %1687 = sbr.rel (%p1685) target = $region88
      $region87: #{wcl_forward.15} parent=5 // pred_region
        %s1688 = ssub.s32 %s9, 2
        // Predicated region
        $region89: #{wcl_forward.15} parent=87 // pred_check
          %p1689 = pneg %p106
        $region90: #{wcl_forward.15} parent=87 // pred_check_branch
          %1691 = sbr.rel (%p1689) target = $region92
        $region91: #{wcl_forward.15} parent=87 // pred_region
          %s1692 = sand.u32 %s91, 1
          %s1693 = sand.u32 %s91, 1
          %s1694 = smul.addr %s1693, 256
          %s1695 = scalar_lea.vmem [#allocation2], %s1694
        $region92: #{wcl_forward.15} parent=87 // pred_fallthru
          _
      $region88: #{wcl_forward.15} parent=5 // pred_fallthru
        _
    $region6: #{wcl_forward.15} parent=1 // loop_footer
      %s13 = sadd.s32 1, %s9
    $region7: #{wcl_forward.15} parent=1 // loop_footer_branch
      %8 = sbr.rel target = $region3
    $region8: #{wcl_forward.15} parent=1 // loop_exit
      _

// kernel: wcl_forward.20
$region0: #{wcl_forward.20}
  #allocation0 [shape = 'u32[]', space=smem, size = 0x4, offset = 0x4, fixed_abs, tag = 'smem constant byte address 0x4 - core index']
  #allocation1 [shape = 'u32[72,128]{1,0:T(1,128)}', space=vmem, size = 0x9000, scoped, tag = 'internal scratch']
  %s0 = inlined_call_operand.vmem [shape: f32[4,64], index: 0, kind: input, shape index: {}]
  %s1 = inlined_call_operand.vmem [shape: bf16[64,64], index: 1, kind: input, shape index: {}]
  %s2 = inlined_call_operand.vmem [shape: f32[1,64], index: 2, kind: input, shape index: {}]
  %s3 = inlined_call_operand.vmem [shape: f32[4,64], index: 3, kind: output, shape index: {}]
  %s4 = sld [smem:[#allocation0]]
  $region22: #{wcl_forward.20} parent=0
    _
  %s6 = ssub.s32 1, %s4
  %s7 = scalar_select 0, %s6, %s4
  // Predicated region
  $region2: #{wcl_forward.20} parent=0 // pred_check
    _
  $region3: #{wcl_forward.20} parent=0 // pred_check_branch
    %9 = sbr.rel (0) target = $region5
  $region4: #{wcl_forward.20} parent=0 // pred_region
    _
  $region5: #{wcl_forward.20} parent=0 // pred_fallthru
    _
  // Predicated region
  $region6: #{wcl_forward.20} parent=0 // pred_check
    _
  $region7: #{wcl_forward.20} parent=0 // pred_check_branch
    %11 = sbr.rel (0) target = $region9
  $region8: #{wcl_forward.20} parent=0 // pred_region
    _
  $region9: #{wcl_forward.20} parent=0 // pred_fallthru
    _
  // Predicated region
  $region10: #{wcl_forward.20} parent=0 // pred_check
    _
  $region11: #{wcl_forward.20} parent=0 // pred_check_branch
    %13 = sbr.rel (0) target = $region13
  $region12: #{wcl_forward.20} parent=0 // pred_region
    _
  $region13: #{wcl_forward.20} parent=0 // pred_fallthru
    _
  %v15 = vld [vmem:[%s0] sm:$0xf]
  %v16 = vpack.c.bf16 %v15, %v15
  %v17 = vld [vmem:[%s1] sm:$0xf]
  %v18 = vld [vmem:[%s1 + $0x4] sm:$0xf]
  %v19 = vld [vmem:[%s1 + $0x8] sm:$0xf]
  %v20 = vld [vmem:[%s1 + $0xc] sm:$0xf]
  %v21 = vld [vmem:[%s1 + $0x10] sm:$0xf]
  %v22 = vld [vmem:[%s1 + $0x14] sm:$0xf]
  %v23 = vld [vmem:[%s1 + $0x18] sm:$0xf]
  %v24 = vld [vmem:[%s1 + $0x1c] sm:$0xf]
  %v25 = vld [vmem:[%s2] sm:$0x1]
  %v27 = vperm.slane %v25, 0
  %v37 = vunpack.c.l.b16 %v17
  %v38 = vunpack.c.l.b16 %v18
  %v39 = vunpack.c.l.b16 %v19
  %v40 = vunpack.c.l.b16 %v20
  %v41 = vunpack.c.l.b16 %v21
  %v42 = vunpack.c.l.b16 %v22
  %v43 = vunpack.c.l.b16 %v23
  %v44 = vunpack.c.l.b16 %v24
  %v45 = vpack.c.b16 %v38, %v37
  %v46 = vpack.c.b16 %v40, %v39
  %v47 = vpack.c.b16 %v42, %v41
  %v48 = vpack.c.b16 %v44, %v43
  %vm53 = vcmask 523264
  %v55 = vsel %vm53, %v16, 0
  %57 = vmatpush.bf16.msra.mxu0 0
  %58 = vmatpush.bf16.msra.mxu0 0
  %59 = vmatpush.bf16.msra.mxu0 0
  %60 = vmatpush.bf16.msra.mxu0 0
  %61 = vmatpush.bf16.msra.mxu0 %v48
  %62 = vmatpush.bf16.msra.mxu0 %v47
  %63 = vmatpush.bf16.msra.mxu0 %v46
  %64 = vmatpush.bf16.msra.mxu0 %v45
  %65 = vmatmul.bf16.gmra.mxu0 %v55
  %v66 = vpop.f32.mrf.mxu0
  %v67 = vadd.f32 %v27, %v66
  %v68 = vpop.f32.mrf.mxu0
  %69 = vdwg.mxu0
  %vm70 = vcmask 519168
  %71 = vst.msk [vmem:[%s3] sm:$0xf] %vm70, %v67
  // Predicated region
  $region14: #{wcl_forward.20} parent=0 // pred_check
    _
  $region15: #{wcl_forward.20} parent=0 // pred_check_branch
    %73 = sbr.rel (0) target = $region17
  $region16: #{wcl_forward.20} parent=0 // pred_region
    _
  $region17: #{wcl_forward.20} parent=0 // pred_fallthru
    _
  // Predicated region
  $region18: #{wcl_forward.20} parent=0 // pred_check
    _
  $region19: #{wcl_forward.20} parent=0 // pred_check_branch
    %75 = sbr.rel (0) target = $region21
  $region20: #{wcl_forward.20} parent=0 // pred_region
    _
  $region21: #{wcl_forward.20} parent=0 // pred_fallthru
    _

// kernel: wcl_forward.23
$region0: #{wcl_forward.23}
  #allocation0 [shape = 'u32[]', space=smem, size = 0x4, offset = 0x4, fixed_abs, tag = 'smem constant byte address 0x4 - core index']
  #allocation1 [shape = 'u32[72,128]{1,0:T(1,128)}', space=vmem, size = 0x9000, scoped, tag = 'internal scratch']
  %s0 = inlined_call_operand.vmem [shape: f32[8,64], index: 0, kind: input, shape index: {}]
  %s1 = inlined_call_operand.vmem [shape: bf16[64,32], index: 1, kind: input, shape index: {}]
  %s2 = inlined_call_operand.vmem [shape: f32[1,32], index: 2, kind: input, shape index: {}]
  %s3 = inlined_call_operand.vmem [shape: bf16[32,32], index: 3, kind: input, shape index: {}]
  %s4 = inlined_call_operand.vmem [shape: f32[1,32], index: 4, kind: input, shape index: {}]
  %s5 = inlined_call_operand.vmem [shape: f32[8,32], index: 5, kind: output, shape index: {}]
  %s6 = sld [smem:[#allocation0]]
  $region30: #{wcl_forward.23} parent=0
    _
  %s8 = ssub.s32 1, %s6
  %s9 = scalar_select 0, %s8, %s6
  // Predicated region
  $region2: #{wcl_forward.23} parent=0 // pred_check
    _
  $region3: #{wcl_forward.23} parent=0 // pred_check_branch
    %11 = sbr.rel (0) target = $region5
  $region4: #{wcl_forward.23} parent=0 // pred_region
    _
  $region5: #{wcl_forward.23} parent=0 // pred_fallthru
    _
  // Predicated region
  $region6: #{wcl_forward.23} parent=0 // pred_check
    _
  $region7: #{wcl_forward.23} parent=0 // pred_check_branch
    %13 = sbr.rel (0) target = $region9
  $region8: #{wcl_forward.23} parent=0 // pred_region
    _
  $region9: #{wcl_forward.23} parent=0 // pred_fallthru
    _
  // Predicated region
  $region10: #{wcl_forward.23} parent=0 // pred_check
    _
  $region11: #{wcl_forward.23} parent=0 // pred_check_branch
    %15 = sbr.rel (0) target = $region13
  $region12: #{wcl_forward.23} parent=0 // pred_region
    _
  $region13: #{wcl_forward.23} parent=0 // pred_fallthru
    _
  // Predicated region
  $region14: #{wcl_forward.23} parent=0 // pred_check
    _
  $region15: #{wcl_forward.23} parent=0 // pred_check_branch
    %17 = sbr.rel (0) target = $region17
  $region16: #{wcl_forward.23} parent=0 // pred_region
    _
  $region17: #{wcl_forward.23} parent=0 // pred_fallthru
    _
  // Predicated region
  $region18: #{wcl_forward.23} parent=0 // pred_check
    _
  $region19: #{wcl_forward.23} parent=0 // pred_check_branch
    %19 = sbr.rel (0) target = $region21
  $region20: #{wcl_forward.23} parent=0 // pred_region
    _
  $region21: #{wcl_forward.23} parent=0 // pred_fallthru
    _
  %v21 = vld [vmem:[%s0] sm:$0xff]
  %v22 = vpack.c.bf16 %v21, %v21
  %v23 = vld [vmem:[%s1] sm:$0xf]
  %v24 = vld [vmem:[%s1 + $0x4] sm:$0xf]
  %v25 = vld [vmem:[%s1 + $0x8] sm:$0xf]
  %v26 = vld [vmem:[%s1 + $0xc] sm:$0xf]
  %v27 = vld [vmem:[%s1 + $0x10] sm:$0xf]
  %v28 = vld [vmem:[%s1 + $0x14] sm:$0xf]
  %v29 = vld [vmem:[%s1 + $0x18] sm:$0xf]
  %v30 = vld [vmem:[%s1 + $0x1c] sm:$0xf]
  %v31 = vld [vmem:[%s2] sm:$0x1]
  %v33 = vperm.slane %v31, 0
  %v43 = vunpack.c.l.b16 %v23
  %v44 = vunpack.c.l.b16 %v24
  %v45 = vunpack.c.l.b16 %v25
  %v46 = vunpack.c.l.b16 %v26
  %v47 = vunpack.c.l.b16 %v27
  %v48 = vunpack.c.l.b16 %v28
  %v49 = vunpack.c.l.b16 %v29
  %v50 = vunpack.c.l.b16 %v30
  %v51 = vpack.c.b16 %v44, %v43
  %v52 = vpack.c.b16 %v46, %v45
  %v53 = vpack.c.b16 %v48, %v47
  %v54 = vpack.c.b16 %v50, %v49
  %vm59 = vcmask 523264
  %v61 = vsel %vm59, %v22, 0
  %63 = vmatpush.bf16.msra.mxu0 0
  %64 = vmatpush.bf16.msra.mxu0 0
  %65 = vmatpush.bf16.msra.mxu0 0
  %66 = vmatpush.bf16.msra.mxu0 0
  %67 = vmatpush.bf16.msra.mxu0 %v54
  %68 = vmatpush.bf16.msra.mxu0 %v53
  %69 = vmatpush.bf16.msra.mxu0 %v52
  %70 = vmatpush.bf16.msra.mxu0 %v51
  %71 = vmatmul.bf16.gmra.mxu0 %v61
  %v72 = vpop.f32.mrf.mxu0
  %v73 = vadd.f32 %v33, %v72
  %v74 = vpop.f32.mrf.mxu0
  %75 = vdwg.mxu0
  %v76 = vmax.f32 %v73, 0.0
  %v77 = vpack.c.bf16 %v76, %v76
  %v78 = vld [vmem:[%s3] sm:$0xf]
  %v79 = vld [vmem:[%s3 + $0x4] sm:$0xf]
  %v80 = vld [vmem:[%s3 + $0x8] sm:$0xf]
  %v81 = vld [vmem:[%s3 + $0xc] sm:$0xf]
  %v82 = vld [vmem:[%s4] sm:$0x1]
  %v84 = vperm.slane %v82, 0
  %v90 = vunpack.c.l.b16 %v78
  %v91 = vunpack.c.l.b16 %v79
  %v92 = vunpack.c.l.b16 %v80
  %v93 = vunpack.c.l.b16 %v81
  %v94 = vpack.c.b16 %v91, %v90
  %v95 = vpack.c.b16 %v93, %v92
  %vm98 = vcmask 261120
  %v100 = vsel %vm98, %v77, 0
  %102 = vmatpush.bf16.msra.mxu0 0
  %103 = vmatpush.bf16.msra.mxu0 0
  %104 = vmatpush.bf16.msra.mxu0 0
  %105 = vmatpush.bf16.msra.mxu0 0
  %106 = vmatpush.bf16.msra.mxu0 0
  %107 = vmatpush.bf16.msra.mxu0 0
  %108 = vmatpush.bf16.msra.mxu0 %v95
  %109 = vmatpush.bf16.msra.mxu0 %v94
  %110 = vmatmul.bf16.gmra.mxu0 %v100
  %v111 = vpop.f32.mrf.mxu0
  %v112 = vadd.f32 %v84, %v111
  %v113 = vpop.f32.mrf.mxu0
  %114 = vdwg.mxu0
  %v115 = vmul.f32 %v112, %v112
  %v116 = vsel %vm98, %v115, 0.0
  %117 = vadd.xlane.f32.xlu0 %v116
  %v118 = vpop.xlane.xlu0 %117
  %v119 = vmax.f32 %v118, 1e-24
  %v120 = vrsqrt.pop %v119
  %v121 = vmul.f32 %v120, %v119
  %v122 = vmul.f32 %v121, %v120
  %v123 = vmul.f32 0.5, %v122
  %v124 = vsub.f32 1.5, %v123
  %v125 = vmul.f32 %v120, %v124
  %vm126 = vweird.f32 %v119
  %vm127 = vweird.f32 %v120
  %vm128 = vmor %vm126, %vm127
  %v129 = vsel %vm128, %v120, %v125
  %v130 = vmul.f32 %v112, %v129
  %131 = vst.msk [vmem:[%s5] sm:$0xff] %vm98, %v130
  // Predicated region
  $region22: #{wcl_forward.23} parent=0 // pred_check
    _
  $region23: #{wcl_forward.23} parent=0 // pred_check_branch
    %133 = sbr.rel (0) target = $region25
  $region24: #{wcl_forward.23} parent=0 // pred_region
    _
  $region25: #{wcl_forward.23} parent=0 // pred_fallthru
    _
  // Predicated region
  $region26: #{wcl_forward.23} parent=0 // pred_check
    _
  $region27: #{wcl_forward.23} parent=0 // pred_check_branch
    %135 = sbr.rel (0) target = $region29
  $region28: #{wcl_forward.23} parent=0 // pred_region
    _
  $region29: #{wcl_forward.23} parent=0 // pred_fallthru
    _

// kernel: wcl_forward.24
$region0: #{wcl_forward.24}
  #allocation0 [shape = 'u32[]', space=smem, size = 0x4, offset = 0x4, fixed_abs, tag = 'smem constant byte address 0x4 - core index']
  #allocation1 [shape = 'u32[72,128]{1,0:T(1,128)}', space=vmem, size = 0x9000, scoped, tag = 'internal scratch']
  %s0 = inlined_call_operand.vmem [shape: f32[8,32], index: 0, kind: input, shape index: {}, may-alias: {0,1}]
  %s1 = inlined_call_operand.vmem [shape: f32[8,32], index: 1, kind: input, shape index: {}, may-alias: {0,1}]
  %s2 = inlined_call_operand.vmem [shape: f32[8,8], index: 2, kind: output, shape index: {}]
  %s3 = sld [smem:[#allocation0]]
  $region18: #{wcl_forward.24} parent=0
    _
  %s5 = ssub.s32 1, %s3
  %s6 = scalar_select 0, %s5, %s3
  // Predicated region
  $region2: #{wcl_forward.24} parent=0 // pred_check
    _
  $region3: #{wcl_forward.24} parent=0 // pred_check_branch
    %8 = sbr.rel (0) target = $region5
  $region4: #{wcl_forward.24} parent=0 // pred_region
    _
  $region5: #{wcl_forward.24} parent=0 // pred_fallthru
    _
  // Predicated region
  $region6: #{wcl_forward.24} parent=0 // pred_check
    _
  $region7: #{wcl_forward.24} parent=0 // pred_check_branch
    %10 = sbr.rel (0) target = $region9
  $region8: #{wcl_forward.24} parent=0 // pred_region
    _
  $region9: #{wcl_forward.24} parent=0 // pred_fallthru
    _
  %v11 = vld [vmem:[%s0] sm:$0xff]
  %v12 = vld [vmem:[%s1] sm:$0xff]
  %vm13 = vcmask 261120
  %v15 = vsel %vm13, %v11, 0
  %v18 = vsel %vm13, %v12, 0
  %20 = vmatpush.xpose.msra.mxu0 0.0
  %21 = vmatpush.xpose.msra.mxu0 0.0
  %22 = vmatpush.xpose.msra.mxu0 0.0
  %23 = vmatpush.xpose.msra.mxu0 0.0
  %24 = vmatpush.xpose.msra.mxu0 0.0
  %25 = vmatpush.xpose.msra.mxu0 0.0
  %26 = vmatpush.xpose.msra.mxu0 0.0
  %27 = vmatpush.xpose.msra.mxu0 0.0
  %28 = vmatpush.xpose.msra.mxu0 0.0
  %29 = vmatpush.xpose.msra.mxu0 0.0
  %30 = vmatpush.xpose.msra.mxu0 0.0
  %31 = vmatpush.xpose.msra.mxu0 0.0
  %32 = vmatpush.xpose.msra.mxu0 0.0
  %33 = vmatpush.xpose.msra.mxu0 0.0
  %34 = vmatpush.xpose.msra.mxu0 0.0
  %35 = vmatpush.xpose.msra.mxu0 %v18
  %36 = vmatmul.f32.gmra.mxu0 %v15
  %v37 = vpop.f32.mrf.mxu0
  %v38 = vadd.f32 0.0, %v37
  %39 = vdwg.mxu0
  %v40 = vmul.f32 %v38, 10.0
  %vm41 = vcmask 64512
  %42 = vst.msk [vmem:[%s2] sm:$0xff] %vm41, %v40
  // Predicated region
  $region10: #{wcl_forward.24} parent=0 // pred_check
    _
  $region11: #{wcl_forward.24} parent=0 // pred_check_branch
    %44 = sbr.rel (0) target = $region13
  $region12: #{wcl_forward.24} parent=0 // pred_region
    _
  $region13: #{wcl_forward.24} parent=0 // pred_fallthru
    _
  // Predicated region
  $region14: #{wcl_forward.24} parent=0 // pred_check
    _
  $region15: #{wcl_forward.24} parent=0 // pred_check_branch
    %46 = sbr.rel (0) target = $region17
  $region16: #{wcl_forward.24} parent=0 // pred_region
    _
  $region17: #{wcl_forward.24} parent=0 // pred_fallthru
    _

// kernel: wcl_forward.27
$region0: #{wcl_forward.27}
  #allocation0 [shape = 'u32[]', space=smem, size = 0x4, offset = 0x4, fixed_abs, tag = 'smem constant byte address 0x4 - core index']
  #allocation1 [shape = 'u32[72,128]{1,0:T(1,128)}', space=vmem, size = 0x9000, scoped, tag = 'internal scratch']
  %s0 = inlined_call_operand.vmem [shape: f32[4,32], index: 0, kind: input, shape index: {}, may-alias: {0,1}]
  %s1 = inlined_call_operand.vmem [shape: f32[4,32], index: 1, kind: input, shape index: {}, may-alias: {0,1}]
  %s2 = inlined_call_operand.vmem [shape: f32[4,4], index: 2, kind: output, shape index: {}]
  %s3 = sld [smem:[#allocation0]]
  $region18: #{wcl_forward.27} parent=0
    _
  %s5 = ssub.s32 1, %s3
  %s6 = scalar_select 0, %s5, %s3
  // Predicated region
  $region2: #{wcl_forward.27} parent=0 // pred_check
    _
  $region3: #{wcl_forward.27} parent=0 // pred_check_branch
    %8 = sbr.rel (0) target = $region5
  $region4: #{wcl_forward.27} parent=0 // pred_region
    _
  $region5: #{wcl_forward.27} parent=0 // pred_fallthru
    _
  // Predicated region
  $region6: #{wcl_forward.27} parent=0 // pred_check
    _
  $region7: #{wcl_forward.27} parent=0 // pred_check_branch
    %10 = sbr.rel (0) target = $region9
  $region8: #{wcl_forward.27} parent=0 // pred_region
    _
  $region9: #{wcl_forward.27} parent=0 // pred_fallthru
    _
  %v11 = vld [vmem:[%s0] sm:$0xf]
  %v12 = vld [vmem:[%s1] sm:$0xf]
  %vm13 = vcmask 261120
  %v15 = vsel %vm13, %v11, 0
  %v18 = vsel %vm13, %v12, 0
  %20 = vmatpush.xpose.msra.mxu0 0.0
  %21 = vmatpush.xpose.msra.mxu0 0.0
  %22 = vmatpush.xpose.msra.mxu0 0.0
  %23 = vmatpush.xpose.msra.mxu0 0.0
  %24 = vmatpush.xpose.msra.mxu0 0.0
  %25 = vmatpush.xpose.msra.mxu0 0.0
  %26 = vmatpush.xpose.msra.mxu0 0.0
  %27 = vmatpush.xpose.msra.mxu0 0.0
  %28 = vmatpush.xpose.msra.mxu0 0.0
  %29 = vmatpush.xpose.msra.mxu0 0.0
  %30 = vmatpush.xpose.msra.mxu0 0.0
  %31 = vmatpush.xpose.msra.mxu0 0.0
  %32 = vmatpush.xpose.msra.mxu0 0.0
  %33 = vmatpush.xpose.msra.mxu0 0.0
  %34 = vmatpush.xpose.msra.mxu0 0.0
  %35 = vmatpush.xpose.msra.mxu0 %v18
  %36 = vmatmul.f32.gmra.mxu0 %v15
  %v37 = vpop.f32.mrf.mxu0
  %v38 = vadd.f32 0.0, %v37
  %39 = vdwg.mxu0
  %vm40 = vcmask 27648
  %41 = vst.msk [vmem:[%s2] sm:$0xf] %vm40, %v38
  // Predicated region
  $region10: #{wcl_forward.27} parent=0 // pred_check
    _
  $region11: #{wcl_forward.27} parent=0 // pred_check_branch
    %43 = sbr.rel (0) target = $region13
  $region12: #{wcl_forward.27} parent=0 // pred_region
    _
  $region13: #{wcl_forward.27} parent=0 // pred_fallthru
    _
  // Predicated region
  $region14: #{wcl_forward.27} parent=0 // pred_check
    _
  $region15: #{wcl_forward.27} parent=0 // pred_check_branch
    %45 = sbr.rel (0) target = $region17
  $region16: #{wcl_forward.27} parent=0 // pred_region
    _
  $region17: #{wcl_forward.27} parent=0 // pred_fallthru
    _

// kernel: wcl_forward.28
$region0: #{wcl_forward.28}
  #allocation0 [shape = 'u32[]', space=smem, size = 0x4, offset = 0x4, fixed_abs, tag = 'smem constant byte address 0x4 - core index']
  #allocation1 [shape = 'u32[72,128]{1,0:T(1,128)}', space=vmem, size = 0x9000, scoped, tag = 'internal scratch']
  %s0 = inlined_call_operand.vmem [shape: f32[4,32], index: 0, kind: input, shape index: {}]
  %s1 = inlined_call_operand.vmem [shape: f32[4,4], index: 1, kind: input, shape index: {}]
  %s2 = inlined_call_operand.hbm [shape: f32[1,1], index: 2, kind: output, shape index: {}]
  %s3 = sld [smem:[#allocation0]]
  $region18: #{wcl_forward.28} parent=0
    _
  %s5 = ssub.s32 1, %s3
  %s6 = scalar_select 0, %s5, %s3
  $region1: #{wcl_forward.28} parent=0
    #allocation2 [shape = 'u8[512]{0}', space=vmem, size = 0x400, scoped, tag = 'output window, operand 0, single buffered']
    #allocation3 [shape = 's32[1]{0}', space=sflag, size = 0x4, scoped, tag = 'scoped memory for wcl_forward.28']
    %7 = vsyncpa [#allocation3], 0
    // Predicated region
    $region2: #{wcl_forward.28} parent=1 // pred_check
      _
    $region3: #{wcl_forward.28} parent=1 // pred_check_branch
      %9 = sbr.rel (0) target = $region5
    $region4: #{wcl_forward.28} parent=1 // pred_region
      _
    $region5: #{wcl_forward.28} parent=1 // pred_fallthru
      _
    // Predicated region
    $region6: #{wcl_forward.28} parent=1 // pred_check
      _
    $region7: #{wcl_forward.28} parent=1 // pred_check_branch
      %11 = sbr.rel (0) target = $region9
    $region8: #{wcl_forward.28} parent=1 // pred_region
      _
    $region9: #{wcl_forward.28} parent=1 // pred_fallthru
      _
    %v12 = vld [vmem:[%s0] sm:$0xf]
    %vm13 = vcmask 261120
    %v15 = vsel %vm13, %v12, 0
    %17 = vmatpush.xpose.msra.mxu0 0.0
    %18 = vmatpush.xpose.msra.mxu0 0.0
    %19 = vmatpush.xpose.msra.mxu0 0.0
    %20 = vmatpush.xpose.msra.mxu0 0.0
    %21 = vmatpush.xpose.msra.mxu0 0.0
    %22 = vmatpush.xpose.msra.mxu0 0.0
    %23 = vmatpush.xpose.msra.mxu0 0.0
    %24 = vmatpush.xpose.msra.mxu0 0.0
    %25 = vmatpush.xpose.msra.mxu0 0.0
    %26 = vmatpush.xpose.msra.mxu0 0.0
    %27 = vmatpush.xpose.msra.mxu0 0.0
    %28 = vmatpush.xpose.msra.mxu0 0.0
    %29 = vmatpush.xpose.msra.mxu0 0.0
    %30 = vmatpush.xpose.msra.mxu0 0.0
    %31 = vmatpush.xpose.msra.mxu0 0.0
    %32 = vmatpush.xpose.msra.mxu0 %v15
    %33 = vmatmul.f32.gmra.mxu0 %v15
    %v34 = vpop.f32.mrf.mxu0
    %v35 = vadd.f32 0.0, %v34
    %36 = vdwg.mxu0
    %v37 = vmul.f32 %v35, 10.0
    %v38 = vlaneseq
    %v39 = vshrl.u32 %v38, 7
    %v40 = vlaneseq
    %v41 = vand.u32 %v40, 127
    %vm42 = vcmp.ne.s32.totalorder %v39, %v41
    %v43 = vsel %vm42, 1, 0
    %v44 = vcvt.s32.f32 %v43
    %v45 = vld [vmem:[%s1] sm:$0xf]
    %v46 = vmul.f32 %v45, %v44
    %vm47 = vcmask 27648
    %v48 = vsel %vm47, %v37, -inf
    %49 = vmax.xlane.f32.xlu0 %v48
    %v50 = vpop.xlane.xlu0 %49
    %v51 = vsub.f32 %v37, %v50
    %v52 = vmul.f32 %v51, 1.442695
    %v53 = vpow.pop %v52
    %v54 = vmul.f32 %v53, %v44
    %v55 = vsel %vm47, %v54, 0.0
    %56 = vadd.xlane.f32.xlu0 %v55
    %v57 = vpop.xlane.xlu0 %56
    %v58 = vlog2.pop %v57
    %v59 = vmul.f32 %v58, 0.6931472
    %v60 = vsub.f32 %v51, %v59
    %v61 = vsel %vm47, %v46, 0.0
    %62 = vadd.xlane.f32.xlu0 %v61
    %v63 = vpop.xlane.xlu0 %62
    %v64 = vmax.f32 %v63, 1e-12
    %v65 = vmul.f32 %v46, %v60
    %v66 = vsel %vm47, %v65, 0.0
    %67 = vadd.xlane.f32.xlu0 %v66
    %v68 = vpop.xlane.xlu0 %67
    %v69 = vrcp.pop %v64
    %v70 = vmul.f32 %v68, %v69
    %vm71 = vcmask 3072
    %v72 = vsel %vm71, %v70, 0.0
    %73 = vadd.xlane.f32.xlu0 %v72
    %v74 = vpop.xlane.xlu0 %73
    %v75 = vrot.slane %v74, 4
    %v76 = vadd.f32 %v74, %v75
    %v77 = vrot.slane %v76, 2
    %v78 = vadd.f32 %v76, %v77
    %v79 = vrot.slane %v78, 1
    %v80 = vadd.f32 %v78, %v79
    %s81 = vtos %v80
    %v82 = vstv %s81
    %v83 = vsub.f32 0.0, %v82
    %v84 = vmul.f32 %v83, 0.25
    %vm85 = vcmask 0
    %86 = vst.msk [vmem:[#allocation2] sm:$0x1] %vm85, %v84
    // Predicated region
    $region10: #{wcl_forward.28} parent=1 // pred_check
      _
    $region11: #{wcl_forward.28} parent=1 // pred_check_branch
      %88 = sbr.rel (0) target = $region13
    $region12: #{wcl_forward.28} parent=1 // pred_region
      %90 = vsyncadd [#allocation3], 0
      %s92 = sshll.u32 [#allocation2], 4
      %s93 = int_to_ptr.vmem [resolvable:$true] %s92
      %s94 = sshll.u32 %s2, 4
      %s95 = int_to_ptr.hbm [resolvable:$true] %s94
      %97 = dma.vmem_to_hbm [thread:$0]  %s93, 16, %s95, [#allocation3]
    $region13: #{wcl_forward.28} parent=1 // pred_fallthru
      _
    // Predicated region
    $region14: #{wcl_forward.28} parent=1 // pred_check
      _
    $region15: #{wcl_forward.28} parent=1 // pred_check_branch
      %99 = sbr.rel (0) target = $region17
    $region16: #{wcl_forward.28} parent=1 // pred_region
      %101 = dma.done [#allocation3], 16
    $region17: #{wcl_forward.28} parent=1 // pred_fallthru
      _
    %102 = vsyncpa [#allocation3], 1

// kernel: wcl_forward.19
$region0: #{wcl_forward.19}
  #allocation0 [shape = 'u32[]', space=smem, size = 0x4, offset = 0x4, fixed_abs, tag = 'smem constant byte address 0x4 - core index']
  #allocation1 [shape = 'u32[72,128]{1,0:T(1,128)}', space=vmem, size = 0x9000, scoped, tag = 'internal scratch']
  %s0 = inlined_call_operand.vmem [shape: f32[788,64], index: 0, kind: input, shape index: {}]
  %s1 = inlined_call_operand.vmem [shape: bf16[64,64], index: 1, kind: input, shape index: {}]
  %s2 = inlined_call_operand.vmem [shape: f32[1,64], index: 2, kind: input, shape index: {}]
  %s3 = inlined_call_operand.vmem [shape: f32[788,64], index: 3, kind: output, shape index: {}]
  %s4 = sld [smem:[#allocation0]]
  $region93: #{wcl_forward.19} parent=0
    _
  %s6 = ssub.s32 1, %s4
  %s7 = scalar_select 0, %s6, %s4
  $region1: #{wcl_forward.19} parent=0
    #allocation2 [shape = 'u8[262144]{0}', space=vmem, size = 0x40000, scoped, tag = 'output window, operand 0']
    loop: start=0, step=1, limit=6
    $region2: #{wcl_forward.19} parent=1 // loop_pre_header
      _
    $region3: #{wcl_forward.19} parent=1 // loop_header
      %s9 = sphi 0, %s13
      %p10 = scmp.ge.s32.totalorder %s9, 6
      %s19 = sphi 0, %s21
      %s22 = sphi 0, %s19
      %s23 = sphi 0, %s22
      %s39 = sphi 0, %s23
      %s43 = sphi 0, %s43
      %s45 = sphi 0, %s43
      %s46 = sphi 0, %s45
      %s60 = sphi 0, %s46
      %s64 = sphi 0, %s64
      %s66 = sphi 0, %s64
      %s67 = sphi 0, %s66
      %s81 = sphi 0, %s67
      %s87 = sphi 0, %s89
      %s90 = sphi 0, %s87
      %s91 = sphi 0, %s90
      %s107 = sphi 0, %s91
    $region4: #{wcl_forward.19} parent=1 // loop_header_branch
      %12 = sbr.rel (%p10) target = $region8
    $region5: #{wcl_forward.19} parent=1 // loop_body
      %s14 = ssub.s32 %s9, 1
      %s15 = ssub.s32 %s9, 2
      %s16 = sadd.s32 %s9, 1
      %s17 = ssub.s32 %s9, %s16
      %p18 = scmp.eq.s32.totalorder %s17, 0
      %s20 = sadd.s32 %s19, 1
      %s21 = scalar_select %p18, %s19, %s20
      %p24 = pneg %p18
      %p25 = scmp.eq.s32.totalorder %s9, 3
      %p26 = por %p24, %p25
      %p27 = scmp.ne.s32.totalorder %s19, %s22
      %p28 = scmp.eq.s32.totalorder %s9, 0
      %p29 = por %p27, %p28
      %p30 = scmp.ne.s32.totalorder %s19, %s22
      %p31 = scmp.eq.s32.totalorder %s14, 3
      %p32 = por %p30, %p31
      %p33 = scmp.ne.s32.totalorder %s22, %s23
      %p34 = scmp.eq.s32.totalorder %s14, 0
      %p35 = por %p33, %p34
      %p36 = scmp.ne.s32.totalorder %s22, %s23
      %p37 = scmp.eq.s32.totalorder %s15, 3
      %p38 = por %p36, %p37
      %p40 = scmp.ne.s32.totalorder %s23, %s39
      %p41 = scmp.eq.s32.totalorder %s15, 0
      %p42 = por %p40, %p41
      %s44 = sadd.s32 %s43, 1
      %p47 = scmp.eq.s32.totalorder %s9, 3
      %p48 = scmp.ne.s32.totalorder %s43, %s45
      %p49 = scmp.eq.s32.totalorder %s9, 0
      %p50 = por %p48, %p49
      %p51 = scmp.ne.s32.totalorder %s43, %s45
      %p52 = scmp.eq.s32.totalorder %s14, 3
      %p53 = por %p51, %p52
      %p54 = scmp.ne.s32.totalorder %s45, %s46
      %p55 = scmp.eq.s32.totalorder %s14, 0
      %p56 = por %p54, %p55
      %p57 = scmp.ne.s32.totalorder %s45, %s46
      %p58 = scmp.eq.s32.totalorder %s15, 3
      %p59 = por %p57, %p58
      %p61 = scmp.ne.s32.totalorder %s46, %s60
      %p62 = scmp.eq.s32.totalorder %s15, 0
      %p63 = por %p61, %p62
      %s65 = sadd.s32 %s64, 1
      %p68 = scmp.eq.s32.totalorder %s9, 3
      %p69 = scmp.ne.s32.totalorder %s64, %s66
      %p70 = scmp.eq.s32.totalorder %s9, 0
      %p71 = por %p69, %p70
      %p72 = scmp.ne.s32.totalorder %s64, %s66
      %p73 = scmp.eq.s32.totalorder %s14, 3
      %p74 = por %p72, %p73
      %p75 = scmp.ne.s32.totalorder %s66, %s67
      %p76 = scmp.eq.s32.totalorder %s14, 0
      %p77 = por %p75, %p76
      %p78 = scmp.ne.s32.totalorder %s66, %s67
      %p79 = scmp.eq.s32.totalorder %s15, 3
      %p80 = por %p78, %p79
      %p82 = scmp.ne.s32.totalorder %s67, %s81
      %p83 = scmp.eq.s32.totalorder %s15, 0
      %p84 = por %p82, %p83
      %s85 = ssub.s32 %s9, %s16
      %p86 = scmp.eq.s32.totalorder %s85, 0
      %s88 = sadd.s32 %s87, 1
      %s89 = scalar_select %p86, %s87, %s88
      %p92 = pneg %p86
      %p93 = scmp.eq.s32.totalorder %s9, 3
      %p94 = por %p92, %p93
      %p95 = scmp.ne.s32.totalorder %s87, %s90
      %p96 = scmp.eq.s32.totalorder %s9, 0
      %p97 = por %p95, %p96
      %p98 = scmp.ne.s32.totalorder %s87, %s90
      %p99 = scmp.eq.s32.totalorder %s14, 3
      %p100 = por %p98, %p99
      %p101 = scmp.ne.s32.totalorder %s90, %s91
      %p102 = scmp.eq.s32.totalorder %s14, 0
      %p103 = por %p101, %p102
      %p104 = scmp.ne.s32.totalorder %s90, %s91
      %p105 = scmp.eq.s32.totalorder %s15, 3
      %p106 = por %p104, %p105
      %p108 = scmp.ne.s32.totalorder %s91, %s107
      %p109 = scmp.eq.s32.totalorder %s15, 0
      %p110 = por %p108, %p109
      %p111 = scmp.le.s32.totalorder 1, %s9
      %p112 = scmp.lt.s32.totalorder %s9, 5
      %p113 = pnand %p111, %p112
      %p114 = pneg %p113
      // Predicated region
      $region9: #{wcl_forward.19} parent=5 // pred_check
        _
      $region10: #{wcl_forward.19} parent=5 // pred_check_branch
        %116 = sbr.rel (%p113) target = $region12
      $region11: #{wcl_forward.19} parent=5 // pred_region
        %s117 = ssub.s32 %s9, 1
        // Predicated region
        $region13: #{wcl_forward.19} parent=11 // pred_check
          %p118 = pneg %p56
        $region14: #{wcl_forward.19} parent=11 // pred_check_branch
          %120 = sbr.rel (%p118) target = $region16
        $region15: #{wcl_forward.19} parent=11 // pred_region
          _
        $region16: #{wcl_forward.19} parent=11 // pred_fallthru
          _
        // Predicated region
        $region17: #{wcl_forward.19} parent=11 // pred_check
          %p121 = pneg %p77
        $region18: #{wcl_forward.19} parent=11 // pred_check_branch
          %123 = sbr.rel (%p121) target = $region20
        $region19: #{wcl_forward.19} parent=11 // pred_region
          _
        $region20: #{wcl_forward.19} parent=11 // pred_fallthru
          _
      $region12: #{wcl_forward.19} parent=5 // pred_fallthru
        _
      %p124 = scmp.lt.s32.totalorder %s9, 4
      // Predicated region
      $region21: #{wcl_forward.19} parent=5 // pred_check
        %p125 = pneg %p124
      $region22: #{wcl_forward.19} parent=5 // pred_check_branch
        %127 = sbr.rel (%p125) target = $region24
      $region23: #{wcl_forward.19} parent=5 // pred_region
        // Predicated region
        $region25: #{wcl_forward.19} parent=23 // pred_check
          %p128 = pneg %p29
        $region26: #{wcl_forward.19} parent=23 // pred_check_branch
          %130 = sbr.rel (%p128) target = $region28
        $region27: #{wcl_forward.19} parent=23 // pred_region
          %s131 = smul.u32 32, %s9
          %s132 = ssub.s32 99, %s131
          %p133 = scmp.lt.s32.totalorder %s132, 32
          %s134 = scalar_select %p133, %s132, 32
          %s135 = smul.u32 8, %s134
          %p136 = scmp.lt.s32.totalorder %s131, 98
          %s137 = scalar_select %p136, %s131, 98
          %s138 = smul.addr %s137, 8
          %s139 = scalar_lea.vmem %s0, %s138
          %s140 = smul.u32 32, %s9
          %s141 = ssub.s32 99, %s140
          %p142 = scmp.lt.s32.totalorder %s141, 32
          %s143 = scalar_select %p142, %s141, 32
          %s144 = smul.u32 8, %s143
        $region28: #{wcl_forward.19} parent=23 // pred_fallthru
          _
      $region24: #{wcl_forward.19} parent=5 // pred_fallthru
        _
      %p145 = scmp.le.s32.totalorder 1, %s9
      %p146 = scmp.lt.s32.totalorder %s9, 5
      %p147 = pnand %p145, %p146
      %p148 = pneg %p147
      // Predicated region
      $region29: #{wcl_forward.19} parent=5 // pred_check
        _
      $region30: #{wcl_forward.19} parent=5 // pred_check_branch
        %150 = sbr.rel (%p147) target = $region32
      $region31: #{wcl_forward.19} parent=5 // pred_region
        %s151 = ssub.s32 %s9, 1
        %s152 = smul.u32 32, %s14
        %s153 = ssub.s32 99, %s152
        %p154 = scmp.lt.s32.totalorder %s153, 32
        %s155 = scalar_select %p154, %s153, 32
        %s156 = smul.u32 8, %s155
        %p157 = scmp.lt.s32.totalorder %s152, 98
        %s158 = scalar_select %p157, %s152, 98
        %s159 = smul.addr %s158, 8
        %s160 = scalar_lea.vmem %s0, %s159
        %p161 = pneg %p35
        %p162 = pneg %p32
        %p163 = pneg %p56
        %p164 = pneg %p53
        %p165 = pneg %p77
        %p166 = pneg %p74
        %p167 = pneg %p103
        %p168 = pneg %p100
        %s169 = sand.u32 %s90, 1
        %s170 = sand.u32 %s90, 1
        %s171 = smul.addr %s170, 256
        %s172 = scalar_lea.vmem [#allocation2], %s171
        %s173 = smul.u32 32, %s14
        %s174 = ssub.s32 99, %s173
        %p175 = scmp.lt.s32.totalorder %s174, 32
        %s176 = scalar_select %p175, %s174, 32
        %s177 = smul.u32 8, %s176
        %p178 = scmp.lt.s32.totalorder %s173, 98
        %s179 = scalar_select %p178, %s173, 98
        %s180 = smul.addr %s179, 8
        %s181 = scalar_lea.vmem %s0, %s180
        %s182 = smul.u32 32, %s14
        %s183 = ssub.s32 99, %s182
        %p184 = scmp.lt.s32.totalorder %s183, 32
        %s185 = scalar_select %p184, %s183, 32
        %s186 = smul.u32 8, %s185
        %s187 = smul.u32 32, %s14
        %s188 = ssub.s32 99, %s187
        %p189 = scmp.lt.s32.totalorder %s188, 32
        %s190 = scalar_select %p189, %s188, 32
        %s191 = smul.u32 8, %s190
        %v193 = vld [vmem:[%s181] sm:$0xff]
        %v194 = vld [vmem:[%s181 + $0x8] sm:$0xff]
        %v195 = vld [vmem:[%s181 + $0x10] sm:$0xff]
        %v196 = vld [vmem:[%s181 + $0x18] sm:$0xff]
        %v197 = vld [vmem:[%s181 + $0x20] sm:$0xff]
        %v198 = vld [vmem:[%s181 + $0x28] sm:$0xff]
        %v199 = vld [vmem:[%s181 + $0x30] sm:$0xff]
        %v200 = vld [vmem:[%s181 + $0x38] sm:$0xff]
        %v201 = vld [vmem:[%s181 + $0x40] sm:$0xff]
        %v202 = vld [vmem:[%s181 + $0x48] sm:$0xff]
        %v203 = vld [vmem:[%s181 + $0x50] sm:$0xff]
        %v204 = vld [vmem:[%s181 + $0x58] sm:$0xff]
        %v205 = vld [vmem:[%s181 + $0x60] sm:$0xff]
        %v206 = vld [vmem:[%s181 + $0x68] sm:$0xff]
        %v207 = vld [vmem:[%s181 + $0x70] sm:$0xff]
        %v208 = vld [vmem:[%s181 + $0x78] sm:$0xff]
        %v209 = vld [vmem:[%s181 + $0x80] sm:$0xff]
        %v210 = vld [vmem:[%s181 + $0x88] sm:$0xff]
        %v211 = vld [vmem:[%s181 + $0x90] sm:$0xff]
        %v212 = vld [vmem:[%s181 + $0x98] sm:$0xff]
        %v213 = vld [vmem:[%s181 + $0xa0] sm:$0xff]
        %v214 = vld [vmem:[%s181 + $0xa8] sm:$0xff]
        %v215 = vld [vmem:[%s181 + $0xb0] sm:$0xff]
        %v216 = vld [vmem:[%s181 + $0xb8] sm:$0xff]
        %v217 = vld [vmem:[%s181 + $0xc0] sm:$0xff]
        %v218 = vld [vmem:[%s181 + $0xc8] sm:$0xff]
        %v219 = vld [vmem:[%s181 + $0xd0] sm:$0xff]
        %v220 = vld [vmem:[%s181 + $0xd8] sm:$0xff]
        %v221 = vld [vmem:[%s181 + $0xe0] sm:$0xff]
        %v222 = vld [vmem:[%s181 + $0xe8] sm:$0xff]
        %v223 = vld [vmem:[%s181 + $0xf0] sm:$0xff]
        %v224 = vld [vmem:[%s181 + $0xf8] sm:$0xff]
        %v225 = vpack.c.bf16 %v194, %v193
        %v226 = vpack.c.bf16 %v196, %v195
        %v227 = vpack.c.bf16 %v198, %v197
        %v228 = vpack.c.bf16 %v200, %v199
        %v229 = vpack.c.bf16 %v202, %v201
        %v230 = vpack.c.bf16 %v204, %v203
        %v231 = vpack.c.bf16 %v206, %v205
        %v232 = vpack.c.bf16 %v208, %v207
        %v233 = vpack.c.bf16 %v210, %v209
        %v234 = vpack.c.bf16 %v212, %v211
        %v235 = vpack.c.bf16 %v214, %v213
        %v236 = vpack.c.bf16 %v216, %v215
        %v237 = vpack.c.bf16 %v218, %v217
        %v238 = vpack.c.bf16 %v220, %v219
        %v239 = vpack.c.bf16 %v222, %v221
        %v240 = vpack.c.bf16 %v224, %v223
        %v241 = vld [vmem:[%s1] sm:$0xf]
        %v242 = vld [vmem:[%s1 + $0x4] sm:$0xf]
        %v243 = vld [vmem:[%s1 + $0x8] sm:$0xf]
        %v244 = vld [vmem:[%s1 + $0xc] sm:$0xf]
        %v245 = vld [vmem:[%s1 + $0x10] sm:$0xf]
        %v246 = vld [vmem:[%s1 + $0x14] sm:$0xf]
        %v247 = vld [vmem:[%s1 + $0x18] sm:$0xf]
        %v248 = vld [vmem:[%s1 + $0x1c] sm:$0xf]
        %v249 = vld [vmem:[%s2] sm:$0x1]
        %v251 = vperm.slane %v249, 0
        %v261 = vunpack.c.l.b16 %v241
        %v262 = vunpack.c.l.b16 %v242
        %v263 = vunpack.c.l.b16 %v243
        %v264 = vunpack.c.l.b16 %v244
        %v265 = vunpack.c.l.b16 %v245
        %v266 = vunpack.c.l.b16 %v246
        %v267 = vunpack.c.l.b16 %v247
        %v268 = vunpack.c.l.b16 %v248
        %v269 = vpack.c.b16 %v262, %v261
        %v270 = vpack.c.b16 %v264, %v263
        %v271 = vpack.c.b16 %v266, %v265
        %v272 = vpack.c.b16 %v268, %v267
        %vm277 = vcmask 523264
        %v279 = vsel %vm277, %v225, 0
        %v282 = vsel %vm277, %v226, 0
        %v285 = vsel %vm277, %v227, 0
        %v288 = vsel %vm277, %v228, 0
        %v291 = vsel %vm277, %v229, 0
        %v294 = vsel %vm277, %v230, 0
        %v297 = vsel %vm277, %v231, 0
        %v300 = vsel %vm277, %v232, 0
        %v303 = vsel %vm277, %v233, 0
        %v306 = vsel %vm277, %v234, 0
        %v309 = vsel %vm277, %v235, 0
        %v312 = vsel %vm277, %v236, 0
        %v315 = vsel %vm277, %v237, 0
        %v318 = vsel %vm277, %v238, 0
        %v321 = vsel %vm277, %v239, 0
        %v324 = vsel %vm277, %v240, 0
        %326 = vmatpush.bf16.msra.mxu0 0
        %327 = vmatpush.bf16.msra.mxu0 0
        %328 = vmatpush.bf16.msra.mxu0 0
        %329 = vmatpush.bf16.msra.mxu0 0
        %330 = vmatpush.bf16.msra.mxu0 %v272
        %331 = vmatpush.bf16.msra.mxu0 %v271
        %332 = vmatpush.bf16.msra.mxu0 %v270
        %333 = vmatpush.bf16.msra.mxu0 %v269
        %334 = vmatmul.bf16.gmra.mxu0 %v279
        %v335 = vpop.f32.mrf.mxu0
        %v336 = vadd.f32 %v251, %v335
        %v337 = vpop.f32.mrf.mxu0
        %v338 = vadd.f32 %v251, %v337
        %339 = vmatmul.bf16.gmra.mxu0 %v282
        %v340 = vpop.f32.mrf.mxu0
        %v341 = vadd.f32 %v251, %v340
        %v342 = vpop.f32.mrf.mxu0
        %v343 = vadd.f32 %v251, %v342
        %344 = vmatmul.bf16.gmra.mxu0 %v285
        %v345 = vpop.f32.mrf.mxu0
        %v346 = vadd.f32 %v251, %v345
        %v347 = vpop.f32.mrf.mxu0
        %v348 = vadd.f32 %v251, %v347
        %349 = vmatmul.bf16.gmra.mxu0 %v288
        %v350 = vpop.f32.mrf.mxu0
        %v351 = vadd.f32 %v251, %v350
        %v352 = vpop.f32.mrf.mxu0
        %v353 = vadd.f32 %v251, %v352
        %354 = vmatmul.bf16.gmra.mxu0 %v291
        %v355 = vpop.f32.mrf.mxu0
        %v356 = vadd.f32 %v251, %v355
        %v357 = vpop.f32.mrf.mxu0
        %v358 = vadd.f32 %v251, %v357
        %359 = vmatmul.bf16.gmra.mxu0 %v294
        %v360 = vpop.f32.mrf.mxu0
        %v361 = vadd.f32 %v251, %v360
        %v362 = vpop.f32.mrf.mxu0
        %v363 = vadd.f32 %v251, %v362
        %364 = vmatmul.bf16.gmra.mxu0 %v297
        %v365 = vpop.f32.mrf.mxu0
        %v366 = vadd.f32 %v251, %v365
        %v367 = vpop.f32.mrf.mxu0
        %v368 = vadd.f32 %v251, %v367
        %369 = vmatmul.bf16.gmra.mxu0 %v300
        %v370 = vpop.f32.mrf.mxu0
        %v371 = vadd.f32 %v251, %v370
        %v372 = vpop.f32.mrf.mxu0
        %v373 = vadd.f32 %v251, %v372
        %374 = vmatmul.bf16.gmra.mxu0 %v303
        %v375 = vpop.f32.mrf.mxu0
        %v376 = vadd.f32 %v251, %v375
        %v377 = vpop.f32.mrf.mxu0
        %v378 = vadd.f32 %v251, %v377
        %379 = vmatmul.bf16.gmra.mxu0 %v306
        %v380 = vpop.f32.mrf.mxu0
        %v381 = vadd.f32 %v251, %v380
        %v382 = vpop.f32.mrf.mxu0
        %v383 = vadd.f32 %v251, %v382
        %384 = vmatmul.bf16.gmra.mxu0 %v309
        %v385 = vpop.f32.mrf.mxu0
        %v386 = vadd.f32 %v251, %v385
        %v387 = vpop.f32.mrf.mxu0
        %v388 = vadd.f32 %v251, %v387
        %389 = vmatmul.bf16.gmra.mxu0 %v312
        %v390 = vpop.f32.mrf.mxu0
        %v391 = vadd.f32 %v251, %v390
        %v392 = vpop.f32.mrf.mxu0
        %v393 = vadd.f32 %v251, %v392
        %394 = vmatmul.bf16.gmra.mxu0 %v315
        %v395 = vpop.f32.mrf.mxu0
        %v396 = vadd.f32 %v251, %v395
        %v397 = vpop.f32.mrf.mxu0
        %v398 = vadd.f32 %v251, %v397
        %399 = vmatmul.bf16.gmra.mxu0 %v318
        %v400 = vpop.f32.mrf.mxu0
        %v401 = vadd.f32 %v251, %v400
        %v402 = vpop.f32.mrf.mxu0
        %v403 = vadd.f32 %v251, %v402
        %404 = vmatmul.bf16.gmra.mxu0 %v321
        %v405 = vpop.f32.mrf.mxu0
        %v406 = vadd.f32 %v251, %v405
        %v407 = vpop.f32.mrf.mxu0
        %v408 = vadd.f32 %v251, %v407
        %409 = vmatmul.bf16.gmra.mxu0 %v324
        %v410 = vpop.f32.mrf.mxu0
        %v411 = vadd.f32 %v251, %v410
        %v412 = vpop.f32.mrf.mxu0
        %v413 = vadd.f32 %v251, %v412
        %414 = vdwg.mxu0
        %415 = vst.msk [vmem:[%s172] sm:$0xff] %vm277, %v336
        %416 = vst.msk [vmem:[%s172 + $0x8] sm:$0xff] %vm277, %v338
        %417 = vst.msk [vmem:[%s172 + $0x10] sm:$0xff] %vm277, %v341
        %418 = vst.msk [vmem:[%s172 + $0x18] sm:$0xff] %vm277, %v343
        %419 = vst.msk [vmem:[%s172 + $0x20] sm:$0xff] %vm277, %v346
        %420 = vst.msk [vmem:[%s172 + $0x28] sm:$0xff] %vm277, %v348
        %421 = vst.msk [vmem:[%s172 + $0x30] sm:$0xff] %vm277, %v351
        %422 = vst.msk [vmem:[%s172 + $0x38] sm:$0xff] %vm277, %v353
        %423 = vst.msk [vmem:[%s172 + $0x40] sm:$0xff] %vm277, %v356
        %424 = vst.msk [vmem:[%s172 + $0x48] sm:$0xff] %vm277, %v358
        %425 = vst.msk [vmem:[%s172 + $0x50] sm:$0xff] %vm277, %v361
        %426 = vst.msk [vmem:[%s172 + $0x58] sm:$0xff] %vm277, %v363
        %427 = vst.msk [vmem:[%s172 + $0x60] sm:$0xff] %vm277, %v366
        %428 = vst.msk [vmem:[%s172 + $0x68] sm:$0xff] %vm277, %v368
        %429 = vst.msk [vmem:[%s172 + $0x70] sm:$0xff] %vm277, %v371
        %430 = vst.msk [vmem:[%s172 + $0x78] sm:$0xff] %vm277, %v373
        %431 = vst.msk [vmem:[%s172 + $0x80] sm:$0xff] %vm277, %v376
        %432 = vst.msk [vmem:[%s172 + $0x88] sm:$0xff] %vm277, %v378
        %433 = vst.msk [vmem:[%s172 + $0x90] sm:$0xff] %vm277, %v381
        %434 = vst.msk [vmem:[%s172 + $0x98] sm:$0xff] %vm277, %v383
        %435 = vst.msk [vmem:[%s172 + $0xa0] sm:$0xff] %vm277, %v386
        %436 = vst.msk [vmem:[%s172 + $0xa8] sm:$0xff] %vm277, %v388
        %437 = vst.msk [vmem:[%s172 + $0xb0] sm:$0xff] %vm277, %v391
        %438 = vst.msk [vmem:[%s172 + $0xb8] sm:$0xff] %vm277, %v393
        %439 = vst.msk [vmem:[%s172 + $0xc0] sm:$0xff] %vm277, %v396
        %440 = vst.msk [vmem:[%s172 + $0xc8] sm:$0xff] %vm277, %v398
        %441 = vst.msk [vmem:[%s172 + $0xd0] sm:$0xff] %vm277, %v401
        %442 = vst.msk [vmem:[%s172 + $0xd8] sm:$0xff] %vm277, %v403
        %443 = vst.msk [vmem:[%s172 + $0xe0] sm:$0xff] %vm277, %v406
        %444 = vst.msk [vmem:[%s172 + $0xe8] sm:$0xff] %vm277, %v408
        %445 = vst.msk [vmem:[%s172 + $0xf0] sm:$0xff] %vm277, %v411
        %446 = vst.msk [vmem:[%s172 + $0xf8] sm:$0xff] %vm277, %v413
        %s447 = sand.u32 %s90, 1
        %s448 = sand.u32 %s90, 1
        %s449 = smul.addr %s448, 256
        %s450 = scalar_lea.vmem [#allocation2], %s449
        // Predicated region
        $region33: #{wcl_forward.19} parent=31 // pred_check
          %p451 = pneg %p100
        $region34: #{wcl_forward.19} parent=31 // pred_check_branch
          %453 = sbr.rel (%p451) target = $region36
        $region35: #{wcl_forward.19} parent=31 // pred_region
          %s454 = smul.u32 32, %s14
          %s455 = ssub.s32 99, %s454
          %p456 = scmp.lt.s32.totalorder %s455, 32
          %s457 = scalar_select %p456, %s455, 32
          %s458 = smul.u32 8, %s457
          %p459 = scmp.ne.s32.totalorder 0, %s458
          %s460 = smul.addr %s454, 8
          %s461 = scalar_lea.vmem %s3, %s460
          // Predicated region
          $region37: #{wcl_forward.19} parent=35 // pred_check
            %p462 = pneg %p459
          $region38: #{wcl_forward.19} parent=35 // pred_check_branch
            %464 = sbr.rel (%p462) target = $region40
          $region39: #{wcl_forward.19} parent=35 // pred_region
            // Predicated region
            $region41: #{wcl_forward.19} parent=39 // pred_check
              _
            $region42: #{wcl_forward.19} parent=39 // pred_check_branch
              %466 = sbr.rel (0) target = $region44
            $region43: #{wcl_forward.19} parent=39 // pred_region
              // Predicated region
              $region63: #{wcl_forward.19} parent=43 // pred_check
                _
              $region64: #{wcl_forward.19} parent=43 // pred_check_branch
                %578 = sbr.rel (0) target = $region66
              $region65: #{wcl_forward.19} parent=43 // pred_region
                %s579 = sshrl.u32 %s457, 5
                // While loop
                $region67: #{wcl_forward.19} parent=65 // loop_pre_header
                  _
                $region68: #{wcl_forward.19} parent=65 // loop_header
                  %s581 = sphi 0, %s583
                  %p582 = scmp.ge.s32.totalorder %s581, %s579
                  %s586 = sphi 0, %s655
                  %s587 = sphi %s450, %s658
                  %s588 = sphi %s461, %s659
                $region69: #{wcl_forward.19} parent=65 // loop_header_branch
                  %585 = sbr.rel (%p582) target = $region73
                $region70: #{wcl_forward.19} parent=65 // loop_body
                  %v589 = vld [vmem:[%s587] sm:$0xff]
                  %590 = vst [vmem:[%s588] sm:$0xff] %v589
                  %v591 = vld [vmem:[%s587 + $0x8] sm:$0xff]
                  %592 = vst [vmem:[%s588 + $0x8] sm:$0xff] %v591
                  %v593 = vld [vmem:[%s587 + $0x10] sm:$0xff]
                  %594 = vst [vmem:[%s588 + $0x10] sm:$0xff] %v593
                  %v595 = vld [vmem:[%s587 + $0x18] sm:$0xff]
                  %596 = vst [vmem:[%s588 + $0x18] sm:$0xff] %v595
                  %v597 = vld [vmem:[%s587 + $0x20] sm:$0xff]
                  %598 = vst [vmem:[%s588 + $0x20] sm:$0xff] %v597
                  %v599 = vld [vmem:[%s587 + $0x28] sm:$0xff]
                  %600 = vst [vmem:[%s588 + $0x28] sm:$0xff] %v599
                  %v601 = vld [vmem:[%s587 + $0x30] sm:$0xff]
                  %602 = vst [vmem:[%s588 + $0x30] sm:$0xff] %v601
                  %v603 = vld [vmem:[%s587 + $0x38] sm:$0xff]
                  %604 = vst [vmem:[%s588 + $0x38] sm:$0xff] %v603
                  %v605 = vld [vmem:[%s587 + $0x40] sm:$0xff]
                  %606 = vst [vmem:[%s588 + $0x40] sm:$0xff] %v605
                  %v607 = vld [vmem:[%s587 + $0x48] sm:$0xff]
                  %608 = vst [vmem:[%s588 + $0x48] sm:$0xff] %v607
                  %v609 = vld [vmem:[%s587 + $0x50] sm:$0xff]
                  %610 = vst [vmem:[%s588 + $0x50] sm:$0xff] %v609
                  %v611 = vld [vmem:[%s587 + $0x58] sm:$0xff]
                  %612 = vst [vmem:[%s588 + $0x58] sm:$0xff] %v611
                  %v613 = vld [vmem:[%s587 + $0x60] sm:$0xff]
                  %614 = vst [vmem:[%s588 + $0x60] sm:$0xff] %v613
                  %v615 = vld [vmem:[%s587 + $0x68] sm:$0xff]
                  %616 = vst [vmem:[%s588 + $0x68] sm:$0xff] %v615
                  %v617 = vld [vmem:[%s587 + $0x70] sm:$0xff]
                  %618 = vst [vmem:[%s588 + $0x70] sm:$0xff] %v617
                  %v619 = vld [vmem:[%s587 + $0x78] sm:$0xff]
                  %620 = vst [vmem:[%s588 + $0x78] sm:$0xff] %v619
                  %v621 = vld [vmem:[%s587 + $0x80] sm:$0xff]
                  %622 = vst [vmem:[%s588 + $0x80] sm:$0xff] %v621
                  %v623 = vld [vmem:[%s587 + $0x88] sm:$0xff]
                  %624 = vst [vmem:[%s588 + $0x88] sm:$0xff] %v623
                  %v625 = vld [vmem:[%s587 + $0x90] sm:$0xff]
                  %626 = vst [vmem:[%s588 + $0x90] sm:$0xff] %v625
                  %v627 = vld [vmem:[%s587 + $0x98] sm:$0xff]
                  %628 = vst [vmem:[%s588 + $0x98] sm:$0xff] %v627
                  %v629 = vld [vmem:[%s587 + $0xa0] sm:$0xff]
                  %630 = vst [vmem:[%s588 + $0xa0] sm:$0xff] %v629
                  %v631 = vld [vmem:[%s587 + $0xa8] sm:$0xff]
                  %632 = vst [vmem:[%s588 + $0xa8] sm:$0xff] %v631
                  %v633 = vld [vmem:[%s587 + $0xb0] sm:$0xff]
                  %634 = vst [vmem:[%s588 + $0xb0] sm:$0xff] %v633
                  %v635 = vld [vmem:[%s587 + $0xb8] sm:$0xff]
                  %636 = vst [vmem:[%s588 + $0xb8] sm:$0xff] %v635
                  %v637 = vld [vmem:[%s587 + $0xc0] sm:$0xff]
                  %638 = vst [vmem:[%s588 + $0xc0] sm:$0xff] %v637
                  %v639 = vld [vmem:[%s587 + $0xc8] sm:$0xff]
                  %640 = vst [vmem:[%s588 + $0xc8] sm:$0xff] %v639
                  %v641 = vld [vmem:[%s587 + $0xd0] sm:$0xff]
                  %642 = vst [vmem:[%s588 + $0xd0] sm:$0xff] %v641
                  %v643 = vld [vmem:[%s587 + $0xd8] sm:$0xff]
                  %644 = vst [vmem:[%s588 + $0xd8] sm:$0xff] %v643
                  %v645 = vld [vmem:[%s587 + $0xe0] sm:$0xff]
                  %646 = vst [vmem:[%s588 + $0xe0] sm:$0xff] %v645
                  %v647 = vld [vmem:[%s587 + $0xe8] sm:$0xff]
                  %648 = vst [vmem:[%s588 + $0xe8] sm:$0xff] %v647
                  %v649 = vld [vmem:[%s587 + $0xf0] sm:$0xff]
                  %650 = vst [vmem:[%s588 + $0xf0] sm:$0xff] %v649
                  %v651 = vld [vmem:[%s587 + $0xf8] sm:$0xff]
                  %652 = vst [vmem:[%s588 + $0xf8] sm:$0xff] %v651
                  %s653 = sadd.s32 1, %s586
                  %p654 = scmp.ge.s32.totalorder %s653, %s579
                  %s655 = scalar_select %p654, 0, %s653
                  %s656 = smul.u32 %s655, 256
                  %s657 = smul.u32 %s655, 256
                  %s658 = scalar_lea.vmem %s450, %s656 [#allocation2]
                  %s659 = scalar_lea.vmem %s461, %s657
                $region71: #{wcl_forward.19} parent=65 // loop_footer
                  %s583 = sadd.s32 %s581, 1
                $region72: #{wcl_forward.19} parent=65 // loop_footer_branch
                  %580 = sbr.rel target = $region68
                $region73: #{wcl_forward.19} parent=65 // loop_exit
                  _
                %s660 = sshrl.u32 %s457, 5
                %s661 = sand.u32 %s457, 31
                %s662 = smul.u32 %s660, 32
                %s663 = smul.u32 8, %s662
                %s664 = scalar_lea.vmem %s450, %s663 [#allocation2]
                %s665 = smul.u32 8, %s662
                %s666 = scalar_lea.vmem %s461, %s665
                // While loop
                $region74: #{wcl_forward.19} parent=65 // loop_pre_header
                  _
                $region75: #{wcl_forward.19} parent=65 // loop_header
                  %s668 = sphi 0, %s670
                  %p669 = scmp.ge.s32.totalorder %s668, %s661
                  %s673 = sphi 0, %s680
                  %s674 = sphi %s664, %s683
                  %s675 = sphi %s666, %s684
                $region76: #{wcl_forward.19} parent=65 // loop_header_branch
                  %672 = sbr.rel (%p669) target = $region80
                $region77: #{wcl_forward.19} parent=65 // loop_body
                  %v676 = vld [vmem:[%s674] sm:$0xff]
                  %677 = vst [vmem:[%s675] sm:$0xff] %v676
                  %s678 = sadd.s32 1, %s673
                  %p679 = scmp.ge.s32.totalorder %s678, %s661
                  %s680 = scalar_select %p679, 0, %s678
                  %s681 = smul.u32 %s680, 8
                  %s682 = smul.u32 %s680, 8
                  %s683 = scalar_lea.vmem %s664, %s681 [#allocation2]
                  %s684 = scalar_lea.vmem %s666, %s682
                $region78: #{wcl_forward.19} parent=65 // loop_footer
                  %s670 = sadd.s32 %s668, 1
                $region79: #{wcl_forward.19} parent=65 // loop_footer_branch
                  %667 = sbr.rel target = $region75
                $region80: #{wcl_forward.19} parent=65 // loop_exit
                  _
              $region66: #{wcl_forward.19} parent=43 // pred_fallthru
                _
              // Predicated region
              $region81: #{wcl_forward.19} parent=43 // pred_check
                _
              $region82: #{wcl_forward.19} parent=43 // pred_check_branch
                %686 = sbr.rel target = $region84
              $region83: #{wcl_forward.19} parent=43 // pred_region
                _
              $region84: #{wcl_forward.19} parent=43 // pred_fallthru
                _
            $region44: #{wcl_forward.19} parent=39 // pred_fallthru
              _
            // Predicated region
            $region45: #{wcl_forward.19} parent=39 // pred_check
              _
            $region46: #{wcl_forward.19} parent=39 // pred_check_branch
              %468 = sbr.rel target = $region48
            $region47: #{wcl_forward.19} parent=39 // pred_region
              %s470 = ssub.s32 256, 1
              %s471 = sshrl.u32 %s457, 5
              // While loop
              $region49: #{wcl_forward.19} parent=47 // loop_pre_header
                _
              $region50: #{wcl_forward.19} parent=47 // loop_header
                %s473 = sphi 0, %s475
                %p474 = scmp.ge.s32.totalorder %s473, %s471
                %s478 = sphi 0, %s547
                %s479 = sphi %s450, %s550
                %s480 = sphi %s461, %s551
              $region51: #{wcl_forward.19} parent=47 // loop_header_branch
                %477 = sbr.rel (%p474) target = $region55
              $region52: #{wcl_forward.19} parent=47 // loop_body
                %v481 = vld [vmem:[%s479] sm:%s470]
                %482 = vst [vmem:[%s480] sm:%s470] %v481
                %v483 = vld [vmem:[%s479 + $0x8] sm:%s470]
                %484 = vst [vmem:[%s480 + $0x8] sm:%s470] %v483
                %v485 = vld [vmem:[%s479 + $0x10] sm:%s470]
                %486 = vst [vmem:[%s480 + $0x10] sm:%s470] %v485
                %v487 = vld [vmem:[%s479 + $0x18] sm:%s470]
                %488 = vst [vmem:[%s480 + $0x18] sm:%s470] %v487
                %v489 = vld [vmem:[%s479 + $0x20] sm:%s470]
                %490 = vst [vmem:[%s480 + $0x20] sm:%s470] %v489
                %v491 = vld [vmem:[%s479 + $0x28] sm:%s470]
                %492 = vst [vmem:[%s480 + $0x28] sm:%s470] %v491
                %v493 = vld [vmem:[%s479 + $0x30] sm:%s470]
                %494 = vst [vmem:[%s480 + $0x30] sm:%s470] %v493
                %v495 = vld [vmem:[%s479 + $0x38] sm:%s470]
                %496 = vst [vmem:[%s480 + $0x38] sm:%s470] %v495
                %v497 = vld [vmem:[%s479 + $0x40] sm:%s470]
                %498 = vst [vmem:[%s480 + $0x40] sm:%s470] %v497
                %v499 = vld [vmem:[%s479 + $0x48] sm:%s470]
                %500 = vst [vmem:[%s480 + $0x48] sm:%s470] %v499
                %v501 = vld [vmem:[%s479 + $0x50] sm:%s470]
                %502 = vst [vmem:[%s480 + $0x50] sm:%s470] %v501
                %v503 = vld [vmem:[%s479 + $0x58] sm:%s470]
                %504 = vst [vmem:[%s480 + $0x58] sm:%s470] %v503
                %v505 = vld [vmem:[%s479 + $0x60] sm:%s470]
                %506 = vst [vmem:[%s480 + $0x60] sm:%s470] %v505
                %v507 = vld [vmem:[%s479 + $0x68] sm:%s470]
                %508 = vst [vmem:[%s480 + $0x68] sm:%s470] %v507
                %v509 = vld [vmem:[%s479 + $0x70] sm:%s470]
                %510 = vst [vmem:[%s480 + $0x70] sm:%s470] %v509
                %v511 = vld [vmem:[%s479 + $0x78] sm:%s470]
                %512 = vst [vmem:[%s480 + $0x78] sm:%s470] %v511
                %v513 = vld [vmem:[%s479 + $0x80] sm:%s470]
                %514 = vst [vmem:[%s480 + $0x80] sm:%s470] %v513
                %v515 = vld [vmem:[%s479 + $0x88] sm:%s470]
                %516 = vst [vmem:[%s480 + $0x88] sm:%s470] %v515
                %v517 = vld [vmem:[%s479 + $0x90] sm:%s470]
                %518 = vst [vmem:[%s480 + $0x90] sm:%s470] %v517
                %v519 = vld [vmem:[%s479 + $0x98] sm:%s470]
                %520 = vst [vmem:[%s480 + $0x98] sm:%s470] %v519
                %v521 = vld [vmem:[%s479 + $0xa0] sm:%s470]
                %522 = vst [vmem:[%s480 + $0xa0] sm:%s470] %v521
                %v523 = vld [vmem:[%s479 + $0xa8] sm:%s470]
                %524 = vst [vmem:[%s480 + $0xa8] sm:%s470] %v523
                %v525 = vld [vmem:[%s479 + $0xb0] sm:%s470]
                %526 = vst [vmem:[%s480 + $0xb0] sm:%s470] %v525
                %v527 = vld [vmem:[%s479 + $0xb8] sm:%s470]
                %528 = vst [vmem:[%s480 + $0xb8] sm:%s470] %v527
                %v529 = vld [vmem:[%s479 + $0xc0] sm:%s470]
                %530 = vst [vmem:[%s480 + $0xc0] sm:%s470] %v529
                %v531 = vld [vmem:[%s479 + $0xc8] sm:%s470]
                %532 = vst [vmem:[%s480 + $0xc8] sm:%s470] %v531
                %v533 = vld [vmem:[%s479 + $0xd0] sm:%s470]
                %534 = vst [vmem:[%s480 + $0xd0] sm:%s470] %v533
                %v535 = vld [vmem:[%s479 + $0xd8] sm:%s470]
                %536 = vst [vmem:[%s480 + $0xd8] sm:%s470] %v535
                %v537 = vld [vmem:[%s479 + $0xe0] sm:%s470]
                %538 = vst [vmem:[%s480 + $0xe0] sm:%s470] %v537
                %v539 = vld [vmem:[%s479 + $0xe8] sm:%s470]
                %540 = vst [vmem:[%s480 + $0xe8] sm:%s470] %v539
                %v541 = vld [vmem:[%s479 + $0xf0] sm:%s470]
                %542 = vst [vmem:[%s480 + $0xf0] sm:%s470] %v541
                %v543 = vld [vmem:[%s479 + $0xf8] sm:%s470]
                %544 = vst [vmem:[%s480 + $0xf8] sm:%s470] %v543
                %s545 = sadd.s32 1, %s478
                %p546 = scmp.ge.s32.totalorder %s545, %s471
                %s547 = scalar_select %p546, 0, %s545
                %s548 = smul.u32 %s547, 256
                %s549 = smul.u32 %s547, 256
                %s550 = scalar_lea.vmem %s450, %s548 [#allocation2]
                %s551 = scalar_lea.vmem %s461, %s549
              $region53: #{wcl_forward.19} parent=47 // loop_footer
                %s475 = sadd.s32 %s473, 1
              $region54: #{wcl_forward.19} parent=47 // loop_footer_branch
                %472 = sbr.rel target = $region50
              $region55: #{wcl_forward.19} parent=47 // loop_exit
                _
              %s552 = sshrl.u32 %s457, 5
              %s553 = sand.u32 %s457, 31
              %s554 = smul.u32 %s552, 32
              %s555 = smul.u32 8, %s554
              %s556 = scalar_lea.vmem %s450, %s555 [#allocation2]
              %s557 = smul.u32 8, %s554
              %s558 = scalar_lea.vmem %s461, %s557
              // While loop
              $region56: #{wcl_forward.19} parent=47 // loop_pre_header
                _
              $region57: #{wcl_forward.19} parent=47 // loop_header
                %s560 = sphi 0, %s562
                %p561 = scmp.ge.s32.totalorder %s560, %s553
                %s565 = sphi 0, %s572
                %s566 = sphi %s556, %s575
                %s567 = sphi %s558, %s576
              $region58: #{wcl_forward.19} parent=47 // loop_header_branch
                %564 = sbr.rel (%p561) target = $region62
              $region59: #{wcl_forward.19} parent=47 // loop_body
                %v568 = vld [vmem:[%s566] sm:%s470]
                %569 = vst [vmem:[%s567] sm:%s470] %v568
                %s570 = sadd.s32 1, %s565
                %p571 = scmp.ge.s32.totalorder %s570, %s553
                %s572 = scalar_select %p571, 0, %s570
                %s573 = smul.u32 %s572, 8
                %s574 = smul.u32 %s572, 8
                %s575 = scalar_lea.vmem %s556, %s573 [#allocation2]
                %s576 = scalar_lea.vmem %s558, %s574
              $region60: #{wcl_forward.19} parent=47 // loop_footer
                %s562 = sadd.s32 %s560, 1
              $region61: #{wcl_forward.19} parent=47 // loop_footer_branch
                %559 = sbr.rel target = $region57
              $region62: #{wcl_forward.19} parent=47 // loop_exit
                _
            $region48: #{wcl_forward.19} parent=39 // pred_fallthru
              _
          $region40: #{wcl_forward.19} parent=35 // pred_fallthru
            _
          %687 = vnop
        $region36: #{wcl_forward.19} parent=31 // pred_fallthru
          _
      $region32: #{wcl_forward.19} parent=5 // pred_fallthru
        _
      %p688 = scmp.le.s32.totalorder 2, %s9
      // Predicated region
      $region85: #{wcl_forward.19} parent=5 // pred_check
        %p689 = pneg %p688
      $region86: #{wcl_forward.19} parent=5 // pred_check_branch
        %691 = sbr.rel (%p689) target = $region88
      $region87: #{wcl_forward.19} parent=5 // pred_region
        %s692 = ssub.s32 %s9, 2
        // Predicated region
        $region89: #{wcl_forward.19} parent=87 // pred_check
          %p693 = pneg %p106
        $region90: #{wcl_forward.19} parent=87 // pred_check_branch
          %695 = sbr.rel (%p693) target = $region92
        $region91: #{wcl_forward.19} parent=87 // pred_region
          %s696 = sand.u32 %s91, 1
          %s697 = sand.u32 %s91, 1
          %s698 = smul.addr %s697, 256
          %s699 = scalar_lea.vmem [#allocation2], %s698
        $region92: #{wcl_forward.19} parent=87 // pred_fallthru
          _
      $region88: #{wcl_forward.19} parent=5 // pred_fallthru
        _
    $region6: #{wcl_forward.19} parent=1 // loop_footer
      %s13 = sadd.s32 1, %s9
    $region7: #{wcl_forward.19} parent=1 // loop_footer_branch
      %8 = sbr.rel target = $region3
    $region8: #{wcl_forward.19} parent=1 // loop_exit
      _

// kernel: wcl_forward.21
$region0: #{wcl_forward.21}
  #allocation0 [shape = 'u32[]', space=smem, size = 0x4, offset = 0x4, fixed_abs, tag = 'smem constant byte address 0x4 - core index']
  #allocation1 [shape = 'u32[72,128]{1,0:T(1,128)}', space=vmem, size = 0x9000, scoped, tag = 'internal scratch']
  %s0 = inlined_call_operand.vmem [shape: f32[1568,64], index: 0, kind: input, shape index: {}]
  %s1 = inlined_call_operand.vmem [shape: bf16[64,32], index: 1, kind: input, shape index: {}]
  %s2 = inlined_call_operand.vmem [shape: f32[1,32], index: 2, kind: input, shape index: {}]
  %s3 = inlined_call_operand.vmem [shape: bf16[32,32], index: 3, kind: input, shape index: {}]
  %s4 = inlined_call_operand.vmem [shape: f32[1,32], index: 4, kind: input, shape index: {}]
  %s5 = inlined_call_operand.vmem [shape: f32[1568,32], index: 5, kind: output, shape index: {}]
  %s6 = sld [smem:[#allocation0]]
  $region101: #{wcl_forward.21} parent=0
    _
  %s8 = ssub.s32 1, %s6
  %s9 = scalar_select 0, %s8, %s6
  $region1: #{wcl_forward.21} parent=0
    #allocation2 [shape = 'u8[262144]{0}', space=vmem, size = 0x40000, scoped, tag = 'output window, operand 0']
    loop: start=0, step=1, limit=9
    $region2: #{wcl_forward.21} parent=1 // loop_pre_header
      _
    $region3: #{wcl_forward.21} parent=1 // loop_header
      %s11 = sphi 0, %s15
      %p12 = scmp.ge.s32.totalorder %s11, 9
      %s21 = sphi 0, %s23
      %s24 = sphi 0, %s21
      %s25 = sphi 0, %s24
      %s41 = sphi 0, %s25
      %s45 = sphi 0, %s45
      %s47 = sphi 0, %s45
      %s48 = sphi 0, %s47
      %s62 = sphi 0, %s48
      %s66 = sphi 0, %s66
      %s68 = sphi 0, %s66
      %s69 = sphi 0, %s68
      %s83 = sphi 0, %s69
      %s87 = sphi 0, %s87
      %s89 = sphi 0, %s87
      %s90 = sphi 0, %s89
      %s104 = sphi 0, %s90
      %s108 = sphi 0, %s108
      %s110 = sphi 0, %s108
      %s111 = sphi 0, %s110
      %s125 = sphi 0, %s111
      %s131 = sphi 0, %s133
      %s134 = sphi 0, %s131
      %s135 = sphi 0, %s134
      %s151 = sphi 0, %s135
    $region4: #{wcl_forward.21} parent=1 // loop_header_branch
      %14 = sbr.rel (%p12) target = $region8
    $region5: #{wcl_forward.21} parent=1 // loop_body
      %s16 = ssub.s32 %s11, 1
      %s17 = ssub.s32 %s11, 2
      %s18 = sadd.s32 %s11, 1
      %s19 = ssub.s32 %s11, %s18
      %p20 = scmp.eq.s32.totalorder %s19, 0
      %s22 = sadd.s32 %s21, 1
      %s23 = scalar_select %p20, %s21, %s22
      %p26 = pneg %p20
      %p27 = scmp.eq.s32.totalorder %s11, 6
      %p28 = por %p26, %p27
      %p29 = scmp.ne.s32.totalorder %s21, %s24
      %p30 = scmp.eq.s32.totalorder %s11, 0
      %p31 = por %p29, %p30
      %p32 = scmp.ne.s32.totalorder %s21, %s24
      %p33 = scmp.eq.s32.totalorder %s16, 6
      %p34 = por %p32, %p33
      %p35 = scmp.ne.s32.totalorder %s24, %s25
      %p36 = scmp.eq.s32.totalorder %s16, 0
      %p37 = por %p35, %p36
      %p38 = scmp.ne.s32.totalorder %s24, %s25
      %p39 = scmp.eq.s32.totalorder %s17, 6
      %p40 = por %p38, %p39
      %p42 = scmp.ne.s32.totalorder %s25, %s41
      %p43 = scmp.eq.s32.totalorder %s17, 0
      %p44 = por %p42, %p43
      %s46 = sadd.s32 %s45, 1
      %p49 = scmp.eq.s32.totalorder %s11, 6
      %p50 = scmp.ne.s32.totalorder %s45, %s47
      %p51 = scmp.eq.s32.totalorder %s11, 0
      %p52 = por %p50, %p51
      %p53 = scmp.ne.s32.totalorder %s45, %s47
      %p54 = scmp.eq.s32.totalorder %s16, 6
      %p55 = por %p53, %p54
      %p56 = scmp.ne.s32.totalorder %s47, %s48
      %p57 = scmp.eq.s32.totalorder %s16, 0
      %p58 = por %p56, %p57
      %p59 = scmp.ne.s32.totalorder %s47, %s48
      %p60 = scmp.eq.s32.totalorder %s17, 6
      %p61 = por %p59, %p60
      %p63 = scmp.ne.s32.totalorder %s48, %s62
      %p64 = scmp.eq.s32.totalorder %s17, 0
      %p65 = por %p63, %p64
      %s67 = sadd.s32 %s66, 1
      %p70 = scmp.eq.s32.totalorder %s11, 6
      %p71 = scmp.ne.s32.totalorder %s66, %s68
      %p72 = scmp.eq.s32.totalorder %s11, 0
      %p73 = por %p71, %p72
      %p74 = scmp.ne.s32.totalorder %s66, %s68
      %p75 = scmp.eq.s32.totalorder %s16, 6
      %p76 = por %p74, %p75
      %p77 = scmp.ne.s32.totalorder %s68, %s69
      %p78 = scmp.eq.s32.totalorder %s16, 0
      %p79 = por %p77, %p78
      %p80 = scmp.ne.s32.totalorder %s68, %s69
      %p81 = scmp.eq.s32.totalorder %s17, 6
      %p82 = por %p80, %p81
      %p84 = scmp.ne.s32.totalorder %s69, %s83
      %p85 = scmp.eq.s32.totalorder %s17, 0
      %p86 = por %p84, %p85
      %s88 = sadd.s32 %s87, 1
      %p91 = scmp.eq.s32.totalorder %s11, 6
      %p92 = scmp.ne.s32.totalorder %s87, %s89
      %p93 = scmp.eq.s32.totalorder %s11, 0
      %p94 = por %p92, %p93
      %p95 = scmp.ne.s32.totalorder %s87, %s89
      %p96 = scmp.eq.s32.totalorder %s16, 6
      %p97 = por %p95, %p96
      %p98 = scmp.ne.s32.totalorder %s89, %s90
      %p99 = scmp.eq.s32.totalorder %s16, 0
      %p100 = por %p98, %p99
      %p101 = scmp.ne.s32.totalorder %s89, %s90
      %p102 = scmp.eq.s32.totalorder %s17, 6
      %p103 = por %p101, %p102
      %p105 = scmp.ne.s32.totalorder %s90, %s104
      %p106 = scmp.eq.s32.totalorder %s17, 0
      %p107 = por %p105, %p106
      %s109 = sadd.s32 %s108, 1
      %p112 = scmp.eq.s32.totalorder %s11, 6
      %p113 = scmp.ne.s32.totalorder %s108, %s110
      %p114 = scmp.eq.s32.totalorder %s11, 0
      %p115 = por %p113, %p114
      %p116 = scmp.ne.s32.totalorder %s108, %s110
      %p117 = scmp.eq.s32.totalorder %s16, 6
      %p118 = por %p116, %p117
      %p119 = scmp.ne.s32.totalorder %s110, %s111
      %p120 = scmp.eq.s32.totalorder %s16, 0
      %p121 = por %p119, %p120
      %p122 = scmp.ne.s32.totalorder %s110, %s111
      %p123 = scmp.eq.s32.totalorder %s17, 6
      %p124 = por %p122, %p123
      %p126 = scmp.ne.s32.totalorder %s111, %s125
      %p127 = scmp.eq.s32.totalorder %s17, 0
      %p128 = por %p126, %p127
      %s129 = ssub.s32 %s11, %s18
      %p130 = scmp.eq.s32.totalorder %s129, 0
      %s132 = sadd.s32 %s131, 1
      %s133 = scalar_select %p130, %s131, %s132
      %p136 = pneg %p130
      %p137 = scmp.eq.s32.totalorder %s11, 6
      %p138 = por %p136, %p137
      %p139 = scmp.ne.s32.totalorder %s131, %s134
      %p140 = scmp.eq.s32.totalorder %s11, 0
      %p141 = por %p139, %p140
      %p142 = scmp.ne.s32.totalorder %s131, %s134
      %p143 = scmp.eq.s32.totalorder %s16, 6
      %p144 = por %p142, %p143
      %p145 = scmp.ne.s32.totalorder %s134, %s135
      %p146 = scmp.eq.s32.totalorder %s16, 0
      %p147 = por %p145, %p146
      %p148 = scmp.ne.s32.totalorder %s134, %s135
      %p149 = scmp.eq.s32.totalorder %s17, 6
      %p150 = por %p148, %p149
      %p152 = scmp.ne.s32.totalorder %s135, %s151
      %p153 = scmp.eq.s32.totalorder %s17, 0
      %p154 = por %p152, %p153
      %p155 = scmp.le.s32.totalorder 1, %s11
      %p156 = scmp.lt.s32.totalorder %s11, 8
      %p157 = pnand %p155, %p156
      %p158 = pneg %p157
      // Predicated region
      $region9: #{wcl_forward.21} parent=5 // pred_check
        _
      $region10: #{wcl_forward.21} parent=5 // pred_check_branch
        %160 = sbr.rel (%p157) target = $region12
      $region11: #{wcl_forward.21} parent=5 // pred_region
        %s161 = ssub.s32 %s11, 1
        // Predicated region
        $region13: #{wcl_forward.21} parent=11 // pred_check
          %p162 = pneg %p58
        $region14: #{wcl_forward.21} parent=11 // pred_check_branch
          %164 = sbr.rel (%p162) target = $region16
        $region15: #{wcl_forward.21} parent=11 // pred_region
          _
        $region16: #{wcl_forward.21} parent=11 // pred_fallthru
          _
        // Predicated region
        $region17: #{wcl_forward.21} parent=11 // pred_check
          %p165 = pneg %p79
        $region18: #{wcl_forward.21} parent=11 // pred_check_branch
          %167 = sbr.rel (%p165) target = $region20
        $region19: #{wcl_forward.21} parent=11 // pred_region
          _
        $region20: #{wcl_forward.21} parent=11 // pred_fallthru
          _
        // Predicated region
        $region21: #{wcl_forward.21} parent=11 // pred_check
          %p168 = pneg %p100
        $region22: #{wcl_forward.21} parent=11 // pred_check_branch
          %170 = sbr.rel (%p168) target = $region24
        $region23: #{wcl_forward.21} parent=11 // pred_region
          _
        $region24: #{wcl_forward.21} parent=11 // pred_fallthru
          _
        // Predicated region
        $region25: #{wcl_forward.21} parent=11 // pred_check
          %p171 = pneg %p121
        $region26: #{wcl_forward.21} parent=11 // pred_check_branch
          %173 = sbr.rel (%p171) target = $region28
        $region27: #{wcl_forward.21} parent=11 // pred_region
          _
        $region28: #{wcl_forward.21} parent=11 // pred_fallthru
          _
      $region12: #{wcl_forward.21} parent=5 // pred_fallthru
        _
      %p174 = scmp.lt.s32.totalorder %s11, 7
      // Predicated region
      $region29: #{wcl_forward.21} parent=5 // pred_check
        %p175 = pneg %p174
      $region30: #{wcl_forward.21} parent=5 // pred_check_branch
        %177 = sbr.rel (%p175) target = $region32
      $region31: #{wcl_forward.21} parent=5 // pred_region
        // Predicated region
        $region33: #{wcl_forward.21} parent=31 // pred_check
          %p178 = pneg %p31
        $region34: #{wcl_forward.21} parent=31 // pred_check_branch
          %180 = sbr.rel (%p178) target = $region36
        $region35: #{wcl_forward.21} parent=31 // pred_region
          %s181 = smul.u32 32, %s11
          %s182 = ssub.s32 196, %s181
          %p183 = scmp.lt.s32.totalorder %s182, 32
          %s184 = scalar_select %p183, %s182, 32
          %s185 = smul.u32 8, %s184
          %p186 = scmp.lt.s32.totalorder %s181, 195
          %s187 = scalar_select %p186, %s181, 195
          %s188 = smul.addr %s187, 8
          %s189 = scalar_lea.vmem %s0, %s188
          %s190 = smul.u32 32, %s11
          %s191 = ssub.s32 196, %s190
          %p192 = scmp.lt.s32.totalorder %s191, 32
          %s193 = scalar_select %p192, %s191, 32
          %s194 = smul.u32 8, %s193
        $region36: #{wcl_forward.21} parent=31 // pred_fallthru
          _
      $region32: #{wcl_forward.21} parent=5 // pred_fallthru
        _
      %p195 = scmp.le.s32.totalorder 1, %s11
      %p196 = scmp.lt.s32.totalorder %s11, 8
      %p197 = pnand %p195, %p196
      %p198 = pneg %p197
      // Predicated region
      $region37: #{wcl_forward.21} parent=5 // pred_check
        _
      $region38: #{wcl_forward.21} parent=5 // pred_check_branch
        %200 = sbr.rel (%p197) target = $region40
      $region39: #{wcl_forward.21} parent=5 // pred_region
        %s201 = ssub.s32 %s11, 1
        %s202 = smul.u32 32, %s16
        %s203 = ssub.s32 196, %s202
        %p204 = scmp.lt.s32.totalorder %s203, 32
        %s205 = scalar_select %p204, %s203, 32
        %s206 = smul.u32 8, %s205
        %p207 = scmp.lt.s32.totalorder %s202, 195
        %s208 = scalar_select %p207, %s202, 195
        %s209 = smul.addr %s208, 8
        %s210 = scalar_lea.vmem %s0, %s209
        %p211 = pneg %p37
        %p212 = pneg %p34
        %p213 = pneg %p58
        %p214 = pneg %p55
        %p215 = pneg %p79
        %p216 = pneg %p76
        %p217 = pneg %p100
        %p218 = pneg %p97
        %p219 = pneg %p121
        %p220 = pneg %p118
        %p221 = pneg %p147
        %p222 = pneg %p144
        %s223 = sand.u32 %s134, 1
        %s224 = sand.u32 %s134, 1
        %s225 = smul.addr %s224, 256
        %s226 = scalar_lea.vmem [#allocation2], %s225
        %s227 = smul.u32 32, %s16
        %s228 = ssub.s32 196, %s227
        %p229 = scmp.lt.s32.totalorder %s228, 32
        %s230 = scalar_select %p229, %s228, 32
        %s231 = smul.u32 8, %s230
        %p232 = scmp.lt.s32.totalorder %s227, 195
        %s233 = scalar_select %p232, %s227, 195
        %s234 = smul.addr %s233, 8
        %s235 = scalar_lea.vmem %s0, %s234
        %s236 = smul.u32 32, %s16
        %s237 = ssub.s32 196, %s236
        %p238 = scmp.lt.s32.totalorder %s237, 32
        %s239 = scalar_select %p238, %s237, 32
        %s240 = smul.u32 8, %s239
        %s241 = smul.u32 32, %s16
        %s242 = ssub.s32 196, %s241
        %p243 = scmp.lt.s32.totalorder %s242, 32
        %s244 = scalar_select %p243, %s242, 32
        %s245 = smul.u32 8, %s244
        %v247 = vld [vmem:[%s235] sm:$0xff]
        %v248 = vld [vmem:[%s235 + $0x8] sm:$0xff]
        %v249 = vld [vmem:[%s235 + $0x10] sm:$0xff]
        %v250 = vld [vmem:[%s235 + $0x18] sm:$0xff]
        %v251 = vld [vmem:[%s235 + $0x20] sm:$0xff]
        %v252 = vld [vmem:[%s235 + $0x28] sm:$0xff]
        %v253 = vld [vmem:[%s235 + $0x30] sm:$0xff]
        %v254 = vld [vmem:[%s235 + $0x38] sm:$0xff]
        %v255 = vld [vmem:[%s235 + $0x40] sm:$0xff]
        %v256 = vld [vmem:[%s235 + $0x48] sm:$0xff]
        %v257 = vld [vmem:[%s235 + $0x50] sm:$0xff]
        %v258 = vld [vmem:[%s235 + $0x58] sm:$0xff]
        %v259 = vld [vmem:[%s235 + $0x60] sm:$0xff]
        %v260 = vld [vmem:[%s235 + $0x68] sm:$0xff]
        %v261 = vld [vmem:[%s235 + $0x70] sm:$0xff]
        %v262 = vld [vmem:[%s235 + $0x78] sm:$0xff]
        %v263 = vld [vmem:[%s235 + $0x80] sm:$0xff]
        %v264 = vld [vmem:[%s235 + $0x88] sm:$0xff]
        %v265 = vld [vmem:[%s235 + $0x90] sm:$0xff]
        %v266 = vld [vmem:[%s235 + $0x98] sm:$0xff]
        %v267 = vld [vmem:[%s235 + $0xa0] sm:$0xff]
        %v268 = vld [vmem:[%s235 + $0xa8] sm:$0xff]
        %v269 = vld [vmem:[%s235 + $0xb0] sm:$0xff]
        %v270 = vld [vmem:[%s235 + $0xb8] sm:$0xff]
        %v271 = vld [vmem:[%s235 + $0xc0] sm:$0xff]
        %v272 = vld [vmem:[%s235 + $0xc8] sm:$0xff]
        %v273 = vld [vmem:[%s235 + $0xd0] sm:$0xff]
        %v274 = vld [vmem:[%s235 + $0xd8] sm:$0xff]
        %v275 = vld [vmem:[%s235 + $0xe0] sm:$0xff]
        %v276 = vld [vmem:[%s235 + $0xe8] sm:$0xff]
        %v277 = vld [vmem:[%s235 + $0xf0] sm:$0xff]
        %v278 = vld [vmem:[%s235 + $0xf8] sm:$0xff]
        %v279 = vpack.c.bf16 %v248, %v247
        %v280 = vpack.c.bf16 %v250, %v249
        %v281 = vpack.c.bf16 %v252, %v251
        %v282 = vpack.c.bf16 %v254, %v253
        %v283 = vpack.c.bf16 %v256, %v255
        %v284 = vpack.c.bf16 %v258, %v257
        %v285 = vpack.c.bf16 %v260, %v259
        %v286 = vpack.c.bf16 %v262, %v261
        %v287 = vpack.c.bf16 %v264, %v263
        %v288 = vpack.c.bf16 %v266, %v265
        %v289 = vpack.c.bf16 %v268, %v267
        %v290 = vpack.c.bf16 %v270, %v269
        %v291 = vpack.c.bf16 %v272, %v271
        %v292 = vpack.c.bf16 %v274, %v273
        %v293 = vpack.c.bf16 %v276, %v275
        %v294 = vpack.c.bf16 %v278, %v277
        %v295 = vld [vmem:[%s1] sm:$0xf]
        %v296 = vld [vmem:[%s1 + $0x4] sm:$0xf]
        %v297 = vld [vmem:[%s1 + $0x8] sm:$0xf]
        %v298 = vld [vmem:[%s1 + $0xc] sm:$0xf]
        %v299 = vld [vmem:[%s1 + $0x10] sm:$0xf]
        %v300 = vld [vmem:[%s1 + $0x14] sm:$0xf]
        %v301 = vld [vmem:[%s1 + $0x18] sm:$0xf]
        %v302 = vld [vmem:[%s1 + $0x1c] sm:$0xf]
        %v303 = vld [vmem:[%s2] sm:$0x1]
        %v305 = vperm.slane %v303, 0
        %v315 = vunpack.c.l.b16 %v295
        %v316 = vunpack.c.l.b16 %v296
        %v317 = vunpack.c.l.b16 %v297
        %v318 = vunpack.c.l.b16 %v298
        %v319 = vunpack.c.l.b16 %v299
        %v320 = vunpack.c.l.b16 %v300
        %v321 = vunpack.c.l.b16 %v301
        %v322 = vunpack.c.l.b16 %v302
        %v323 = vpack.c.b16 %v316, %v315
        %v324 = vpack.c.b16 %v318, %v317
        %v325 = vpack.c.b16 %v320, %v319
        %v326 = vpack.c.b16 %v322, %v321
        %vm331 = vcmask 523264
        %v333 = vsel %vm331, %v279, 0
        %v336 = vsel %vm331, %v280, 0
        %v339 = vsel %vm331, %v281, 0
        %v342 = vsel %vm331, %v282, 0
        %v345 = vsel %vm331, %v283, 0
        %v348 = vsel %vm331, %v284, 0
        %v351 = vsel %vm331, %v285, 0
        %v354 = vsel %vm331, %v286, 0
        %v357 = vsel %vm331, %v287, 0
        %v360 = vsel %vm331, %v288, 0
        %v363 = vsel %vm331, %v289, 0
        %v366 = vsel %vm331, %v290, 0
        %v369 = vsel %vm331, %v291, 0
        %v372 = vsel %vm331, %v292, 0
        %v375 = vsel %vm331, %v293, 0
        %v378 = vsel %vm331, %v294, 0
        %380 = vmatpush.bf16.msra.mxu0 0
        %381 = vmatpush.bf16.msra.mxu0 0
        %382 = vmatpush.bf16.msra.mxu0 0
        %383 = vmatpush.bf16.msra.mxu0 0
        %384 = vmatpush.bf16.msra.mxu0 %v326
        %385 = vmatpush.bf16.msra.mxu0 %v325
        %386 = vmatpush.bf16.msra.mxu0 %v324
        %387 = vmatpush.bf16.msra.mxu0 %v323
        %388 = vmatmul.bf16.gmra.mxu0 %v333
        %v389 = vpop.f32.mrf.mxu0
        %v390 = vadd.f32 %v305, %v389
        %v391 = vpop.f32.mrf.mxu0
        %v392 = vadd.f32 %v305, %v391
        %393 = vmatmul.bf16.gmra.mxu0 %v336
        %v394 = vpop.f32.mrf.mxu0
        %v395 = vadd.f32 %v305, %v394
        %v396 = vpop.f32.mrf.mxu0
        %v397 = vadd.f32 %v305, %v396
        %398 = vmatmul.bf16.gmra.mxu0 %v339
        %v399 = vpop.f32.mrf.mxu0
        %v400 = vadd.f32 %v305, %v399
        %v401 = vpop.f32.mrf.mxu0
        %v402 = vadd.f32 %v305, %v401
        %403 = vmatmul.bf16.gmra.mxu0 %v342
        %v404 = vpop.f32.mrf.mxu0
        %v405 = vadd.f32 %v305, %v404
        %v406 = vpop.f32.mrf.mxu0
        %v407 = vadd.f32 %v305, %v406
        %408 = vmatmul.bf16.gmra.mxu0 %v345
        %v409 = vpop.f32.mrf.mxu0
        %v410 = vadd.f32 %v305, %v409
        %v411 = vpop.f32.mrf.mxu0
        %v412 = vadd.f32 %v305, %v411
        %413 = vmatmul.bf16.gmra.mxu0 %v348
        %v414 = vpop.f32.mrf.mxu0
        %v415 = vadd.f32 %v305, %v414
        %v416 = vpop.f32.mrf.mxu0
        %v417 = vadd.f32 %v305, %v416
        %418 = vmatmul.bf16.gmra.mxu0 %v351
        %v419 = vpop.f32.mrf.mxu0
        %v420 = vadd.f32 %v305, %v419
        %v421 = vpop.f32.mrf.mxu0
        %v422 = vadd.f32 %v305, %v421
        %423 = vmatmul.bf16.gmra.mxu0 %v354
        %v424 = vpop.f32.mrf.mxu0
        %v425 = vadd.f32 %v305, %v424
        %v426 = vpop.f32.mrf.mxu0
        %v427 = vadd.f32 %v305, %v426
        %428 = vmatmul.bf16.gmra.mxu0 %v357
        %v429 = vpop.f32.mrf.mxu0
        %v430 = vadd.f32 %v305, %v429
        %v431 = vpop.f32.mrf.mxu0
        %v432 = vadd.f32 %v305, %v431
        %433 = vmatmul.bf16.gmra.mxu0 %v360
        %v434 = vpop.f32.mrf.mxu0
        %v435 = vadd.f32 %v305, %v434
        %v436 = vpop.f32.mrf.mxu0
        %v437 = vadd.f32 %v305, %v436
        %438 = vmatmul.bf16.gmra.mxu0 %v363
        %v439 = vpop.f32.mrf.mxu0
        %v440 = vadd.f32 %v305, %v439
        %v441 = vpop.f32.mrf.mxu0
        %v442 = vadd.f32 %v305, %v441
        %443 = vmatmul.bf16.gmra.mxu0 %v366
        %v444 = vpop.f32.mrf.mxu0
        %v445 = vadd.f32 %v305, %v444
        %v446 = vpop.f32.mrf.mxu0
        %v447 = vadd.f32 %v305, %v446
        %448 = vmatmul.bf16.gmra.mxu0 %v369
        %v449 = vpop.f32.mrf.mxu0
        %v450 = vadd.f32 %v305, %v449
        %v451 = vpop.f32.mrf.mxu0
        %v452 = vadd.f32 %v305, %v451
        %453 = vmatmul.bf16.gmra.mxu0 %v372
        %v454 = vpop.f32.mrf.mxu0
        %v455 = vadd.f32 %v305, %v454
        %v456 = vpop.f32.mrf.mxu0
        %v457 = vadd.f32 %v305, %v456
        %458 = vmatmul.bf16.gmra.mxu0 %v375
        %v459 = vpop.f32.mrf.mxu0
        %v460 = vadd.f32 %v305, %v459
        %v461 = vpop.f32.mrf.mxu0
        %v462 = vadd.f32 %v305, %v461
        %463 = vmatmul.bf16.gmra.mxu0 %v378
        %v464 = vpop.f32.mrf.mxu0
        %v465 = vadd.f32 %v305, %v464
        %v466 = vpop.f32.mrf.mxu0
        %v467 = vadd.f32 %v305, %v466
        %468 = vdwg.mxu0
        %v469 = vmax.f32 %v390, 0.0
        %v470 = vmax.f32 %v392, 0.0
        %v471 = vmax.f32 %v395, 0.0
        %v472 = vmax.f32 %v397, 0.0
        %v473 = vmax.f32 %v400, 0.0
        %v474 = vmax.f32 %v402, 0.0
        %v475 = vmax.f32 %v405, 0.0
        %v476 = vmax.f32 %v407, 0.0
        %v477 = vmax.f32 %v410, 0.0
        %v478 = vmax.f32 %v412, 0.0
        %v479 = vmax.f32 %v415, 0.0
        %v480 = vmax.f32 %v417, 0.0
        %v481 = vmax.f32 %v420, 0.0
        %v482 = vmax.f32 %v422, 0.0
        %v483 = vmax.f32 %v425, 0.0
        %v484 = vmax.f32 %v427, 0.0
        %v485 = vmax.f32 %v430, 0.0
        %v486 = vmax.f32 %v432, 0.0
        %v487 = vmax.f32 %v435, 0.0
        %v488 = vmax.f32 %v437, 0.0
        %v489 = vmax.f32 %v440, 0.0
        %v490 = vmax.f32 %v442, 0.0
        %v491 = vmax.f32 %v445, 0.0
        %v492 = vmax.f32 %v447, 0.0
        %v493 = vmax.f32 %v450, 0.0
        %v494 = vmax.f32 %v452, 0.0
        %v495 = vmax.f32 %v455, 0.0
        %v496 = vmax.f32 %v457, 0.0
        %v497 = vmax.f32 %v460, 0.0
        %v498 = vmax.f32 %v462, 0.0
        %v499 = vmax.f32 %v465, 0.0
        %v500 = vmax.f32 %v467, 0.0
        %v501 = vpack.c.bf16 %v470, %v469
        %v502 = vpack.c.bf16 %v472, %v471
        %v503 = vpack.c.bf16 %v474, %v473
        %v504 = vpack.c.bf16 %v476, %v475
        %v505 = vpack.c.bf16 %v478, %v477
        %v506 = vpack.c.bf16 %v480, %v479
        %v507 = vpack.c.bf16 %v482, %v481
        %v508 = vpack.c.bf16 %v484, %v483
        %v509 = vpack.c.bf16 %v486, %v485
        %v510 = vpack.c.bf16 %v488, %v487
        %v511 = vpack.c.bf16 %v490, %v489
        %v512 = vpack.c.bf16 %v492, %v491
        %v513 = vpack.c.bf16 %v494, %v493
        %v514 = vpack.c.bf16 %v496, %v495
        %v515 = vpack.c.bf16 %v498, %v497
        %v516 = vpack.c.bf16 %v500, %v499
        %v517 = vld [vmem:[%s3] sm:$0xf]
        %v518 = vld [vmem:[%s3 + $0x4] sm:$0xf]
        %v519 = vld [vmem:[%s3 + $0x8] sm:$0xf]
        %v520 = vld [vmem:[%s3 + $0xc] sm:$0xf]
        %v521 = vld [vmem:[%s4] sm:$0x1]
        %v523 = vperm.slane %v521, 0
        %v529 = vunpack.c.l.b16 %v517
        %v530 = vunpack.c.l.b16 %v518
        %v531 = vunpack.c.l.b16 %v519
        %v532 = vunpack.c.l.b16 %v520
        %v533 = vpack.c.b16 %v530, %v529
        %v534 = vpack.c.b16 %v532, %v531
        %vm537 = vcmask 261120
        %v539 = vsel %vm537, %v501, 0
        %v542 = vsel %vm537, %v502, 0
        %v545 = vsel %vm537, %v503, 0
        %v548 = vsel %vm537, %v504, 0
        %v551 = vsel %vm537, %v505, 0
        %v554 = vsel %vm537, %v506, 0
        %v557 = vsel %vm537, %v507, 0
        %v560 = vsel %vm537, %v508, 0
        %v563 = vsel %vm537, %v509, 0
        %v566 = vsel %vm537, %v510, 0
        %v569 = vsel %vm537, %v511, 0
        %v572 = vsel %vm537, %v512, 0
        %v575 = vsel %vm537, %v513, 0
        %v578 = vsel %vm537, %v514, 0
        %v581 = vsel %vm537, %v515, 0
        %v584 = vsel %vm537, %v516, 0
        %586 = vmatpush.bf16.msra.mxu0 0
        %587 = vmatpush.bf16.msra.mxu0 0
        %588 = vmatpush.bf16.msra.mxu0 0
        %589 = vmatpush.bf16.msra.mxu0 0
        %590 = vmatpush.bf16.msra.mxu0 0
        %591 = vmatpush.bf16.msra.mxu0 0
        %592 = vmatpush.bf16.msra.mxu0 %v534
        %593 = vmatpush.bf16.msra.mxu0 %v533
        %594 = vmatmul.bf16.gmra.mxu0 %v539
        %v595 = vpop.f32.mrf.mxu0
        %v596 = vadd.f32 %v523, %v595
        %v597 = vpop.f32.mrf.mxu0
        %v598 = vadd.f32 %v523, %v597
        %599 = vmatmul.bf16.gmra.mxu0 %v542
        %v600 = vpop.f32.mrf.mxu0
        %v601 = vadd.f32 %v523, %v600
        %v602 = vpop.f32.mrf.mxu0
        %v603 = vadd.f32 %v523, %v602
        %604 = vmatmul.bf16.gmra.mxu0 %v545
        %v605 = vpop.f32.mrf.mxu0
        %v606 = vadd.f32 %v523, %v605
        %v607 = vpop.f32.mrf.mxu0
        %v608 = vadd.f32 %v523, %v607
        %609 = vmatmul.bf16.gmra.mxu0 %v548
        %v610 = vpop.f32.mrf.mxu0
        %v611 = vadd.f32 %v523, %v610
        %v612 = vpop.f32.mrf.mxu0
        %v613 = vadd.f32 %v523, %v612
        %614 = vmatmul.bf16.gmra.mxu0 %v551
        %v615 = vpop.f32.mrf.mxu0
        %v616 = vadd.f32 %v523, %v615
        %v617 = vpop.f32.mrf.mxu0
        %v618 = vadd.f32 %v523, %v617
        %619 = vmatmul.bf16.gmra.mxu0 %v554
        %v620 = vpop.f32.mrf.mxu0
        %v621 = vadd.f32 %v523, %v620
        %v622 = vpop.f32.mrf.mxu0
        %v623 = vadd.f32 %v523, %v622
        %624 = vmatmul.bf16.gmra.mxu0 %v557
        %v625 = vpop.f32.mrf.mxu0
        %v626 = vadd.f32 %v523, %v625
        %v627 = vpop.f32.mrf.mxu0
        %v628 = vadd.f32 %v523, %v627
        %629 = vmatmul.bf16.gmra.mxu0 %v560
        %v630 = vpop.f32.mrf.mxu0
        %v631 = vadd.f32 %v523, %v630
        %v632 = vpop.f32.mrf.mxu0
        %v633 = vadd.f32 %v523, %v632
        %634 = vmatmul.bf16.gmra.mxu0 %v563
        %v635 = vpop.f32.mrf.mxu0
        %v636 = vadd.f32 %v523, %v635
        %v637 = vpop.f32.mrf.mxu0
        %v638 = vadd.f32 %v523, %v637
        %639 = vmatmul.bf16.gmra.mxu0 %v566
        %v640 = vpop.f32.mrf.mxu0
        %v641 = vadd.f32 %v523, %v640
        %v642 = vpop.f32.mrf.mxu0
        %v643 = vadd.f32 %v523, %v642
        %644 = vmatmul.bf16.gmra.mxu0 %v569
        %v645 = vpop.f32.mrf.mxu0
        %v646 = vadd.f32 %v523, %v645
        %v647 = vpop.f32.mrf.mxu0
        %v648 = vadd.f32 %v523, %v647
        %649 = vmatmul.bf16.gmra.mxu0 %v572
        %v650 = vpop.f32.mrf.mxu0
        %v651 = vadd.f32 %v523, %v650
        %v652 = vpop.f32.mrf.mxu0
        %v653 = vadd.f32 %v523, %v652
        %654 = vmatmul.bf16.gmra.mxu0 %v575
        %v655 = vpop.f32.mrf.mxu0
        %v656 = vadd.f32 %v523, %v655
        %v657 = vpop.f32.mrf.mxu0
        %v658 = vadd.f32 %v523, %v657
        %659 = vmatmul.bf16.gmra.mxu0 %v578
        %v660 = vpop.f32.mrf.mxu0
        %v661 = vadd.f32 %v523, %v660
        %v662 = vpop.f32.mrf.mxu0
        %v663 = vadd.f32 %v523, %v662
        %664 = vmatmul.bf16.gmra.mxu0 %v581
        %v665 = vpop.f32.mrf.mxu0
        %v666 = vadd.f32 %v523, %v665
        %v667 = vpop.f32.mrf.mxu0
        %v668 = vadd.f32 %v523, %v667
        %669 = vmatmul.bf16.gmra.mxu0 %v584
        %v670 = vpop.f32.mrf.mxu0
        %v671 = vadd.f32 %v523, %v670
        %v672 = vpop.f32.mrf.mxu0
        %v673 = vadd.f32 %v523, %v672
        %674 = vdwg.mxu0
        %v675 = vmul.f32 %v596, %v596
        %v676 = vmul.f32 %v598, %v598
        %v677 = vmul.f32 %v601, %v601
        %v678 = vmul.f32 %v603, %v603
        %v679 = vmul.f32 %v606, %v606
        %v680 = vmul.f32 %v608, %v608
        %v681 = vmul.f32 %v611, %v611
        %v682 = vmul.f32 %v613, %v613
        %v683 = vmul.f32 %v616, %v616
        %v684 = vmul.f32 %v618, %v618
        %v685 = vmul.f32 %v621, %v621
        %v686 = vmul.f32 %v623, %v623
        %v687 = vmul.f32 %v626, %v626
        %v688 = vmul.f32 %v628, %v628
        %v689 = vmul.f32 %v631, %v631
        %v690 = vmul.f32 %v633, %v633
        %v691 = vmul.f32 %v636, %v636
        %v692 = vmul.f32 %v638, %v638
        %v693 = vmul.f32 %v641, %v641
        %v694 = vmul.f32 %v643, %v643
        %v695 = vmul.f32 %v646, %v646
        %v696 = vmul.f32 %v648, %v648
        %v697 = vmul.f32 %v651, %v651
        %v698 = vmul.f32 %v653, %v653
        %v699 = vmul.f32 %v656, %v656
        %v700 = vmul.f32 %v658, %v658
        %v701 = vmul.f32 %v661, %v661
        %v702 = vmul.f32 %v663, %v663
        %v703 = vmul.f32 %v666, %v666
        %v704 = vmul.f32 %v668, %v668
        %v705 = vmul.f32 %v671, %v671
        %v706 = vmul.f32 %v673, %v673
        %v707 = vsel %vm537, %v675, 0.0
        %708 = vadd.xlane.f32.xlu0 %v707
        %v709 = vpop.xlane.xlu0 %708
        %v710 = vsel %vm537, %v676, 0.0
        %711 = vadd.xlane.f32.xlu0 %v710
        %v712 = vpop.xlane.xlu0 %711
        %v713 = vsel %vm537, %v677, 0.0
        %714 = vadd.xlane.f32.xlu0 %v713
        %v715 = vpop.xlane.xlu0 %714
        %v716 = vsel %vm537, %v678, 0.0
        %717 = vadd.xlane.f32.xlu0 %v716
        %v718 = vpop.xlane.xlu0 %717
        %v719 = vsel %vm537, %v679, 0.0
        %720 = vadd.xlane.f32.xlu0 %v719
        %v721 = vpop.xlane.xlu0 %720
        %v722 = vsel %vm537, %v680, 0.0
        %723 = vadd.xlane.f32.xlu0 %v722
        %v724 = vpop.xlane.xlu0 %723
        %v725 = vsel %vm537, %v681, 0.0
        %726 = vadd.xlane.f32.xlu0 %v725
        %v727 = vpop.xlane.xlu0 %726
        %v728 = vsel %vm537, %v682, 0.0
        %729 = vadd.xlane.f32.xlu0 %v728
        %v730 = vpop.xlane.xlu0 %729
        %v731 = vsel %vm537, %v683, 0.0
        %732 = vadd.xlane.f32.xlu0 %v731
        %v733 = vpop.xlane.xlu0 %732
        %v734 = vsel %vm537, %v684, 0.0
        %735 = vadd.xlane.f32.xlu0 %v734
        %v736 = vpop.xlane.xlu0 %735
        %v737 = vsel %vm537, %v685, 0.0
        %738 = vadd.xlane.f32.xlu0 %v737
        %v739 = vpop.xlane.xlu0 %738
        %v740 = vsel %vm537, %v686, 0.0
        %741 = vadd.xlane.f32.xlu0 %v740
        %v742 = vpop.xlane.xlu0 %741
        %v743 = vsel %vm537, %v687, 0.0
        %744 = vadd.xlane.f32.xlu0 %v743
        %v745 = vpop.xlane.xlu0 %744
        %v746 = vsel %vm537, %v688, 0.0
        %747 = vadd.xlane.f32.xlu0 %v746
        %v748 = vpop.xlane.xlu0 %747
        %v749 = vsel %vm537, %v689, 0.0
        %750 = vadd.xlane.f32.xlu0 %v749
        %v751 = vpop.xlane.xlu0 %750
        %v752 = vsel %vm537, %v690, 0.0
        %753 = vadd.xlane.f32.xlu0 %v752
        %v754 = vpop.xlane.xlu0 %753
        %v755 = vsel %vm537, %v691, 0.0
        %756 = vadd.xlane.f32.xlu0 %v755
        %v757 = vpop.xlane.xlu0 %756
        %v758 = vsel %vm537, %v692, 0.0
        %759 = vadd.xlane.f32.xlu0 %v758
        %v760 = vpop.xlane.xlu0 %759
        %v761 = vsel %vm537, %v693, 0.0
        %762 = vadd.xlane.f32.xlu0 %v761
        %v763 = vpop.xlane.xlu0 %762
        %v764 = vsel %vm537, %v694, 0.0
        %765 = vadd.xlane.f32.xlu0 %v764
        %v766 = vpop.xlane.xlu0 %765
        %v767 = vsel %vm537, %v695, 0.0
        %768 = vadd.xlane.f32.xlu0 %v767
        %v769 = vpop.xlane.xlu0 %768
        %v770 = vsel %vm537, %v696, 0.0
        %771 = vadd.xlane.f32.xlu0 %v770
        %v772 = vpop.xlane.xlu0 %771
        %v773 = vsel %vm537, %v697, 0.0
        %774 = vadd.xlane.f32.xlu0 %v773
        %v775 = vpop.xlane.xlu0 %774
        %v776 = vsel %vm537, %v698, 0.0
        %777 = vadd.xlane.f32.xlu0 %v776
        %v778 = vpop.xlane.xlu0 %777
        %v779 = vsel %vm537, %v699, 0.0
        %780 = vadd.xlane.f32.xlu0 %v779
        %v781 = vpop.xlane.xlu0 %780
        %v782 = vsel %vm537, %v700, 0.0
        %783 = vadd.xlane.f32.xlu0 %v782
        %v784 = vpop.xlane.xlu0 %783
        %v785 = vsel %vm537, %v701, 0.0
        %786 = vadd.xlane.f32.xlu0 %v785
        %v787 = vpop.xlane.xlu0 %786
        %v788 = vsel %vm537, %v702, 0.0
        %789 = vadd.xlane.f32.xlu0 %v788
        %v790 = vpop.xlane.xlu0 %789
        %v791 = vsel %vm537, %v703, 0.0
        %792 = vadd.xlane.f32.xlu0 %v791
        %v793 = vpop.xlane.xlu0 %792
        %v794 = vsel %vm537, %v704, 0.0
        %795 = vadd.xlane.f32.xlu0 %v794
        %v796 = vpop.xlane.xlu0 %795
        %v797 = vsel %vm537, %v705, 0.0
        %798 = vadd.xlane.f32.xlu0 %v797
        %v799 = vpop.xlane.xlu0 %798
        %v800 = vsel %vm537, %v706, 0.0
        %801 = vadd.xlane.f32.xlu0 %v800
        %v802 = vpop.xlane.xlu0 %801
        %v803 = vmax.f32 %v709, 1e-24
        %v804 = vmax.f32 %v712, 1e-24
        %v805 = vmax.f32 %v715, 1e-24
        %v806 = vmax.f32 %v718, 1e-24
        %v807 = vmax.f32 %v721, 1e-24
        %v808 = vmax.f32 %v724, 1e-24
        %v809 = vmax.f32 %v727, 1e-24
        %v810 = vmax.f32 %v730, 1e-24
        %v811 = vmax.f32 %v733, 1e-24
        %v812 = vmax.f32 %v736, 1e-24
        %v813 = vmax.f32 %v739, 1e-24
        %v814 = vmax.f32 %v742, 1e-24
        %v815 = vmax.f32 %v745, 1e-24
        %v816 = vmax.f32 %v748, 1e-24
        %v817 = vmax.f32 %v751, 1e-24
        %v818 = vmax.f32 %v754, 1e-24
        %v819 = vmax.f32 %v757, 1e-24
        %v820 = vmax.f32 %v760, 1e-24
        %v821 = vmax.f32 %v763, 1e-24
        %v822 = vmax.f32 %v766, 1e-24
        %v823 = vmax.f32 %v769, 1e-24
        %v824 = vmax.f32 %v772, 1e-24
        %v825 = vmax.f32 %v775, 1e-24
        %v826 = vmax.f32 %v778, 1e-24
        %v827 = vmax.f32 %v781, 1e-24
        %v828 = vmax.f32 %v784, 1e-24
        %v829 = vmax.f32 %v787, 1e-24
        %v830 = vmax.f32 %v790, 1e-24
        %v831 = vmax.f32 %v793, 1e-24
        %v832 = vmax.f32 %v796, 1e-24
        %v833 = vmax.f32 %v799, 1e-24
        %v834 = vmax.f32 %v802, 1e-24
        %v835 = vrsqrt.pop %v803
        %v836 = vmul.f32 %v835, %v803
        %v837 = vmul.f32 %v836, %v835
        %v838 = vmul.f32 0.5, %v837
        %v839 = vsub.f32 1.5, %v838
        %v840 = vmul.f32 %v835, %v839
        %vm841 = vweird.f32 %v803
        %vm842 = vweird.f32 %v835
        %vm843 = vmor %vm841, %vm842
        %v844 = vsel %vm843, %v835, %v840
        %v845 = vrsqrt.pop %v804
        %v846 = vmul.f32 %v845, %v804
        %v847 = vmul.f32 %v846, %v845
        %v848 = vmul.f32 0.5, %v847
        %v849 = vsub.f32 1.5, %v848
        %v850 = vmul.f32 %v845, %v849
        %vm851 = vweird.f32 %v804
        %vm852 = vweird.f32 %v845
        %vm853 = vmor %vm851, %vm852
        %v854 = vsel %vm853, %v845, %v850
        %v855 = vrsqrt.pop %v805
        %v856 = vmul.f32 %v855, %v805
        %v857 = vmul.f32 %v856, %v855
        %v858 = vmul.f32 0.5, %v857
        %v859 = vsub.f32 1.5, %v858
        %v860 = vmul.f32 %v855, %v859
        %vm861 = vweird.f32 %v805
        %vm862 = vweird.f32 %v855
        %vm863 = vmor %vm861, %vm862
        %v864 = vsel %vm863, %v855, %v860
        %v865 = vrsqrt.pop %v806
        %v866 = vmul.f32 %v865, %v806
        %v867 = vmul.f32 %v866, %v865
        %v868 = vmul.f32 0.5, %v867
        %v869 = vsub.f32 1.5, %v868
        %v870 = vmul.f32 %v865, %v869
        %vm871 = vweird.f32 %v806
        %vm872 = vweird.f32 %v865
        %vm873 = vmor %vm871, %vm872
        %v874 = vsel %vm873, %v865, %v870
        %v875 = vrsqrt.pop %v807
        %v876 = vmul.f32 %v875, %v807
        %v877 = vmul.f32 %v876, %v875
        %v878 = vmul.f32 0.5, %v877
        %v879 = vsub.f32 1.5, %v878
        %v880 = vmul.f32 %v875, %v879
        %vm881 = vweird.f32 %v807
        %vm882 = vweird.f32 %v875
        %vm883 = vmor %vm881, %vm882
        %v884 = vsel %vm883, %v875, %v880
        %v885 = vrsqrt.pop %v808
        %v886 = vmul.f32 %v885, %v808
        %v887 = vmul.f32 %v886, %v885
        %v888 = vmul.f32 0.5, %v887
        %v889 = vsub.f32 1.5, %v888
        %v890 = vmul.f32 %v885, %v889
        %vm891 = vweird.f32 %v808
        %vm892 = vweird.f32 %v885
        %vm893 = vmor %vm891, %vm892
        %v894 = vsel %vm893, %v885, %v890
        %v895 = vrsqrt.pop %v809
        %v896 = vmul.f32 %v895, %v809
        %v897 = vmul.f32 %v896, %v895
        %v898 = vmul.f32 0.5, %v897
        %v899 = vsub.f32 1.5, %v898
        %v900 = vmul.f32 %v895, %v899
        %vm901 = vweird.f32 %v809
        %vm902 = vweird.f32 %v895
        %vm903 = vmor %vm901, %vm902
        %v904 = vsel %vm903, %v895, %v900
        %v905 = vrsqrt.pop %v810
        %v906 = vmul.f32 %v905, %v810
        %v907 = vmul.f32 %v906, %v905
        %v908 = vmul.f32 0.5, %v907
        %v909 = vsub.f32 1.5, %v908
        %v910 = vmul.f32 %v905, %v909
        %vm911 = vweird.f32 %v810
        %vm912 = vweird.f32 %v905
        %vm913 = vmor %vm911, %vm912
        %v914 = vsel %vm913, %v905, %v910
        %v915 = vrsqrt.pop %v811
        %v916 = vmul.f32 %v915, %v811
        %v917 = vmul.f32 %v916, %v915
        %v918 = vmul.f32 0.5, %v917
        %v919 = vsub.f32 1.5, %v918
        %v920 = vmul.f32 %v915, %v919
        %vm921 = vweird.f32 %v811
        %vm922 = vweird.f32 %v915
        %vm923 = vmor %vm921, %vm922
        %v924 = vsel %vm923, %v915, %v920
        %v925 = vrsqrt.pop %v812
        %v926 = vmul.f32 %v925, %v812
        %v927 = vmul.f32 %v926, %v925
        %v928 = vmul.f32 0.5, %v927
        %v929 = vsub.f32 1.5, %v928
        %v930 = vmul.f32 %v925, %v929
        %vm931 = vweird.f32 %v812
        %vm932 = vweird.f32 %v925
        %vm933 = vmor %vm931, %vm932
        %v934 = vsel %vm933, %v925, %v930
        %v935 = vrsqrt.pop %v813
        %v936 = vmul.f32 %v935, %v813
        %v937 = vmul.f32 %v936, %v935
        %v938 = vmul.f32 0.5, %v937
        %v939 = vsub.f32 1.5, %v938
        %v940 = vmul.f32 %v935, %v939
        %vm941 = vweird.f32 %v813
        %vm942 = vweird.f32 %v935
        %vm943 = vmor %vm941, %vm942
        %v944 = vsel %vm943, %v935, %v940
        %v945 = vrsqrt.pop %v814
        %v946 = vmul.f32 %v945, %v814
        %v947 = vmul.f32 %v946, %v945
        %v948 = vmul.f32 0.5, %v947
        %v949 = vsub.f32 1.5, %v948
        %v950 = vmul.f32 %v945, %v949
        %vm951 = vweird.f32 %v814
        %vm952 = vweird.f32 %v945
        %vm953 = vmor %vm951, %vm952
        %v954 = vsel %vm953, %v945, %v950
        %v955 = vrsqrt.pop %v815
        %v956 = vmul.f32 %v955, %v815
        %v957 = vmul.f32 %v956, %v955
        %v958 = vmul.f32 0.5, %v957
        %v959 = vsub.f32 1.5, %v958
        %v960 = vmul.f32 %v955, %v959
        %vm961 = vweird.f32 %v815
        %vm962 = vweird.f32 %v955
        %vm963 = vmor %vm961, %vm962
        %v964 = vsel %vm963, %v955, %v960
        %v965 = vrsqrt.pop %v816
        %v966 = vmul.f32 %v965, %v816
        %v967 = vmul.f32 %v966, %v965
        %v968 = vmul.f32 0.5, %v967
        %v969 = vsub.f32 1.5, %v968
        %v970 = vmul.f32 %v965, %v969
        %vm971 = vweird.f32 %v816
        %vm972 = vweird.f32 %v965
        %vm973 = vmor %vm971, %vm972
        %v974 = vsel %vm973, %v965, %v970
        %v975 = vrsqrt.pop %v817
        %v976 = vmul.f32 %v975, %v817
        %v977 = vmul.f32 %v976, %v975
        %v978 = vmul.f32 0.5, %v977
        %v979 = vsub.f32 1.5, %v978
        %v980 = vmul.f32 %v975, %v979
        %vm981 = vweird.f32 %v817
        %vm982 = vweird.f32 %v975
        %vm983 = vmor %vm981, %vm982
        %v984 = vsel %vm983, %v975, %v980
        %v985 = vrsqrt.pop %v818
        %v986 = vmul.f32 %v985, %v818
        %v987 = vmul.f32 %v986, %v985
        %v988 = vmul.f32 0.5, %v987
        %v989 = vsub.f32 1.5, %v988
        %v990 = vmul.f32 %v985, %v989
        %vm991 = vweird.f32 %v818
        %vm992 = vweird.f32 %v985
        %vm993 = vmor %vm991, %vm992
        %v994 = vsel %vm993, %v985, %v990
        %v995 = vrsqrt.pop %v819
        %v996 = vmul.f32 %v995, %v819
        %v997 = vmul.f32 %v996, %v995
        %v998 = vmul.f32 0.5, %v997
        %v999 = vsub.f32 1.5, %v998
        %v1000 = vmul.f32 %v995, %v999
        %vm1001 = vweird.f32 %v819
        %vm1002 = vweird.f32 %v995
        %vm1003 = vmor %vm1001, %vm1002
        %v1004 = vsel %vm1003, %v995, %v1000
        %v1005 = vrsqrt.pop %v820
        %v1006 = vmul.f32 %v1005, %v820
        %v1007 = vmul.f32 %v1006, %v1005
        %v1008 = vmul.f32 0.5, %v1007
        %v1009 = vsub.f32 1.5, %v1008
        %v1010 = vmul.f32 %v1005, %v1009
        %vm1011 = vweird.f32 %v820
        %vm1012 = vweird.f32 %v1005
        %vm1013 = vmor %vm1011, %vm1012
        %v1014 = vsel %vm1013, %v1005, %v1010
        %v1015 = vrsqrt.pop %v821
        %v1016 = vmul.f32 %v1015, %v821
        %v1017 = vmul.f32 %v1016, %v1015
        %v1018 = vmul.f32 0.5, %v1017
        %v1019 = vsub.f32 1.5, %v1018
        %v1020 = vmul.f32 %v1015, %v1019
        %vm1021 = vweird.f32 %v821
        %vm1022 = vweird.f32 %v1015
        %vm1023 = vmor %vm1021, %vm1022
        %v1024 = vsel %vm1023, %v1015, %v1020
        %v1025 = vrsqrt.pop %v822
        %v1026 = vmul.f32 %v1025, %v822
        %v1027 = vmul.f32 %v1026, %v1025
        %v1028 = vmul.f32 0.5, %v1027
        %v1029 = vsub.f32 1.5, %v1028
        %v1030 = vmul.f32 %v1025, %v1029
        %vm1031 = vweird.f32 %v822
        %vm1032 = vweird.f32 %v1025
        %vm1033 = vmor %vm1031, %vm1032
        %v1034 = vsel %vm1033, %v1025, %v1030
        %v1035 = vrsqrt.pop %v823
        %v1036 = vmul.f32 %v1035, %v823
        %v1037 = vmul.f32 %v1036, %v1035
        %v1038 = vmul.f32 0.5, %v1037
        %v1039 = vsub.f32 1.5, %v1038
        %v1040 = vmul.f32 %v1035, %v1039
        %vm1041 = vweird.f32 %v823
        %vm1042 = vweird.f32 %v1035
        %vm1043 = vmor %vm1041, %vm1042
        %v1044 = vsel %vm1043, %v1035, %v1040
        %v1045 = vrsqrt.pop %v824
        %v1046 = vmul.f32 %v1045, %v824
        %v1047 = vmul.f32 %v1046, %v1045
        %v1048 = vmul.f32 0.5, %v1047
        %v1049 = vsub.f32 1.5, %v1048
        %v1050 = vmul.f32 %v1045, %v1049
        %vm1051 = vweird.f32 %v824
        %vm1052 = vweird.f32 %v1045
        %vm1053 = vmor %vm1051, %vm1052
        %v1054 = vsel %vm1053, %v1045, %v1050
        %v1055 = vrsqrt.pop %v825
        %v1056 = vmul.f32 %v1055, %v825
        %v1057 = vmul.f32 %v1056, %v1055
        %v1058 = vmul.f32 0.5, %v1057
        %v1059 = vsub.f32 1.5, %v1058
        %v1060 = vmul.f32 %v1055, %v1059
        %vm1061 = vweird.f32 %v825
        %vm1062 = vweird.f32 %v1055
        %vm1063 = vmor %vm1061, %vm1062
        %v1064 = vsel %vm1063, %v1055, %v1060
        %v1065 = vrsqrt.pop %v826
        %v1066 = vmul.f32 %v1065, %v826
        %v1067 = vmul.f32 %v1066, %v1065
        %v1068 = vmul.f32 0.5, %v1067
        %v1069 = vsub.f32 1.5, %v1068
        %v1070 = vmul.f32 %v1065, %v1069
        %vm1071 = vweird.f32 %v826
        %vm1072 = vweird.f32 %v1065
        %vm1073 = vmor %vm1071, %vm1072
        %v1074 = vsel %vm1073, %v1065, %v1070
        %v1075 = vrsqrt.pop %v827
        %v1076 = vmul.f32 %v1075, %v827
        %v1077 = vmul.f32 %v1076, %v1075
        %v1078 = vmul.f32 0.5, %v1077
        %v1079 = vsub.f32 1.5, %v1078
        %v1080 = vmul.f32 %v1075, %v1079
        %vm1081 = vweird.f32 %v827
        %vm1082 = vweird.f32 %v1075
        %vm1083 = vmor %vm1081, %vm1082
        %v1084 = vsel %vm1083, %v1075, %v1080
        %v1085 = vrsqrt.pop %v828
        %v1086 = vmul.f32 %v1085, %v828
        %v1087 = vmul.f32 %v1086, %v1085
        %v1088 = vmul.f32 0.5, %v1087
        %v1089 = vsub.f32 1.5, %v1088
        %v1090 = vmul.f32 %v1085, %v1089
        %vm1091 = vweird.f32 %v828
        %vm1092 = vweird.f32 %v1085
        %vm1093 = vmor %vm1091, %vm1092
        %v1094 = vsel %vm1093, %v1085, %v1090
        %v1095 = vrsqrt.pop %v829
        %v1096 = vmul.f32 %v1095, %v829
        %v1097 = vmul.f32 %v1096, %v1095
        %v1098 = vmul.f32 0.5, %v1097
        %v1099 = vsub.f32 1.5, %v1098
        %v1100 = vmul.f32 %v1095, %v1099
        %vm1101 = vweird.f32 %v829
        %vm1102 = vweird.f32 %v1095
        %vm1103 = vmor %vm1101, %vm1102
        %v1104 = vsel %vm1103, %v1095, %v1100
        %v1105 = vrsqrt.pop %v830
        %v1106 = vmul.f32 %v1105, %v830
        %v1107 = vmul.f32 %v1106, %v1105
        %v1108 = vmul.f32 0.5, %v1107
        %v1109 = vsub.f32 1.5, %v1108
        %v1110 = vmul.f32 %v1105, %v1109
        %vm1111 = vweird.f32 %v830
        %vm1112 = vweird.f32 %v1105
        %vm1113 = vmor %vm1111, %vm1112
        %v1114 = vsel %vm1113, %v1105, %v1110
        %v1115 = vrsqrt.pop %v831
        %v1116 = vmul.f32 %v1115, %v831
        %v1117 = vmul.f32 %v1116, %v1115
        %v1118 = vmul.f32 0.5, %v1117
        %v1119 = vsub.f32 1.5, %v1118
        %v1120 = vmul.f32 %v1115, %v1119
        %vm1121 = vweird.f32 %v831
        %vm1122 = vweird.f32 %v1115
        %vm1123 = vmor %vm1121, %vm1122
        %v1124 = vsel %vm1123, %v1115, %v1120
        %v1125 = vrsqrt.pop %v832
        %v1126 = vmul.f32 %v1125, %v832
        %v1127 = vmul.f32 %v1126, %v1125
        %v1128 = vmul.f32 0.5, %v1127
        %v1129 = vsub.f32 1.5, %v1128
        %v1130 = vmul.f32 %v1125, %v1129
        %vm1131 = vweird.f32 %v832
        %vm1132 = vweird.f32 %v1125
        %vm1133 = vmor %vm1131, %vm1132
        %v1134 = vsel %vm1133, %v1125, %v1130
        %v1135 = vrsqrt.pop %v833
        %v1136 = vmul.f32 %v1135, %v833
        %v1137 = vmul.f32 %v1136, %v1135
        %v1138 = vmul.f32 0.5, %v1137
        %v1139 = vsub.f32 1.5, %v1138
        %v1140 = vmul.f32 %v1135, %v1139
        %vm1141 = vweird.f32 %v833
        %vm1142 = vweird.f32 %v1135
        %vm1143 = vmor %vm1141, %vm1142
        %v1144 = vsel %vm1143, %v1135, %v1140
        %v1145 = vrsqrt.pop %v834
        %v1146 = vmul.f32 %v1145, %v834
        %v1147 = vmul.f32 %v1146, %v1145
        %v1148 = vmul.f32 0.5, %v1147
        %v1149 = vsub.f32 1.5, %v1148
        %v1150 = vmul.f32 %v1145, %v1149
        %vm1151 = vweird.f32 %v834
        %vm1152 = vweird.f32 %v1145
        %vm1153 = vmor %vm1151, %vm1152
        %v1154 = vsel %vm1153, %v1145, %v1150
        %v1155 = vmul.f32 %v596, %v844
        %v1156 = vmul.f32 %v598, %v854
        %v1157 = vmul.f32 %v601, %v864
        %v1158 = vmul.f32 %v603, %v874
        %v1159 = vmul.f32 %v606, %v884
        %v1160 = vmul.f32 %v608, %v894
        %v1161 = vmul.f32 %v611, %v904
        %v1162 = vmul.f32 %v613, %v914
        %v1163 = vmul.f32 %v616, %v924
        %v1164 = vmul.f32 %v618, %v934
        %v1165 = vmul.f32 %v621, %v944
        %v1166 = vmul.f32 %v623, %v954
        %v1167 = vmul.f32 %v626, %v964
        %v1168 = vmul.f32 %v628, %v974
        %v1169 = vmul.f32 %v631, %v984
        %v1170 = vmul.f32 %v633, %v994
        %v1171 = vmul.f32 %v636, %v1004
        %v1172 = vmul.f32 %v638, %v1014
        %v1173 = vmul.f32 %v641, %v1024
        %v1174 = vmul.f32 %v643, %v1034
        %v1175 = vmul.f32 %v646, %v1044
        %v1176 = vmul.f32 %v648, %v1054
        %v1177 = vmul.f32 %v651, %v1064
        %v1178 = vmul.f32 %v653, %v1074
        %v1179 = vmul.f32 %v656, %v1084
        %v1180 = vmul.f32 %v658, %v1094
        %v1181 = vmul.f32 %v661, %v1104
        %v1182 = vmul.f32 %v663, %v1114
        %v1183 = vmul.f32 %v666, %v1124
        %v1184 = vmul.f32 %v668, %v1134
        %v1185 = vmul.f32 %v671, %v1144
        %v1186 = vmul.f32 %v673, %v1154
        %1187 = vst.msk [vmem:[%s226] sm:$0xff] %vm537, %v1155
        %1188 = vst.msk [vmem:[%s226 + $0x8] sm:$0xff] %vm537, %v1156
        %1189 = vst.msk [vmem:[%s226 + $0x10] sm:$0xff] %vm537, %v1157
        %1190 = vst.msk [vmem:[%s226 + $0x18] sm:$0xff] %vm537, %v1158
        %1191 = vst.msk [vmem:[%s226 + $0x20] sm:$0xff] %vm537, %v1159
        %1192 = vst.msk [vmem:[%s226 + $0x28] sm:$0xff] %vm537, %v1160
        %1193 = vst.msk [vmem:[%s226 + $0x30] sm:$0xff] %vm537, %v1161
        %1194 = vst.msk [vmem:[%s226 + $0x38] sm:$0xff] %vm537, %v1162
        %1195 = vst.msk [vmem:[%s226 + $0x40] sm:$0xff] %vm537, %v1163
        %1196 = vst.msk [vmem:[%s226 + $0x48] sm:$0xff] %vm537, %v1164
        %1197 = vst.msk [vmem:[%s226 + $0x50] sm:$0xff] %vm537, %v1165
        %1198 = vst.msk [vmem:[%s226 + $0x58] sm:$0xff] %vm537, %v1166
        %1199 = vst.msk [vmem:[%s226 + $0x60] sm:$0xff] %vm537, %v1167
        %1200 = vst.msk [vmem:[%s226 + $0x68] sm:$0xff] %vm537, %v1168
        %1201 = vst.msk [vmem:[%s226 + $0x70] sm:$0xff] %vm537, %v1169
        %1202 = vst.msk [vmem:[%s226 + $0x78] sm:$0xff] %vm537, %v1170
        %1203 = vst.msk [vmem:[%s226 + $0x80] sm:$0xff] %vm537, %v1171
        %1204 = vst.msk [vmem:[%s226 + $0x88] sm:$0xff] %vm537, %v1172
        %1205 = vst.msk [vmem:[%s226 + $0x90] sm:$0xff] %vm537, %v1173
        %1206 = vst.msk [vmem:[%s226 + $0x98] sm:$0xff] %vm537, %v1174
        %1207 = vst.msk [vmem:[%s226 + $0xa0] sm:$0xff] %vm537, %v1175
        %1208 = vst.msk [vmem:[%s226 + $0xa8] sm:$0xff] %vm537, %v1176
        %1209 = vst.msk [vmem:[%s226 + $0xb0] sm:$0xff] %vm537, %v1177
        %1210 = vst.msk [vmem:[%s226 + $0xb8] sm:$0xff] %vm537, %v1178
        %1211 = vst.msk [vmem:[%s226 + $0xc0] sm:$0xff] %vm537, %v1179
        %1212 = vst.msk [vmem:[%s226 + $0xc8] sm:$0xff] %vm537, %v1180
        %1213 = vst.msk [vmem:[%s226 + $0xd0] sm:$0xff] %vm537, %v1181
        %1214 = vst.msk [vmem:[%s226 + $0xd8] sm:$0xff] %vm537, %v1182
        %1215 = vst.msk [vmem:[%s226 + $0xe0] sm:$0xff] %vm537, %v1183
        %1216 = vst.msk [vmem:[%s226 + $0xe8] sm:$0xff] %vm537, %v1184
        %1217 = vst.msk [vmem:[%s226 + $0xf0] sm:$0xff] %vm537, %v1185
        %1218 = vst.msk [vmem:[%s226 + $0xf8] sm:$0xff] %vm537, %v1186
        %s1219 = sand.u32 %s134, 1
        %s1220 = sand.u32 %s134, 1
        %s1221 = smul.addr %s1220, 256
        %s1222 = scalar_lea.vmem [#allocation2], %s1221
        // Predicated region
        $region41: #{wcl_forward.21} parent=39 // pred_check
          %p1223 = pneg %p144
        $region42: #{wcl_forward.21} parent=39 // pred_check_branch
          %1225 = sbr.rel (%p1223) target = $region44
        $region43: #{wcl_forward.21} parent=39 // pred_region
          %s1226 = smul.u32 32, %s16
          %s1227 = ssub.s32 196, %s1226
          %p1228 = scmp.lt.s32.totalorder %s1227, 32
          %s1229 = scalar_select %p1228, %s1227, 32
          %s1230 = smul.u32 8, %s1229
          %p1231 = scmp.ne.s32.totalorder 0, %s1230
          %s1232 = smul.addr %s1226, 8
          %s1233 = scalar_lea.vmem %s5, %s1232
          // Predicated region
          $region45: #{wcl_forward.21} parent=43 // pred_check
            %p1234 = pneg %p1231
          $region46: #{wcl_forward.21} parent=43 // pred_check_branch
            %1236 = sbr.rel (%p1234) target = $region48
          $region47: #{wcl_forward.21} parent=43 // pred_region
            // Predicated region
            $region49: #{wcl_forward.21} parent=47 // pred_check
              _
            $region50: #{wcl_forward.21} parent=47 // pred_check_branch
              %1238 = sbr.rel (0) target = $region52
            $region51: #{wcl_forward.21} parent=47 // pred_region
              // Predicated region
              $region71: #{wcl_forward.21} parent=51 // pred_check
                _
              $region72: #{wcl_forward.21} parent=51 // pred_check_branch
                %1350 = sbr.rel (0) target = $region74
              $region73: #{wcl_forward.21} parent=51 // pred_region
                %s1351 = sshrl.u32 %s1229, 5
                // While loop
                $region75: #{wcl_forward.21} parent=73 // loop_pre_header
                  _
                $region76: #{wcl_forward.21} parent=73 // loop_header
                  %s1353 = sphi 0, %s1355
                  %p1354 = scmp.ge.s32.totalorder %s1353, %s1351
                  %s1358 = sphi 0, %s1427
                  %s1359 = sphi %s1222, %s1430
                  %s1360 = sphi %s1233, %s1431
                $region77: #{wcl_forward.21} parent=73 // loop_header_branch
                  %1357 = sbr.rel (%p1354) target = $region81
                $region78: #{wcl_forward.21} parent=73 // loop_body
                  %v1361 = vld [vmem:[%s1359] sm:$0xff]
                  %1362 = vst [vmem:[%s1360] sm:$0xff] %v1361
                  %v1363 = vld [vmem:[%s1359 + $0x8] sm:$0xff]
                  %1364 = vst [vmem:[%s1360 + $0x8] sm:$0xff] %v1363
                  %v1365 = vld [vmem:[%s1359 + $0x10] sm:$0xff]
                  %1366 = vst [vmem:[%s1360 + $0x10] sm:$0xff] %v1365
                  %v1367 = vld [vmem:[%s1359 + $0x18] sm:$0xff]
                  %1368 = vst [vmem:[%s1360 + $0x18] sm:$0xff] %v1367
                  %v1369 = vld [vmem:[%s1359 + $0x20] sm:$0xff]
                  %1370 = vst [vmem:[%s1360 + $0x20] sm:$0xff] %v1369
                  %v1371 = vld [vmem:[%s1359 + $0x28] sm:$0xff]
                  %1372 = vst [vmem:[%s1360 + $0x28] sm:$0xff] %v1371
                  %v1373 = vld [vmem:[%s1359 + $0x30] sm:$0xff]
                  %1374 = vst [vmem:[%s1360 + $0x30] sm:$0xff] %v1373
                  %v1375 = vld [vmem:[%s1359 + $0x38] sm:$0xff]
                  %1376 = vst [vmem:[%s1360 + $0x38] sm:$0xff] %v1375
                  %v1377 = vld [vmem:[%s1359 + $0x40] sm:$0xff]
                  %1378 = vst [vmem:[%s1360 + $0x40] sm:$0xff] %v1377
                  %v1379 = vld [vmem:[%s1359 + $0x48] sm:$0xff]
                  %1380 = vst [vmem:[%s1360 + $0x48] sm:$0xff] %v1379
                  %v1381 = vld [vmem:[%s1359 + $0x50] sm:$0xff]
                  %1382 = vst [vmem:[%s1360 + $0x50] sm:$0xff] %v1381
                  %v1383 = vld [vmem:[%s1359 + $0x58] sm:$0xff]
                  %1384 = vst [vmem:[%s1360 + $0x58] sm:$0xff] %v1383
                  %v1385 = vld [vmem:[%s1359 + $0x60] sm:$0xff]
                  %1386 = vst [vmem:[%s1360 + $0x60] sm:$0xff] %v1385
                  %v1387 = vld [vmem:[%s1359 + $0x68] sm:$0xff]
                  %1388 = vst [vmem:[%s1360 + $0x68] sm:$0xff] %v1387
                  %v1389 = vld [vmem:[%s1359 + $0x70] sm:$0xff]
                  %1390 = vst [vmem:[%s1360 + $0x70] sm:$0xff] %v1389
                  %v1391 = vld [vmem:[%s1359 + $0x78] sm:$0xff]
                  %1392 = vst [vmem:[%s1360 + $0x78] sm:$0xff] %v1391
                  %v1393 = vld [vmem:[%s1359 + $0x80] sm:$0xff]
                  %1394 = vst [vmem:[%s1360 + $0x80] sm:$0xff] %v1393
                  %v1395 = vld [vmem:[%s1359 + $0x88] sm:$0xff]
                  %1396 = vst [vmem:[%s1360 + $0x88] sm:$0xff] %v1395
                  %v1397 = vld [vmem:[%s1359 + $0x90] sm:$0xff]
                  %1398 = vst [vmem:[%s1360 + $0x90] sm:$0xff] %v1397
                  %v1399 = vld [vmem:[%s1359 + $0x98] sm:$0xff]
                  %1400 = vst [vmem:[%s1360 + $0x98] sm:$0xff] %v1399
                  %v1401 = vld [vmem:[%s1359 + $0xa0] sm:$0xff]
                  %1402 = vst [vmem:[%s1360 + $0xa0] sm:$0xff] %v1401
                  %v1403 = vld [vmem:[%s1359 + $0xa8] sm:$0xff]
                  %1404 = vst [vmem:[%s1360 + $0xa8] sm:$0xff] %v1403
                  %v1405 = vld [vmem:[%s1359 + $0xb0] sm:$0xff]
                  %1406 = vst [vmem:[%s1360 + $0xb0] sm:$0xff] %v1405
                  %v1407 = vld [vmem:[%s1359 + $0xb8] sm:$0xff]
                  %1408 = vst [vmem:[%s1360 + $0xb8] sm:$0xff] %v1407
                  %v1409 = vld [vmem:[%s1359 + $0xc0] sm:$0xff]
                  %1410 = vst [vmem:[%s1360 + $0xc0] sm:$0xff] %v1409
                  %v1411 = vld [vmem:[%s1359 + $0xc8] sm:$0xff]
                  %1412 = vst [vmem:[%s1360 + $0xc8] sm:$0xff] %v1411
                  %v1413 = vld [vmem:[%s1359 + $0xd0] sm:$0xff]
                  %1414 = vst [vmem:[%s1360 + $0xd0] sm:$0xff] %v1413
                  %v1415 = vld [vmem:[%s1359 + $0xd8] sm:$0xff]
                  %1416 = vst [vmem:[%s1360 + $0xd8] sm:$0xff] %v1415
                  %v1417 = vld [vmem:[%s1359 + $0xe0] sm:$0xff]
                  %1418 = vst [vmem:[%s1360 + $0xe0] sm:$0xff] %v1417
                  %v1419 = vld [vmem:[%s1359 + $0xe8] sm:$0xff]
                  %1420 = vst [vmem:[%s1360 + $0xe8] sm:$0xff] %v1419
                  %v1421 = vld [vmem:[%s1359 + $0xf0] sm:$0xff]
                  %1422 = vst [vmem:[%s1360 + $0xf0] sm:$0xff] %v1421
                  %v1423 = vld [vmem:[%s1359 + $0xf8] sm:$0xff]
                  %1424 = vst [vmem:[%s1360 + $0xf8] sm:$0xff] %v1423
                  %s1425 = sadd.s32 1, %s1358
                  %p1426 = scmp.ge.s32.totalorder %s1425, %s1351
                  %s1427 = scalar_select %p1426, 0, %s1425
                  %s1428 = smul.u32 %s1427, 256
                  %s1429 = smul.u32 %s1427, 256
                  %s1430 = scalar_lea.vmem %s1222, %s1428 [#allocation2]
                  %s1431 = scalar_lea.vmem %s1233, %s1429
                $region79: #{wcl_forward.21} parent=73 // loop_footer
                  %s1355 = sadd.s32 %s1353, 1
                $region80: #{wcl_forward.21} parent=73 // loop_footer_branch
                  %1352 = sbr.rel target = $region76
                $region81: #{wcl_forward.21} parent=73 // loop_exit
                  _
                %s1432 = sshrl.u32 %s1229, 5
                %s1433 = sand.u32 %s1229, 31
                %s1434 = smul.u32 %s1432, 32
                %s1435 = smul.u32 8, %s1434
                %s1436 = scalar_lea.vmem %s1222, %s1435 [#allocation2]
                %s1437 = smul.u32 8, %s1434
                %s1438 = scalar_lea.vmem %s1233, %s1437
                // While loop
                $region82: #{wcl_forward.21} parent=73 // loop_pre_header
                  _
                $region83: #{wcl_forward.21} parent=73 // loop_header
                  %s1440 = sphi 0, %s1442
                  %p1441 = scmp.ge.s32.totalorder %s1440, %s1433
                  %s1445 = sphi 0, %s1452
                  %s1446 = sphi %s1436, %s1455
                  %s1447 = sphi %s1438, %s1456
                $region84: #{wcl_forward.21} parent=73 // loop_header_branch
                  %1444 = sbr.rel (%p1441) target = $region88
                $region85: #{wcl_forward.21} parent=73 // loop_body
                  %v1448 = vld [vmem:[%s1446] sm:$0xff]
                  %1449 = vst [vmem:[%s1447] sm:$0xff] %v1448
                  %s1450 = sadd.s32 1, %s1445
                  %p1451 = scmp.ge.s32.totalorder %s1450, %s1433
                  %s1452 = scalar_select %p1451, 0, %s1450
                  %s1453 = smul.u32 %s1452, 8
                  %s1454 = smul.u32 %s1452, 8
                  %s1455 = scalar_lea.vmem %s1436, %s1453 [#allocation2]
                  %s1456 = scalar_lea.vmem %s1438, %s1454
                $region86: #{wcl_forward.21} parent=73 // loop_footer
                  %s1442 = sadd.s32 %s1440, 1
                $region87: #{wcl_forward.21} parent=73 // loop_footer_branch
                  %1439 = sbr.rel target = $region83
                $region88: #{wcl_forward.21} parent=73 // loop_exit
                  _
              $region74: #{wcl_forward.21} parent=51 // pred_fallthru
                _
              // Predicated region
              $region89: #{wcl_forward.21} parent=51 // pred_check
                _
              $region90: #{wcl_forward.21} parent=51 // pred_check_branch
                %1458 = sbr.rel target = $region92
              $region91: #{wcl_forward.21} parent=51 // pred_region
                _
              $region92: #{wcl_forward.21} parent=51 // pred_fallthru
                _
            $region52: #{wcl_forward.21} parent=47 // pred_fallthru
              _
            // Predicated region
            $region53: #{wcl_forward.21} parent=47 // pred_check
              _
            $region54: #{wcl_forward.21} parent=47 // pred_check_branch
              %1240 = sbr.rel target = $region56
            $region55: #{wcl_forward.21} parent=47 // pred_region
              %s1242 = ssub.s32 256, 1
              %s1243 = sshrl.u32 %s1229, 5
              // While loop
              $region57: #{wcl_forward.21} parent=55 // loop_pre_header
                _
              $region58: #{wcl_forward.21} parent=55 // loop_header
                %s1245 = sphi 0, %s1247
                %p1246 = scmp.ge.s32.totalorder %s1245, %s1243
                %s1250 = sphi 0, %s1319
                %s1251 = sphi %s1222, %s1322
                %s1252 = sphi %s1233, %s1323
              $region59: #{wcl_forward.21} parent=55 // loop_header_branch
                %1249 = sbr.rel (%p1246) target = $region63
              $region60: #{wcl_forward.21} parent=55 // loop_body
                %v1253 = vld [vmem:[%s1251] sm:%s1242]
                %1254 = vst [vmem:[%s1252] sm:%s1242] %v1253
                %v1255 = vld [vmem:[%s1251 + $0x8] sm:%s1242]
                %1256 = vst [vmem:[%s1252 + $0x8] sm:%s1242] %v1255
                %v1257 = vld [vmem:[%s1251 + $0x10] sm:%s1242]
                %1258 = vst [vmem:[%s1252 + $0x10] sm:%s1242] %v1257
                %v1259 = vld [vmem:[%s1251 + $0x18] sm:%s1242]
                %1260 = vst [vmem:[%s1252 + $0x18] sm:%s1242] %v1259
                %v1261 = vld [vmem:[%s1251 + $0x20] sm:%s1242]
                %1262 = vst [vmem:[%s1252 + $0x20] sm:%s1242] %v1261
                %v1263 = vld [vmem:[%s1251 + $0x28] sm:%s1242]
                %1264 = vst [vmem:[%s1252 + $0x28] sm:%s1242] %v1263
                %v1265 = vld [vmem:[%s1251 + $0x30] sm:%s1242]
                %1266 = vst [vmem:[%s1252 + $0x30] sm:%s1242] %v1265
                %v1267 = vld [vmem:[%s1251 + $0x38] sm:%s1242]
                %1268 = vst [vmem:[%s1252 + $0x38] sm:%s1242] %v1267
                %v1269 = vld [vmem:[%s1251 + $0x40] sm:%s1242]
                %1270 = vst [vmem:[%s1252 + $0x40] sm:%s1242] %v1269
                %v1271 = vld [vmem:[%s1251 + $0x48] sm:%s1242]
                %1272 = vst [vmem:[%s1252 + $0x48] sm:%s1242] %v1271
                %v1273 = vld [vmem:[%s1251 + $0x50] sm:%s1242]
                %1274 = vst [vmem:[%s1252 + $0x50] sm:%s1242] %v1273
                %v1275 = vld [vmem:[%s1251 + $0x58] sm:%s1242]
                %1276 = vst [vmem:[%s1252 + $0x58] sm:%s1242] %v1275
                %v1277 = vld [vmem:[%s1251 + $0x60] sm:%s1242]
                %1278 = vst [vmem:[%s1252 + $0x60] sm:%s1242] %v1277
                %v1279 = vld [vmem:[%s1251 + $0x68] sm:%s1242]
                %1280 = vst [vmem:[%s1252 + $0x68] sm:%s1242] %v1279
                %v1281 = vld [vmem:[%s1251 + $0x70] sm:%s1242]
                %1282 = vst [vmem:[%s1252 + $0x70] sm:%s1242] %v1281
                %v1283 = vld [vmem:[%s1251 + $0x78] sm:%s1242]
                %1284 = vst [vmem:[%s1252 + $0x78] sm:%s1242] %v1283
                %v1285 = vld [vmem:[%s1251 + $0x80] sm:%s1242]
                %1286 = vst [vmem:[%s1252 + $0x80] sm:%s1242] %v1285
                %v1287 = vld [vmem:[%s1251 + $0x88] sm:%s1242]
                %1288 = vst [vmem:[%s1252 + $0x88] sm:%s1242] %v1287
                %v1289 = vld [vmem:[%s1251 + $0x90] sm:%s1242]
                %1290 = vst [vmem:[%s1252 + $0x90] sm:%s1242] %v1289
                %v1291 = vld [vmem:[%s1251 + $0x98] sm:%s1242]
                %1292 = vst [vmem:[%s1252 + $0x98] sm:%s1242] %v1291
                %v1293 = vld [vmem:[%s1251 + $0xa0] sm:%s1242]
                %1294 = vst [vmem:[%s1252 + $0xa0] sm:%s1242] %v1293
                %v1295 = vld [vmem:[%s1251 + $0xa8] sm:%s1242]
                %1296 = vst [vmem:[%s1252 + $0xa8] sm:%s1242] %v1295
                %v1297 = vld [vmem:[%s1251 + $0xb0] sm:%s1242]
                %1298 = vst [vmem:[%s1252 + $0xb0] sm:%s1242] %v1297
                %v1299 = vld [vmem:[%s1251 + $0xb8] sm:%s1242]
                %1300 = vst [vmem:[%s1252 + $0xb8] sm:%s1242] %v1299
                %v1301 = vld [vmem:[%s1251 + $0xc0] sm:%s1242]
                %1302 = vst [vmem:[%s1252 + $0xc0] sm:%s1242] %v1301
                %v1303 = vld [vmem:[%s1251 + $0xc8] sm:%s1242]
                %1304 = vst [vmem:[%s1252 + $0xc8] sm:%s1242] %v1303
                %v1305 = vld [vmem:[%s1251 + $0xd0] sm:%s1242]
                %1306 = vst [vmem:[%s1252 + $0xd0] sm:%s1242] %v1305
                %v1307 = vld [vmem:[%s1251 + $0xd8] sm:%s1242]
                %1308 = vst [vmem:[%s1252 + $0xd8] sm:%s1242] %v1307
                %v1309 = vld [vmem:[%s1251 + $0xe0] sm:%s1242]
                %1310 = vst [vmem:[%s1252 + $0xe0] sm:%s1242] %v1309
                %v1311 = vld [vmem:[%s1251 + $0xe8] sm:%s1242]
                %1312 = vst [vmem:[%s1252 + $0xe8] sm:%s1242] %v1311
                %v1313 = vld [vmem:[%s1251 + $0xf0] sm:%s1242]
                %1314 = vst [vmem:[%s1252 + $0xf0] sm:%s1242] %v1313
                %v1315 = vld [vmem:[%s1251 + $0xf8] sm:%s1242]
                %1316 = vst [vmem:[%s1252 + $0xf8] sm:%s1242] %v1315
                %s1317 = sadd.s32 1, %s1250
                %p1318 = scmp.ge.s32.totalorder %s1317, %s1243
                %s1319 = scalar_select %p1318, 0, %s1317
                %s1320 = smul.u32 %s1319, 256
                %s1321 = smul.u32 %s1319, 256
                %s1322 = scalar_lea.vmem %s1222, %s1320 [#allocation2]
                %s1323 = scalar_lea.vmem %s1233, %s1321
              $region61: #{wcl_forward.21} parent=55 // loop_footer
                %s1247 = sadd.s32 %s1245, 1
              $region62: #{wcl_forward.21} parent=55 // loop_footer_branch
                %1244 = sbr.rel target = $region58
              $region63: #{wcl_forward.21} parent=55 // loop_exit
                _
              %s1324 = sshrl.u32 %s1229, 5
              %s1325 = sand.u32 %s1229, 31
              %s1326 = smul.u32 %s1324, 32
              %s1327 = smul.u32 8, %s1326
              %s1328 = scalar_lea.vmem %s1222, %s1327 [#allocation2]
              %s1329 = smul.u32 8, %s1326
              %s1330 = scalar_lea.vmem %s1233, %s1329
              // While loop
              $region64: #{wcl_forward.21} parent=55 // loop_pre_header
                _
              $region65: #{wcl_forward.21} parent=55 // loop_header
                %s1332 = sphi 0, %s1334
                %p1333 = scmp.ge.s32.totalorder %s1332, %s1325
                %s1337 = sphi 0, %s1344
                %s1338 = sphi %s1328, %s1347
                %s1339 = sphi %s1330, %s1348
              $region66: #{wcl_forward.21} parent=55 // loop_header_branch
                %1336 = sbr.rel (%p1333) target = $region70
              $region67: #{wcl_forward.21} parent=55 // loop_body
                %v1340 = vld [vmem:[%s1338] sm:%s1242]
                %1341 = vst [vmem:[%s1339] sm:%s1242] %v1340
                %s1342 = sadd.s32 1, %s1337
                %p1343 = scmp.ge.s32.totalorder %s1342, %s1325
                %s1344 = scalar_select %p1343, 0, %s1342
                %s1345 = smul.u32 %s1344, 8
                %s1346 = smul.u32 %s1344, 8
                %s1347 = scalar_lea.vmem %s1328, %s1345 [#allocation2]
                %s1348 = scalar_lea.vmem %s1330, %s1346
              $region68: #{wcl_forward.21} parent=55 // loop_footer
                %s1334 = sadd.s32 %s1332, 1
              $region69: #{wcl_forward.21} parent=55 // loop_footer_branch
                %1331 = sbr.rel target = $region65
              $region70: #{wcl_forward.21} parent=55 // loop_exit
                _
            $region56: #{wcl_forward.21} parent=47 // pred_fallthru
              _
          $region48: #{wcl_forward.21} parent=43 // pred_fallthru
            _
          %1459 = vnop
        $region44: #{wcl_forward.21} parent=39 // pred_fallthru
          _
      $region40: #{wcl_forward.21} parent=5 // pred_fallthru
        _
      %p1460 = scmp.le.s32.totalorder 2, %s11
      // Predicated region
      $region93: #{wcl_forward.21} parent=5 // pred_check
        %p1461 = pneg %p1460
      $region94: #{wcl_forward.21} parent=5 // pred_check_branch
        %1463 = sbr.rel (%p1461) target = $region96
      $region95: #{wcl_forward.21} parent=5 // pred_region
        %s1464 = ssub.s32 %s11, 2
        // Predicated region
        $region97: #{wcl_forward.21} parent=95 // pred_check
          %p1465 = pneg %p150
        $region98: #{wcl_forward.21} parent=95 // pred_check_branch
          %1467 = sbr.rel (%p1465) target = $region100
        $region99: #{wcl_forward.21} parent=95 // pred_region
          %s1468 = sand.u32 %s135, 1
          %s1469 = sand.u32 %s135, 1
          %s1470 = smul.addr %s1469, 256
          %s1471 = scalar_lea.vmem [#allocation2], %s1470
        $region100: #{wcl_forward.21} parent=95 // pred_fallthru
          _
      $region96: #{wcl_forward.21} parent=5 // pred_fallthru
        _
    $region6: #{wcl_forward.21} parent=1 // loop_footer
      %s15 = sadd.s32 1, %s11
    $region7: #{wcl_forward.21} parent=1 // loop_footer_branch
      %10 = sbr.rel target = $region3
    $region8: #{wcl_forward.21} parent=1 // loop_exit
      _

// kernel: wcl_forward.22
$region0: #{wcl_forward.22}
  #allocation0 [shape = 'u32[]', space=smem, size = 0x4, offset = 0x4, fixed_abs, tag = 'smem constant byte address 0x4 - core index']
  #allocation1 [shape = 'u32[72,128]{1,0:T(1,128)}', space=vmem, size = 0x9000, scoped, tag = 'internal scratch']
  %s0 = inlined_call_operand.vmem [shape: f32[784,32], index: 0, kind: input, shape index: {}]
  %s1 = inlined_call_operand.vmem [shape: f32[784,32], index: 1, kind: input, shape index: {}]
  %s2 = inlined_call_operand.hbm [shape: f32[1,1], index: 2, kind: output, shape index: {}]
  %s3 = sld [smem:[#allocation0]]
  $region18: #{wcl_forward.22} parent=0
    _
  %s5 = ssub.s32 1, %s3
  %s6 = scalar_select 0, %s5, %s3
  $region1: #{wcl_forward.22} parent=0
    #allocation2 [shape = 'u8[512]{0}', space=vmem, size = 0x400, scoped, tag = 'output window, operand 0, single buffered']
    #allocation3 [shape = 's32[1]{0}', space=sflag, size = 0x4, scoped, tag = 'scoped memory for wcl_forward.22']
    %7 = vsyncpa [#allocation3], 0
    // Predicated region
    $region2: #{wcl_forward.22} parent=1 // pred_check
      _
    $region3: #{wcl_forward.22} parent=1 // pred_check_branch
      %9 = sbr.rel (0) target = $region5
    $region4: #{wcl_forward.22} parent=1 // pred_region
      _
    $region5: #{wcl_forward.22} parent=1 // pred_fallthru
      _
    // Predicated region
    $region6: #{wcl_forward.22} parent=1 // pred_check
      _
    $region7: #{wcl_forward.22} parent=1 // pred_check_branch
      %11 = sbr.rel (0) target = $region9
    $region8: #{wcl_forward.22} parent=1 // pred_region
      _
    $region9: #{wcl_forward.22} parent=1 // pred_fallthru
      _
    %v12 = vld [vmem:[%s0] sm:$0xff]
    %v13 = vld [vmem:[%s0 + $0x8] sm:$0xff]
    %v14 = vld [vmem:[%s0 + $0x10] sm:$0xff]
    %v15 = vld [vmem:[%s0 + $0x18] sm:$0xff]
    %v16 = vld [vmem:[%s0 + $0x20] sm:$0xff]
    %v17 = vld [vmem:[%s0 + $0x28] sm:$0xff]
    %v18 = vld [vmem:[%s0 + $0x30] sm:$0xff]
    %v19 = vld [vmem:[%s0 + $0x38] sm:$0xff]
    %v20 = vld [vmem:[%s0 + $0x40] sm:$0xff]
    %v21 = vld [vmem:[%s0 + $0x48] sm:$0xff]
    %v22 = vld [vmem:[%s0 + $0x50] sm:$0xff]
    %v23 = vld [vmem:[%s0 + $0x58] sm:$0xff]
    %v24 = vld [vmem:[%s0 + $0x60] sm:$0xff]
    %v25 = vld [vmem:[%s0 + $0x68] sm:$0xff]
    %v26 = vld [vmem:[%s0 + $0x70] sm:$0xff]
    %v27 = vld [vmem:[%s0 + $0x78] sm:$0xff]
    %v28 = vld [vmem:[%s0 + $0x80] sm:$0xff]
    %v29 = vld [vmem:[%s0 + $0x88] sm:$0xff]
    %v30 = vld [vmem:[%s0 + $0x90] sm:$0xff]
    %v31 = vld [vmem:[%s0 + $0x98] sm:$0xff]
    %v32 = vld [vmem:[%s0 + $0xa0] sm:$0xff]
    %v33 = vld [vmem:[%s0 + $0xa8] sm:$0xff]
    %v34 = vld [vmem:[%s0 + $0xb0] sm:$0xff]
    %v35 = vld [vmem:[%s0 + $0xb8] sm:$0xff]
    %v36 = vld [vmem:[%s0 + $0xc0] sm:$0xff]
    %v37 = vld [vmem:[%s0 + $0xc8] sm:$0xff]
    %v38 = vld [vmem:[%s0 + $0xd0] sm:$0xff]
    %v39 = vld [vmem:[%s0 + $0xd8] sm:$0xff]
    %v40 = vld [vmem:[%s0 + $0xe0] sm:$0xff]
    %v41 = vld [vmem:[%s0 + $0xe8] sm:$0xff]
    %v42 = vld [vmem:[%s0 + $0xf0] sm:$0xff]
    %v43 = vld [vmem:[%s0 + $0xf8] sm:$0xff]
    %v44 = vld [vmem:[%s0 + $0x100] sm:$0xff]
    %v45 = vld [vmem:[%s0 + $0x108] sm:$0xff]
    %v46 = vld [vmem:[%s0 + $0x110] sm:$0xff]
    %v47 = vld [vmem:[%s0 + $0x118] sm:$0xff]
    %v48 = vld [vmem:[%s0 + $0x120] sm:$0xff]
    %v49 = vld [vmem:[%s0 + $0x128] sm:$0xff]
    %v50 = vld [vmem:[%s0 + $0x130] sm:$0xff]
    %v51 = vld [vmem:[%s0 + $0x138] sm:$0xff]
    %v52 = vld [vmem:[%s0 + $0x140] sm:$0xff]
    %v53 = vld [vmem:[%s0 + $0x148] sm:$0xff]
    %v54 = vld [vmem:[%s0 + $0x150] sm:$0xff]
    %v55 = vld [vmem:[%s0 + $0x158] sm:$0xff]
    %v56 = vld [vmem:[%s0 + $0x160] sm:$0xff]
    %v57 = vld [vmem:[%s0 + $0x168] sm:$0xff]
    %v58 = vld [vmem:[%s0 + $0x170] sm:$0xff]
    %v59 = vld [vmem:[%s0 + $0x178] sm:$0xff]
    %v60 = vld [vmem:[%s0 + $0x180] sm:$0xff]
    %v61 = vld [vmem:[%s0 + $0x188] sm:$0xff]
    %v62 = vld [vmem:[%s0 + $0x190] sm:$0xff]
    %v63 = vld [vmem:[%s0 + $0x198] sm:$0xff]
    %v64 = vld [vmem:[%s0 + $0x1a0] sm:$0xff]
    %v65 = vld [vmem:[%s0 + $0x1a8] sm:$0xff]
    %v66 = vld [vmem:[%s0 + $0x1b0] sm:$0xff]
    %v67 = vld [vmem:[%s0 + $0x1b8] sm:$0xff]
    %v68 = vld [vmem:[%s0 + $0x1c0] sm:$0xff]
    %v69 = vld [vmem:[%s0 + $0x1c8] sm:$0xff]
    %v70 = vld [vmem:[%s0 + $0x1d0] sm:$0xff]
    %v71 = vld [vmem:[%s0 + $0x1d8] sm:$0xff]
    %v72 = vld [vmem:[%s0 + $0x1e0] sm:$0xff]
    %v73 = vld [vmem:[%s0 + $0x1e8] sm:$0xff]
    %v74 = vld [vmem:[%s0 + $0x1f0] sm:$0xff]
    %v75 = vld [vmem:[%s0 + $0x1f8] sm:$0xff]
    %v76 = vld [vmem:[%s0 + $0x200] sm:$0xff]
    %v77 = vld [vmem:[%s0 + $0x208] sm:$0xff]
    %v78 = vld [vmem:[%s0 + $0x210] sm:$0xff]
    %v79 = vld [vmem:[%s0 + $0x218] sm:$0xff]
    %v80 = vld [vmem:[%s0 + $0x220] sm:$0xff]
    %v81 = vld [vmem:[%s0 + $0x228] sm:$0xff]
    %v82 = vld [vmem:[%s0 + $0x230] sm:$0xff]
    %v83 = vld [vmem:[%s0 + $0x238] sm:$0xff]
    %v84 = vld [vmem:[%s0 + $0x240] sm:$0xff]
    %v85 = vld [vmem:[%s0 + $0x248] sm:$0xff]
    %v86 = vld [vmem:[%s0 + $0x250] sm:$0xff]
    %v87 = vld [vmem:[%s0 + $0x258] sm:$0xff]
    %v88 = vld [vmem:[%s0 + $0x260] sm:$0xff]
    %v89 = vld [vmem:[%s0 + $0x268] sm:$0xff]
    %v90 = vld [vmem:[%s0 + $0x270] sm:$0xff]
    %v91 = vld [vmem:[%s0 + $0x278] sm:$0xff]
    %v92 = vld [vmem:[%s0 + $0x280] sm:$0xff]
    %v93 = vld [vmem:[%s0 + $0x288] sm:$0xff]
    %v94 = vld [vmem:[%s0 + $0x290] sm:$0xff]
    %v95 = vld [vmem:[%s0 + $0x298] sm:$0xff]
    %v96 = vld [vmem:[%s0 + $0x2a0] sm:$0xff]
    %v97 = vld [vmem:[%s0 + $0x2a8] sm:$0xff]
    %v98 = vld [vmem:[%s0 + $0x2b0] sm:$0xff]
    %v99 = vld [vmem:[%s0 + $0x2b8] sm:$0xff]
    %v100 = vld [vmem:[%s0 + $0x2c0] sm:$0xff]
    %v101 = vld [vmem:[%s0 + $0x2c8] sm:$0xff]
    %v102 = vld [vmem:[%s0 + $0x2d0] sm:$0xff]
    %v103 = vld [vmem:[%s0 + $0x2d8] sm:$0xff]
    %v104 = vld [vmem:[%s0 + $0x2e0] sm:$0xff]
    %v105 = vld [vmem:[%s0 + $0x2e8] sm:$0xff]
    %v106 = vld [vmem:[%s0 + $0x2f0] sm:$0xff]
    %v107 = vld [vmem:[%s0 + $0x2f8] sm:$0xff]
    %v108 = vld [vmem:[%s0 + $0x300] sm:$0xff]
    %v109 = vld [vmem:[%s0 + $0x308] sm:$0xff]
    %v110 = vmul.f32 %v12, 5.0
    %v111 = vmul.f32 %v13, 5.0
    %v112 = vmul.f32 %v14, 5.0
    %v113 = vmul.f32 %v15, 5.0
    %v114 = vmul.f32 %v16, 5.0
    %v115 = vmul.f32 %v17, 5.0
    %v116 = vmul.f32 %v18, 5.0
    %v117 = vmul.f32 %v19, 5.0
    %v118 = vmul.f32 %v20, 5.0
    %v119 = vmul.f32 %v21, 5.0
    %v120 = vmul.f32 %v22, 5.0
    %v121 = vmul.f32 %v23, 5.0
    %v122 = vmul.f32 %v24, 5.0
    %v123 = vmul.f32 %v25, 5.0
    %v124 = vmul.f32 %v26, 5.0
    %v125 = vmul.f32 %v27, 5.0
    %v126 = vmul.f32 %v28, 5.0
    %v127 = vmul.f32 %v29, 5.0
    %v128 = vmul.f32 %v30, 5.0
    %v129 = vmul.f32 %v31, 5.0
    %v130 = vmul.f32 %v32, 5.0
    %v131 = vmul.f32 %v33, 5.0
    %v132 = vmul.f32 %v34, 5.0
    %v133 = vmul.f32 %v35, 5.0
    %v134 = vmul.f32 %v36, 5.0
    %v135 = vmul.f32 %v37, 5.0
    %v136 = vmul.f32 %v38, 5.0
    %v137 = vmul.f32 %v39, 5.0
    %v138 = vmul.f32 %v40, 5.0
    %v139 = vmul.f32 %v41, 5.0
    %v140 = vmul.f32 %v42, 5.0
    %v141 = vmul.f32 %v43, 5.0
    %v142 = vmul.f32 %v44, 5.0
    %v143 = vmul.f32 %v45, 5.0
    %v144 = vmul.f32 %v46, 5.0
    %v145 = vmul.f32 %v47, 5.0
    %v146 = vmul.f32 %v48, 5.0
    %v147 = vmul.f32 %v49, 5.0
    %v148 = vmul.f32 %v50, 5.0
    %v149 = vmul.f32 %v51, 5.0
    %v150 = vmul.f32 %v52, 5.0
    %v151 = vmul.f32 %v53, 5.0
    %v152 = vmul.f32 %v54, 5.0
    %v153 = vmul.f32 %v55, 5.0
    %v154 = vmul.f32 %v56, 5.0
    %v155 = vmul.f32 %v57, 5.0
    %v156 = vmul.f32 %v58, 5.0
    %v157 = vmul.f32 %v59, 5.0
    %v158 = vmul.f32 %v60, 5.0
    %v159 = vmul.f32 %v61, 5.0
    %v160 = vmul.f32 %v62, 5.0
    %v161 = vmul.f32 %v63, 5.0
    %v162 = vmul.f32 %v64, 5.0
    %v163 = vmul.f32 %v65, 5.0
    %v164 = vmul.f32 %v66, 5.0
    %v165 = vmul.f32 %v67, 5.0
    %v166 = vmul.f32 %v68, 5.0
    %v167 = vmul.f32 %v69, 5.0
    %v168 = vmul.f32 %v70, 5.0
    %v169 = vmul.f32 %v71, 5.0
    %v170 = vmul.f32 %v72, 5.0
    %v171 = vmul.f32 %v73, 5.0
    %v172 = vmul.f32 %v74, 5.0
    %v173 = vmul.f32 %v75, 5.0
    %v174 = vmul.f32 %v76, 5.0
    %v175 = vmul.f32 %v77, 5.0
    %v176 = vmul.f32 %v78, 5.0
    %v177 = vmul.f32 %v79, 5.0
    %v178 = vmul.f32 %v80, 5.0
    %v179 = vmul.f32 %v81, 5.0
    %v180 = vmul.f32 %v82, 5.0
    %v181 = vmul.f32 %v83, 5.0
    %v182 = vmul.f32 %v84, 5.0
    %v183 = vmul.f32 %v85, 5.0
    %v184 = vmul.f32 %v86, 5.0
    %v185 = vmul.f32 %v87, 5.0
    %v186 = vmul.f32 %v88, 5.0
    %v187 = vmul.f32 %v89, 5.0
    %v188 = vmul.f32 %v90, 5.0
    %v189 = vmul.f32 %v91, 5.0
    %v190 = vmul.f32 %v92, 5.0
    %v191 = vmul.f32 %v93, 5.0
    %v192 = vmul.f32 %v94, 5.0
    %v193 = vmul.f32 %v95, 5.0
    %v194 = vmul.f32 %v96, 5.0
    %v195 = vmul.f32 %v97, 5.0
    %v196 = vmul.f32 %v98, 5.0
    %v197 = vmul.f32 %v99, 5.0
    %v198 = vmul.f32 %v100, 5.0
    %v199 = vmul.f32 %v101, 5.0
    %v200 = vmul.f32 %v102, 5.0
    %v201 = vmul.f32 %v103, 5.0
    %v202 = vmul.f32 %v104, 5.0
    %v203 = vmul.f32 %v105, 5.0
    %v204 = vmul.f32 %v106, 5.0
    %v205 = vmul.f32 %v107, 5.0
    %v206 = vmul.f32 %v108, 5.0
    %v207 = vmul.f32 %v109, 5.0
    %v208 = vld [vmem:[%s1] sm:$0xff]
    %v209 = vld [vmem:[%s1 + $0x8] sm:$0xff]
    %v210 = vld [vmem:[%s1 + $0x10] sm:$0xff]
    %v211 = vld [vmem:[%s1 + $0x18] sm:$0xff]
    %v212 = vld [vmem:[%s1 + $0x20] sm:$0xff]
    %v213 = vld [vmem:[%s1 + $0x28] sm:$0xff]
    %v214 = vld [vmem:[%s1 + $0x30] sm:$0xff]
    %v215 = vld [vmem:[%s1 + $0x38] sm:$0xff]
    %v216 = vld [vmem:[%s1 + $0x40] sm:$0xff]
    %v217 = vld [vmem:[%s1 + $0x48] sm:$0xff]
    %v218 = vld [vmem:[%s1 + $0x50] sm:$0xff]
    %v219 = vld [vmem:[%s1 + $0x58] sm:$0xff]
    %v220 = vld [vmem:[%s1 + $0x60] sm:$0xff]
    %v221 = vld [vmem:[%s1 + $0x68] sm:$0xff]
    %v222 = vld [vmem:[%s1 + $0x70] sm:$0xff]
    %v223 = vld [vmem:[%s1 + $0x78] sm:$0xff]
    %v224 = vld [vmem:[%s1 + $0x80] sm:$0xff]
    %v225 = vld [vmem:[%s1 + $0x88] sm:$0xff]
    %v226 = vld [vmem:[%s1 + $0x90] sm:$0xff]
    %v227 = vld [vmem:[%s1 + $0x98] sm:$0xff]
    %v228 = vld [vmem:[%s1 + $0xa0] sm:$0xff]
    %v229 = vld [vmem:[%s1 + $0xa8] sm:$0xff]
    %v230 = vld [vmem:[%s1 + $0xb0] sm:$0xff]
    %v231 = vld [vmem:[%s1 + $0xb8] sm:$0xff]
    %v232 = vld [vmem:[%s1 + $0xc0] sm:$0xff]
    %v233 = vld [vmem:[%s1 + $0xc8] sm:$0xff]
    %v234 = vld [vmem:[%s1 + $0xd0] sm:$0xff]
    %v235 = vld [vmem:[%s1 + $0xd8] sm:$0xff]
    %v236 = vld [vmem:[%s1 + $0xe0] sm:$0xff]
    %v237 = vld [vmem:[%s1 + $0xe8] sm:$0xff]
    %v238 = vld [vmem:[%s1 + $0xf0] sm:$0xff]
    %v239 = vld [vmem:[%s1 + $0xf8] sm:$0xff]
    %v240 = vld [vmem:[%s1 + $0x100] sm:$0xff]
    %v241 = vld [vmem:[%s1 + $0x108] sm:$0xff]
    %v242 = vld [vmem:[%s1 + $0x110] sm:$0xff]
    %v243 = vld [vmem:[%s1 + $0x118] sm:$0xff]
    %v244 = vld [vmem:[%s1 + $0x120] sm:$0xff]
    %v245 = vld [vmem:[%s1 + $0x128] sm:$0xff]
    %v246 = vld [vmem:[%s1 + $0x130] sm:$0xff]
    %v247 = vld [vmem:[%s1 + $0x138] sm:$0xff]
    %v248 = vld [vmem:[%s1 + $0x140] sm:$0xff]
    %v249 = vld [vmem:[%s1 + $0x148] sm:$0xff]
    %v250 = vld [vmem:[%s1 + $0x150] sm:$0xff]
    %v251 = vld [vmem:[%s1 + $0x158] sm:$0xff]
    %v252 = vld [vmem:[%s1 + $0x160] sm:$0xff]
    %v253 = vld [vmem:[%s1 + $0x168] sm:$0xff]
    %v254 = vld [vmem:[%s1 + $0x170] sm:$0xff]
    %v255 = vld [vmem:[%s1 + $0x178] sm:$0xff]
    %v256 = vld [vmem:[%s1 + $0x180] sm:$0xff]
    %v257 = vld [vmem:[%s1 + $0x188] sm:$0xff]
    %v258 = vld [vmem:[%s1 + $0x190] sm:$0xff]
    %v259 = vld [vmem:[%s1 + $0x198] sm:$0xff]
    %v260 = vld [vmem:[%s1 + $0x1a0] sm:$0xff]
    %v261 = vld [vmem:[%s1 + $0x1a8] sm:$0xff]
    %v262 = vld [vmem:[%s1 + $0x1b0] sm:$0xff]
    %v263 = vld [vmem:[%s1 + $0x1b8] sm:$0xff]
    %v264 = vld [vmem:[%s1 + $0x1c0] sm:$0xff]
    %v265 = vld [vmem:[%s1 + $0x1c8] sm:$0xff]
    %v266 = vld [vmem:[%s1 + $0x1d0] sm:$0xff]
    %v267 = vld [vmem:[%s1 + $0x1d8] sm:$0xff]
    %v268 = vld [vmem:[%s1 + $0x1e0] sm:$0xff]
    %v269 = vld [vmem:[%s1 + $0x1e8] sm:$0xff]
    %v270 = vld [vmem:[%s1 + $0x1f0] sm:$0xff]
    %v271 = vld [vmem:[%s1 + $0x1f8] sm:$0xff]
    %v272 = vld [vmem:[%s1 + $0x200] sm:$0xff]
    %v273 = vld [vmem:[%s1 + $0x208] sm:$0xff]
    %v274 = vld [vmem:[%s1 + $0x210] sm:$0xff]
    %v275 = vld [vmem:[%s1 + $0x218] sm:$0xff]
    %v276 = vld [vmem:[%s1 + $0x220] sm:$0xff]
    %v277 = vld [vmem:[%s1 + $0x228] sm:$0xff]
    %v278 = vld [vmem:[%s1 + $0x230] sm:$0xff]
    %v279 = vld [vmem:[%s1 + $0x238] sm:$0xff]
    %v280 = vld [vmem:[%s1 + $0x240] sm:$0xff]
    %v281 = vld [vmem:[%s1 + $0x248] sm:$0xff]
    %v282 = vld [vmem:[%s1 + $0x250] sm:$0xff]
    %v283 = vld [vmem:[%s1 + $0x258] sm:$0xff]
    %v284 = vld [vmem:[%s1 + $0x260] sm:$0xff]
    %v285 = vld [vmem:[%s1 + $0x268] sm:$0xff]
    %v286 = vld [vmem:[%s1 + $0x270] sm:$0xff]
    %v287 = vld [vmem:[%s1 + $0x278] sm:$0xff]
    %v288 = vld [vmem:[%s1 + $0x280] sm:$0xff]
    %v289 = vld [vmem:[%s1 + $0x288] sm:$0xff]
    %v290 = vld [vmem:[%s1 + $0x290] sm:$0xff]
    %v291 = vld [vmem:[%s1 + $0x298] sm:$0xff]
    %v292 = vld [vmem:[%s1 + $0x2a0] sm:$0xff]
    %v293 = vld [vmem:[%s1 + $0x2a8] sm:$0xff]
    %v294 = vld [vmem:[%s1 + $0x2b0] sm:$0xff]
    %v295 = vld [vmem:[%s1 + $0x2b8] sm:$0xff]
    %v296 = vld [vmem:[%s1 + $0x2c0] sm:$0xff]
    %v297 = vld [vmem:[%s1 + $0x2c8] sm:$0xff]
    %v298 = vld [vmem:[%s1 + $0x2d0] sm:$0xff]
    %v299 = vld [vmem:[%s1 + $0x2d8] sm:$0xff]
    %v300 = vld [vmem:[%s1 + $0x2e0] sm:$0xff]
    %v301 = vld [vmem:[%s1 + $0x2e8] sm:$0xff]
    %v302 = vld [vmem:[%s1 + $0x2f0] sm:$0xff]
    %v303 = vld [vmem:[%s1 + $0x2f8] sm:$0xff]
    %v304 = vld [vmem:[%s1 + $0x300] sm:$0xff]
    %v305 = vld [vmem:[%s1 + $0x308] sm:$0xff]
    %v306 = vmul.f32 %v208, 5.0
    %v307 = vmul.f32 %v209, 5.0
    %v308 = vmul.f32 %v210, 5.0
    %v309 = vmul.f32 %v211, 5.0
    %v310 = vmul.f32 %v212, 5.0
    %v311 = vmul.f32 %v213, 5.0
    %v312 = vmul.f32 %v214, 5.0
    %v313 = vmul.f32 %v215, 5.0
    %v314 = vmul.f32 %v216, 5.0
    %v315 = vmul.f32 %v217, 5.0
    %v316 = vmul.f32 %v218, 5.0
    %v317 = vmul.f32 %v219, 5.0
    %v318 = vmul.f32 %v220, 5.0
    %v319 = vmul.f32 %v221, 5.0
    %v320 = vmul.f32 %v222, 5.0
    %v321 = vmul.f32 %v223, 5.0
    %v322 = vmul.f32 %v224, 5.0
    %v323 = vmul.f32 %v225, 5.0
    %v324 = vmul.f32 %v226, 5.0
    %v325 = vmul.f32 %v227, 5.0
    %v326 = vmul.f32 %v228, 5.0
    %v327 = vmul.f32 %v229, 5.0
    %v328 = vmul.f32 %v230, 5.0
    %v329 = vmul.f32 %v231, 5.0
    %v330 = vmul.f32 %v232, 5.0
    %v331 = vmul.f32 %v233, 5.0
    %v332 = vmul.f32 %v234, 5.0
    %v333 = vmul.f32 %v235, 5.0
    %v334 = vmul.f32 %v236, 5.0
    %v335 = vmul.f32 %v237, 5.0
    %v336 = vmul.f32 %v238, 5.0
    %v337 = vmul.f32 %v239, 5.0
    %v338 = vmul.f32 %v240, 5.0
    %v339 = vmul.f32 %v241, 5.0
    %v340 = vmul.f32 %v242, 5.0
    %v341 = vmul.f32 %v243, 5.0
    %v342 = vmul.f32 %v244, 5.0
    %v343 = vmul.f32 %v245, 5.0
    %v344 = vmul.f32 %v246, 5.0
    %v345 = vmul.f32 %v247, 5.0
    %v346 = vmul.f32 %v248, 5.0
    %v347 = vmul.f32 %v249, 5.0
    %v348 = vmul.f32 %v250, 5.0
    %v349 = vmul.f32 %v251, 5.0
    %v350 = vmul.f32 %v252, 5.0
    %v351 = vmul.f32 %v253, 5.0
    %v352 = vmul.f32 %v254, 5.0
    %v353 = vmul.f32 %v255, 5.0
    %v354 = vmul.f32 %v256, 5.0
    %v355 = vmul.f32 %v257, 5.0
    %v356 = vmul.f32 %v258, 5.0
    %v357 = vmul.f32 %v259, 5.0
    %v358 = vmul.f32 %v260, 5.0
    %v359 = vmul.f32 %v261, 5.0
    %v360 = vmul.f32 %v262, 5.0
    %v361 = vmul.f32 %v263, 5.0
    %v362 = vmul.f32 %v264, 5.0
    %v363 = vmul.f32 %v265, 5.0
    %v364 = vmul.f32 %v266, 5.0
    %v365 = vmul.f32 %v267, 5.0
    %v366 = vmul.f32 %v268, 5.0
    %v367 = vmul.f32 %v269, 5.0
    %v368 = vmul.f32 %v270, 5.0
    %v369 = vmul.f32 %v271, 5.0
    %v370 = vmul.f32 %v272, 5.0
    %v371 = vmul.f32 %v273, 5.0
    %v372 = vmul.f32 %v274, 5.0
    %v373 = vmul.f32 %v275, 5.0
    %v374 = vmul.f32 %v276, 5.0
    %v375 = vmul.f32 %v277, 5.0
    %v376 = vmul.f32 %v278, 5.0
    %v377 = vmul.f32 %v279, 5.0
    %v378 = vmul.f32 %v280, 5.0
    %v379 = vmul.f32 %v281, 5.0
    %v380 = vmul.f32 %v282, 5.0
    %v381 = vmul.f32 %v283, 5.0
    %v382 = vmul.f32 %v284, 5.0
    %v383 = vmul.f32 %v285, 5.0
    %v384 = vmul.f32 %v286, 5.0
    %v385 = vmul.f32 %v287, 5.0
    %v386 = vmul.f32 %v288, 5.0
    %v387 = vmul.f32 %v289, 5.0
    %v388 = vmul.f32 %v290, 5.0
    %v389 = vmul.f32 %v291, 5.0
    %v390 = vmul.f32 %v292, 5.0
    %v391 = vmul.f32 %v293, 5.0
    %v392 = vmul.f32 %v294, 5.0
    %v393 = vmul.f32 %v295, 5.0
    %v394 = vmul.f32 %v296, 5.0
    %v395 = vmul.f32 %v297, 5.0
    %v396 = vmul.f32 %v298, 5.0
    %v397 = vmul.f32 %v299, 5.0
    %v398 = vmul.f32 %v300, 5.0
    %v399 = vmul.f32 %v301, 5.0
    %v400 = vmul.f32 %v302, 5.0
    %v401 = vmul.f32 %v303, 5.0
    %v402 = vmul.f32 %v304, 5.0
    %v403 = vmul.f32 %v305, 5.0
    %vm404 = vcmask 261120
    %v405 = vsel %vm404, %v110, -inf
    %406 = vmax.xlane.f32.xlu0 %v405
    %v407 = vpop.xlane.xlu0 %406
    %v408 = vsel %vm404, %v111, -inf
    %409 = vmax.xlane.f32.xlu0 %v408
    %v410 = vpop.xlane.xlu0 %409
    %v411 = vsel %vm404, %v112, -inf
    %412 = vmax.xlane.f32.xlu0 %v411
    %v413 = vpop.xlane.xlu0 %412
    %v414 = vsel %vm404, %v113, -inf
    %415 = vmax.xlane.f32.xlu0 %v414
    %v416 = vpop.xlane.xlu0 %415
    %v417 = vsel %vm404, %v114, -inf
    %418 = vmax.xlane.f32.xlu0 %v417
    %v419 = vpop.xlane.xlu0 %418
    %v420 = vsel %vm404, %v115, -inf
    %421 = vmax.xlane.f32.xlu0 %v420
    %v422 = vpop.xlane.xlu0 %421
    %v423 = vsel %vm404, %v116, -inf
    %424 = vmax.xlane.f32.xlu0 %v423
    %v425 = vpop.xlane.xlu0 %424
    %v426 = vsel %vm404, %v117, -inf
    %427 = vmax.xlane.f32.xlu0 %v426
    %v428 = vpop.xlane.xlu0 %427
    %v429 = vsel %vm404, %v118, -inf
    %430 = vmax.xlane.f32.xlu0 %v429
    %v431 = vpop.xlane.xlu0 %430
    %v432 = vsel %vm404, %v119, -inf
    %433 = vmax.xlane.f32.xlu0 %v432
    %v434 = vpop.xlane.xlu0 %433
    %v435 = vsel %vm404, %v120, -inf
    %436 = vmax.xlane.f32.xlu0 %v435
    %v437 = vpop.xlane.xlu0 %436
    %v438 = vsel %vm404, %v121, -inf
    %439 = vmax.xlane.f32.xlu0 %v438
    %v440 = vpop.xlane.xlu0 %439
    %v441 = vsel %vm404, %v122, -inf
    %442 = vmax.xlane.f32.xlu0 %v441
    %v443 = vpop.xlane.xlu0 %442
    %v444 = vsel %vm404, %v123, -inf
    %445 = vmax.xlane.f32.xlu0 %v444
    %v446 = vpop.xlane.xlu0 %445
    %v447 = vsel %vm404, %v124, -inf
    %448 = vmax.xlane.f32.xlu0 %v447
    %v449 = vpop.xlane.xlu0 %448
    %v450 = vsel %vm404, %v125, -inf
    %451 = vmax.xlane.f32.xlu0 %v450
    %v452 = vpop.xlane.xlu0 %451
    %v453 = vsel %vm404, %v126, -inf
    %454 = vmax.xlane.f32.xlu0 %v453
    %v455 = vpop.xlane.xlu0 %454
    %v456 = vsel %vm404, %v127, -inf
    %457 = vmax.xlane.f32.xlu0 %v456
    %v458 = vpop.xlane.xlu0 %457
    %v459 = vsel %vm404, %v128, -inf
    %460 = vmax.xlane.f32.xlu0 %v459
    %v461 = vpop.xlane.xlu0 %460
    %v462 = vsel %vm404, %v129, -inf
    %463 = vmax.xlane.f32.xlu0 %v462
    %v464 = vpop.xlane.xlu0 %463
    %v465 = vsel %vm404, %v130, -inf
    %466 = vmax.xlane.f32.xlu0 %v465
    %v467 = vpop.xlane.xlu0 %466
    %v468 = vsel %vm404, %v131, -inf
    %469 = vmax.xlane.f32.xlu0 %v468
    %v470 = vpop.xlane.xlu0 %469
    %v471 = vsel %vm404, %v132, -inf
    %472 = vmax.xlane.f32.xlu0 %v471
    %v473 = vpop.xlane.xlu0 %472
    %v474 = vsel %vm404, %v133, -inf
    %475 = vmax.xlane.f32.xlu0 %v474
    %v476 = vpop.xlane.xlu0 %475
    %v477 = vsel %vm404, %v134, -inf
    %478 = vmax.xlane.f32.xlu0 %v477
    %v479 = vpop.xlane.xlu0 %478
    %v480 = vsel %vm404, %v135, -inf
    %481 = vmax.xlane.f32.xlu0 %v480
    %v482 = vpop.xlane.xlu0 %481
    %v483 = vsel %vm404, %v136, -inf
    %484 = vmax.xlane.f32.xlu0 %v483
    %v485 = vpop.xlane.xlu0 %484
    %v486 = vsel %vm404, %v137, -inf
    %487 = vmax.xlane.f32.xlu0 %v486
    %v488 = vpop.xlane.xlu0 %487
    %v489 = vsel %vm404, %v138, -inf
    %490 = vmax.xlane.f32.xlu0 %v489
    %v491 = vpop.xlane.xlu0 %490
    %v492 = vsel %vm404, %v139, -inf
    %493 = vmax.xlane.f32.xlu0 %v492
    %v494 = vpop.xlane.xlu0 %493
    %v495 = vsel %vm404, %v140, -inf
    %496 = vmax.xlane.f32.xlu0 %v495
    %v497 = vpop.xlane.xlu0 %496
    %v498 = vsel %vm404, %v141, -inf
    %499 = vmax.xlane.f32.xlu0 %v498
    %v500 = vpop.xlane.xlu0 %499
    %v501 = vsel %vm404, %v142, -inf
    %502 = vmax.xlane.f32.xlu0 %v501
    %v503 = vpop.xlane.xlu0 %502
    %v504 = vsel %vm404, %v143, -inf
    %505 = vmax.xlane.f32.xlu0 %v504
    %v506 = vpop.xlane.xlu0 %505
    %v507 = vsel %vm404, %v144, -inf
    %508 = vmax.xlane.f32.xlu0 %v507
    %v509 = vpop.xlane.xlu0 %508
    %v510 = vsel %vm404, %v145, -inf
    %511 = vmax.xlane.f32.xlu0 %v510
    %v512 = vpop.xlane.xlu0 %511
    %v513 = vsel %vm404, %v146, -inf
    %514 = vmax.xlane.f32.xlu0 %v513
    %v515 = vpop.xlane.xlu0 %514
    %v516 = vsel %vm404, %v147, -inf
    %517 = vmax.xlane.f32.xlu0 %v516
    %v518 = vpop.xlane.xlu0 %517
    %v519 = vsel %vm404, %v148, -inf
    %520 = vmax.xlane.f32.xlu0 %v519
    %v521 = vpop.xlane.xlu0 %520
    %v522 = vsel %vm404, %v149, -inf
    %523 = vmax.xlane.f32.xlu0 %v522
    %v524 = vpop.xlane.xlu0 %523
    %v525 = vsel %vm404, %v150, -inf
    %526 = vmax.xlane.f32.xlu0 %v525
    %v527 = vpop.xlane.xlu0 %526
    %v528 = vsel %vm404, %v151, -inf
    %529 = vmax.xlane.f32.xlu0 %v528
    %v530 = vpop.xlane.xlu0 %529
    %v531 = vsel %vm404, %v152, -inf
    %532 = vmax.xlane.f32.xlu0 %v531
    %v533 = vpop.xlane.xlu0 %532
    %v534 = vsel %vm404, %v153, -inf
    %535 = vmax.xlane.f32.xlu0 %v534
    %v536 = vpop.xlane.xlu0 %535
    %v537 = vsel %vm404, %v154, -inf
    %538 = vmax.xlane.f32.xlu0 %v537
    %v539 = vpop.xlane.xlu0 %538
    %v540 = vsel %vm404, %v155, -inf
    %541 = vmax.xlane.f32.xlu0 %v540
    %v542 = vpop.xlane.xlu0 %541
    %v543 = vsel %vm404, %v156, -inf
    %544 = vmax.xlane.f32.xlu0 %v543
    %v545 = vpop.xlane.xlu0 %544
    %v546 = vsel %vm404, %v157, -inf
    %547 = vmax.xlane.f32.xlu0 %v546
    %v548 = vpop.xlane.xlu0 %547
    %v549 = vsel %vm404, %v158, -inf
    %550 = vmax.xlane.f32.xlu0 %v549
    %v551 = vpop.xlane.xlu0 %550
    %v552 = vsel %vm404, %v159, -inf
    %553 = vmax.xlane.f32.xlu0 %v552
    %v554 = vpop.xlane.xlu0 %553
    %v555 = vsel %vm404, %v160, -inf
    %556 = vmax.xlane.f32.xlu0 %v555
    %v557 = vpop.xlane.xlu0 %556
    %v558 = vsel %vm404, %v161, -inf
    %559 = vmax.xlane.f32.xlu0 %v558
    %v560 = vpop.xlane.xlu0 %559
    %v561 = vsel %vm404, %v162, -inf
    %562 = vmax.xlane.f32.xlu0 %v561
    %v563 = vpop.xlane.xlu0 %562
    %v564 = vsel %vm404, %v163, -inf
    %565 = vmax.xlane.f32.xlu0 %v564
    %v566 = vpop.xlane.xlu0 %565
    %v567 = vsel %vm404, %v164, -inf
    %568 = vmax.xlane.f32.xlu0 %v567
    %v569 = vpop.xlane.xlu0 %568
    %v570 = vsel %vm404, %v165, -inf
    %571 = vmax.xlane.f32.xlu0 %v570
    %v572 = vpop.xlane.xlu0 %571
    %v573 = vsel %vm404, %v166, -inf
    %574 = vmax.xlane.f32.xlu0 %v573
    %v575 = vpop.xlane.xlu0 %574
    %v576 = vsel %vm404, %v167, -inf
    %577 = vmax.xlane.f32.xlu0 %v576
    %v578 = vpop.xlane.xlu0 %577
    %v579 = vsel %vm404, %v168, -inf
    %580 = vmax.xlane.f32.xlu0 %v579
    %v581 = vpop.xlane.xlu0 %580
    %v582 = vsel %vm404, %v169, -inf
    %583 = vmax.xlane.f32.xlu0 %v582
    %v584 = vpop.xlane.xlu0 %583
    %v585 = vsel %vm404, %v170, -inf
    %586 = vmax.xlane.f32.xlu0 %v585
    %v587 = vpop.xlane.xlu0 %586
    %v588 = vsel %vm404, %v171, -inf
    %589 = vmax.xlane.f32.xlu0 %v588
    %v590 = vpop.xlane.xlu0 %589
    %v591 = vsel %vm404, %v172, -inf
    %592 = vmax.xlane.f32.xlu0 %v591
    %v593 = vpop.xlane.xlu0 %592
    %v594 = vsel %vm404, %v173, -inf
    %595 = vmax.xlane.f32.xlu0 %v594
    %v596 = vpop.xlane.xlu0 %595
    %v597 = vsel %vm404, %v174, -inf
    %598 = vmax.xlane.f32.xlu0 %v597
    %v599 = vpop.xlane.xlu0 %598
    %v600 = vsel %vm404, %v175, -inf
    %601 = vmax.xlane.f32.xlu0 %v600
    %v602 = vpop.xlane.xlu0 %601
    %v603 = vsel %vm404, %v176, -inf
    %604 = vmax.xlane.f32.xlu0 %v603
    %v605 = vpop.xlane.xlu0 %604
    %v606 = vsel %vm404, %v177, -inf
    %607 = vmax.xlane.f32.xlu0 %v606
    %v608 = vpop.xlane.xlu0 %607
    %v609 = vsel %vm404, %v178, -inf
    %610 = vmax.xlane.f32.xlu0 %v609
    %v611 = vpop.xlane.xlu0 %610
    %v612 = vsel %vm404, %v179, -inf
    %613 = vmax.xlane.f32.xlu0 %v612
    %v614 = vpop.xlane.xlu0 %613
    %v615 = vsel %vm404, %v180, -inf
    %616 = vmax.xlane.f32.xlu0 %v615
    %v617 = vpop.xlane.xlu0 %616
    %v618 = vsel %vm404, %v181, -inf
    %619 = vmax.xlane.f32.xlu0 %v618
    %v620 = vpop.xlane.xlu0 %619
    %v621 = vsel %vm404, %v182, -inf
    %622 = vmax.xlane.f32.xlu0 %v621
    %v623 = vpop.xlane.xlu0 %622
    %v624 = vsel %vm404, %v183, -inf
    %625 = vmax.xlane.f32.xlu0 %v624
    %v626 = vpop.xlane.xlu0 %625
    %v627 = vsel %vm404, %v184, -inf
    %628 = vmax.xlane.f32.xlu0 %v627
    %v629 = vpop.xlane.xlu0 %628
    %v630 = vsel %vm404, %v185, -inf
    %631 = vmax.xlane.f32.xlu0 %v630
    %v632 = vpop.xlane.xlu0 %631
    %v633 = vsel %vm404, %v186, -inf
    %634 = vmax.xlane.f32.xlu0 %v633
    %v635 = vpop.xlane.xlu0 %634
    %v636 = vsel %vm404, %v187, -inf
    %637 = vmax.xlane.f32.xlu0 %v636
    %v638 = vpop.xlane.xlu0 %637
    %v639 = vsel %vm404, %v188, -inf
    %640 = vmax.xlane.f32.xlu0 %v639
    %v641 = vpop.xlane.xlu0 %640
    %v642 = vsel %vm404, %v189, -inf
    %643 = vmax.xlane.f32.xlu0 %v642
    %v644 = vpop.xlane.xlu0 %643
    %v645 = vsel %vm404, %v190, -inf
    %646 = vmax.xlane.f32.xlu0 %v645
    %v647 = vpop.xlane.xlu0 %646
    %v648 = vsel %vm404, %v191, -inf
    %649 = vmax.xlane.f32.xlu0 %v648
    %v650 = vpop.xlane.xlu0 %649
    %v651 = vsel %vm404, %v192, -inf
    %652 = vmax.xlane.f32.xlu0 %v651
    %v653 = vpop.xlane.xlu0 %652
    %v654 = vsel %vm404, %v193, -inf
    %655 = vmax.xlane.f32.xlu0 %v654
    %v656 = vpop.xlane.xlu0 %655
    %v657 = vsel %vm404, %v194, -inf
    %658 = vmax.xlane.f32.xlu0 %v657
    %v659 = vpop.xlane.xlu0 %658
    %v660 = vsel %vm404, %v195, -inf
    %661 = vmax.xlane.f32.xlu0 %v660
    %v662 = vpop.xlane.xlu0 %661
    %v663 = vsel %vm404, %v196, -inf
    %664 = vmax.xlane.f32.xlu0 %v663
    %v665 = vpop.xlane.xlu0 %664
    %v666 = vsel %vm404, %v197, -inf
    %667 = vmax.xlane.f32.xlu0 %v666
    %v668 = vpop.xlane.xlu0 %667
    %v669 = vsel %vm404, %v198, -inf
    %670 = vmax.xlane.f32.xlu0 %v669
    %v671 = vpop.xlane.xlu0 %670
    %v672 = vsel %vm404, %v199, -inf
    %673 = vmax.xlane.f32.xlu0 %v672
    %v674 = vpop.xlane.xlu0 %673
    %v675 = vsel %vm404, %v200, -inf
    %676 = vmax.xlane.f32.xlu0 %v675
    %v677 = vpop.xlane.xlu0 %676
    %v678 = vsel %vm404, %v201, -inf
    %679 = vmax.xlane.f32.xlu0 %v678
    %v680 = vpop.xlane.xlu0 %679
    %v681 = vsel %vm404, %v202, -inf
    %682 = vmax.xlane.f32.xlu0 %v681
    %v683 = vpop.xlane.xlu0 %682
    %v684 = vsel %vm404, %v203, -inf
    %685 = vmax.xlane.f32.xlu0 %v684
    %v686 = vpop.xlane.xlu0 %685
    %v687 = vsel %vm404, %v204, -inf
    %688 = vmax.xlane.f32.xlu0 %v687
    %v689 = vpop.xlane.xlu0 %688
    %v690 = vsel %vm404, %v205, -inf
    %691 = vmax.xlane.f32.xlu0 %v690
    %v692 = vpop.xlane.xlu0 %691
    %v693 = vsel %vm404, %v206, -inf
    %694 = vmax.xlane.f32.xlu0 %v693
    %v695 = vpop.xlane.xlu0 %694
    %v696 = vsel %vm404, %v207, -inf
    %697 = vmax.xlane.f32.xlu0 %v696
    %v698 = vpop.xlane.xlu0 %697
    %v699 = vsub.f32 %v110, %v407
    %v700 = vsub.f32 %v111, %v410
    %v701 = vsub.f32 %v112, %v413
    %v702 = vsub.f32 %v113, %v416
    %v703 = vsub.f32 %v114, %v419
    %v704 = vsub.f32 %v115, %v422
    %v705 = vsub.f32 %v116, %v425
    %v706 = vsub.f32 %v117, %v428
    %v707 = vsub.f32 %v118, %v431
    %v708 = vsub.f32 %v119, %v434
    %v709 = vsub.f32 %v120, %v437
    %v710 = vsub.f32 %v121, %v440
    %v711 = vsub.f32 %v122, %v443
    %v712 = vsub.f32 %v123, %v446
    %v713 = vsub.f32 %v124, %v449
    %v714 = vsub.f32 %v125, %v452
    %v715 = vsub.f32 %v126, %v455
    %v716 = vsub.f32 %v127, %v458
    %v717 = vsub.f32 %v128, %v461
    %v718 = vsub.f32 %v129, %v464
    %v719 = vsub.f32 %v130, %v467
    %v720 = vsub.f32 %v131, %v470
    %v721 = vsub.f32 %v132, %v473
    %v722 = vsub.f32 %v133, %v476
    %v723 = vsub.f32 %v134, %v479
    %v724 = vsub.f32 %v135, %v482
    %v725 = vsub.f32 %v136, %v485
    %v726 = vsub.f32 %v137, %v488
    %v727 = vsub.f32 %v138, %v491
    %v728 = vsub.f32 %v139, %v494
    %v729 = vsub.f32 %v140, %v497
    %v730 = vsub.f32 %v141, %v500
    %v731 = vsub.f32 %v142, %v503
    %v732 = vsub.f32 %v143, %v506
    %v733 = vsub.f32 %v144, %v509
    %v734 = vsub.f32 %v145, %v512
    %v735 = vsub.f32 %v146, %v515
    %v736 = vsub.f32 %v147, %v518
    %v737 = vsub.f32 %v148, %v521
    %v738 = vsub.f32 %v149, %v524
    %v739 = vsub.f32 %v150, %v527
    %v740 = vsub.f32 %v151, %v530
    %v741 = vsub.f32 %v152, %v533
    %v742 = vsub.f32 %v153, %v536
    %v743 = vsub.f32 %v154, %v539
    %v744 = vsub.f32 %v155, %v542
    %v745 = vsub.f32 %v156, %v545
    %v746 = vsub.f32 %v157, %v548
    %v747 = vsub.f32 %v158, %v551
    %v748 = vsub.f32 %v159, %v554
    %v749 = vsub.f32 %v160, %v557
    %v750 = vsub.f32 %v161, %v560
    %v751 = vsub.f32 %v162, %v563
    %v752 = vsub.f32 %v163, %v566
    %v753 = vsub.f32 %v164, %v569
    %v754 = vsub.f32 %v165, %v572
    %v755 = vsub.f32 %v166, %v575
    %v756 = vsub.f32 %v167, %v578
    %v757 = vsub.f32 %v168, %v581
    %v758 = vsub.f32 %v169, %v584
    %v759 = vsub.f32 %v170, %v587
    %v760 = vsub.f32 %v171, %v590
    %v761 = vsub.f32 %v172, %v593
    %v762 = vsub.f32 %v173, %v596
    %v763 = vsub.f32 %v174, %v599
    %v764 = vsub.f32 %v175, %v602
    %v765 = vsub.f32 %v176, %v605
    %v766 = vsub.f32 %v177, %v608
    %v767 = vsub.f32 %v178, %v611
    %v768 = vsub.f32 %v179, %v614
    %v769 = vsub.f32 %v180, %v617
    %v770 = vsub.f32 %v181, %v620
    %v771 = vsub.f32 %v182, %v623
    %v772 = vsub.f32 %v183, %v626
    %v773 = vsub.f32 %v184, %v629
    %v774 = vsub.f32 %v185, %v632
    %v775 = vsub.f32 %v186, %v635
    %v776 = vsub.f32 %v187, %v638
    %v777 = vsub.f32 %v188, %v641
    %v778 = vsub.f32 %v189, %v644
    %v779 = vsub.f32 %v190, %v647
    %v780 = vsub.f32 %v191, %v650
    %v781 = vsub.f32 %v192, %v653
    %v782 = vsub.f32 %v193, %v656
    %v783 = vsub.f32 %v194, %v659
    %v784 = vsub.f32 %v195, %v662
    %v785 = vsub.f32 %v196, %v665
    %v786 = vsub.f32 %v197, %v668
    %v787 = vsub.f32 %v198, %v671
    %v788 = vsub.f32 %v199, %v674
    %v789 = vsub.f32 %v200, %v677
    %v790 = vsub.f32 %v201, %v680
    %v791 = vsub.f32 %v202, %v683
    %v792 = vsub.f32 %v203, %v686
    %v793 = vsub.f32 %v204, %v689
    %v794 = vsub.f32 %v205, %v692
    %v795 = vsub.f32 %v206, %v695
    %v796 = vsub.f32 %v207, %v698
    %v797 = vmul.f32 %v699, 1.442695
    %v798 = vpow.pop %v797
    %v799 = vmul.f32 %v700, 1.442695
    %v800 = vpow.pop %v799
    %v801 = vmul.f32 %v701, 1.442695
    %v802 = vpow.pop %v801
    %v803 = vmul.f32 %v702, 1.442695
    %v804 = vpow.pop %v803
    %v805 = vmul.f32 %v703, 1.442695
    %v806 = vpow.pop %v805
    %v807 = vmul.f32 %v704, 1.442695
    %v808 = vpow.pop %v807
    %v809 = vmul.f32 %v705, 1.442695
    %v810 = vpow.pop %v809
    %v811 = vmul.f32 %v706, 1.442695
    %v812 = vpow.pop %v811
    %v813 = vmul.f32 %v707, 1.442695
    %v814 = vpow.pop %v813
    %v815 = vmul.f32 %v708, 1.442695
    %v816 = vpow.pop %v815
    %v817 = vmul.f32 %v709, 1.442695
    %v818 = vpow.pop %v817
    %v819 = vmul.f32 %v710, 1.442695
    %v820 = vpow.pop %v819
    %v821 = vmul.f32 %v711, 1.442695
    %v822 = vpow.pop %v821
    %v823 = vmul.f32 %v712, 1.442695
    %v824 = vpow.pop %v823
    %v825 = vmul.f32 %v713, 1.442695
    %v826 = vpow.pop %v825
    %v827 = vmul.f32 %v714, 1.442695
    %v828 = vpow.pop %v827
    %v829 = vmul.f32 %v715, 1.442695
    %v830 = vpow.pop %v829
    %v831 = vmul.f32 %v716, 1.442695
    %v832 = vpow.pop %v831
    %v833 = vmul.f32 %v717, 1.442695
    %v834 = vpow.pop %v833
    %v835 = vmul.f32 %v718, 1.442695
    %v836 = vpow.pop %v835
    %v837 = vmul.f32 %v719, 1.442695
    %v838 = vpow.pop %v837
    %v839 = vmul.f32 %v720, 1.442695
    %v840 = vpow.pop %v839
    %v841 = vmul.f32 %v721, 1.442695
    %v842 = vpow.pop %v841
    %v843 = vmul.f32 %v722, 1.442695
    %v844 = vpow.pop %v843
    %v845 = vmul.f32 %v723, 1.442695
    %v846 = vpow.pop %v845
    %v847 = vmul.f32 %v724, 1.442695
    %v848 = vpow.pop %v847
    %v849 = vmul.f32 %v725, 1.442695
    %v850 = vpow.pop %v849
    %v851 = vmul.f32 %v726, 1.442695
    %v852 = vpow.pop %v851
    %v853 = vmul.f32 %v727, 1.442695
    %v854 = vpow.pop %v853
    %v855 = vmul.f32 %v728, 1.442695
    %v856 = vpow.pop %v855
    %v857 = vmul.f32 %v729, 1.442695
    %v858 = vpow.pop %v857
    %v859 = vmul.f32 %v730, 1.442695
    %v860 = vpow.pop %v859
    %v861 = vmul.f32 %v731, 1.442695
    %v862 = vpow.pop %v861
    %v863 = vmul.f32 %v732, 1.442695
    %v864 = vpow.pop %v863
    %v865 = vmul.f32 %v733, 1.442695
    %v866 = vpow.pop %v865
    %v867 = vmul.f32 %v734, 1.442695
    %v868 = vpow.pop %v867
    %v869 = vmul.f32 %v735, 1.442695
    %v870 = vpow.pop %v869
    %v871 = vmul.f32 %v736, 1.442695
    %v872 = vpow.pop %v871
    %v873 = vmul.f32 %v737, 1.442695
    %v874 = vpow.pop %v873
    %v875 = vmul.f32 %v738, 1.442695
    %v876 = vpow.pop %v875
    %v877 = vmul.f32 %v739, 1.442695
    %v878 = vpow.pop %v877
    %v879 = vmul.f32 %v740, 1.442695
    %v880 = vpow.pop %v879
    %v881 = vmul.f32 %v741, 1.442695
    %v882 = vpow.pop %v881
    %v883 = vmul.f32 %v742, 1.442695
    %v884 = vpow.pop %v883
    %v885 = vmul.f32 %v743, 1.442695
    %v886 = vpow.pop %v885
    %v887 = vmul.f32 %v744, 1.442695
    %v888 = vpow.pop %v887
    %v889 = vmul.f32 %v745, 1.442695
    %v890 = vpow.pop %v889
    %v891 = vmul.f32 %v746, 1.442695
    %v892 = vpow.pop %v891
    %v893 = vmul.f32 %v747, 1.442695
    %v894 = vpow.pop %v893
    %v895 = vmul.f32 %v748, 1.442695
    %v896 = vpow.pop %v895
    %v897 = vmul.f32 %v749, 1.442695
    %v898 = vpow.pop %v897
    %v899 = vmul.f32 %v750, 1.442695
    %v900 = vpow.pop %v899
    %v901 = vmul.f32 %v751, 1.442695
    %v902 = vpow.pop %v901
    %v903 = vmul.f32 %v752, 1.442695
    %v904 = vpow.pop %v903
    %v905 = vmul.f32 %v753, 1.442695
    %v906 = vpow.pop %v905
    %v907 = vmul.f32 %v754, 1.442695
    %v908 = vpow.pop %v907
    %v909 = vmul.f32 %v755, 1.442695
    %v910 = vpow.pop %v909
    %v911 = vmul.f32 %v756, 1.442695
    %v912 = vpow.pop %v911
    %v913 = vmul.f32 %v757, 1.442695
    %v914 = vpow.pop %v913
    %v915 = vmul.f32 %v758, 1.442695
    %v916 = vpow.pop %v915
    %v917 = vmul.f32 %v759, 1.442695
    %v918 = vpow.pop %v917
    %v919 = vmul.f32 %v760, 1.442695
    %v920 = vpow.pop %v919
    %v921 = vmul.f32 %v761, 1.442695
    %v922 = vpow.pop %v921
    %v923 = vmul.f32 %v762, 1.442695
    %v924 = vpow.pop %v923
    %v925 = vmul.f32 %v763, 1.442695
    %v926 = vpow.pop %v925
    %v927 = vmul.f32 %v764, 1.442695
    %v928 = vpow.pop %v927
    %v929 = vmul.f32 %v765, 1.442695
    %v930 = vpow.pop %v929
    %v931 = vmul.f32 %v766, 1.442695
    %v932 = vpow.pop %v931
    %v933 = vmul.f32 %v767, 1.442695
    %v934 = vpow.pop %v933
    %v935 = vmul.f32 %v768, 1.442695
    %v936 = vpow.pop %v935
    %v937 = vmul.f32 %v769, 1.442695
    %v938 = vpow.pop %v937
    %v939 = vmul.f32 %v770, 1.442695
    %v940 = vpow.pop %v939
    %v941 = vmul.f32 %v771, 1.442695
    %v942 = vpow.pop %v941
    %v943 = vmul.f32 %v772, 1.442695
    %v944 = vpow.pop %v943
    %v945 = vmul.f32 %v773, 1.442695
    %v946 = vpow.pop %v945
    %v947 = vmul.f32 %v774, 1.442695
    %v948 = vpow.pop %v947
    %v949 = vmul.f32 %v775, 1.442695
    %v950 = vpow.pop %v949
    %v951 = vmul.f32 %v776, 1.442695
    %v952 = vpow.pop %v951
    %v953 = vmul.f32 %v777, 1.442695
    %v954 = vpow.pop %v953
    %v955 = vmul.f32 %v778, 1.442695
    %v956 = vpow.pop %v955
    %v957 = vmul.f32 %v779, 1.442695
    %v958 = vpow.pop %v957
    %v959 = vmul.f32 %v780, 1.442695
    %v960 = vpow.pop %v959
    %v961 = vmul.f32 %v781, 1.442695
    %v962 = vpow.pop %v961
    %v963 = vmul.f32 %v782, 1.442695
    %v964 = vpow.pop %v963
    %v965 = vmul.f32 %v783, 1.442695
    %v966 = vpow.pop %v965
    %v967 = vmul.f32 %v784, 1.442695
    %v968 = vpow.pop %v967
    %v969 = vmul.f32 %v785, 1.442695
    %v970 = vpow.pop %v969
    %v971 = vmul.f32 %v786, 1.442695
    %v972 = vpow.pop %v971
    %v973 = vmul.f32 %v787, 1.442695
    %v974 = vpow.pop %v973
    %v975 = vmul.f32 %v788, 1.442695
    %v976 = vpow.pop %v975
    %v977 = vmul.f32 %v789, 1.442695
    %v978 = vpow.pop %v977
    %v979 = vmul.f32 %v790, 1.442695
    %v980 = vpow.pop %v979
    %v981 = vmul.f32 %v791, 1.442695
    %v982 = vpow.pop %v981
    %v983 = vmul.f32 %v792, 1.442695
    %v984 = vpow.pop %v983
    %v985 = vmul.f32 %v793, 1.442695
    %v986 = vpow.pop %v985
    %v987 = vmul.f32 %v794, 1.442695
    %v988 = vpow.pop %v987
    %v989 = vmul.f32 %v795, 1.442695
    %v990 = vpow.pop %v989
    %v991 = vmul.f32 %v796, 1.442695
    %v992 = vpow.pop %v991
    %v993 = vsel %vm404, %v798, 0.0
    %994 = vadd.xlane.f32.xlu0 %v993
    %v995 = vpop.xlane.xlu0 %994
    %v996 = vsel %vm404, %v800, 0.0
    %997 = vadd.xlane.f32.xlu0 %v996
    %v998 = vpop.xlane.xlu0 %997
    %v999 = vsel %vm404, %v802, 0.0
    %1000 = vadd.xlane.f32.xlu0 %v999
    %v1001 = vpop.xlane.xlu0 %1000
    %v1002 = vsel %vm404, %v804, 0.0
    %1003 = vadd.xlane.f32.xlu0 %v1002
    %v1004 = vpop.xlane.xlu0 %1003
    %v1005 = vsel %vm404, %v806, 0.0
    %1006 = vadd.xlane.f32.xlu0 %v1005
    %v1007 = vpop.xlane.xlu0 %1006
    %v1008 = vsel %vm404, %v808, 0.0
    %1009 = vadd.xlane.f32.xlu0 %v1008
    %v1010 = vpop.xlane.xlu0 %1009
    %v1011 = vsel %vm404, %v810, 0.0
    %1012 = vadd.xlane.f32.xlu0 %v1011
    %v1013 = vpop.xlane.xlu0 %1012
    %v1014 = vsel %vm404, %v812, 0.0
    %1015 = vadd.xlane.f32.xlu0 %v1014
    %v1016 = vpop.xlane.xlu0 %1015
    %v1017 = vsel %vm404, %v814, 0.0
    %1018 = vadd.xlane.f32.xlu0 %v1017
    %v1019 = vpop.xlane.xlu0 %1018
    %v1020 = vsel %vm404, %v816, 0.0
    %1021 = vadd.xlane.f32.xlu0 %v1020
    %v1022 = vpop.xlane.xlu0 %1021
    %v1023 = vsel %vm404, %v818, 0.0
    %1024 = vadd.xlane.f32.xlu0 %v1023
    %v1025 = vpop.xlane.xlu0 %1024
    %v1026 = vsel %vm404, %v820, 0.0
    %1027 = vadd.xlane.f32.xlu0 %v1026
    %v1028 = vpop.xlane.xlu0 %1027
    %v1029 = vsel %vm404, %v822, 0.0
    %1030 = vadd.xlane.f32.xlu0 %v1029
    %v1031 = vpop.xlane.xlu0 %1030
    %v1032 = vsel %vm404, %v824, 0.0
    %1033 = vadd.xlane.f32.xlu0 %v1032
    %v1034 = vpop.xlane.xlu0 %1033
    %v1035 = vsel %vm404, %v826, 0.0
    %1036 = vadd.xlane.f32.xlu0 %v1035
    %v1037 = vpop.xlane.xlu0 %1036
    %v1038 = vsel %vm404, %v828, 0.0
    %1039 = vadd.xlane.f32.xlu0 %v1038
    %v1040 = vpop.xlane.xlu0 %1039
    %v1041 = vsel %vm404, %v830, 0.0
    %1042 = vadd.xlane.f32.xlu0 %v1041
    %v1043 = vpop.xlane.xlu0 %1042
    %v1044 = vsel %vm404, %v832, 0.0
    %1045 = vadd.xlane.f32.xlu0 %v1044
    %v1046 = vpop.xlane.xlu0 %1045
    %v1047 = vsel %vm404, %v834, 0.0
    %1048 = vadd.xlane.f32.xlu0 %v1047
    %v1049 = vpop.xlane.xlu0 %1048
    %v1050 = vsel %vm404, %v836, 0.0
    %1051 = vadd.xlane.f32.xlu0 %v1050
    %v1052 = vpop.xlane.xlu0 %1051
    %v1053 = vsel %vm404, %v838, 0.0
    %1054 = vadd.xlane.f32.xlu0 %v1053
    %v1055 = vpop.xlane.xlu0 %1054
    %v1056 = vsel %vm404, %v840, 0.0
    %1057 = vadd.xlane.f32.xlu0 %v1056
    %v1058 = vpop.xlane.xlu0 %1057
    %v1059 = vsel %vm404, %v842, 0.0
    %1060 = vadd.xlane.f32.xlu0 %v1059
    %v1061 = vpop.xlane.xlu0 %1060
    %v1062 = vsel %vm404, %v844, 0.0
    %1063 = vadd.xlane.f32.xlu0 %v1062
    %v1064 = vpop.xlane.xlu0 %1063
    %v1065 = vsel %vm404, %v846, 0.0
    %1066 = vadd.xlane.f32.xlu0 %v1065
    %v1067 = vpop.xlane.xlu0 %1066
    %v1068 = vsel %vm404, %v848, 0.0
    %1069 = vadd.xlane.f32.xlu0 %v1068
    %v1070 = vpop.xlane.xlu0 %1069
    %v1071 = vsel %vm404, %v850, 0.0
    %1072 = vadd.xlane.f32.xlu0 %v1071
    %v1073 = vpop.xlane.xlu0 %1072
    %v1074 = vsel %vm404, %v852, 0.0
    %1075 = vadd.xlane.f32.xlu0 %v1074
    %v1076 = vpop.xlane.xlu0 %1075
    %v1077 = vsel %vm404, %v854, 0.0
    %1078 = vadd.xlane.f32.xlu0 %v1077
    %v1079 = vpop.xlane.xlu0 %1078
    %v1080 = vsel %vm404, %v856, 0.0
    %1081 = vadd.xlane.f32.xlu0 %v1080
    %v1082 = vpop.xlane.xlu0 %1081
    %v1083 = vsel %vm404, %v858, 0.0
    %1084 = vadd.xlane.f32.xlu0 %v1083
    %v1085 = vpop.xlane.xlu0 %1084
    %v1086 = vsel %vm404, %v860, 0.0
    %1087 = vadd.xlane.f32.xlu0 %v1086
    %v1088 = vpop.xlane.xlu0 %1087
    %v1089 = vsel %vm404, %v862, 0.0
    %1090 = vadd.xlane.f32.xlu0 %v1089
    %v1091 = vpop.xlane.xlu0 %1090
    %v1092 = vsel %vm404, %v864, 0.0
    %1093 = vadd.xlane.f32.xlu0 %v1092
    %v1094 = vpop.xlane.xlu0 %1093
    %v1095 = vsel %vm404, %v866, 0.0
    %1096 = vadd.xlane.f32.xlu0 %v1095
    %v1097 = vpop.xlane.xlu0 %1096
    %v1098 = vsel %vm404, %v868, 0.0
    %1099 = vadd.xlane.f32.xlu0 %v1098
    %v1100 = vpop.xlane.xlu0 %1099
    %v1101 = vsel %vm404, %v870, 0.0
    %1102 = vadd.xlane.f32.xlu0 %v1101
    %v1103 = vpop.xlane.xlu0 %1102
    %v1104 = vsel %vm404, %v872, 0.0
    %1105 = vadd.xlane.f32.xlu0 %v1104
    %v1106 = vpop.xlane.xlu0 %1105
    %v1107 = vsel %vm404, %v874, 0.0
    %1108 = vadd.xlane.f32.xlu0 %v1107
    %v1109 = vpop.xlane.xlu0 %1108
    %v1110 = vsel %vm404, %v876, 0.0
    %1111 = vadd.xlane.f32.xlu0 %v1110
    %v1112 = vpop.xlane.xlu0 %1111
    %v1113 = vsel %vm404, %v878, 0.0
    %1114 = vadd.xlane.f32.xlu0 %v1113
    %v1115 = vpop.xlane.xlu0 %1114
    %v1116 = vsel %vm404, %v880, 0.0
    %1117 = vadd.xlane.f32.xlu0 %v1116
    %v1118 = vpop.xlane.xlu0 %1117
    %v1119 = vsel %vm404, %v882, 0.0
    %1120 = vadd.xlane.f32.xlu0 %v1119
    %v1121 = vpop.xlane.xlu0 %1120
    %v1122 = vsel %vm404, %v884, 0.0
    %1123 = vadd.xlane.f32.xlu0 %v1122
    %v1124 = vpop.xlane.xlu0 %1123
    %v1125 = vsel %vm404, %v886, 0.0
    %1126 = vadd.xlane.f32.xlu0 %v1125
    %v1127 = vpop.xlane.xlu0 %1126
    %v1128 = vsel %vm404, %v888, 0.0
    %1129 = vadd.xlane.f32.xlu0 %v1128
    %v1130 = vpop.xlane.xlu0 %1129
    %v1131 = vsel %vm404, %v890, 0.0
    %1132 = vadd.xlane.f32.xlu0 %v1131
    %v1133 = vpop.xlane.xlu0 %1132
    %v1134 = vsel %vm404, %v892, 0.0
    %1135 = vadd.xlane.f32.xlu0 %v1134
    %v1136 = vpop.xlane.xlu0 %1135
    %v1137 = vsel %vm404, %v894, 0.0
    %1138 = vadd.xlane.f32.xlu0 %v1137
    %v1139 = vpop.xlane.xlu0 %1138
    %v1140 = vsel %vm404, %v896, 0.0
    %1141 = vadd.xlane.f32.xlu0 %v1140
    %v1142 = vpop.xlane.xlu0 %1141
    %v1143 = vsel %vm404, %v898, 0.0
    %1144 = vadd.xlane.f32.xlu0 %v1143
    %v1145 = vpop.xlane.xlu0 %1144
    %v1146 = vsel %vm404, %v900, 0.0
    %1147 = vadd.xlane.f32.xlu0 %v1146
    %v1148 = vpop.xlane.xlu0 %1147
    %v1149 = vsel %vm404, %v902, 0.0
    %1150 = vadd.xlane.f32.xlu0 %v1149
    %v1151 = vpop.xlane.xlu0 %1150
    %v1152 = vsel %vm404, %v904, 0.0
    %1153 = vadd.xlane.f32.xlu0 %v1152
    %v1154 = vpop.xlane.xlu0 %1153
    %v1155 = vsel %vm404, %v906, 0.0
    %1156 = vadd.xlane.f32.xlu0 %v1155
    %v1157 = vpop.xlane.xlu0 %1156
    %v1158 = vsel %vm404, %v908, 0.0
    %1159 = vadd.xlane.f32.xlu0 %v1158
    %v1160 = vpop.xlane.xlu0 %1159
    %v1161 = vsel %vm404, %v910, 0.0
    %1162 = vadd.xlane.f32.xlu0 %v1161
    %v1163 = vpop.xlane.xlu0 %1162
    %v1164 = vsel %vm404, %v912, 0.0
    %1165 = vadd.xlane.f32.xlu0 %v1164
    %v1166 = vpop.xlane.xlu0 %1165
    %v1167 = vsel %vm404, %v914, 0.0
    %1168 = vadd.xlane.f32.xlu0 %v1167
    %v1169 = vpop.xlane.xlu0 %1168
    %v1170 = vsel %vm404, %v916, 0.0
    %1171 = vadd.xlane.f32.xlu0 %v1170
    %v1172 = vpop.xlane.xlu0 %1171
    %v1173 = vsel %vm404, %v918, 0.0
    %1174 = vadd.xlane.f32.xlu0 %v1173
    %v1175 = vpop.xlane.xlu0 %1174
    %v1176 = vsel %vm404, %v920, 0.0
    %1177 = vadd.xlane.f32.xlu0 %v1176
    %v1178 = vpop.xlane.xlu0 %1177
    %v1179 = vsel %vm404, %v922, 0.0
    %1180 = vadd.xlane.f32.xlu0 %v1179
    %v1181 = vpop.xlane.xlu0 %1180
    %v1182 = vsel %vm404, %v924, 0.0
    %1183 = vadd.xlane.f32.xlu0 %v1182
    %v1184 = vpop.xlane.xlu0 %1183
    %v1185 = vsel %vm404, %v926, 0.0
    %1186 = vadd.xlane.f32.xlu0 %v1185
    %v1187 = vpop.xlane.xlu0 %1186
    %v1188 = vsel %vm404, %v928, 0.0
    %1189 = vadd.xlane.f32.xlu0 %v1188
    %v1190 = vpop.xlane.xlu0 %1189
    %v1191 = vsel %vm404, %v930, 0.0
    %1192 = vadd.xlane.f32.xlu0 %v1191
    %v1193 = vpop.xlane.xlu0 %1192
    %v1194 = vsel %vm404, %v932, 0.0
    %1195 = vadd.xlane.f32.xlu0 %v1194
    %v1196 = vpop.xlane.xlu0 %1195
    %v1197 = vsel %vm404, %v934, 0.0
    %1198 = vadd.xlane.f32.xlu0 %v1197
    %v1199 = vpop.xlane.xlu0 %1198
    %v1200 = vsel %vm404, %v936, 0.0
    %1201 = vadd.xlane.f32.xlu0 %v1200
    %v1202 = vpop.xlane.xlu0 %1201
    %v1203 = vsel %vm404, %v938, 0.0
    %1204 = vadd.xlane.f32.xlu0 %v1203
    %v1205 = vpop.xlane.xlu0 %1204
    %v1206 = vsel %vm404, %v940, 0.0
    %1207 = vadd.xlane.f32.xlu0 %v1206
    %v1208 = vpop.xlane.xlu0 %1207
    %v1209 = vsel %vm404, %v942, 0.0
    %1210 = vadd.xlane.f32.xlu0 %v1209
    %v1211 = vpop.xlane.xlu0 %1210
    %v1212 = vsel %vm404, %v944, 0.0
    %1213 = vadd.xlane.f32.xlu0 %v1212
    %v1214 = vpop.xlane.xlu0 %1213
    %v1215 = vsel %vm404, %v946, 0.0
    %1216 = vadd.xlane.f32.xlu0 %v1215
    %v1217 = vpop.xlane.xlu0 %1216
    %v1218 = vsel %vm404, %v948, 0.0
    %1219 = vadd.xlane.f32.xlu0 %v1218
    %v1220 = vpop.xlane.xlu0 %1219
    %v1221 = vsel %vm404, %v950, 0.0
    %1222 = vadd.xlane.f32.xlu0 %v1221
    %v1223 = vpop.xlane.xlu0 %1222
    %v1224 = vsel %vm404, %v952, 0.0
    %1225 = vadd.xlane.f32.xlu0 %v1224
    %v1226 = vpop.xlane.xlu0 %1225
    %v1227 = vsel %vm404, %v954, 0.0
    %1228 = vadd.xlane.f32.xlu0 %v1227
    %v1229 = vpop.xlane.xlu0 %1228
    %v1230 = vsel %vm404, %v956, 0.0
    %1231 = vadd.xlane.f32.xlu0 %v1230
    %v1232 = vpop.xlane.xlu0 %1231
    %v1233 = vsel %vm404, %v958, 0.0
    %1234 = vadd.xlane.f32.xlu0 %v1233
    %v1235 = vpop.xlane.xlu0 %1234
    %v1236 = vsel %vm404, %v960, 0.0
    %1237 = vadd.xlane.f32.xlu0 %v1236
    %v1238 = vpop.xlane.xlu0 %1237
    %v1239 = vsel %vm404, %v962, 0.0
    %1240 = vadd.xlane.f32.xlu0 %v1239
    %v1241 = vpop.xlane.xlu0 %1240
    %v1242 = vsel %vm404, %v964, 0.0
    %1243 = vadd.xlane.f32.xlu0 %v1242
    %v1244 = vpop.xlane.xlu0 %1243
    %v1245 = vsel %vm404, %v966, 0.0
    %1246 = vadd.xlane.f32.xlu0 %v1245
    %v1247 = vpop.xlane.xlu0 %1246
    %v1248 = vsel %vm404, %v968, 0.0
    %1249 = vadd.xlane.f32.xlu0 %v1248
    %v1250 = vpop.xlane.xlu0 %1249
    %v1251 = vsel %vm404, %v970, 0.0
    %1252 = vadd.xlane.f32.xlu0 %v1251
    %v1253 = vpop.xlane.xlu0 %1252
    %v1254 = vsel %vm404, %v972, 0.0
    %1255 = vadd.xlane.f32.xlu0 %v1254
    %v1256 = vpop.xlane.xlu0 %1255
    %v1257 = vsel %vm404, %v974, 0.0
    %1258 = vadd.xlane.f32.xlu0 %v1257
    %v1259 = vpop.xlane.xlu0 %1258
    %v1260 = vsel %vm404, %v976, 0.0
    %1261 = vadd.xlane.f32.xlu0 %v1260
    %v1262 = vpop.xlane.xlu0 %1261
    %v1263 = vsel %vm404, %v978, 0.0
    %1264 = vadd.xlane.f32.xlu0 %v1263
    %v1265 = vpop.xlane.xlu0 %1264
    %v1266 = vsel %vm404, %v980, 0.0
    %1267 = vadd.xlane.f32.xlu0 %v1266
    %v1268 = vpop.xlane.xlu0 %1267
    %v1269 = vsel %vm404, %v982, 0.0
    %1270 = vadd.xlane.f32.xlu0 %v1269
    %v1271 = vpop.xlane.xlu0 %1270
    %v1272 = vsel %vm404, %v984, 0.0
    %1273 = vadd.xlane.f32.xlu0 %v1272
    %v1274 = vpop.xlane.xlu0 %1273
    %v1275 = vsel %vm404, %v986, 0.0
    %1276 = vadd.xlane.f32.xlu0 %v1275
    %v1277 = vpop.xlane.xlu0 %1276
    %v1278 = vsel %vm404, %v988, 0.0
    %1279 = vadd.xlane.f32.xlu0 %v1278
    %v1280 = vpop.xlane.xlu0 %1279
    %v1281 = vsel %vm404, %v990, 0.0
    %1282 = vadd.xlane.f32.xlu0 %v1281
    %v1283 = vpop.xlane.xlu0 %1282
    %v1284 = vsel %vm404, %v992, 0.0
    %1285 = vadd.xlane.f32.xlu0 %v1284
    %v1286 = vpop.xlane.xlu0 %1285
    %v1287 = vlog2.pop %v995
    %v1288 = vmul.f32 %v1287, 0.6931472
    %v1289 = vlog2.pop %v998
    %v1290 = vmul.f32 %v1289, 0.6931472
    %v1291 = vlog2.pop %v1001
    %v1292 = vmul.f32 %v1291, 0.6931472
    %v1293 = vlog2.pop %v1004
    %v1294 = vmul.f32 %v1293, 0.6931472
    %v1295 = vlog2.pop %v1007
    %v1296 = vmul.f32 %v1295, 0.6931472
    %v1297 = vlog2.pop %v1010
    %v1298 = vmul.f32 %v1297, 0.6931472
    %v1299 = vlog2.pop %v1013
    %v1300 = vmul.f32 %v1299, 0.6931472
    %v1301 = vlog2.pop %v1016
    %v1302 = vmul.f32 %v1301, 0.6931472
    %v1303 = vlog2.pop %v1019
    %v1304 = vmul.f32 %v1303, 0.6931472
    %v1305 = vlog2.pop %v1022
    %v1306 = vmul.f32 %v1305, 0.6931472
    %v1307 = vlog2.pop %v1025
    %v1308 = vmul.f32 %v1307, 0.6931472
    %v1309 = vlog2.pop %v1028
    %v1310 = vmul.f32 %v1309, 0.6931472
    %v1311 = vlog2.pop %v1031
    %v1312 = vmul.f32 %v1311, 0.6931472
    %v1313 = vlog2.pop %v1034
    %v1314 = vmul.f32 %v1313, 0.6931472
    %v1315 = vlog2.pop %v1037
    %v1316 = vmul.f32 %v1315, 0.6931472
    %v1317 = vlog2.pop %v1040
    %v1318 = vmul.f32 %v1317, 0.6931472
    %v1319 = vlog2.pop %v1043
    %v1320 = vmul.f32 %v1319, 0.6931472
    %v1321 = vlog2.pop %v1046
    %v1322 = vmul.f32 %v1321, 0.6931472
    %v1323 = vlog2.pop %v1049
    %v1324 = vmul.f32 %v1323, 0.6931472
    %v1325 = vlog2.pop %v1052
    %v1326 = vmul.f32 %v1325, 0.6931472
    %v1327 = vlog2.pop %v1055
    %v1328 = vmul.f32 %v1327, 0.6931472
    %v1329 = vlog2.pop %v1058
    %v1330 = vmul.f32 %v1329, 0.6931472
    %v1331 = vlog2.pop %v1061
    %v1332 = vmul.f32 %v1331, 0.6931472
    %v1333 = vlog2.pop %v1064
    %v1334 = vmul.f32 %v1333, 0.6931472
    %v1335 = vlog2.pop %v1067
    %v1336 = vmul.f32 %v1335, 0.6931472
    %v1337 = vlog2.pop %v1070
    %v1338 = vmul.f32 %v1337, 0.6931472
    %v1339 = vlog2.pop %v1073
    %v1340 = vmul.f32 %v1339, 0.6931472
    %v1341 = vlog2.pop %v1076
    %v1342 = vmul.f32 %v1341, 0.6931472
    %v1343 = vlog2.pop %v1079
    %v1344 = vmul.f32 %v1343, 0.6931472
    %v1345 = vlog2.pop %v1082
    %v1346 = vmul.f32 %v1345, 0.6931472
    %v1347 = vlog2.pop %v1085
    %v1348 = vmul.f32 %v1347, 0.6931472
    %v1349 = vlog2.pop %v1088
    %v1350 = vmul.f32 %v1349, 0.6931472
    %v1351 = vlog2.pop %v1091
    %v1352 = vmul.f32 %v1351, 0.6931472
    %v1353 = vlog2.pop %v1094
    %v1354 = vmul.f32 %v1353, 0.6931472
    %v1355 = vlog2.pop %v1097
    %v1356 = vmul.f32 %v1355, 0.6931472
    %v1357 = vlog2.pop %v1100
    %v1358 = vmul.f32 %v1357, 0.6931472
    %v1359 = vlog2.pop %v1103
    %v1360 = vmul.f32 %v1359, 0.6931472
    %v1361 = vlog2.pop %v1106
    %v1362 = vmul.f32 %v1361, 0.6931472
    %v1363 = vlog2.pop %v1109
    %v1364 = vmul.f32 %v1363, 0.6931472
    %v1365 = vlog2.pop %v1112
    %v1366 = vmul.f32 %v1365, 0.6931472
    %v1367 = vlog2.pop %v1115
    %v1368 = vmul.f32 %v1367, 0.6931472
    %v1369 = vlog2.pop %v1118
    %v1370 = vmul.f32 %v1369, 0.6931472
    %v1371 = vlog2.pop %v1121
    %v1372 = vmul.f32 %v1371, 0.6931472
    %v1373 = vlog2.pop %v1124
    %v1374 = vmul.f32 %v1373, 0.6931472
    %v1375 = vlog2.pop %v1127
    %v1376 = vmul.f32 %v1375, 0.6931472
    %v1377 = vlog2.pop %v1130
    %v1378 = vmul.f32 %v1377, 0.6931472
    %v1379 = vlog2.pop %v1133
    %v1380 = vmul.f32 %v1379, 0.6931472
    %v1381 = vlog2.pop %v1136
    %v1382 = vmul.f32 %v1381, 0.6931472
    %v1383 = vlog2.pop %v1139
    %v1384 = vmul.f32 %v1383, 0.6931472
    %v1385 = vlog2.pop %v1142
    %v1386 = vmul.f32 %v1385, 0.6931472
    %v1387 = vlog2.pop %v1145
    %v1388 = vmul.f32 %v1387, 0.6931472
    %v1389 = vlog2.pop %v1148
    %v1390 = vmul.f32 %v1389, 0.6931472
    %v1391 = vlog2.pop %v1151
    %v1392 = vmul.f32 %v1391, 0.6931472
    %v1393 = vlog2.pop %v1154
    %v1394 = vmul.f32 %v1393, 0.6931472
    %v1395 = vlog2.pop %v1157
    %v1396 = vmul.f32 %v1395, 0.6931472
    %v1397 = vlog2.pop %v1160
    %v1398 = vmul.f32 %v1397, 0.6931472
    %v1399 = vlog2.pop %v1163
    %v1400 = vmul.f32 %v1399, 0.6931472
    %v1401 = vlog2.pop %v1166
    %v1402 = vmul.f32 %v1401, 0.6931472
    %v1403 = vlog2.pop %v1169
    %v1404 = vmul.f32 %v1403, 0.6931472
    %v1405 = vlog2.pop %v1172
    %v1406 = vmul.f32 %v1405, 0.6931472
    %v1407 = vlog2.pop %v1175
    %v1408 = vmul.f32 %v1407, 0.6931472
    %v1409 = vlog2.pop %v1178
    %v1410 = vmul.f32 %v1409, 0.6931472
    %v1411 = vlog2.pop %v1181
    %v1412 = vmul.f32 %v1411, 0.6931472
    %v1413 = vlog2.pop %v1184
    %v1414 = vmul.f32 %v1413, 0.6931472
    %v1415 = vlog2.pop %v1187
    %v1416 = vmul.f32 %v1415, 0.6931472
    %v1417 = vlog2.pop %v1190
    %v1418 = vmul.f32 %v1417, 0.6931472
    %v1419 = vlog2.pop %v1193
    %v1420 = vmul.f32 %v1419, 0.6931472
    %v1421 = vlog2.pop %v1196
    %v1422 = vmul.f32 %v1421, 0.6931472
    %v1423 = vlog2.pop %v1199
    %v1424 = vmul.f32 %v1423, 0.6931472
    %v1425 = vlog2.pop %v1202
    %v1426 = vmul.f32 %v1425, 0.6931472
    %v1427 = vlog2.pop %v1205
    %v1428 = vmul.f32 %v1427, 0.6931472
    %v1429 = vlog2.pop %v1208
    %v1430 = vmul.f32 %v1429, 0.6931472
    %v1431 = vlog2.pop %v1211
    %v1432 = vmul.f32 %v1431, 0.6931472
    %v1433 = vlog2.pop %v1214
    %v1434 = vmul.f32 %v1433, 0.6931472
    %v1435 = vlog2.pop %v1217
    %v1436 = vmul.f32 %v1435, 0.6931472
    %v1437 = vlog2.pop %v1220
    %v1438 = vmul.f32 %v1437, 0.6931472
    %v1439 = vlog2.pop %v1223
    %v1440 = vmul.f32 %v1439, 0.6931472
    %v1441 = vlog2.pop %v1226
    %v1442 = vmul.f32 %v1441, 0.6931472
    %v1443 = vlog2.pop %v1229
    %v1444 = vmul.f32 %v1443, 0.6931472
    %v1445 = vlog2.pop %v1232
    %v1446 = vmul.f32 %v1445, 0.6931472
    %v1447 = vlog2.pop %v1235
    %v1448 = vmul.f32 %v1447, 0.6931472
    %v1449 = vlog2.pop %v1238
    %v1450 = vmul.f32 %v1449, 0.6931472
    %v1451 = vlog2.pop %v1241
    %v1452 = vmul.f32 %v1451, 0.6931472
    %v1453 = vlog2.pop %v1244
    %v1454 = vmul.f32 %v1453, 0.6931472
    %v1455 = vlog2.pop %v1247
    %v1456 = vmul.f32 %v1455, 0.6931472
    %v1457 = vlog2.pop %v1250
    %v1458 = vmul.f32 %v1457, 0.6931472
    %v1459 = vlog2.pop %v1253
    %v1460 = vmul.f32 %v1459, 0.6931472
    %v1461 = vlog2.pop %v1256
    %v1462 = vmul.f32 %v1461, 0.6931472
    %v1463 = vlog2.pop %v1259
    %v1464 = vmul.f32 %v1463, 0.6931472
    %v1465 = vlog2.pop %v1262
    %v1466 = vmul.f32 %v1465, 0.6931472
    %v1467 = vlog2.pop %v1265
    %v1468 = vmul.f32 %v1467, 0.6931472
    %v1469 = vlog2.pop %v1268
    %v1470 = vmul.f32 %v1469, 0.6931472
    %v1471 = vlog2.pop %v1271
    %v1472 = vmul.f32 %v1471, 0.6931472
    %v1473 = vlog2.pop %v1274
    %v1474 = vmul.f32 %v1473, 0.6931472
    %v1475 = vlog2.pop %v1277
    %v1476 = vmul.f32 %v1475, 0.6931472
    %v1477 = vlog2.pop %v1280
    %v1478 = vmul.f32 %v1477, 0.6931472
    %v1479 = vlog2.pop %v1283
    %v1480 = vmul.f32 %v1479, 0.6931472
    %v1481 = vlog2.pop %v1286
    %v1482 = vmul.f32 %v1481, 0.6931472
    %v1483 = vsub.f32 %v699, %v1288
    %v1484 = vsub.f32 %v700, %v1290
    %v1485 = vsub.f32 %v701, %v1292
    %v1486 = vsub.f32 %v702, %v1294
    %v1487 = vsub.f32 %v703, %v1296
    %v1488 = vsub.f32 %v704, %v1298
    %v1489 = vsub.f32 %v705, %v1300
    %v1490 = vsub.f32 %v706, %v1302
    %v1491 = vsub.f32 %v707, %v1304
    %v1492 = vsub.f32 %v708, %v1306
    %v1493 = vsub.f32 %v709, %v1308
    %v1494 = vsub.f32 %v710, %v1310
    %v1495 = vsub.f32 %v711, %v1312
    %v1496 = vsub.f32 %v712, %v1314
    %v1497 = vsub.f32 %v713, %v1316
    %v1498 = vsub.f32 %v714, %v1318
    %v1499 = vsub.f32 %v715, %v1320
    %v1500 = vsub.f32 %v716, %v1322
    %v1501 = vsub.f32 %v717, %v1324
    %v1502 = vsub.f32 %v718, %v1326
    %v1503 = vsub.f32 %v719, %v1328
    %v1504 = vsub.f32 %v720, %v1330
    %v1505 = vsub.f32 %v721, %v1332
    %v1506 = vsub.f32 %v722, %v1334
    %v1507 = vsub.f32 %v723, %v1336
    %v1508 = vsub.f32 %v724, %v1338
    %v1509 = vsub.f32 %v725, %v1340
    %v1510 = vsub.f32 %v726, %v1342
    %v1511 = vsub.f32 %v727, %v1344
    %v1512 = vsub.f32 %v728, %v1346
    %v1513 = vsub.f32 %v729, %v1348
    %v1514 = vsub.f32 %v730, %v1350
    %v1515 = vsub.f32 %v731, %v1352
    %v1516 = vsub.f32 %v732, %v1354
    %v1517 = vsub.f32 %v733, %v1356
    %v1518 = vsub.f32 %v734, %v1358
    %v1519 = vsub.f32 %v735, %v1360
    %v1520 = vsub.f32 %v736, %v1362
    %v1521 = vsub.f32 %v737, %v1364
    %v1522 = vsub.f32 %v738, %v1366
    %v1523 = vsub.f32 %v739, %v1368
    %v1524 = vsub.f32 %v740, %v1370
    %v1525 = vsub.f32 %v741, %v1372
    %v1526 = vsub.f32 %v742, %v1374
    %v1527 = vsub.f32 %v743, %v1376
    %v1528 = vsub.f32 %v744, %v1378
    %v1529 = vsub.f32 %v745, %v1380
    %v1530 = vsub.f32 %v746, %v1382
    %v1531 = vsub.f32 %v747, %v1384
    %v1532 = vsub.f32 %v748, %v1386
    %v1533 = vsub.f32 %v749, %v1388
    %v1534 = vsub.f32 %v750, %v1390
    %v1535 = vsub.f32 %v751, %v1392
    %v1536 = vsub.f32 %v752, %v1394
    %v1537 = vsub.f32 %v753, %v1396
    %v1538 = vsub.f32 %v754, %v1398
    %v1539 = vsub.f32 %v755, %v1400
    %v1540 = vsub.f32 %v756, %v1402
    %v1541 = vsub.f32 %v757, %v1404
    %v1542 = vsub.f32 %v758, %v1406
    %v1543 = vsub.f32 %v759, %v1408
    %v1544 = vsub.f32 %v760, %v1410
    %v1545 = vsub.f32 %v761, %v1412
    %v1546 = vsub.f32 %v762, %v1414
    %v1547 = vsub.f32 %v763, %v1416
    %v1548 = vsub.f32 %v764, %v1418
    %v1549 = vsub.f32 %v765, %v1420
    %v1550 = vsub.f32 %v766, %v1422
    %v1551 = vsub.f32 %v767, %v1424
    %v1552 = vsub.f32 %v768, %v1426
    %v1553 = vsub.f32 %v769, %v1428
    %v1554 = vsub.f32 %v770, %v1430
    %v1555 = vsub.f32 %v771, %v1432
    %v1556 = vsub.f32 %v772, %v1434
    %v1557 = vsub.f32 %v773, %v1436
    %v1558 = vsub.f32 %v774, %v1438
    %v1559 = vsub.f32 %v775, %v1440
    %v1560 = vsub.f32 %v776, %v1442
    %v1561 = vsub.f32 %v777, %v1444
    %v1562 = vsub.f32 %v778, %v1446
    %v1563 = vsub.f32 %v779, %v1448
    %v1564 = vsub.f32 %v780, %v1450
    %v1565 = vsub.f32 %v781, %v1452
    %v1566 = vsub.f32 %v782, %v1454
    %v1567 = vsub.f32 %v783, %v1456
    %v1568 = vsub.f32 %v784, %v1458
    %v1569 = vsub.f32 %v785, %v1460
    %v1570 = vsub.f32 %v786, %v1462
    %v1571 = vsub.f32 %v787, %v1464
    %v1572 = vsub.f32 %v788, %v1466
    %v1573 = vsub.f32 %v789, %v1468
    %v1574 = vsub.f32 %v790, %v1470
    %v1575 = vsub.f32 %v791, %v1472
    %v1576 = vsub.f32 %v792, %v1474
    %v1577 = vsub.f32 %v793, %v1476
    %v1578 = vsub.f32 %v794, %v1478
    %v1579 = vsub.f32 %v795, %v1480
    %v1580 = vsub.f32 %v796, %v1482
    %v1581 = vsel %vm404, %v306, -inf
    %1582 = vmax.xlane.f32.xlu0 %v1581
    %v1583 = vpop.xlane.xlu0 %1582
    %v1584 = vsel %vm404, %v307, -inf
    %1585 = vmax.xlane.f32.xlu0 %v1584
    %v1586 = vpop.xlane.xlu0 %1585
    %v1587 = vsel %vm404, %v308, -inf
    %1588 = vmax.xlane.f32.xlu0 %v1587
    %v1589 = vpop.xlane.xlu0 %1588
    %v1590 = vsel %vm404, %v309, -inf
    %1591 = vmax.xlane.f32.xlu0 %v1590
    %v1592 = vpop.xlane.xlu0 %1591
    %v1593 = vsel %vm404, %v310, -inf
    %1594 = vmax.xlane.f32.xlu0 %v1593
    %v1595 = vpop.xlane.xlu0 %1594
    %v1596 = vsel %vm404, %v311, -inf
    %1597 = vmax.xlane.f32.xlu0 %v1596
    %v1598 = vpop.xlane.xlu0 %1597
    %v1599 = vsel %vm404, %v312, -inf
    %1600 = vmax.xlane.f32.xlu0 %v1599
    %v1601 = vpop.xlane.xlu0 %1600
    %v1602 = vsel %vm404, %v313, -inf
    %1603 = vmax.xlane.f32.xlu0 %v1602
    %v1604 = vpop.xlane.xlu0 %1603
    %v1605 = vsel %vm404, %v314, -inf
    %1606 = vmax.xlane.f32.xlu0 %v1605
    %v1607 = vpop.xlane.xlu0 %1606
    %v1608 = vsel %vm404, %v315, -inf
    %1609 = vmax.xlane.f32.xlu0 %v1608
    %v1610 = vpop.xlane.xlu0 %1609
    %v1611 = vsel %vm404, %v316, -inf
    %1612 = vmax.xlane.f32.xlu0 %v1611
    %v1613 = vpop.xlane.xlu0 %1612
    %v1614 = vsel %vm404, %v317, -inf
    %1615 = vmax.xlane.f32.xlu0 %v1614
    %v1616 = vpop.xlane.xlu0 %1615
    %v1617 = vsel %vm404, %v318, -inf
    %1618 = vmax.xlane.f32.xlu0 %v1617
    %v1619 = vpop.xlane.xlu0 %1618
    %v1620 = vsel %vm404, %v319, -inf
    %1621 = vmax.xlane.f32.xlu0 %v1620
    %v1622 = vpop.xlane.xlu0 %1621
    %v1623 = vsel %vm404, %v320, -inf
    %1624 = vmax.xlane.f32.xlu0 %v1623
    %v1625 = vpop.xlane.xlu0 %1624
    %v1626 = vsel %vm404, %v321, -inf
    %1627 = vmax.xlane.f32.xlu0 %v1626
    %v1628 = vpop.xlane.xlu0 %1627
    %v1629 = vsel %vm404, %v322, -inf
    %1630 = vmax.xlane.f32.xlu0 %v1629
    %v1631 = vpop.xlane.xlu0 %1630
    %v1632 = vsel %vm404, %v323, -inf
    %1633 = vmax.xlane.f32.xlu0 %v1632
    %v1634 = vpop.xlane.xlu0 %1633
    %v1635 = vsel %vm404, %v324, -inf
    %1636 = vmax.xlane.f32.xlu0 %v1635
    %v1637 = vpop.xlane.xlu0 %1636
    %v1638 = vsel %vm404, %v325, -inf
    %1639 = vmax.xlane.f32.xlu0 %v1638
    %v1640 = vpop.xlane.xlu0 %1639
    %v1641 = vsel %vm404, %v326, -inf
    %1642 = vmax.xlane.f32.xlu0 %v1641
    %v1643 = vpop.xlane.xlu0 %1642
    %v1644 = vsel %vm404, %v327, -inf
    %1645 = vmax.xlane.f32.xlu0 %v1644
    %v1646 = vpop.xlane.xlu0 %1645
    %v1647 = vsel %vm404, %v328, -inf
    %1648 = vmax.xlane.f32.xlu0 %v1647
    %v1649 = vpop.xlane.xlu0 %1648
    %v1650 = vsel %vm404, %v329, -inf
    %1651 = vmax.xlane.f32.xlu0 %v1650
    %v1652 = vpop.xlane.xlu0 %1651
    %v1653 = vsel %vm404, %v330, -inf
    %1654 = vmax.xlane.f32.xlu0 %v1653
    %v1655 = vpop.xlane.xlu0 %1654
    %v1656 = vsel %vm404, %v331, -inf
    %1657 = vmax.xlane.f32.xlu0 %v1656
    %v1658 = vpop.xlane.xlu0 %1657
    %v1659 = vsel %vm404, %v332, -inf
    %1660 = vmax.xlane.f32.xlu0 %v1659
    %v1661 = vpop.xlane.xlu0 %1660
    %v1662 = vsel %vm404, %v333, -inf
    %1663 = vmax.xlane.f32.xlu0 %v1662
    %v1664 = vpop.xlane.xlu0 %1663
    %v1665 = vsel %vm404, %v334, -inf
    %1666 = vmax.xlane.f32.xlu0 %v1665
    %v1667 = vpop.xlane.xlu0 %1666
    %v1668 = vsel %vm404, %v335, -inf
    %1669 = vmax.xlane.f32.xlu0 %v1668
    %v1670 = vpop.xlane.xlu0 %1669
    %v1671 = vsel %vm404, %v336, -inf
    %1672 = vmax.xlane.f32.xlu0 %v1671
    %v1673 = vpop.xlane.xlu0 %1672
    %v1674 = vsel %vm404, %v337, -inf
    %1675 = vmax.xlane.f32.xlu0 %v1674
    %v1676 = vpop.xlane.xlu0 %1675
    %v1677 = vsel %vm404, %v338, -inf
    %1678 = vmax.xlane.f32.xlu0 %v1677
    %v1679 = vpop.xlane.xlu0 %1678
    %v1680 = vsel %vm404, %v339, -inf
    %1681 = vmax.xlane.f32.xlu0 %v1680
    %v1682 = vpop.xlane.xlu0 %1681
    %v1683 = vsel %vm404, %v340, -inf
    %1684 = vmax.xlane.f32.xlu0 %v1683
    %v1685 = vpop.xlane.xlu0 %1684
    %v1686 = vsel %vm404, %v341, -inf
    %1687 = vmax.xlane.f32.xlu0 %v1686
    %v1688 = vpop.xlane.xlu0 %1687
    %v1689 = vsel %vm404, %v342, -inf
    %1690 = vmax.xlane.f32.xlu0 %v1689
    %v1691 = vpop.xlane.xlu0 %1690
    %v1692 = vsel %vm404, %v343, -inf
    %1693 = vmax.xlane.f32.xlu0 %v1692
    %v1694 = vpop.xlane.xlu0 %1693
    %v1695 = vsel %vm404, %v344, -inf
    %1696 = vmax.xlane.f32.xlu0 %v1695
    %v1697 = vpop.xlane.xlu0 %1696
    %v1698 = vsel %vm404, %v345, -inf
    %1699 = vmax.xlane.f32.xlu0 %v1698
    %v1700 = vpop.xlane.xlu0 %1699
    %v1701 = vsel %vm404, %v346, -inf
    %1702 = vmax.xlane.f32.xlu0 %v1701
    %v1703 = vpop.xlane.xlu0 %1702
    %v1704 = vsel %vm404, %v347, -inf
    %1705 = vmax.xlane.f32.xlu0 %v1704
    %v1706 = vpop.xlane.xlu0 %1705
    %v1707 = vsel %vm404, %v348, -inf
    %1708 = vmax.xlane.f32.xlu0 %v1707
    %v1709 = vpop.xlane.xlu0 %1708
    %v1710 = vsel %vm404, %v349, -inf
    %1711 = vmax.xlane.f32.xlu0 %v1710
    %v1712 = vpop.xlane.xlu0 %1711
    %v1713 = vsel %vm404, %v350, -inf
    %1714 = vmax.xlane.f32.xlu0 %v1713
    %v1715 = vpop.xlane.xlu0 %1714
    %v1716 = vsel %vm404, %v351, -inf
    %1717 = vmax.xlane.f32.xlu0 %v1716
    %v1718 = vpop.xlane.xlu0 %1717
    %v1719 = vsel %vm404, %v352, -inf
    %1720 = vmax.xlane.f32.xlu0 %v1719
    %v1721 = vpop.xlane.xlu0 %1720
    %v1722 = vsel %vm404, %v353, -inf
    %1723 = vmax.xlane.f32.xlu0 %v1722
    %v1724 = vpop.xlane.xlu0 %1723
    %v1725 = vsel %vm404, %v354, -inf
    %1726 = vmax.xlane.f32.xlu0 %v1725
    %v1727 = vpop.xlane.xlu0 %1726
    %v1728 = vsel %vm404, %v355, -inf
    %1729 = vmax.xlane.f32.xlu0 %v1728
    %v1730 = vpop.xlane.xlu0 %1729
    %v1731 = vsel %vm404, %v356, -inf
    %1732 = vmax.xlane.f32.xlu0 %v1731
    %v1733 = vpop.xlane.xlu0 %1732
    %v1734 = vsel %vm404, %v357, -inf
    %1735 = vmax.xlane.f32.xlu0 %v1734
    %v1736 = vpop.xlane.xlu0 %1735
    %v1737 = vsel %vm404, %v358, -inf
    %1738 = vmax.xlane.f32.xlu0 %v1737
    %v1739 = vpop.xlane.xlu0 %1738
    %v1740 = vsel %vm404, %v359, -inf
    %1741 = vmax.xlane.f32.xlu0 %v1740
    %v1742 = vpop.xlane.xlu0 %1741
    %v1743 = vsel %vm404, %v360, -inf
    %1744 = vmax.xlane.f32.xlu0 %v1743
    %v1745 = vpop.xlane.xlu0 %1744
    %v1746 = vsel %vm404, %v361, -inf
    %1747 = vmax.xlane.f32.xlu0 %v1746
    %v1748 = vpop.xlane.xlu0 %1747
    %v1749 = vsel %vm404, %v362, -inf
    %1750 = vmax.xlane.f32.xlu0 %v1749
    %v1751 = vpop.xlane.xlu0 %1750
    %v1752 = vsel %vm404, %v363, -inf
    %1753 = vmax.xlane.f32.xlu0 %v1752
    %v1754 = vpop.xlane.xlu0 %1753
    %v1755 = vsel %vm404, %v364, -inf
    %1756 = vmax.xlane.f32.xlu0 %v1755
    %v1757 = vpop.xlane.xlu0 %1756
    %v1758 = vsel %vm404, %v365, -inf
    %1759 = vmax.xlane.f32.xlu0 %v1758
    %v1760 = vpop.xlane.xlu0 %1759
    %v1761 = vsel %vm404, %v366, -inf
    %1762 = vmax.xlane.f32.xlu0 %v1761
    %v1763 = vpop.xlane.xlu0 %1762
    %v1764 = vsel %vm404, %v367, -inf
    %1765 = vmax.xlane.f32.xlu0 %v1764
    %v1766 = vpop.xlane.xlu0 %1765
    %v1767 = vsel %vm404, %v368, -inf
    %1768 = vmax.xlane.f32.xlu0 %v1767
    %v1769 = vpop.xlane.xlu0 %1768
    %v1770 = vsel %vm404, %v369, -inf
    %1771 = vmax.xlane.f32.xlu0 %v1770
    %v1772 = vpop.xlane.xlu0 %1771
    %v1773 = vsel %vm404, %v370, -inf
    %1774 = vmax.xlane.f32.xlu0 %v1773
    %v1775 = vpop.xlane.xlu0 %1774
    %v1776 = vsel %vm404, %v371, -inf
    %1777 = vmax.xlane.f32.xlu0 %v1776
    %v1778 = vpop.xlane.xlu0 %1777
    %v1779 = vsel %vm404, %v372, -inf
    %1780 = vmax.xlane.f32.xlu0 %v1779
    %v1781 = vpop.xlane.xlu0 %1780
    %v1782 = vsel %vm404, %v373, -inf
    %1783 = vmax.xlane.f32.xlu0 %v1782
    %v1784 = vpop.xlane.xlu0 %1783
    %v1785 = vsel %vm404, %v374, -inf
    %1786 = vmax.xlane.f32.xlu0 %v1785
    %v1787 = vpop.xlane.xlu0 %1786
    %v1788 = vsel %vm404, %v375, -inf
    %1789 = vmax.xlane.f32.xlu0 %v1788
    %v1790 = vpop.xlane.xlu0 %1789
    %v1791 = vsel %vm404, %v376, -inf
    %1792 = vmax.xlane.f32.xlu0 %v1791
    %v1793 = vpop.xlane.xlu0 %1792
    %v1794 = vsel %vm404, %v377, -inf
    %1795 = vmax.xlane.f32.xlu0 %v1794
    %v1796 = vpop.xlane.xlu0 %1795
    %v1797 = vsel %vm404, %v378, -inf
    %1798 = vmax.xlane.f32.xlu0 %v1797
    %v1799 = vpop.xlane.xlu0 %1798
    %v1800 = vsel %vm404, %v379, -inf
    %1801 = vmax.xlane.f32.xlu0 %v1800
    %v1802 = vpop.xlane.xlu0 %1801
    %v1803 = vsel %vm404, %v380, -inf
    %1804 = vmax.xlane.f32.xlu0 %v1803
    %v1805 = vpop.xlane.xlu0 %1804
    %v1806 = vsel %vm404, %v381, -inf
    %1807 = vmax.xlane.f32.xlu0 %v1806
    %v1808 = vpop.xlane.xlu0 %1807
    %v1809 = vsel %vm404, %v382, -inf
    %1810 = vmax.xlane.f32.xlu0 %v1809
    %v1811 = vpop.xlane.xlu0 %1810
    %v1812 = vsel %vm404, %v383, -inf
    %1813 = vmax.xlane.f32.xlu0 %v1812
    %v1814 = vpop.xlane.xlu0 %1813
    %v1815 = vsel %vm404, %v384, -inf
    %1816 = vmax.xlane.f32.xlu0 %v1815
    %v1817 = vpop.xlane.xlu0 %1816
    %v1818 = vsel %vm404, %v385, -inf
    %1819 = vmax.xlane.f32.xlu0 %v1818
    %v1820 = vpop.xlane.xlu0 %1819
    %v1821 = vsel %vm404, %v386, -inf
    %1822 = vmax.xlane.f32.xlu0 %v1821
    %v1823 = vpop.xlane.xlu0 %1822
    %v1824 = vsel %vm404, %v387, -inf
    %1825 = vmax.xlane.f32.xlu0 %v1824
    %v1826 = vpop.xlane.xlu0 %1825
    %v1827 = vsel %vm404, %v388, -inf
    %1828 = vmax.xlane.f32.xlu0 %v1827
    %v1829 = vpop.xlane.xlu0 %1828
    %v1830 = vsel %vm404, %v389, -inf
    %1831 = vmax.xlane.f32.xlu0 %v1830
    %v1832 = vpop.xlane.xlu0 %1831
    %v1833 = vsel %vm404, %v390, -inf
    %1834 = vmax.xlane.f32.xlu0 %v1833
    %v1835 = vpop.xlane.xlu0 %1834
    %v1836 = vsel %vm404, %v391, -inf
    %1837 = vmax.xlane.f32.xlu0 %v1836
    %v1838 = vpop.xlane.xlu0 %1837
    %v1839 = vsel %vm404, %v392, -inf
    %1840 = vmax.xlane.f32.xlu0 %v1839
    %v1841 = vpop.xlane.xlu0 %1840
    %v1842 = vsel %vm404, %v393, -inf
    %1843 = vmax.xlane.f32.xlu0 %v1842
    %v1844 = vpop.xlane.xlu0 %1843
    %v1845 = vsel %vm404, %v394, -inf
    %1846 = vmax.xlane.f32.xlu0 %v1845
    %v1847 = vpop.xlane.xlu0 %1846
    %v1848 = vsel %vm404, %v395, -inf
    %1849 = vmax.xlane.f32.xlu0 %v1848
    %v1850 = vpop.xlane.xlu0 %1849
    %v1851 = vsel %vm404, %v396, -inf
    %1852 = vmax.xlane.f32.xlu0 %v1851
    %v1853 = vpop.xlane.xlu0 %1852
    %v1854 = vsel %vm404, %v397, -inf
    %1855 = vmax.xlane.f32.xlu0 %v1854
    %v1856 = vpop.xlane.xlu0 %1855
    %v1857 = vsel %vm404, %v398, -inf
    %1858 = vmax.xlane.f32.xlu0 %v1857
    %v1859 = vpop.xlane.xlu0 %1858
    %v1860 = vsel %vm404, %v399, -inf
    %1861 = vmax.xlane.f32.xlu0 %v1860
    %v1862 = vpop.xlane.xlu0 %1861
    %v1863 = vsel %vm404, %v400, -inf
    %1864 = vmax.xlane.f32.xlu0 %v1863
    %v1865 = vpop.xlane.xlu0 %1864
    %v1866 = vsel %vm404, %v401, -inf
    %1867 = vmax.xlane.f32.xlu0 %v1866
    %v1868 = vpop.xlane.xlu0 %1867
    %v1869 = vsel %vm404, %v402, -inf
    %1870 = vmax.xlane.f32.xlu0 %v1869
    %v1871 = vpop.xlane.xlu0 %1870
    %v1872 = vsel %vm404, %v403, -inf
    %1873 = vmax.xlane.f32.xlu0 %v1872
    %v1874 = vpop.xlane.xlu0 %1873
    %v1875 = vsub.f32 %v306, %v1583
    %v1876 = vsub.f32 %v307, %v1586
    %v1877 = vsub.f32 %v308, %v1589
    %v1878 = vsub.f32 %v309, %v1592
    %v1879 = vsub.f32 %v310, %v1595
    %v1880 = vsub.f32 %v311, %v1598
    %v1881 = vsub.f32 %v312, %v1601
    %v1882 = vsub.f32 %v313, %v1604
    %v1883 = vsub.f32 %v314, %v1607
    %v1884 = vsub.f32 %v315, %v1610
    %v1885 = vsub.f32 %v316, %v1613
    %v1886 = vsub.f32 %v317, %v1616
    %v1887 = vsub.f32 %v318, %v1619
    %v1888 = vsub.f32 %v319, %v1622
    %v1889 = vsub.f32 %v320, %v1625
    %v1890 = vsub.f32 %v321, %v1628
    %v1891 = vsub.f32 %v322, %v1631
    %v1892 = vsub.f32 %v323, %v1634
    %v1893 = vsub.f32 %v324, %v1637
    %v1894 = vsub.f32 %v325, %v1640
    %v1895 = vsub.f32 %v326, %v1643
    %v1896 = vsub.f32 %v327, %v1646
    %v1897 = vsub.f32 %v328, %v1649
    %v1898 = vsub.f32 %v329, %v1652
    %v1899 = vsub.f32 %v330, %v1655
    %v1900 = vsub.f32 %v331, %v1658
    %v1901 = vsub.f32 %v332, %v1661
    %v1902 = vsub.f32 %v333, %v1664
    %v1903 = vsub.f32 %v334, %v1667
    %v1904 = vsub.f32 %v335, %v1670
    %v1905 = vsub.f32 %v336, %v1673
    %v1906 = vsub.f32 %v337, %v1676
    %v1907 = vsub.f32 %v338, %v1679
    %v1908 = vsub.f32 %v339, %v1682
    %v1909 = vsub.f32 %v340, %v1685
    %v1910 = vsub.f32 %v341, %v1688
    %v1911 = vsub.f32 %v342, %v1691
    %v1912 = vsub.f32 %v343, %v1694
    %v1913 = vsub.f32 %v344, %v1697
    %v1914 = vsub.f32 %v345, %v1700
    %v1915 = vsub.f32 %v346, %v1703
    %v1916 = vsub.f32 %v347, %v1706
    %v1917 = vsub.f32 %v348, %v1709
    %v1918 = vsub.f32 %v349, %v1712
    %v1919 = vsub.f32 %v350, %v1715
    %v1920 = vsub.f32 %v351, %v1718
    %v1921 = vsub.f32 %v352, %v1721
    %v1922 = vsub.f32 %v353, %v1724
    %v1923 = vsub.f32 %v354, %v1727
    %v1924 = vsub.f32 %v355, %v1730
    %v1925 = vsub.f32 %v356, %v1733
    %v1926 = vsub.f32 %v357, %v1736
    %v1927 = vsub.f32 %v358, %v1739
    %v1928 = vsub.f32 %v359, %v1742
    %v1929 = vsub.f32 %v360, %v1745
    %v1930 = vsub.f32 %v361, %v1748
    %v1931 = vsub.f32 %v362, %v1751
    %v1932 = vsub.f32 %v363, %v1754
    %v1933 = vsub.f32 %v364, %v1757
    %v1934 = vsub.f32 %v365, %v1760
    %v1935 = vsub.f32 %v366, %v1763
    %v1936 = vsub.f32 %v367, %v1766
    %v1937 = vsub.f32 %v368, %v1769
    %v1938 = vsub.f32 %v369, %v1772
    %v1939 = vsub.f32 %v370, %v1775
    %v1940 = vsub.f32 %v371, %v1778
    %v1941 = vsub.f32 %v372, %v1781
    %v1942 = vsub.f32 %v373, %v1784
    %v1943 = vsub.f32 %v374, %v1787
    %v1944 = vsub.f32 %v375, %v1790
    %v1945 = vsub.f32 %v376, %v1793
    %v1946 = vsub.f32 %v377, %v1796
    %v1947 = vsub.f32 %v378, %v1799
    %v1948 = vsub.f32 %v379, %v1802
    %v1949 = vsub.f32 %v380, %v1805
    %v1950 = vsub.f32 %v381, %v1808
    %v1951 = vsub.f32 %v382, %v1811
    %v1952 = vsub.f32 %v383, %v1814
    %v1953 = vsub.f32 %v384, %v1817
    %v1954 = vsub.f32 %v385, %v1820
    %v1955 = vsub.f32 %v386, %v1823
    %v1956 = vsub.f32 %v387, %v1826
    %v1957 = vsub.f32 %v388, %v1829
    %v1958 = vsub.f32 %v389, %v1832
    %v1959 = vsub.f32 %v390, %v1835
    %v1960 = vsub.f32 %v391, %v1838
    %v1961 = vsub.f32 %v392, %v1841
    %v1962 = vsub.f32 %v393, %v1844
    %v1963 = vsub.f32 %v394, %v1847
    %v1964 = vsub.f32 %v395, %v1850
    %v1965 = vsub.f32 %v396, %v1853
    %v1966 = vsub.f32 %v397, %v1856
    %v1967 = vsub.f32 %v398, %v1859
    %v1968 = vsub.f32 %v399, %v1862
    %v1969 = vsub.f32 %v400, %v1865
    %v1970 = vsub.f32 %v401, %v1868
    %v1971 = vsub.f32 %v402, %v1871
    %v1972 = vsub.f32 %v403, %v1874
    %v1973 = vmul.f32 %v1875, 1.442695
    %v1974 = vpow.pop %v1973
    %v1975 = vmul.f32 %v1876, 1.442695
    %v1976 = vpow.pop %v1975
    %v1977 = vmul.f32 %v1877, 1.442695
    %v1978 = vpow.pop %v1977
    %v1979 = vmul.f32 %v1878, 1.442695
    %v1980 = vpow.pop %v1979
    %v1981 = vmul.f32 %v1879, 1.442695
    %v1982 = vpow.pop %v1981
    %v1983 = vmul.f32 %v1880, 1.442695
    %v1984 = vpow.pop %v1983
    %v1985 = vmul.f32 %v1881, 1.442695
    %v1986 = vpow.pop %v1985
    %v1987 = vmul.f32 %v1882, 1.442695
    %v1988 = vpow.pop %v1987
    %v1989 = vmul.f32 %v1883, 1.442695
    %v1990 = vpow.pop %v1989
    %v1991 = vmul.f32 %v1884, 1.442695
    %v1992 = vpow.pop %v1991
    %v1993 = vmul.f32 %v1885, 1.442695
    %v1994 = vpow.pop %v1993
    %v1995 = vmul.f32 %v1886, 1.442695
    %v1996 = vpow.pop %v1995
    %v1997 = vmul.f32 %v1887, 1.442695
    %v1998 = vpow.pop %v1997
    %v1999 = vmul.f32 %v1888, 1.442695
    %v2000 = vpow.pop %v1999
    %v2001 = vmul.f32 %v1889, 1.442695
    %v2002 = vpow.pop %v2001
    %v2003 = vmul.f32 %v1890, 1.442695
    %v2004 = vpow.pop %v2003
    %v2005 = vmul.f32 %v1891, 1.442695
    %v2006 = vpow.pop %v2005
    %v2007 = vmul.f32 %v1892, 1.442695
    %v2008 = vpow.pop %v2007
    %v2009 = vmul.f32 %v1893, 1.442695
    %v2010 = vpow.pop %v2009
    %v2011 = vmul.f32 %v1894, 1.442695
    %v2012 = vpow.pop %v2011
    %v2013 = vmul.f32 %v1895, 1.442695
    %v2014 = vpow.pop %v2013
    %v2015 = vmul.f32 %v1896, 1.442695
    %v2016 = vpow.pop %v2015
    %v2017 = vmul.f32 %v1897, 1.442695
    %v2018 = vpow.pop %v2017
    %v2019 = vmul.f32 %v1898, 1.442695
    %v2020 = vpow.pop %v2019
    %v2021 = vmul.f32 %v1899, 1.442695
    %v2022 = vpow.pop %v2021
    %v2023 = vmul.f32 %v1900, 1.442695
    %v2024 = vpow.pop %v2023
    %v2025 = vmul.f32 %v1901, 1.442695
    %v2026 = vpow.pop %v2025
    %v2027 = vmul.f32 %v1902, 1.442695
    %v2028 = vpow.pop %v2027
    %v2029 = vmul.f32 %v1903, 1.442695
    %v2030 = vpow.pop %v2029
    %v2031 = vmul.f32 %v1904, 1.442695
    %v2032 = vpow.pop %v2031
    %v2033 = vmul.f32 %v1905, 1.442695
    %v2034 = vpow.pop %v2033
    %v2035 = vmul.f32 %v1906, 1.442695
    %v2036 = vpow.pop %v2035
    %v2037 = vmul.f32 %v1907, 1.442695
    %v2038 = vpow.pop %v2037
    %v2039 = vmul.f32 %v1908, 1.442695
    %v2040 = vpow.pop %v2039
    %v2041 = vmul.f32 %v1909, 1.442695
    %v2042 = vpow.pop %v2041
    %v2043 = vmul.f32 %v1910, 1.442695
    %v2044 = vpow.pop %v2043
    %v2045 = vmul.f32 %v1911, 1.442695
    %v2046 = vpow.pop %v2045
    %v2047 = vmul.f32 %v1912, 1.442695
    %v2048 = vpow.pop %v2047
    %v2049 = vmul.f32 %v1913, 1.442695
    %v2050 = vpow.pop %v2049
    %v2051 = vmul.f32 %v1914, 1.442695
    %v2052 = vpow.pop %v2051
    %v2053 = vmul.f32 %v1915, 1.442695
    %v2054 = vpow.pop %v2053
    %v2055 = vmul.f32 %v1916, 1.442695
    %v2056 = vpow.pop %v2055
    %v2057 = vmul.f32 %v1917, 1.442695
    %v2058 = vpow.pop %v2057
    %v2059 = vmul.f32 %v1918, 1.442695
    %v2060 = vpow.pop %v2059
    %v2061 = vmul.f32 %v1919, 1.442695
    %v2062 = vpow.pop %v2061
    %v2063 = vmul.f32 %v1920, 1.442695
    %v2064 = vpow.pop %v2063
    %v2065 = vmul.f32 %v1921, 1.442695
    %v2066 = vpow.pop %v2065
    %v2067 = vmul.f32 %v1922, 1.442695
    %v2068 = vpow.pop %v2067
    %v2069 = vmul.f32 %v1923, 1.442695
    %v2070 = vpow.pop %v2069
    %v2071 = vmul.f32 %v1924, 1.442695
    %v2072 = vpow.pop %v2071
    %v2073 = vmul.f32 %v1925, 1.442695
    %v2074 = vpow.pop %v2073
    %v2075 = vmul.f32 %v1926, 1.442695
    %v2076 = vpow.pop %v2075
    %v2077 = vmul.f32 %v1927, 1.442695
    %v2078 = vpow.pop %v2077
    %v2079 = vmul.f32 %v1928, 1.442695
    %v2080 = vpow.pop %v2079
    %v2081 = vmul.f32 %v1929, 1.442695
    %v2082 = vpow.pop %v2081
    %v2083 = vmul.f32 %v1930, 1.442695
    %v2084 = vpow.pop %v2083
    %v2085 = vmul.f32 %v1931, 1.442695
    %v2086 = vpow.pop %v2085
    %v2087 = vmul.f32 %v1932, 1.442695
    %v2088 = vpow.pop %v2087
    %v2089 = vmul.f32 %v1933, 1.442695
    %v2090 = vpow.pop %v2089
    %v2091 = vmul.f32 %v1934, 1.442695
    %v2092 = vpow.pop %v2091
    %v2093 = vmul.f32 %v1935, 1.442695
    %v2094 = vpow.pop %v2093
    %v2095 = vmul.f32 %v1936, 1.442695
    %v2096 = vpow.pop %v2095
    %v2097 = vmul.f32 %v1937, 1.442695
    %v2098 = vpow.pop %v2097
    %v2099 = vmul.f32 %v1938, 1.442695
    %v2100 = vpow.pop %v2099
    %v2101 = vmul.f32 %v1939, 1.442695
    %v2102 = vpow.pop %v2101
    %v2103 = vmul.f32 %v1940, 1.442695
    %v2104 = vpow.pop %v2103
    %v2105 = vmul.f32 %v1941, 1.442695
    %v2106 = vpow.pop %v2105
    %v2107 = vmul.f32 %v1942, 1.442695
    %v2108 = vpow.pop %v2107
    %v2109 = vmul.f32 %v1943, 1.442695
    %v2110 = vpow.pop %v2109
    %v2111 = vmul.f32 %v1944, 1.442695
    %v2112 = vpow.pop %v2111
    %v2113 = vmul.f32 %v1945, 1.442695
    %v2114 = vpow.pop %v2113
    %v2115 = vmul.f32 %v1946, 1.442695
    %v2116 = vpow.pop %v2115
    %v2117 = vmul.f32 %v1947, 1.442695
    %v2118 = vpow.pop %v2117
    %v2119 = vmul.f32 %v1948, 1.442695
    %v2120 = vpow.pop %v2119
    %v2121 = vmul.f32 %v1949, 1.442695
    %v2122 = vpow.pop %v2121
    %v2123 = vmul.f32 %v1950, 1.442695
    %v2124 = vpow.pop %v2123
    %v2125 = vmul.f32 %v1951, 1.442695
    %v2126 = vpow.pop %v2125
    %v2127 = vmul.f32 %v1952, 1.442695
    %v2128 = vpow.pop %v2127
    %v2129 = vmul.f32 %v1953, 1.442695
    %v2130 = vpow.pop %v2129
    %v2131 = vmul.f32 %v1954, 1.442695
    %v2132 = vpow.pop %v2131
    %v2133 = vmul.f32 %v1955, 1.442695
    %v2134 = vpow.pop %v2133
    %v2135 = vmul.f32 %v1956, 1.442695
    %v2136 = vpow.pop %v2135
    %v2137 = vmul.f32 %v1957, 1.442695
    %v2138 = vpow.pop %v2137
    %v2139 = vmul.f32 %v1958, 1.442695
    %v2140 = vpow.pop %v2139
    %v2141 = vmul.f32 %v1959, 1.442695
    %v2142 = vpow.pop %v2141
    %v2143 = vmul.f32 %v1960, 1.442695
    %v2144 = vpow.pop %v2143
    %v2145 = vmul.f32 %v1961, 1.442695
    %v2146 = vpow.pop %v2145
    %v2147 = vmul.f32 %v1962, 1.442695
    %v2148 = vpow.pop %v2147
    %v2149 = vmul.f32 %v1963, 1.442695
    %v2150 = vpow.pop %v2149
    %v2151 = vmul.f32 %v1964, 1.442695
    %v2152 = vpow.pop %v2151
    %v2153 = vmul.f32 %v1965, 1.442695
    %v2154 = vpow.pop %v2153
    %v2155 = vmul.f32 %v1966, 1.442695
    %v2156 = vpow.pop %v2155
    %v2157 = vmul.f32 %v1967, 1.442695
    %v2158 = vpow.pop %v2157
    %v2159 = vmul.f32 %v1968, 1.442695
    %v2160 = vpow.pop %v2159
    %v2161 = vmul.f32 %v1969, 1.442695
    %v2162 = vpow.pop %v2161
    %v2163 = vmul.f32 %v1970, 1.442695
    %v2164 = vpow.pop %v2163
    %v2165 = vmul.f32 %v1971, 1.442695
    %v2166 = vpow.pop %v2165
    %v2167 = vmul.f32 %v1972, 1.442695
    %v2168 = vpow.pop %v2167
    %v2169 = vsel %vm404, %v1974, 0.0
    %2170 = vadd.xlane.f32.xlu0 %v2169
    %v2171 = vpop.xlane.xlu0 %2170
    %v2172 = vsel %vm404, %v1976, 0.0
    %2173 = vadd.xlane.f32.xlu0 %v2172
    %v2174 = vpop.xlane.xlu0 %2173
    %v2175 = vsel %vm404, %v1978, 0.0
    %2176 = vadd.xlane.f32.xlu0 %v2175
    %v2177 = vpop.xlane.xlu0 %2176
    %v2178 = vsel %vm404, %v1980, 0.0
    %2179 = vadd.xlane.f32.xlu0 %v2178
    %v2180 = vpop.xlane.xlu0 %2179
    %v2181 = vsel %vm404, %v1982, 0.0
    %2182 = vadd.xlane.f32.xlu0 %v2181
    %v2183 = vpop.xlane.xlu0 %2182
    %v2184 = vsel %vm404, %v1984, 0.0
    %2185 = vadd.xlane.f32.xlu0 %v2184
    %v2186 = vpop.xlane.xlu0 %2185
    %v2187 = vsel %vm404, %v1986, 0.0
    %2188 = vadd.xlane.f32.xlu0 %v2187
    %v2189 = vpop.xlane.xlu0 %2188
    %v2190 = vsel %vm404, %v1988, 0.0
    %2191 = vadd.xlane.f32.xlu0 %v2190
    %v2192 = vpop.xlane.xlu0 %2191
    %v2193 = vsel %vm404, %v1990, 0.0
    %2194 = vadd.xlane.f32.xlu0 %v2193
    %v2195 = vpop.xlane.xlu0 %2194
    %v2196 = vsel %vm404, %v1992, 0.0
    %2197 = vadd.xlane.f32.xlu0 %v2196
    %v2198 = vpop.xlane.xlu0 %2197
    %v2199 = vsel %vm404, %v1994, 0.0
    %2200 = vadd.xlane.f32.xlu0 %v2199
    %v2201 = vpop.xlane.xlu0 %2200
    %v2202 = vsel %vm404, %v1996, 0.0
    %2203 = vadd.xlane.f32.xlu0 %v2202
    %v2204 = vpop.xlane.xlu0 %2203
    %v2205 = vsel %vm404, %v1998, 0.0
    %2206 = vadd.xlane.f32.xlu0 %v2205
    %v2207 = vpop.xlane.xlu0 %2206
    %v2208 = vsel %vm404, %v2000, 0.0
    %2209 = vadd.xlane.f32.xlu0 %v2208
    %v2210 = vpop.xlane.xlu0 %2209
    %v2211 = vsel %vm404, %v2002, 0.0
    %2212 = vadd.xlane.f32.xlu0 %v2211
    %v2213 = vpop.xlane.xlu0 %2212
    %v2214 = vsel %vm404, %v2004, 0.0
    %2215 = vadd.xlane.f32.xlu0 %v2214
    %v2216 = vpop.xlane.xlu0 %2215
    %v2217 = vsel %vm404, %v2006, 0.0
    %2218 = vadd.xlane.f32.xlu0 %v2217
    %v2219 = vpop.xlane.xlu0 %2218
    %v2220 = vsel %vm404, %v2008, 0.0
    %2221 = vadd.xlane.f32.xlu0 %v2220
    %v2222 = vpop.xlane.xlu0 %2221
    %v2223 = vsel %vm404, %v2010, 0.0
    %2224 = vadd.xlane.f32.xlu0 %v2223
    %v2225 = vpop.xlane.xlu0 %2224
    %v2226 = vsel %vm404, %v2012, 0.0
    %2227 = vadd.xlane.f32.xlu0 %v2226
    %v2228 = vpop.xlane.xlu0 %2227
    %v2229 = vsel %vm404, %v2014, 0.0
    %2230 = vadd.xlane.f32.xlu0 %v2229
    %v2231 = vpop.xlane.xlu0 %2230
    %v2232 = vsel %vm404, %v2016, 0.0
    %2233 = vadd.xlane.f32.xlu0 %v2232
    %v2234 = vpop.xlane.xlu0 %2233
    %v2235 = vsel %vm404, %v2018, 0.0
    %2236 = vadd.xlane.f32.xlu0 %v2235
    %v2237 = vpop.xlane.xlu0 %2236
    %v2238 = vsel %vm404, %v2020, 0.0
    %2239 = vadd.xlane.f32.xlu0 %v2238
    %v2240 = vpop.xlane.xlu0 %2239
    %v2241 = vsel %vm404, %v2022, 0.0
    %2242 = vadd.xlane.f32.xlu0 %v2241
    %v2243 = vpop.xlane.xlu0 %2242
    %v2244 = vsel %vm404, %v2024, 0.0
    %2245 = vadd.xlane.f32.xlu0 %v2244
    %v2246 = vpop.xlane.xlu0 %2245
    %v2247 = vsel %vm404, %v2026, 0.0
    %2248 = vadd.xlane.f32.xlu0 %v2247
    %v2249 = vpop.xlane.xlu0 %2248
    %v2250 = vsel %vm404, %v2028, 0.0
    %2251 = vadd.xlane.f32.xlu0 %v2250
    %v2252 = vpop.xlane.xlu0 %2251
    %v2253 = vsel %vm404, %v2030, 0.0
    %2254 = vadd.xlane.f32.xlu0 %v2253
    %v2255 = vpop.xlane.xlu0 %2254
    %v2256 = vsel %vm404, %v2032, 0.0
    %2257 = vadd.xlane.f32.xlu0 %v2256
    %v2258 = vpop.xlane.xlu0 %2257
    %v2259 = vsel %vm404, %v2034, 0.0
    %2260 = vadd.xlane.f32.xlu0 %v2259
    %v2261 = vpop.xlane.xlu0 %2260
    %v2262 = vsel %vm404, %v2036, 0.0
    %2263 = vadd.xlane.f32.xlu0 %v2262
    %v2264 = vpop.xlane.xlu0 %2263
    %v2265 = vsel %vm404, %v2038, 0.0
    %2266 = vadd.xlane.f32.xlu0 %v2265
    %v2267 = vpop.xlane.xlu0 %2266
    %v2268 = vsel %vm404, %v2040, 0.0
    %2269 = vadd.xlane.f32.xlu0 %v2268
    %v2270 = vpop.xlane.xlu0 %2269
    %v2271 = vsel %vm404, %v2042, 0.0
    %2272 = vadd.xlane.f32.xlu0 %v2271
    %v2273 = vpop.xlane.xlu0 %2272
    %v2274 = vsel %vm404, %v2044, 0.0
    %2275 = vadd.xlane.f32.xlu0 %v2274
    %v2276 = vpop.xlane.xlu0 %2275
    %v2277 = vsel %vm404, %v2046, 0.0
    %2278 = vadd.xlane.f32.xlu0 %v2277
    %v2279 = vpop.xlane.xlu0 %2278
    %v2280 = vsel %vm404, %v2048, 0.0
    %2281 = vadd.xlane.f32.xlu0 %v2280
    %v2282 = vpop.xlane.xlu0 %2281
    %v2283 = vsel %vm404, %v2050, 0.0
    %2284 = vadd.xlane.f32.xlu0 %v2283
    %v2285 = vpop.xlane.xlu0 %2284
    %v2286 = vsel %vm404, %v2052, 0.0
    %2287 = vadd.xlane.f32.xlu0 %v2286
    %v2288 = vpop.xlane.xlu0 %2287
    %v2289 = vsel %vm404, %v2054, 0.0
    %2290 = vadd.xlane.f32.xlu0 %v2289
    %v2291 = vpop.xlane.xlu0 %2290
    %v2292 = vsel %vm404, %v2056, 0.0
    %2293 = vadd.xlane.f32.xlu0 %v2292
    %v2294 = vpop.xlane.xlu0 %2293
    %v2295 = vsel %vm404, %v2058, 0.0
    %2296 = vadd.xlane.f32.xlu0 %v2295
    %v2297 = vpop.xlane.xlu0 %2296
    %v2298 = vsel %vm404, %v2060, 0.0
    %2299 = vadd.xlane.f32.xlu0 %v2298
    %v2300 = vpop.xlane.xlu0 %2299
    %v2301 = vsel %vm404, %v2062, 0.0
    %2302 = vadd.xlane.f32.xlu0 %v2301
    %v2303 = vpop.xlane.xlu0 %2302
    %v2304 = vsel %vm404, %v2064, 0.0
    %2305 = vadd.xlane.f32.xlu0 %v2304
    %v2306 = vpop.xlane.xlu0 %2305
    %v2307 = vsel %vm404, %v2066, 0.0
    %2308 = vadd.xlane.f32.xlu0 %v2307
    %v2309 = vpop.xlane.xlu0 %2308
    %v2310 = vsel %vm404, %v2068, 0.0
    %2311 = vadd.xlane.f32.xlu0 %v2310
    %v2312 = vpop.xlane.xlu0 %2311
    %v2313 = vsel %vm404, %v2070, 0.0
    %2314 = vadd.xlane.f32.xlu0 %v2313
    %v2315 = vpop.xlane.xlu0 %2314
    %v2316 = vsel %vm404, %v2072, 0.0
    %2317 = vadd.xlane.f32.xlu0 %v2316
    %v2318 = vpop.xlane.xlu0 %2317
    %v2319 = vsel %vm404, %v2074, 0.0
    %2320 = vadd.xlane.f32.xlu0 %v2319
    %v2321 = vpop.xlane.xlu0 %2320
    %v2322 = vsel %vm404, %v2076, 0.0
    %2323 = vadd.xlane.f32.xlu0 %v2322
    %v2324 = vpop.xlane.xlu0 %2323
    %v2325 = vsel %vm404, %v2078, 0.0
    %2326 = vadd.xlane.f32.xlu0 %v2325
    %v2327 = vpop.xlane.xlu0 %2326
    %v2328 = vsel %vm404, %v2080, 0.0
    %2329 = vadd.xlane.f32.xlu0 %v2328
    %v2330 = vpop.xlane.xlu0 %2329
    %v2331 = vsel %vm404, %v2082, 0.0
    %2332 = vadd.xlane.f32.xlu0 %v2331
    %v2333 = vpop.xlane.xlu0 %2332
    %v2334 = vsel %vm404, %v2084, 0.0
    %2335 = vadd.xlane.f32.xlu0 %v2334
    %v2336 = vpop.xlane.xlu0 %2335
    %v2337 = vsel %vm404, %v2086, 0.0
    %2338 = vadd.xlane.f32.xlu0 %v2337
    %v2339 = vpop.xlane.xlu0 %2338
    %v2340 = vsel %vm404, %v2088, 0.0
    %2341 = vadd.xlane.f32.xlu0 %v2340
    %v2342 = vpop.xlane.xlu0 %2341
    %v2343 = vsel %vm404, %v2090, 0.0
    %2344 = vadd.xlane.f32.xlu0 %v2343
    %v2345 = vpop.xlane.xlu0 %2344
    %v2346 = vsel %vm404, %v2092, 0.0
    %2347 = vadd.xlane.f32.xlu0 %v2346
    %v2348 = vpop.xlane.xlu0 %2347
    %v2349 = vsel %vm404, %v2094, 0.0
    %2350 = vadd.xlane.f32.xlu0 %v2349
    %v2351 = vpop.xlane.xlu0 %2350
    %v2352 = vsel %vm404, %v2096, 0.0
    %2353 = vadd.xlane.f32.xlu0 %v2352
    %v2354 = vpop.xlane.xlu0 %2353
    %v2355 = vsel %vm404, %v2098, 0.0
    %2356 = vadd.xlane.f32.xlu0 %v2355
    %v2357 = vpop.xlane.xlu0 %2356
    %v2358 = vsel %vm404, %v2100, 0.0
    %2359 = vadd.xlane.f32.xlu0 %v2358
    %v2360 = vpop.xlane.xlu0 %2359
    %v2361 = vsel %vm404, %v2102, 0.0
    %2362 = vadd.xlane.f32.xlu0 %v2361
    %v2363 = vpop.xlane.xlu0 %2362
    %v2364 = vsel %vm404, %v2104, 0.0
    %2365 = vadd.xlane.f32.xlu0 %v2364
    %v2366 = vpop.xlane.xlu0 %2365
    %v2367 = vsel %vm404, %v2106, 0.0
    %2368 = vadd.xlane.f32.xlu0 %v2367
    %v2369 = vpop.xlane.xlu0 %2368
    %v2370 = vsel %vm404, %v2108, 0.0
    %2371 = vadd.xlane.f32.xlu0 %v2370
    %v2372 = vpop.xlane.xlu0 %2371
    %v2373 = vsel %vm404, %v2110, 0.0
    %2374 = vadd.xlane.f32.xlu0 %v2373
    %v2375 = vpop.xlane.xlu0 %2374
    %v2376 = vsel %vm404, %v2112, 0.0
    %2377 = vadd.xlane.f32.xlu0 %v2376
    %v2378 = vpop.xlane.xlu0 %2377
    %v2379 = vsel %vm404, %v2114, 0.0
    %2380 = vadd.xlane.f32.xlu0 %v2379
    %v2381 = vpop.xlane.xlu0 %2380
    %v2382 = vsel %vm404, %v2116, 0.0
    %2383 = vadd.xlane.f32.xlu0 %v2382
    %v2384 = vpop.xlane.xlu0 %2383
    %v2385 = vsel %vm404, %v2118, 0.0
    %2386 = vadd.xlane.f32.xlu0 %v2385
    %v2387 = vpop.xlane.xlu0 %2386
    %v2388 = vsel %vm404, %v2120, 0.0
    %2389 = vadd.xlane.f32.xlu0 %v2388
    %v2390 = vpop.xlane.xlu0 %2389
    %v2391 = vsel %vm404, %v2122, 0.0
    %2392 = vadd.xlane.f32.xlu0 %v2391
    %v2393 = vpop.xlane.xlu0 %2392
    %v2394 = vsel %vm404, %v2124, 0.0
    %2395 = vadd.xlane.f32.xlu0 %v2394
    %v2396 = vpop.xlane.xlu0 %2395
    %v2397 = vsel %vm404, %v2126, 0.0
    %2398 = vadd.xlane.f32.xlu0 %v2397
    %v2399 = vpop.xlane.xlu0 %2398
    %v2400 = vsel %vm404, %v2128, 0.0
    %2401 = vadd.xlane.f32.xlu0 %v2400
    %v2402 = vpop.xlane.xlu0 %2401
    %v2403 = vsel %vm404, %v2130, 0.0
    %2404 = vadd.xlane.f32.xlu0 %v2403
    %v2405 = vpop.xlane.xlu0 %2404
    %v2406 = vsel %vm404, %v2132, 0.0
    %2407 = vadd.xlane.f32.xlu0 %v2406
    %v2408 = vpop.xlane.xlu0 %2407
    %v2409 = vsel %vm404, %v2134, 0.0
    %2410 = vadd.xlane.f32.xlu0 %v2409
    %v2411 = vpop.xlane.xlu0 %2410
    %v2412 = vsel %vm404, %v2136, 0.0
    %2413 = vadd.xlane.f32.xlu0 %v2412
    %v2414 = vpop.xlane.xlu0 %2413
    %v2415 = vsel %vm404, %v2138, 0.0
    %2416 = vadd.xlane.f32.xlu0 %v2415
    %v2417 = vpop.xlane.xlu0 %2416
    %v2418 = vsel %vm404, %v2140, 0.0
    %2419 = vadd.xlane.f32.xlu0 %v2418
    %v2420 = vpop.xlane.xlu0 %2419
    %v2421 = vsel %vm404, %v2142, 0.0
    %2422 = vadd.xlane.f32.xlu0 %v2421
    %v2423 = vpop.xlane.xlu0 %2422
    %v2424 = vsel %vm404, %v2144, 0.0
    %2425 = vadd.xlane.f32.xlu0 %v2424
    %v2426 = vpop.xlane.xlu0 %2425
    %v2427 = vsel %vm404, %v2146, 0.0
    %2428 = vadd.xlane.f32.xlu0 %v2427
    %v2429 = vpop.xlane.xlu0 %2428
    %v2430 = vsel %vm404, %v2148, 0.0
    %2431 = vadd.xlane.f32.xlu0 %v2430
    %v2432 = vpop.xlane.xlu0 %2431
    %v2433 = vsel %vm404, %v2150, 0.0
    %2434 = vadd.xlane.f32.xlu0 %v2433
    %v2435 = vpop.xlane.xlu0 %2434
    %v2436 = vsel %vm404, %v2152, 0.0
    %2437 = vadd.xlane.f32.xlu0 %v2436
    %v2438 = vpop.xlane.xlu0 %2437
    %v2439 = vsel %vm404, %v2154, 0.0
    %2440 = vadd.xlane.f32.xlu0 %v2439
    %v2441 = vpop.xlane.xlu0 %2440
    %v2442 = vsel %vm404, %v2156, 0.0
    %2443 = vadd.xlane.f32.xlu0 %v2442
    %v2444 = vpop.xlane.xlu0 %2443
    %v2445 = vsel %vm404, %v2158, 0.0
    %2446 = vadd.xlane.f32.xlu0 %v2445
    %v2447 = vpop.xlane.xlu0 %2446
    %v2448 = vsel %vm404, %v2160, 0.0
    %2449 = vadd.xlane.f32.xlu0 %v2448
    %v2450 = vpop.xlane.xlu0 %2449
    %v2451 = vsel %vm404, %v2162, 0.0
    %2452 = vadd.xlane.f32.xlu0 %v2451
    %v2453 = vpop.xlane.xlu0 %2452
    %v2454 = vsel %vm404, %v2164, 0.0
    %2455 = vadd.xlane.f32.xlu0 %v2454
    %v2456 = vpop.xlane.xlu0 %2455
    %v2457 = vsel %vm404, %v2166, 0.0
    %2458 = vadd.xlane.f32.xlu0 %v2457
    %v2459 = vpop.xlane.xlu0 %2458
    %v2460 = vsel %vm404, %v2168, 0.0
    %2461 = vadd.xlane.f32.xlu0 %v2460
    %v2462 = vpop.xlane.xlu0 %2461
    %v2463 = vrcp.pop %v2171
    %v2464 = vrcp.pop %v2174
    %v2465 = vrcp.pop %v2177
    %v2466 = vrcp.pop %v2180
    %v2467 = vrcp.pop %v2183
    %v2468 = vrcp.pop %v2186
    %v2469 = vrcp.pop %v2189
    %v2470 = vrcp.pop %v2192
    %v2471 = vrcp.pop %v2195
    %v2472 = vrcp.pop %v2198
    %v2473 = vrcp.pop %v2201
    %v2474 = vrcp.pop %v2204
    %v2475 = vrcp.pop %v2207
    %v2476 = vrcp.pop %v2210
    %v2477 = vrcp.pop %v2213
    %v2478 = vrcp.pop %v2216
    %v2479 = vrcp.pop %v2219
    %v2480 = vrcp.pop %v2222
    %v2481 = vrcp.pop %v2225
    %v2482 = vrcp.pop %v2228
    %v2483 = vrcp.pop %v2231
    %v2484 = vrcp.pop %v2234
    %v2485 = vrcp.pop %v2237
    %v2486 = vrcp.pop %v2240
    %v2487 = vrcp.pop %v2243
    %v2488 = vrcp.pop %v2246
    %v2489 = vrcp.pop %v2249
    %v2490 = vrcp.pop %v2252
    %v2491 = vrcp.pop %v2255
    %v2492 = vrcp.pop %v2258
    %v2493 = vrcp.pop %v2261
    %v2494 = vrcp.pop %v2264
    %v2495 = vrcp.pop %v2267
    %v2496 = vrcp.pop %v2270
    %v2497 = vrcp.pop %v2273
    %v2498 = vrcp.pop %v2276
    %v2499 = vrcp.pop %v2279
    %v2500 = vrcp.pop %v2282
    %v2501 = vrcp.pop %v2285
    %v2502 = vrcp.pop %v2288
    %v2503 = vrcp.pop %v2291
    %v2504 = vrcp.pop %v2294
    %v2505 = vrcp.pop %v2297
    %v2506 = vrcp.pop %v2300
    %v2507 = vrcp.pop %v2303
    %v2508 = vrcp.pop %v2306
    %v2509 = vrcp.pop %v2309
    %v2510 = vrcp.pop %v2312
    %v2511 = vrcp.pop %v2315
    %v2512 = vrcp.pop %v2318
    %v2513 = vrcp.pop %v2321
    %v2514 = vrcp.pop %v2324
    %v2515 = vrcp.pop %v2327
    %v2516 = vrcp.pop %v2330
    %v2517 = vrcp.pop %v2333
    %v2518 = vrcp.pop %v2336
    %v2519 = vrcp.pop %v2339
    %v2520 = vrcp.pop %v2342
    %v2521 = vrcp.pop %v2345
    %v2522 = vrcp.pop %v2348
    %v2523 = vrcp.pop %v2351
    %v2524 = vrcp.pop %v2354
    %v2525 = vrcp.pop %v2357
    %v2526 = vrcp.pop %v2360
    %v2527 = vrcp.pop %v2363
    %v2528 = vrcp.pop %v2366
    %v2529 = vrcp.pop %v2369
    %v2530 = vrcp.pop %v2372
    %v2531 = vrcp.pop %v2375
    %v2532 = vrcp.pop %v2378
    %v2533 = vrcp.pop %v2381
    %v2534 = vrcp.pop %v2384
    %v2535 = vrcp.pop %v2387
    %v2536 = vrcp.pop %v2390
    %v2537 = vrcp.pop %v2393
    %v2538 = vrcp.pop %v2396
    %v2539 = vrcp.pop %v2399
    %v2540 = vrcp.pop %v2402
    %v2541 = vrcp.pop %v2405
    %v2542 = vrcp.pop %v2408
    %v2543 = vrcp.pop %v2411
    %v2544 = vrcp.pop %v2414
    %v2545 = vrcp.pop %v2417
    %v2546 = vrcp.pop %v2420
    %v2547 = vrcp.pop %v2423
    %v2548 = vrcp.pop %v2426
    %v2549 = vrcp.pop %v2429
    %v2550 = vrcp.pop %v2432
    %v2551 = vrcp.pop %v2435
    %v2552 = vrcp.pop %v2438
    %v2553 = vrcp.pop %v2441
    %v2554 = vrcp.pop %v2444
    %v2555 = vrcp.pop %v2447
    %v2556 = vrcp.pop %v2450
    %v2557 = vrcp.pop %v2453
    %v2558 = vrcp.pop %v2456
    %v2559 = vrcp.pop %v2459
    %v2560 = vrcp.pop %v2462
    %v2561 = vmul.f32 %v1974, %v2463
    %v2562 = vmul.f32 %v1976, %v2464
    %v2563 = vmul.f32 %v1978, %v2465
    %v2564 = vmul.f32 %v1980, %v2466
    %v2565 = vmul.f32 %v1982, %v2467
    %v2566 = vmul.f32 %v1984, %v2468
    %v2567 = vmul.f32 %v1986, %v2469
    %v2568 = vmul.f32 %v1988, %v2470
    %v2569 = vmul.f32 %v1990, %v2471
    %v2570 = vmul.f32 %v1992, %v2472
    %v2571 = vmul.f32 %v1994, %v2473
    %v2572 = vmul.f32 %v1996, %v2474
    %v2573 = vmul.f32 %v1998, %v2475
    %v2574 = vmul.f32 %v2000, %v2476
    %v2575 = vmul.f32 %v2002, %v2477
    %v2576 = vmul.f32 %v2004, %v2478
    %v2577 = vmul.f32 %v2006, %v2479
    %v2578 = vmul.f32 %v2008, %v2480
    %v2579 = vmul.f32 %v2010, %v2481
    %v2580 = vmul.f32 %v2012, %v2482
    %v2581 = vmul.f32 %v2014, %v2483
    %v2582 = vmul.f32 %v2016, %v2484
    %v2583 = vmul.f32 %v2018, %v2485
    %v2584 = vmul.f32 %v2020, %v2486
    %v2585 = vmul.f32 %v2022, %v2487
    %v2586 = vmul.f32 %v2024, %v2488
    %v2587 = vmul.f32 %v2026, %v2489
    %v2588 = vmul.f32 %v2028, %v2490
    %v2589 = vmul.f32 %v2030, %v2491
    %v2590 = vmul.f32 %v2032, %v2492
    %v2591 = vmul.f32 %v2034, %v2493
    %v2592 = vmul.f32 %v2036, %v2494
    %v2593 = vmul.f32 %v2038, %v2495
    %v2594 = vmul.f32 %v2040, %v2496
    %v2595 = vmul.f32 %v2042, %v2497
    %v2596 = vmul.f32 %v2044, %v2498
    %v2597 = vmul.f32 %v2046, %v2499
    %v2598 = vmul.f32 %v2048, %v2500
    %v2599 = vmul.f32 %v2050, %v2501
    %v2600 = vmul.f32 %v2052, %v2502
    %v2601 = vmul.f32 %v2054, %v2503
    %v2602 = vmul.f32 %v2056, %v2504
    %v2603 = vmul.f32 %v2058, %v2505
    %v2604 = vmul.f32 %v2060, %v2506
    %v2605 = vmul.f32 %v2062, %v2507
    %v2606 = vmul.f32 %v2064, %v2508
    %v2607 = vmul.f32 %v2066, %v2509
    %v2608 = vmul.f32 %v2068, %v2510
    %v2609 = vmul.f32 %v2070, %v2511
    %v2610 = vmul.f32 %v2072, %v2512
    %v2611 = vmul.f32 %v2074, %v2513
    %v2612 = vmul.f32 %v2076, %v2514
    %v2613 = vmul.f32 %v2078, %v2515
    %v2614 = vmul.f32 %v2080, %v2516
    %v2615 = vmul.f32 %v2082, %v2517
    %v2616 = vmul.f32 %v2084, %v2518
    %v2617 = vmul.f32 %v2086, %v2519
    %v2618 = vmul.f32 %v2088, %v2520
    %v2619 = vmul.f32 %v2090, %v2521
    %v2620 = vmul.f32 %v2092, %v2522
    %v2621 = vmul.f32 %v2094, %v2523
    %v2622 = vmul.f32 %v2096, %v2524
    %v2623 = vmul.f32 %v2098, %v2525
    %v2624 = vmul.f32 %v2100, %v2526
    %v2625 = vmul.f32 %v2102, %v2527
    %v2626 = vmul.f32 %v2104, %v2528
    %v2627 = vmul.f32 %v2106, %v2529
    %v2628 = vmul.f32 %v2108, %v2530
    %v2629 = vmul.f32 %v2110, %v2531
    %v2630 = vmul.f32 %v2112, %v2532
    %v2631 = vmul.f32 %v2114, %v2533
    %v2632 = vmul.f32 %v2116, %v2534
    %v2633 = vmul.f32 %v2118, %v2535
    %v2634 = vmul.f32 %v2120, %v2536
    %v2635 = vmul.f32 %v2122, %v2537
    %v2636 = vmul.f32 %v2124, %v2538
    %v2637 = vmul.f32 %v2126, %v2539
    %v2638 = vmul.f32 %v2128, %v2540
    %v2639 = vmul.f32 %v2130, %v2541
    %v2640 = vmul.f32 %v2132, %v2542
    %v2641 = vmul.f32 %v2134, %v2543
    %v2642 = vmul.f32 %v2136, %v2544
    %v2643 = vmul.f32 %v2138, %v2545
    %v2644 = vmul.f32 %v2140, %v2546
    %v2645 = vmul.f32 %v2142, %v2547
    %v2646 = vmul.f32 %v2144, %v2548
    %v2647 = vmul.f32 %v2146, %v2549
    %v2648 = vmul.f32 %v2148, %v2550
    %v2649 = vmul.f32 %v2150, %v2551
    %v2650 = vmul.f32 %v2152, %v2552
    %v2651 = vmul.f32 %v2154, %v2553
    %v2652 = vmul.f32 %v2156, %v2554
    %v2653 = vmul.f32 %v2158, %v2555
    %v2654 = vmul.f32 %v2160, %v2556
    %v2655 = vmul.f32 %v2162, %v2557
    %v2656 = vmul.f32 %v2164, %v2558
    %v2657 = vmul.f32 %v2166, %v2559
    %v2658 = vmul.f32 %v2168, %v2560
    %v2659 = vsub.f32 0.0, %v2561
    %v2660 = vsub.f32 0.0, %v2562
    %v2661 = vsub.f32 0.0, %v2563
    %v2662 = vsub.f32 0.0, %v2564
    %v2663 = vsub.f32 0.0, %v2565
    %v2664 = vsub.f32 0.0, %v2566
    %v2665 = vsub.f32 0.0, %v2567
    %v2666 = vsub.f32 0.0, %v2568
    %v2667 = vsub.f32 0.0, %v2569
    %v2668 = vsub.f32 0.0, %v2570
    %v2669 = vsub.f32 0.0, %v2571
    %v2670 = vsub.f32 0.0, %v2572
    %v2671 = vsub.f32 0.0, %v2573
    %v2672 = vsub.f32 0.0, %v2574
    %v2673 = vsub.f32 0.0, %v2575
    %v2674 = vsub.f32 0.0, %v2576
    %v2675 = vsub.f32 0.0, %v2577
    %v2676 = vsub.f32 0.0, %v2578
    %v2677 = vsub.f32 0.0, %v2579
    %v2678 = vsub.f32 0.0, %v2580
    %v2679 = vsub.f32 0.0, %v2581
    %v2680 = vsub.f32 0.0, %v2582
    %v2681 = vsub.f32 0.0, %v2583
    %v2682 = vsub.f32 0.0, %v2584
    %v2683 = vsub.f32 0.0, %v2585
    %v2684 = vsub.f32 0.0, %v2586
    %v2685 = vsub.f32 0.0, %v2587
    %v2686 = vsub.f32 0.0, %v2588
    %v2687 = vsub.f32 0.0, %v2589
    %v2688 = vsub.f32 0.0, %v2590
    %v2689 = vsub.f32 0.0, %v2591
    %v2690 = vsub.f32 0.0, %v2592
    %v2691 = vsub.f32 0.0, %v2593
    %v2692 = vsub.f32 0.0, %v2594
    %v2693 = vsub.f32 0.0, %v2595
    %v2694 = vsub.f32 0.0, %v2596
    %v2695 = vsub.f32 0.0, %v2597
    %v2696 = vsub.f32 0.0, %v2598
    %v2697 = vsub.f32 0.0, %v2599
    %v2698 = vsub.f32 0.0, %v2600
    %v2699 = vsub.f32 0.0, %v2601
    %v2700 = vsub.f32 0.0, %v2602
    %v2701 = vsub.f32 0.0, %v2603
    %v2702 = vsub.f32 0.0, %v2604
    %v2703 = vsub.f32 0.0, %v2605
    %v2704 = vsub.f32 0.0, %v2606
    %v2705 = vsub.f32 0.0, %v2607
    %v2706 = vsub.f32 0.0, %v2608
    %v2707 = vsub.f32 0.0, %v2609
    %v2708 = vsub.f32 0.0, %v2610
    %v2709 = vsub.f32 0.0, %v2611
    %v2710 = vsub.f32 0.0, %v2612
    %v2711 = vsub.f32 0.0, %v2613
    %v2712 = vsub.f32 0.0, %v2614
    %v2713 = vsub.f32 0.0, %v2615
    %v2714 = vsub.f32 0.0, %v2616
    %v2715 = vsub.f32 0.0, %v2617
    %v2716 = vsub.f32 0.0, %v2618
    %v2717 = vsub.f32 0.0, %v2619
    %v2718 = vsub.f32 0.0, %v2620
    %v2719 = vsub.f32 0.0, %v2621
    %v2720 = vsub.f32 0.0, %v2622
    %v2721 = vsub.f32 0.0, %v2623
    %v2722 = vsub.f32 0.0, %v2624
    %v2723 = vsub.f32 0.0, %v2625
    %v2724 = vsub.f32 0.0, %v2626
    %v2725 = vsub.f32 0.0, %v2627
    %v2726 = vsub.f32 0.0, %v2628
    %v2727 = vsub.f32 0.0, %v2629
    %v2728 = vsub.f32 0.0, %v2630
    %v2729 = vsub.f32 0.0, %v2631
    %v2730 = vsub.f32 0.0, %v2632
    %v2731 = vsub.f32 0.0, %v2633
    %v2732 = vsub.f32 0.0, %v2634
    %v2733 = vsub.f32 0.0, %v2635
    %v2734 = vsub.f32 0.0, %v2636
    %v2735 = vsub.f32 0.0, %v2637
    %v2736 = vsub.f32 0.0, %v2638
    %v2737 = vsub.f32 0.0, %v2639
    %v2738 = vsub.f32 0.0, %v2640
    %v2739 = vsub.f32 0.0, %v2641
    %v2740 = vsub.f32 0.0, %v2642
    %v2741 = vsub.f32 0.0, %v2643
    %v2742 = vsub.f32 0.0, %v2644
    %v2743 = vsub.f32 0.0, %v2645
    %v2744 = vsub.f32 0.0, %v2646
    %v2745 = vsub.f32 0.0, %v2647
    %v2746 = vsub.f32 0.0, %v2648
    %v2747 = vsub.f32 0.0, %v2649
    %v2748 = vsub.f32 0.0, %v2650
    %v2749 = vsub.f32 0.0, %v2651
    %v2750 = vsub.f32 0.0, %v2652
    %v2751 = vsub.f32 0.0, %v2653
    %v2752 = vsub.f32 0.0, %v2654
    %v2753 = vsub.f32 0.0, %v2655
    %v2754 = vsub.f32 0.0, %v2656
    %v2755 = vsub.f32 0.0, %v2657
    %v2756 = vsub.f32 0.0, %v2658
    %v2757 = vmul.f32 %v2659, %v1483
    %v2758 = vmul.f32 %v2660, %v1484
    %v2759 = vmul.f32 %v2661, %v1485
    %v2760 = vmul.f32 %v2662, %v1486
    %v2761 = vmul.f32 %v2663, %v1487
    %v2762 = vmul.f32 %v2664, %v1488
    %v2763 = vmul.f32 %v2665, %v1489
    %v2764 = vmul.f32 %v2666, %v1490
    %v2765 = vmul.f32 %v2667, %v1491
    %v2766 = vmul.f32 %v2668, %v1492
    %v2767 = vmul.f32 %v2669, %v1493
    %v2768 = vmul.f32 %v2670, %v1494
    %v2769 = vmul.f32 %v2671, %v1495
    %v2770 = vmul.f32 %v2672, %v1496
    %v2771 = vmul.f32 %v2673, %v1497
    %v2772 = vmul.f32 %v2674, %v1498
    %v2773 = vmul.f32 %v2675, %v1499
    %v2774 = vmul.f32 %v2676, %v1500
    %v2775 = vmul.f32 %v2677, %v1501
    %v2776 = vmul.f32 %v2678, %v1502
    %v2777 = vmul.f32 %v2679, %v1503
    %v2778 = vmul.f32 %v2680, %v1504
    %v2779 = vmul.f32 %v2681, %v1505
    %v2780 = vmul.f32 %v2682, %v1506
    %v2781 = vmul.f32 %v2683, %v1507
    %v2782 = vmul.f32 %v2684, %v1508
    %v2783 = vmul.f32 %v2685, %v1509
    %v2784 = vmul.f32 %v2686, %v1510
    %v2785 = vmul.f32 %v2687, %v1511
    %v2786 = vmul.f32 %v2688, %v1512
    %v2787 = vmul.f32 %v2689, %v1513
    %v2788 = vmul.f32 %v2690, %v1514
    %v2789 = vmul.f32 %v2691, %v1515
    %v2790 = vmul.f32 %v2692, %v1516
    %v2791 = vmul.f32 %v2693, %v1517
    %v2792 = vmul.f32 %v2694, %v1518
    %v2793 = vmul.f32 %v2695, %v1519
    %v2794 = vmul.f32 %v2696, %v1520
    %v2795 = vmul.f32 %v2697, %v1521
    %v2796 = vmul.f32 %v2698, %v1522
    %v2797 = vmul.f32 %v2699, %v1523
    %v2798 = vmul.f32 %v2700, %v1524
    %v2799 = vmul.f32 %v2701, %v1525
    %v2800 = vmul.f32 %v2702, %v1526
    %v2801 = vmul.f32 %v2703, %v1527
    %v2802 = vmul.f32 %v2704, %v1528
    %v2803 = vmul.f32 %v2705, %v1529
    %v2804 = vmul.f32 %v2706, %v1530
    %v2805 = vmul.f32 %v2707, %v1531
    %v2806 = vmul.f32 %v2708, %v1532
    %v2807 = vmul.f32 %v2709, %v1533
    %v2808 = vmul.f32 %v2710, %v1534
    %v2809 = vmul.f32 %v2711, %v1535
    %v2810 = vmul.f32 %v2712, %v1536
    %v2811 = vmul.f32 %v2713, %v1537
    %v2812 = vmul.f32 %v2714, %v1538
    %v2813 = vmul.f32 %v2715, %v1539
    %v2814 = vmul.f32 %v2716, %v1540
    %v2815 = vmul.f32 %v2717, %v1541
    %v2816 = vmul.f32 %v2718, %v1542
    %v2817 = vmul.f32 %v2719, %v1543
    %v2818 = vmul.f32 %v2720, %v1544
    %v2819 = vmul.f32 %v2721, %v1545
    %v2820 = vmul.f32 %v2722, %v1546
    %v2821 = vmul.f32 %v2723, %v1547
    %v2822 = vmul.f32 %v2724, %v1548
    %v2823 = vmul.f32 %v2725, %v1549
    %v2824 = vmul.f32 %v2726, %v1550
    %v2825 = vmul.f32 %v2727, %v1551
    %v2826 = vmul.f32 %v2728, %v1552
    %v2827 = vmul.f32 %v2729, %v1553
    %v2828 = vmul.f32 %v2730, %v1554
    %v2829 = vmul.f32 %v2731, %v1555
    %v2830 = vmul.f32 %v2732, %v1556
    %v2831 = vmul.f32 %v2733, %v1557
    %v2832 = vmul.f32 %v2734, %v1558
    %v2833 = vmul.f32 %v2735, %v1559
    %v2834 = vmul.f32 %v2736, %v1560
    %v2835 = vmul.f32 %v2737, %v1561
    %v2836 = vmul.f32 %v2738, %v1562
    %v2837 = vmul.f32 %v2739, %v1563
    %v2838 = vmul.f32 %v2740, %v1564
    %v2839 = vmul.f32 %v2741, %v1565
    %v2840 = vmul.f32 %v2742, %v1566
    %v2841 = vmul.f32 %v2743, %v1567
    %v2842 = vmul.f32 %v2744, %v1568
    %v2843 = vmul.f32 %v2745, %v1569
    %v2844 = vmul.f32 %v2746, %v1570
    %v2845 = vmul.f32 %v2747, %v1571
    %v2846 = vmul.f32 %v2748, %v1572
    %v2847 = vmul.f32 %v2749, %v1573
    %v2848 = vmul.f32 %v2750, %v1574
    %v2849 = vmul.f32 %v2751, %v1575
    %v2850 = vmul.f32 %v2752, %v1576
    %v2851 = vmul.f32 %v2753, %v1577
    %v2852 = vmul.f32 %v2754, %v1578
    %v2853 = vmul.f32 %v2755, %v1579
    %v2854 = vmul.f32 %v2756, %v1580
    %v2855 = vsel %vm404, %v2757, 0.0
    %2856 = vadd.xlane.f32.xlu0 %v2855
    %v2857 = vpop.xlane.xlu0 %2856
    %v2858 = vsel %vm404, %v2758, 0.0
    %2859 = vadd.xlane.f32.xlu0 %v2858
    %v2860 = vpop.xlane.xlu0 %2859
    %v2861 = vsel %vm404, %v2759, 0.0
    %2862 = vadd.xlane.f32.xlu0 %v2861
    %v2863 = vpop.xlane.xlu0 %2862
    %v2864 = vsel %vm404, %v2760, 0.0
    %2865 = vadd.xlane.f32.xlu0 %v2864
    %v2866 = vpop.xlane.xlu0 %2865
    %v2867 = vsel %vm404, %v2761, 0.0
    %2868 = vadd.xlane.f32.xlu0 %v2867
    %v2869 = vpop.xlane.xlu0 %2868
    %v2870 = vsel %vm404, %v2762, 0.0
    %2871 = vadd.xlane.f32.xlu0 %v2870
    %v2872 = vpop.xlane.xlu0 %2871
    %v2873 = vsel %vm404, %v2763, 0.0
    %2874 = vadd.xlane.f32.xlu0 %v2873
    %v2875 = vpop.xlane.xlu0 %2874
    %v2876 = vsel %vm404, %v2764, 0.0
    %2877 = vadd.xlane.f32.xlu0 %v2876
    %v2878 = vpop.xlane.xlu0 %2877
    %v2879 = vsel %vm404, %v2765, 0.0
    %2880 = vadd.xlane.f32.xlu0 %v2879
    %v2881 = vpop.xlane.xlu0 %2880
    %v2882 = vsel %vm404, %v2766, 0.0
    %2883 = vadd.xlane.f32.xlu0 %v2882
    %v2884 = vpop.xlane.xlu0 %2883
    %v2885 = vsel %vm404, %v2767, 0.0
    %2886 = vadd.xlane.f32.xlu0 %v2885
    %v2887 = vpop.xlane.xlu0 %2886
    %v2888 = vsel %vm404, %v2768, 0.0
    %2889 = vadd.xlane.f32.xlu0 %v2888
    %v2890 = vpop.xlane.xlu0 %2889
    %v2891 = vsel %vm404, %v2769, 0.0
    %2892 = vadd.xlane.f32.xlu0 %v2891
    %v2893 = vpop.xlane.xlu0 %2892
    %v2894 = vsel %vm404, %v2770, 0.0
    %2895 = vadd.xlane.f32.xlu0 %v2894
    %v2896 = vpop.xlane.xlu0 %2895
    %v2897 = vsel %vm404, %v2771, 0.0
    %2898 = vadd.xlane.f32.xlu0 %v2897
    %v2899 = vpop.xlane.xlu0 %2898
    %v2900 = vsel %vm404, %v2772, 0.0
    %2901 = vadd.xlane.f32.xlu0 %v2900
    %v2902 = vpop.xlane.xlu0 %2901
    %v2903 = vsel %vm404, %v2773, 0.0
    %2904 = vadd.xlane.f32.xlu0 %v2903
    %v2905 = vpop.xlane.xlu0 %2904
    %v2906 = vsel %vm404, %v2774, 0.0
    %2907 = vadd.xlane.f32.xlu0 %v2906
    %v2908 = vpop.xlane.xlu0 %2907
    %v2909 = vsel %vm404, %v2775, 0.0
    %2910 = vadd.xlane.f32.xlu0 %v2909
    %v2911 = vpop.xlane.xlu0 %2910
    %v2912 = vsel %vm404, %v2776, 0.0
    %2913 = vadd.xlane.f32.xlu0 %v2912
    %v2914 = vpop.xlane.xlu0 %2913
    %v2915 = vsel %vm404, %v2777, 0.0
    %2916 = vadd.xlane.f32.xlu0 %v2915
    %v2917 = vpop.xlane.xlu0 %2916
    %v2918 = vsel %vm404, %v2778, 0.0
    %2919 = vadd.xlane.f32.xlu0 %v2918
    %v2920 = vpop.xlane.xlu0 %2919
    %v2921 = vsel %vm404, %v2779, 0.0
    %2922 = vadd.xlane.f32.xlu0 %v2921
    %v2923 = vpop.xlane.xlu0 %2922
    %v2924 = vsel %vm404, %v2780, 0.0
    %2925 = vadd.xlane.f32.xlu0 %v2924
    %v2926 = vpop.xlane.xlu0 %2925
    %v2927 = vsel %vm404, %v2781, 0.0
    %2928 = vadd.xlane.f32.xlu0 %v2927
    %v2929 = vpop.xlane.xlu0 %2928
    %v2930 = vsel %vm404, %v2782, 0.0
    %2931 = vadd.xlane.f32.xlu0 %v2930
    %v2932 = vpop.xlane.xlu0 %2931
    %v2933 = vsel %vm404, %v2783, 0.0
    %2934 = vadd.xlane.f32.xlu0 %v2933
    %v2935 = vpop.xlane.xlu0 %2934
    %v2936 = vsel %vm404, %v2784, 0.0
    %2937 = vadd.xlane.f32.xlu0 %v2936
    %v2938 = vpop.xlane.xlu0 %2937
    %v2939 = vsel %vm404, %v2785, 0.0
    %2940 = vadd.xlane.f32.xlu0 %v2939
    %v2941 = vpop.xlane.xlu0 %2940
    %v2942 = vsel %vm404, %v2786, 0.0
    %2943 = vadd.xlane.f32.xlu0 %v2942
    %v2944 = vpop.xlane.xlu0 %2943
    %v2945 = vsel %vm404, %v2787, 0.0
    %2946 = vadd.xlane.f32.xlu0 %v2945
    %v2947 = vpop.xlane.xlu0 %2946
    %v2948 = vsel %vm404, %v2788, 0.0
    %2949 = vadd.xlane.f32.xlu0 %v2948
    %v2950 = vpop.xlane.xlu0 %2949
    %v2951 = vsel %vm404, %v2789, 0.0
    %2952 = vadd.xlane.f32.xlu0 %v2951
    %v2953 = vpop.xlane.xlu0 %2952
    %v2954 = vsel %vm404, %v2790, 0.0
    %2955 = vadd.xlane.f32.xlu0 %v2954
    %v2956 = vpop.xlane.xlu0 %2955
    %v2957 = vsel %vm404, %v2791, 0.0
    %2958 = vadd.xlane.f32.xlu0 %v2957
    %v2959 = vpop.xlane.xlu0 %2958
    %v2960 = vsel %vm404, %v2792, 0.0
    %2961 = vadd.xlane.f32.xlu0 %v2960
    %v2962 = vpop.xlane.xlu0 %2961
    %v2963 = vsel %vm404, %v2793, 0.0
    %2964 = vadd.xlane.f32.xlu0 %v2963
    %v2965 = vpop.xlane.xlu0 %2964
    %v2966 = vsel %vm404, %v2794, 0.0
    %2967 = vadd.xlane.f32.xlu0 %v2966
    %v2968 = vpop.xlane.xlu0 %2967
    %v2969 = vsel %vm404, %v2795, 0.0
    %2970 = vadd.xlane.f32.xlu0 %v2969
    %v2971 = vpop.xlane.xlu0 %2970
    %v2972 = vsel %vm404, %v2796, 0.0
    %2973 = vadd.xlane.f32.xlu0 %v2972
    %v2974 = vpop.xlane.xlu0 %2973
    %v2975 = vsel %vm404, %v2797, 0.0
    %2976 = vadd.xlane.f32.xlu0 %v2975
    %v2977 = vpop.xlane.xlu0 %2976
    %v2978 = vsel %vm404, %v2798, 0.0
    %2979 = vadd.xlane.f32.xlu0 %v2978
    %v2980 = vpop.xlane.xlu0 %2979
    %v2981 = vsel %vm404, %v2799, 0.0
    %2982 = vadd.xlane.f32.xlu0 %v2981
    %v2983 = vpop.xlane.xlu0 %2982
    %v2984 = vsel %vm404, %v2800, 0.0
    %2985 = vadd.xlane.f32.xlu0 %v2984
    %v2986 = vpop.xlane.xlu0 %2985
    %v2987 = vsel %vm404, %v2801, 0.0
    %2988 = vadd.xlane.f32.xlu0 %v2987
    %v2989 = vpop.xlane.xlu0 %2988
    %v2990 = vsel %vm404, %v2802, 0.0
    %2991 = vadd.xlane.f32.xlu0 %v2990
    %v2992 = vpop.xlane.xlu0 %2991
    %v2993 = vsel %vm404, %v2803, 0.0
    %2994 = vadd.xlane.f32.xlu0 %v2993
    %v2995 = vpop.xlane.xlu0 %2994
    %v2996 = vsel %vm404, %v2804, 0.0
    %2997 = vadd.xlane.f32.xlu0 %v2996
    %v2998 = vpop.xlane.xlu0 %2997
    %v2999 = vsel %vm404, %v2805, 0.0
    %3000 = vadd.xlane.f32.xlu0 %v2999
    %v3001 = vpop.xlane.xlu0 %3000
    %v3002 = vsel %vm404, %v2806, 0.0
    %3003 = vadd.xlane.f32.xlu0 %v3002
    %v3004 = vpop.xlane.xlu0 %3003
    %v3005 = vsel %vm404, %v2807, 0.0
    %3006 = vadd.xlane.f32.xlu0 %v3005
    %v3007 = vpop.xlane.xlu0 %3006
    %v3008 = vsel %vm404, %v2808, 0.0
    %3009 = vadd.xlane.f32.xlu0 %v3008
    %v3010 = vpop.xlane.xlu0 %3009
    %v3011 = vsel %vm404, %v2809, 0.0
    %3012 = vadd.xlane.f32.xlu0 %v3011
    %v3013 = vpop.xlane.xlu0 %3012
    %v3014 = vsel %vm404, %v2810, 0.0
    %3015 = vadd.xlane.f32.xlu0 %v3014
    %v3016 = vpop.xlane.xlu0 %3015
    %v3017 = vsel %vm404, %v2811, 0.0
    %3018 = vadd.xlane.f32.xlu0 %v3017
    %v3019 = vpop.xlane.xlu0 %3018
    %v3020 = vsel %vm404, %v2812, 0.0
    %3021 = vadd.xlane.f32.xlu0 %v3020
    %v3022 = vpop.xlane.xlu0 %3021
    %v3023 = vsel %vm404, %v2813, 0.0
    %3024 = vadd.xlane.f32.xlu0 %v3023
    %v3025 = vpop.xlane.xlu0 %3024
    %v3026 = vsel %vm404, %v2814, 0.0
    %3027 = vadd.xlane.f32.xlu0 %v3026
    %v3028 = vpop.xlane.xlu0 %3027
    %v3029 = vsel %vm404, %v2815, 0.0
    %3030 = vadd.xlane.f32.xlu0 %v3029
    %v3031 = vpop.xlane.xlu0 %3030
    %v3032 = vsel %vm404, %v2816, 0.0
    %3033 = vadd.xlane.f32.xlu0 %v3032
    %v3034 = vpop.xlane.xlu0 %3033
    %v3035 = vsel %vm404, %v2817, 0.0
    %3036 = vadd.xlane.f32.xlu0 %v3035
    %v3037 = vpop.xlane.xlu0 %3036
    %v3038 = vsel %vm404, %v2818, 0.0
    %3039 = vadd.xlane.f32.xlu0 %v3038
    %v3040 = vpop.xlane.xlu0 %3039
    %v3041 = vsel %vm404, %v2819, 0.0
    %3042 = vadd.xlane.f32.xlu0 %v3041
    %v3043 = vpop.xlane.xlu0 %3042
    %v3044 = vsel %vm404, %v2820, 0.0
    %3045 = vadd.xlane.f32.xlu0 %v3044
    %v3046 = vpop.xlane.xlu0 %3045
    %v3047 = vsel %vm404, %v2821, 0.0
    %3048 = vadd.xlane.f32.xlu0 %v3047
    %v3049 = vpop.xlane.xlu0 %3048
    %v3050 = vsel %vm404, %v2822, 0.0
    %3051 = vadd.xlane.f32.xlu0 %v3050
    %v3052 = vpop.xlane.xlu0 %3051
    %v3053 = vsel %vm404, %v2823, 0.0
    %3054 = vadd.xlane.f32.xlu0 %v3053
    %v3055 = vpop.xlane.xlu0 %3054
    %v3056 = vsel %vm404, %v2824, 0.0
    %3057 = vadd.xlane.f32.xlu0 %v3056
    %v3058 = vpop.xlane.xlu0 %3057
    %v3059 = vsel %vm404, %v2825, 0.0
    %3060 = vadd.xlane.f32.xlu0 %v3059
    %v3061 = vpop.xlane.xlu0 %3060
    %v3062 = vsel %vm404, %v2826, 0.0
    %3063 = vadd.xlane.f32.xlu0 %v3062
    %v3064 = vpop.xlane.xlu0 %3063
    %v3065 = vsel %vm404, %v2827, 0.0
    %3066 = vadd.xlane.f32.xlu0 %v3065
    %v3067 = vpop.xlane.xlu0 %3066
    %v3068 = vsel %vm404, %v2828, 0.0
    %3069 = vadd.xlane.f32.xlu0 %v3068
    %v3070 = vpop.xlane.xlu0 %3069
    %v3071 = vsel %vm404, %v2829, 0.0
    %3072 = vadd.xlane.f32.xlu0 %v3071
    %v3073 = vpop.xlane.xlu0 %3072
    %v3074 = vsel %vm404, %v2830, 0.0
    %3075 = vadd.xlane.f32.xlu0 %v3074
    %v3076 = vpop.xlane.xlu0 %3075
    %v3077 = vsel %vm404, %v2831, 0.0
    %3078 = vadd.xlane.f32.xlu0 %v3077
    %v3079 = vpop.xlane.xlu0 %3078
    %v3080 = vsel %vm404, %v2832, 0.0
    %3081 = vadd.xlane.f32.xlu0 %v3080
    %v3082 = vpop.xlane.xlu0 %3081
    %v3083 = vsel %vm404, %v2833, 0.0
    %3084 = vadd.xlane.f32.xlu0 %v3083
    %v3085 = vpop.xlane.xlu0 %3084
    %v3086 = vsel %vm404, %v2834, 0.0
    %3087 = vadd.xlane.f32.xlu0 %v3086
    %v3088 = vpop.xlane.xlu0 %3087
    %v3089 = vsel %vm404, %v2835, 0.0
    %3090 = vadd.xlane.f32.xlu0 %v3089
    %v3091 = vpop.xlane.xlu0 %3090
    %v3092 = vsel %vm404, %v2836, 0.0
    %3093 = vadd.xlane.f32.xlu0 %v3092
    %v3094 = vpop.xlane.xlu0 %3093
    %v3095 = vsel %vm404, %v2837, 0.0
    %3096 = vadd.xlane.f32.xlu0 %v3095
    %v3097 = vpop.xlane.xlu0 %3096
    %v3098 = vsel %vm404, %v2838, 0.0
    %3099 = vadd.xlane.f32.xlu0 %v3098
    %v3100 = vpop.xlane.xlu0 %3099
    %v3101 = vsel %vm404, %v2839, 0.0
    %3102 = vadd.xlane.f32.xlu0 %v3101
    %v3103 = vpop.xlane.xlu0 %3102
    %v3104 = vsel %vm404, %v2840, 0.0
    %3105 = vadd.xlane.f32.xlu0 %v3104
    %v3106 = vpop.xlane.xlu0 %3105
    %v3107 = vsel %vm404, %v2841, 0.0
    %3108 = vadd.xlane.f32.xlu0 %v3107
    %v3109 = vpop.xlane.xlu0 %3108
    %v3110 = vsel %vm404, %v2842, 0.0
    %3111 = vadd.xlane.f32.xlu0 %v3110
    %v3112 = vpop.xlane.xlu0 %3111
    %v3113 = vsel %vm404, %v2843, 0.0
    %3114 = vadd.xlane.f32.xlu0 %v3113
    %v3115 = vpop.xlane.xlu0 %3114
    %v3116 = vsel %vm404, %v2844, 0.0
    %3117 = vadd.xlane.f32.xlu0 %v3116
    %v3118 = vpop.xlane.xlu0 %3117
    %v3119 = vsel %vm404, %v2845, 0.0
    %3120 = vadd.xlane.f32.xlu0 %v3119
    %v3121 = vpop.xlane.xlu0 %3120
    %v3122 = vsel %vm404, %v2846, 0.0
    %3123 = vadd.xlane.f32.xlu0 %v3122
    %v3124 = vpop.xlane.xlu0 %3123
    %v3125 = vsel %vm404, %v2847, 0.0
    %3126 = vadd.xlane.f32.xlu0 %v3125
    %v3127 = vpop.xlane.xlu0 %3126
    %v3128 = vsel %vm404, %v2848, 0.0
    %3129 = vadd.xlane.f32.xlu0 %v3128
    %v3130 = vpop.xlane.xlu0 %3129
    %v3131 = vsel %vm404, %v2849, 0.0
    %3132 = vadd.xlane.f32.xlu0 %v3131
    %v3133 = vpop.xlane.xlu0 %3132
    %v3134 = vsel %vm404, %v2850, 0.0
    %3135 = vadd.xlane.f32.xlu0 %v3134
    %v3136 = vpop.xlane.xlu0 %3135
    %v3137 = vsel %vm404, %v2851, 0.0
    %3138 = vadd.xlane.f32.xlu0 %v3137
    %v3139 = vpop.xlane.xlu0 %3138
    %v3140 = vsel %vm404, %v2852, 0.0
    %3141 = vadd.xlane.f32.xlu0 %v3140
    %v3142 = vpop.xlane.xlu0 %3141
    %v3143 = vsel %vm404, %v2853, 0.0
    %3144 = vadd.xlane.f32.xlu0 %v3143
    %v3145 = vpop.xlane.xlu0 %3144
    %v3146 = vsel %vm404, %v2854, 0.0
    %3147 = vadd.xlane.f32.xlu0 %v3146
    %v3148 = vpop.xlane.xlu0 %3147
    %vm3149 = vcmask 7168
    %v3150 = vsel %vm3149, %v2857, 0.0
    %v3151 = vsel %vm3149, %v2860, 0.0
    %v3152 = vadd.f32 %v3150, %v3151
    %v3153 = vsel %vm3149, %v2863, 0.0
    %v3154 = vadd.f32 %v3152, %v3153
    %v3155 = vsel %vm3149, %v2866, 0.0
    %v3156 = vadd.f32 %v3154, %v3155
    %v3157 = vsel %vm3149, %v2869, 0.0
    %v3158 = vadd.f32 %v3156, %v3157
    %v3159 = vsel %vm3149, %v2872, 0.0
    %v3160 = vadd.f32 %v3158, %v3159
    %v3161 = vsel %vm3149, %v2875, 0.0
    %v3162 = vadd.f32 %v3160, %v3161
    %v3163 = vsel %vm3149, %v2878, 0.0
    %v3164 = vadd.f32 %v3162, %v3163
    %v3165 = vsel %vm3149, %v2881, 0.0
    %v3166 = vadd.f32 %v3164, %v3165
    %v3167 = vsel %vm3149, %v2884, 0.0
    %v3168 = vadd.f32 %v3166, %v3167
    %v3169 = vsel %vm3149, %v2887, 0.0
    %v3170 = vadd.f32 %v3168, %v3169
    %v3171 = vsel %vm3149, %v2890, 0.0
    %v3172 = vadd.f32 %v3170, %v3171
    %v3173 = vsel %vm3149, %v2893, 0.0
    %v3174 = vadd.f32 %v3172, %v3173
    %v3175 = vsel %vm3149, %v2896, 0.0
    %v3176 = vadd.f32 %v3174, %v3175
    %v3177 = vsel %vm3149, %v2899, 0.0
    %v3178 = vadd.f32 %v3176, %v3177
    %v3179 = vsel %vm3149, %v2902, 0.0
    %v3180 = vadd.f32 %v3178, %v3179
    %v3181 = vsel %vm3149, %v2905, 0.0
    %v3182 = vadd.f32 %v3180, %v3181
    %v3183 = vsel %vm3149, %v2908, 0.0
    %v3184 = vadd.f32 %v3182, %v3183
    %v3185 = vsel %vm3149, %v2911, 0.0
    %v3186 = vadd.f32 %v3184, %v3185
    %v3187 = vsel %vm3149, %v2914, 0.0
    %v3188 = vadd.f32 %v3186, %v3187
    %v3189 = vsel %vm3149, %v2917, 0.0
    %v3190 = vadd.f32 %v3188, %v3189
    %v3191 = vsel %vm3149, %v2920, 0.0
    %v3192 = vadd.f32 %v3190, %v3191
    %v3193 = vsel %vm3149, %v2923, 0.0
    %v3194 = vadd.f32 %v3192, %v3193
    %v3195 = vsel %vm3149, %v2926, 0.0
    %v3196 = vadd.f32 %v3194, %v3195
    %v3197 = vsel %vm3149, %v2929, 0.0
    %v3198 = vadd.f32 %v3196, %v3197
    %v3199 = vsel %vm3149, %v2932, 0.0
    %v3200 = vadd.f32 %v3198, %v3199
    %v3201 = vsel %vm3149, %v2935, 0.0
    %v3202 = vadd.f32 %v3200, %v3201
    %v3203 = vsel %vm3149, %v2938, 0.0
    %v3204 = vadd.f32 %v3202, %v3203
    %v3205 = vsel %vm3149, %v2941, 0.0
    %v3206 = vadd.f32 %v3204, %v3205
    %v3207 = vsel %vm3149, %v2944, 0.0
    %v3208 = vadd.f32 %v3206, %v3207
    %v3209 = vsel %vm3149, %v2947, 0.0
    %v3210 = vadd.f32 %v3208, %v3209
    %v3211 = vsel %vm3149, %v2950, 0.0
    %v3212 = vadd.f32 %v3210, %v3211
    %v3213 = vsel %vm3149, %v2953, 0.0
    %v3214 = vadd.f32 %v3212, %v3213
    %v3215 = vsel %vm3149, %v2956, 0.0
    %v3216 = vadd.f32 %v3214, %v3215
    %v3217 = vsel %vm3149, %v2959, 0.0
    %v3218 = vadd.f32 %v3216, %v3217
    %v3219 = vsel %vm3149, %v2962, 0.0
    %v3220 = vadd.f32 %v3218, %v3219
    %v3221 = vsel %vm3149, %v2965, 0.0
    %v3222 = vadd.f32 %v3220, %v3221
    %v3223 = vsel %vm3149, %v2968, 0.0
    %v3224 = vadd.f32 %v3222, %v3223
    %v3225 = vsel %vm3149, %v2971, 0.0
    %v3226 = vadd.f32 %v3224, %v3225
    %v3227 = vsel %vm3149, %v2974, 0.0
    %v3228 = vadd.f32 %v3226, %v3227
    %v3229 = vsel %vm3149, %v2977, 0.0
    %v3230 = vadd.f32 %v3228, %v3229
    %v3231 = vsel %vm3149, %v2980, 0.0
    %v3232 = vadd.f32 %v3230, %v3231
    %v3233 = vsel %vm3149, %v2983, 0.0
    %v3234 = vadd.f32 %v3232, %v3233
    %v3235 = vsel %vm3149, %v2986, 0.0
    %v3236 = vadd.f32 %v3234, %v3235
    %v3237 = vsel %vm3149, %v2989, 0.0
    %v3238 = vadd.f32 %v3236, %v3237
    %v3239 = vsel %vm3149, %v2992, 0.0
    %v3240 = vadd.f32 %v3238, %v3239
    %v3241 = vsel %vm3149, %v2995, 0.0
    %v3242 = vadd.f32 %v3240, %v3241
    %v3243 = vsel %vm3149, %v2998, 0.0
    %v3244 = vadd.f32 %v3242, %v3243
    %v3245 = vsel %vm3149, %v3001, 0.0
    %v3246 = vadd.f32 %v3244, %v3245
    %v3247 = vsel %vm3149, %v3004, 0.0
    %v3248 = vadd.f32 %v3246, %v3247
    %v3249 = vsel %vm3149, %v3007, 0.0
    %v3250 = vadd.f32 %v3248, %v3249
    %v3251 = vsel %vm3149, %v3010, 0.0
    %v3252 = vadd.f32 %v3250, %v3251
    %v3253 = vsel %vm3149, %v3013, 0.0
    %v3254 = vadd.f32 %v3252, %v3253
    %v3255 = vsel %vm3149, %v3016, 0.0
    %v3256 = vadd.f32 %v3254, %v3255
    %v3257 = vsel %vm3149, %v3019, 0.0
    %v3258 = vadd.f32 %v3256, %v3257
    %v3259 = vsel %vm3149, %v3022, 0.0
    %v3260 = vadd.f32 %v3258, %v3259
    %v3261 = vsel %vm3149, %v3025, 0.0
    %v3262 = vadd.f32 %v3260, %v3261
    %v3263 = vsel %vm3149, %v3028, 0.0
    %v3264 = vadd.f32 %v3262, %v3263
    %v3265 = vsel %vm3149, %v3031, 0.0
    %v3266 = vadd.f32 %v3264, %v3265
    %v3267 = vsel %vm3149, %v3034, 0.0
    %v3268 = vadd.f32 %v3266, %v3267
    %v3269 = vsel %vm3149, %v3037, 0.0
    %v3270 = vadd.f32 %v3268, %v3269
    %v3271 = vsel %vm3149, %v3040, 0.0
    %v3272 = vadd.f32 %v3270, %v3271
    %v3273 = vsel %vm3149, %v3043, 0.0
    %v3274 = vadd.f32 %v3272, %v3273
    %v3275 = vsel %vm3149, %v3046, 0.0
    %v3276 = vadd.f32 %v3274, %v3275
    %v3277 = vsel %vm3149, %v3049, 0.0
    %v3278 = vadd.f32 %v3276, %v3277
    %v3279 = vsel %vm3149, %v3052, 0.0
    %v3280 = vadd.f32 %v3278, %v3279
    %v3281 = vsel %vm3149, %v3055, 0.0
    %v3282 = vadd.f32 %v3280, %v3281
    %v3283 = vsel %vm3149, %v3058, 0.0
    %v3284 = vadd.f32 %v3282, %v3283
    %v3285 = vsel %vm3149, %v3061, 0.0
    %v3286 = vadd.f32 %v3284, %v3285
    %v3287 = vsel %vm3149, %v3064, 0.0
    %v3288 = vadd.f32 %v3286, %v3287
    %v3289 = vsel %vm3149, %v3067, 0.0
    %v3290 = vadd.f32 %v3288, %v3289
    %v3291 = vsel %vm3149, %v3070, 0.0
    %v3292 = vadd.f32 %v3290, %v3291
    %v3293 = vsel %vm3149, %v3073, 0.0
    %v3294 = vadd.f32 %v3292, %v3293
    %v3295 = vsel %vm3149, %v3076, 0.0
    %v3296 = vadd.f32 %v3294, %v3295
    %v3297 = vsel %vm3149, %v3079, 0.0
    %v3298 = vadd.f32 %v3296, %v3297
    %v3299 = vsel %vm3149, %v3082, 0.0
    %v3300 = vadd.f32 %v3298, %v3299
    %v3301 = vsel %vm3149, %v3085, 0.0
    %v3302 = vadd.f32 %v3300, %v3301
    %v3303 = vsel %vm3149, %v3088, 0.0
    %v3304 = vadd.f32 %v3302, %v3303
    %v3305 = vsel %vm3149, %v3091, 0.0
    %v3306 = vadd.f32 %v3304, %v3305
    %v3307 = vsel %vm3149, %v3094, 0.0
    %v3308 = vadd.f32 %v3306, %v3307
    %v3309 = vsel %vm3149, %v3097, 0.0
    %v3310 = vadd.f32 %v3308, %v3309
    %v3311 = vsel %vm3149, %v3100, 0.0
    %v3312 = vadd.f32 %v3310, %v3311
    %v3313 = vsel %vm3149, %v3103, 0.0
    %v3314 = vadd.f32 %v3312, %v3313
    %v3315 = vsel %vm3149, %v3106, 0.0
    %v3316 = vadd.f32 %v3314, %v3315
    %v3317 = vsel %vm3149, %v3109, 0.0
    %v3318 = vadd.f32 %v3316, %v3317
    %v3319 = vsel %vm3149, %v3112, 0.0
    %v3320 = vadd.f32 %v3318, %v3319
    %v3321 = vsel %vm3149, %v3115, 0.0
    %v3322 = vadd.f32 %v3320, %v3321
    %v3323 = vsel %vm3149, %v3118, 0.0
    %v3324 = vadd.f32 %v3322, %v3323
    %v3325 = vsel %vm3149, %v3121, 0.0
    %v3326 = vadd.f32 %v3324, %v3325
    %v3327 = vsel %vm3149, %v3124, 0.0
    %v3328 = vadd.f32 %v3326, %v3327
    %v3329 = vsel %vm3149, %v3127, 0.0
    %v3330 = vadd.f32 %v3328, %v3329
    %v3331 = vsel %vm3149, %v3130, 0.0
    %v3332 = vadd.f32 %v3330, %v3331
    %v3333 = vsel %vm3149, %v3133, 0.0
    %v3334 = vadd.f32 %v3332, %v3333
    %v3335 = vsel %vm3149, %v3136, 0.0
    %v3336 = vadd.f32 %v3334, %v3335
    %v3337 = vsel %vm3149, %v3139, 0.0
    %v3338 = vadd.f32 %v3336, %v3337
    %v3339 = vsel %vm3149, %v3142, 0.0
    %v3340 = vadd.f32 %v3338, %v3339
    %v3341 = vsel %vm3149, %v3145, 0.0
    %v3342 = vadd.f32 %v3340, %v3341
    %v3343 = vsel %vm3149, %v3148, 0.0
    %v3344 = vadd.f32 %v3342, %v3343
    %3345 = vadd.xlane.f32.xlu0 %v3344
    %v3346 = vpop.xlane.xlu0 %3345
    %v3347 = vrot.slane %v3346, 4
    %v3348 = vadd.f32 %v3346, %v3347
    %v3349 = vrot.slane %v3348, 2
    %v3350 = vadd.f32 %v3348, %v3349
    %v3351 = vrot.slane %v3350, 1
    %v3352 = vadd.f32 %v3350, %v3351
    %s3353 = vtos %v3352
    %v3354 = vstv %s3353
    %v3355 = vmul.f32 %v3354, 0.0012755102
    %vm3356 = vcmask 0
    %3357 = vst.msk [vmem:[#allocation2] sm:$0x1] %vm3356, %v3355
    // Predicated region
    $region10: #{wcl_forward.22} parent=1 // pred_check
      _
    $region11: #{wcl_forward.22} parent=1 // pred_check_branch
      %3359 = sbr.rel (0) target = $region13
    $region12: #{wcl_forward.22} parent=1 // pred_region
      %3361 = vsyncadd [#allocation3], 0
      %s3363 = sshll.u32 [#allocation2], 4
      %s3364 = int_to_ptr.vmem [resolvable:$true] %s3363
      %s3365 = sshll.u32 %s2, 4
      %s3366 = int_to_ptr.hbm [resolvable:$true] %s3365
      %3368 = dma.vmem_to_hbm [thread:$0]  %s3364, 16, %s3366, [#allocation3]
    $region13: #{wcl_forward.22} parent=1 // pred_fallthru
      _
    // Predicated region
    $region14: #{wcl_forward.22} parent=1 // pred_check
      _
    $region15: #{wcl_forward.22} parent=1 // pred_check_branch
      %3370 = sbr.rel (0) target = $region17
    $region16: #{wcl_forward.22} parent=1 // pred_region
      %3372 = dma.done [#allocation3], 16
    $region17: #{wcl_forward.22} parent=1 // pred_fallthru
      _
    %3373 = vsyncpa [#allocation3], 1

</llo_original>
